<compile_context>
chip_gen: v6e
topology: v6e:2x2x1
jax: 0.10.0
libtpu: 0.0.40
codegen_flags: <defaults>
</compile_context>

<pallas_src>
import functools
import math

import jax
import jax.numpy as jnp
from jax.experimental import pallas as pl
from jax.experimental.pallas import tpu as pltpu


# ----------------------------------------------------------------------------
# Kernel A: 3x3 stride-1 "same" conv + bias (+ optional fused residual add)
# ----------------------------------------------------------------------------
def _conv3x3_s1_acc(x_ref, w_ref, b_ref, Ho, Wo):
    Cin = x_ref.shape[-1]
    Cout = w_ref.shape[-1]
    acc = jnp.zeros((Ho * Wo, Cout), jnp.float32)
    for kh in range(3):
        for kw in range(3):
            win = x_ref[:, kh:kh + Ho, kw:kw + Wo, :]            # (1, Ho, Wo, Cin)
            lhs = win.reshape(Ho * Wo, Cin).astype(jnp.bfloat16)
            acc = acc + jnp.dot(lhs, w_ref[kh * 3 + kw],
                                preferred_element_type=jnp.float32)
    return acc + b_ref[...]                                       # (Ho*Wo, Cout) f32


def _conv3x3_s1_kernel(x_ref, w_ref, b_ref, o_ref, *, Ho, Wo):
    acc = _conv3x3_s1_acc(x_ref, w_ref, b_ref, Ho, Wo)
    o_ref[...] = acc[None].astype(o_ref.dtype)


def _conv3x3_s1_res_kernel(x_ref, w_ref, b_ref, r_ref, o_ref, *, Ho, Wo):
    acc = _conv3x3_s1_acc(x_ref, w_ref, b_ref, Ho, Wo)
    o_ref[...] = (acc[None] + r_ref[...]).astype(o_ref.dtype)


def conv3x3_s1(x, w9, b, residual=None):
    """x: (N,H,W,Cin) f32, w9: (9,Cin,Cout) bf16, b: (Cout,) f32 -> (N,H,W,Cout)."""
    N, H, W, Cin = x.shape
    Cout = w9.shape[-1]
    xp = jnp.pad(x, ((0, 0), (1, 1), (1, 1), (0, 0)))             # cheap vs. 9x im2col
    b2 = b.reshape(1, Cout)
    flops = 2 * N * H * W * 9 * Cin * Cout
    bytes_acc = xp.size * 4 + w9.size * 2 + N * H * W * Cout * 4
    if residual is not None:
        bytes_acc += residual.size * 4
    common = dict(
        out_shape=jax.ShapeDtypeStruct((N, H * W, Cout), jnp.float32),
        grid=(N,),
        out_specs=pl.BlockSpec((1, H * W, Cout), lambda n: (n, 0, 0)),
        compiler_params=pltpu.CompilerParams(dimension_semantics=("parallel",)),
        cost_estimate=pl.CostEstimate(flops=flops, transcendentals=0,
                                      bytes_accessed=bytes_acc),
    )
    x_spec = pl.BlockSpec((1, H + 2, W + 2, Cin), lambda n: (n, 0, 0, 0))
    w_spec = pl.BlockSpec((9, Cin, Cout), lambda n: (0, 0, 0))
    b_spec = pl.BlockSpec((1, Cout), lambda n: (0, 0))
    if residual is None:
        out = pl.pallas_call(
            functools.partial(_conv3x3_s1_kernel, Ho=H, Wo=W),
            in_specs=[x_spec, w_spec, b_spec], **common)(xp, w9, b2)
    else:
        r_flat = residual.reshape(N, H * W, Cout)                 # free reshape
        r_spec = pl.BlockSpec((1, H * W, Cout), lambda n: (n, 0, 0))
        out = pl.pallas_call(
            functools.partial(_conv3x3_s1_res_kernel, Ho=H, Wo=W),
            in_specs=[x_spec, w_spec, b_spec, r_spec], **common)(xp, w9, b2, r_flat)
    return out.reshape(N, H, W, Cout)                             # free reshape


# ----------------------------------------------------------------------------
# Kernel B: 3x3 stride-2 conv + bias + InstanceNorm + ReLU (fused epilogue).
# Input is the zero-padded image in a "paired" layout (free row-major reshape):
#   (N, Hp, Wp, Cin) -> (N, Hp/2, 2, Wp/2, 2*Cin)
# so every tap is a contiguous window; the 9 taps fold into 6 (2*Cin, Cout) slabs.
# ----------------------------------------------------------------------------
def _conv3x3_s2_in_relu_kernel(x_ref, w_ref, b_ref, o_ref, *, Ho, Wo, eps):
    C2 = x_ref.shape[-1]
    Cout = w_ref.shape[-1]
    acc = jnp.zeros((Ho * Wo, Cout), jnp.float32)
    for kh in range(3):
        a0, bh = kh // 2, kh % 2
        for kwg in range(2):                                      # kwg=0 -> taps kw=0,1 ; kwg=1 -> kw=2
            win = x_ref[:, a0:a0 + Ho, bh:bh + 1, kwg:kwg + Wo, :]  # (1,Ho,1,Wo,2Cin)
            lhs = win.reshape(Ho * Wo, C2).astype(jnp.bfloat16)
            acc = acc + jnp.dot(lhs, w_ref[kh * 2 + kwg],
                                preferred_element_type=jnp.float32)
    z = acc + b_ref[...]                                          # (Ho*Wo, Cout) f32
    mean = jnp.mean(z, axis=0, keepdims=True)                     # instance norm over HW
    zc = z - mean
    var = jnp.mean(zc * zc, axis=0, keepdims=True)
    y = jnp.maximum(zc * jax.lax.rsqrt(var + eps), 0.0)
    o_ref[...] = y[None].astype(o_ref.dtype)


def _fold_s2_weights(w):
    """w: (3,3,Cin,Cout) f32 -> (6, 2*Cin, Cout) folded for the paired s2 layout."""
    Cin, Cout = w.shape[2], w.shape[3]
    zero = jnp.zeros((Cin, Cout), w.dtype)
    groups = []
    for kh in range(3):
        groups.append(jnp.concatenate([w[kh, 0], w[kh, 1]], axis=0))   # window u0=0
        groups.append(jnp.concatenate([w[kh, 2], zero], axis=0))       # window u0=1
    return jnp.stack(groups, axis=0)


def conv3x3_s2_in_relu(x, w6, b, eps=1e-5):
    """x: (N,H,W,Cin) f32 -> ReLU(IN(conv3x3 stride-2(x)+b)): (N,H/2,W/2,Cout)."""
    N, H, W, Cin = x.shape
    assert H % 2 == 0 and W % 2 == 0
    Ho, Wo = H // 2, W // 2
    Cout = w6.shape[-1]
    xp = jnp.pad(x, ((0, 0), (1, 1), (1, 1), (0, 0)))
    xp = xp.reshape(N, Ho + 1, 2, Wo + 1, 2 * Cin)                # free row-major reshape
    b2 = b.reshape(1, Cout)
    flops = 2 * N * Ho * Wo * (6 * 2 * Cin) * Cout
    bytes_acc = xp.size * 4 + w6.size * 2 + N * Ho * Wo * Cout * 4
    out = pl.pallas_call(
        functools.partial(_conv3x3_s2_in_relu_kernel, Ho=Ho, Wo=Wo, eps=eps),
        out_shape=jax.ShapeDtypeStruct((N, Ho * Wo, Cout), jnp.float32),
        grid=(N,),
        in_specs=[
            pl.BlockSpec((1, Ho + 1, 2, Wo + 1, 2 * Cin), lambda n: (n, 0, 0, 0, 0)),
            pl.BlockSpec((6, 2 * Cin, Cout), lambda n: (0, 0, 0)),
            pl.BlockSpec((1, Cout), lambda n: (0, 0)),
        ],
        out_specs=pl.BlockSpec((1, Ho * Wo, Cout), lambda n: (n, 0, 0)),
        compiler_params=pltpu.CompilerParams(dimension_semantics=("parallel",)),
        cost_estimate=pl.CostEstimate(flops=flops, transcendentals=N * Cout,
                                      bytes_accessed=bytes_acc),
    )(xp, w6, b2)
    return out.reshape(N, Ho, Wo, Cout)


# ----------------------------------------------------------------------------
# Kernel C: InstanceNorm + ReLU on the raw block input, fused with the 1x1
# stride-2 shortcut conv (shares the single HBM read of out_prev).
# Input/normalized output are in the paired layout (N, H/2, 2, W/2, 2C).
# ----------------------------------------------------------------------------
def _in_relu_shortcut_kernel(x_ref, w_ref, b_ref, y_ref, sc_ref, *, H, W, C, eps):
    x = x_ref[...]                                                # (1, H/2, 2, W/2, 2C) f32
    inv_hw = 1.0 / float(H * W)
    s = jnp.sum(x, axis=(1, 2, 3), keepdims=True)                 # (1,1,1,1,2C)
    mean_c = (s[..., :C] + s[..., C:]) * inv_hw                   # per-channel (fold halves)
    mean2 = jnp.concatenate([mean_c, mean_c], axis=-1)
    xc = x - mean2
    ss = jnp.sum(xc * xc, axis=(1, 2, 3), keepdims=True)
    var_c = (ss[..., :C] + ss[..., C:]) * inv_hw
    inv_c = jax.lax.rsqrt(var_c + eps)
    inv2 = jnp.concatenate([inv_c, inv_c], axis=-1)
    y_ref[...] = jnp.maximum(xc * inv2, 0.0).astype(y_ref.dtype)
    # 1x1 stride-2 shortcut on the RAW input: even rows via the b=0 slice, even
    # columns via the zero rows C:2C of the folded weight matrix.
    sub = x[:, :, 0:1, :, :]                                      # (1, H/2, 1, W/2, 2C)
    lhs = sub.reshape((H // 2) * (W // 2), 2 * C).astype(jnp.bfloat16)
    sc = jnp.dot(lhs, w_ref[...], preferred_element_type=jnp.float32) + b_ref[...]
    sc_ref[...] = sc[None].astype(sc_ref.dtype)


def in_relu_shortcut(x, wsc2, bsc, eps=1e-5):
    """x: (N,H,W,C) -> (ReLU(IN(x)) [same shape], 1x1-s2 shortcut conv of x)."""
    N, H, W, C = x.shape
    assert H % 2 == 0 and W % 2 == 0
    H2, W2 = H // 2, W // 2
    Csc = wsc2.shape[-1]
    xp = x.reshape(N, H2, 2, W2, 2 * C)                           # free
    b2 = bsc.reshape(1, Csc)
    y, sc = pl.pallas_call(
        functools.partial(_in_relu_shortcut_kernel, H=H, W=W, C=C, eps=eps),
        out_shape=(jax.ShapeDtypeStruct((N, H2, 2, W2, 2 * C), jnp.float32),
                   jax.ShapeDtypeStruct((N, H2 * W2, Csc), jnp.float32)),
        grid=(N,),
        in_specs=[
            pl.BlockSpec((1, H2, 2, W2, 2 * C), lambda n: (n, 0, 0, 0, 0)),
            pl.BlockSpec((2 * C, Csc), lambda n: (0, 0)),
            pl.BlockSpec((1, Csc), lambda n: (0, 0)),
        ],
        out_specs=(pl.BlockSpec((1, H2, 2, W2, 2 * C), lambda n: (n, 0, 0, 0, 0)),
                   pl.BlockSpec((1, H2 * W2, Csc), lambda n: (n, 0, 0))),
        compiler_params=pltpu.CompilerParams(dimension_semantics=("parallel",)),
    )(xp, wsc2, b2)
    return y.reshape(N, H, W, C), sc.reshape(N, H2, W2, Csc)      # free reshapes


# ----------------------------------------------------------------------------
# Kernel D: plain InstanceNorm + ReLU (used once, at the encoder tail).
# ----------------------------------------------------------------------------
def _in_relu_kernel(x_ref, o_ref, *, eps):
    x = x_ref[...]                                                # (1, H, W, C)
    mean = jnp.mean(x, axis=(1, 2), keepdims=True)
    xc = x - mean
    var = jnp.mean(xc * xc, axis=(1, 2), keepdims=True)
    o_ref[...] = jnp.maximum(xc * jax.lax.rsqrt(var + eps), 0.0).astype(o_ref.dtype)


def instance_norm_relu(x, eps=1e-5):
    N, H, W, C = x.shape
    return pl.pallas_call(
        functools.partial(_in_relu_kernel, eps=eps),
        out_shape=jax.ShapeDtypeStruct((N, H, W, C), jnp.float32),
        grid=(N,),
        in_specs=[pl.BlockSpec((1, H, W, C), lambda n: (n, 0, 0, 0))],
        out_specs=pl.BlockSpec((1, H, W, C), lambda n: (n, 0, 0, 0)),
        compiler_params=pltpu.CompilerParams(dimension_semantics=("parallel",)),
    )(x)


# ----------------------------------------------------------------------------
# Parameter init (deterministic, kaiming_normal_-style) in kernel-ready form:
# weights pre-cast to bf16 and pre-folded for the stride-2 paired layout.
# ----------------------------------------------------------------------------
def _kaiming(key, k, cin, cout):
    std = math.sqrt(2.0 / (cin * k * k))
    return std * jax.random.normal(key, (k, k, cin, cout), jnp.float32)


def init_params(key, in_channels, num_channels_list, kernel_size=3):
    assert kernel_size == 3, "kernels are specialized to 3x3"
    n_blocks = len(num_channels_list) - 1
    keys = jax.random.split(key, 1 + 3 * max(n_blocks, 1))
    ki = 0
    c0 = num_channels_list[0]
    w0 = _kaiming(keys[ki], 3, in_channels, c0); ki += 1
    params = {
        "conv0_w": w0.reshape(9, in_channels, c0).astype(jnp.bfloat16),
        "conv0_b": jnp.zeros((c0,), jnp.float32),
        "blocks": [],
    }
    last = c0
    for i in range(1, len(num_channels_list)):
        cf = num_channels_list[i]
        w1 = _kaiming(keys[ki], 3, last, cf)
        w2 = _kaiming(keys[ki + 1], 3, cf, cf)
        wsc = _kaiming(keys[ki + 2], 1, last, cf).reshape(last, cf)
        ki += 3
        params["blocks"].append({
            "conv1_w": _fold_s2_weights(w1).astype(jnp.bfloat16),     # (6, 2*last, cf)
            "conv1_b": jnp.zeros((cf,), jnp.float32),
            "conv2_w": w2.reshape(9, cf, cf).astype(jnp.bfloat16),
            "conv2_b": jnp.zeros((cf,), jnp.float32),
            # 1x1 s2 shortcut, folded to (2*last, cf): bottom half zero (odd columns).
            "sc_w": jnp.concatenate(
                [wsc, jnp.zeros((last, cf), jnp.float32)], axis=0).astype(jnp.bfloat16),
            "sc_b": jnp.zeros((cf,), jnp.float32),
        })
        last = cf
    return params


# ----------------------------------------------------------------------------
# Encoder forward: NHWC internally, single transpose at entry / exit / skips.
# ----------------------------------------------------------------------------
def encoder_forward(x_nchw, params):
    x = jnp.transpose(x_nchw, (0, 2, 3, 1))                       # once: NCHW -> NHWC
    skips_nhwc = []
    size_hw = x.shape[1:3]

    # Block 0: plain 3x3 stride-1 conv (spatial unchanged -> no skip).
    out = conv3x3_s1(x, params["conv0_w"], params["conv0_b"])
    if out.shape[1:3] != size_hw:
        size_hw = out.shape[1:3]
        skips_nhwc.append(x)

    # Residual subsampling blocks: IN->ReLU->conv(s2)->IN->ReLU->conv(s1) + 1x1(s2) shortcut.
    for bp in params["blocks"]:
        out_prev = out
        h, sc = in_relu_shortcut(out_prev, bp["sc_w"], bp["sc_b"])
        h = conv3x3_s2_in_relu(h, bp["conv1_w"], bp["conv1_b"])
        # dropout p = 0.0 -> identity
        out = conv3x3_s1(h, bp["conv2_w"], bp["conv2_b"], residual=sc)
        if out.shape[1:3] != size_hw:
            size_hw = out.shape[1:3]
            skips_nhwc.append(out_prev)                           # skip_pool_indices=False

    out = instance_norm_relu(out)                                 # final IN + ReLU

    out_nchw = jnp.transpose(out, (0, 3, 1, 2))                   # once: NHWC -> NCHW
    skips = [jnp.transpose(s, (0, 3, 1, 2)) for s in skips_nhwc]
    return out_nchw, skips


# ----------------------------------------------------------------------------
if __name__ == "__main__":
    key = jax.random.PRNGKey(0)
    # batch=2, in_channels=4, spatial=16, num_conv_blocks=3, num_channels_list=[8,16,32]
    N, Cin, H, W = 2, 4, 16, 16
    num_channels_list = [8, 16, 32]

    pkey, xkey = jax.random.split(key)
    params = init_params(pkey, Cin, num_channels_list, kernel_size=3)
    x = jax.random.normal(xkey, (N, Cin, H, W), jnp.float32)

    fwd = jax.jit(encoder_forward)
    out, skips = fwd(x, params)
    jax.block_until_ready(out)
    for s in skips:
        jax.block_until_ready(s)

    assert out.shape == (N, num_channels_list[-1], H // 4, W // 4), out.shape
    assert len(skips) == 2, len(skips)
    assert skips[0].shape == (N, num_channels_list[0], H, W), skips[0].shape
    assert skips[1].shape == (N, num_channels_list[1], H // 2, W // 2), skips[1].shape
    print("KERNEL_OK")
</pallas_src>

<mosaic_0001>
module attributes {stable_mosaic.version = 11 : i64} {
  func.func @_conv3x3_s1_kernel(%arg0: i32, %arg1: memref<1x18x18x4xf32, #tpu.memory_space<vmem>>, %arg2: memref<9x4x8xbf16, #tpu.memory_space<vmem>>, %arg3: memref<1x8xf32, #tpu.memory_space<vmem>>, %arg4: memref<1x256x8xf32, #tpu.memory_space<vmem>>) attributes {dimension_semantics = [#tpu.dimension_semantics<parallel>], iteration_bounds = array<i64: 2>, scalar_prefetch = 0 : i64, scratch_operands = 0 : i64, tpu.core_type = #tpu.core_type<tc>, window_params = [{transform_indices = @transform_0, window_bounds = array<i64: 1, 18, 18, 4>}, {pipeline_mode = #tpu.pipeline_mode<synchronous>, transform_indices = @transform_1, window_bounds = array<i64: 9, 4, 8>}, {pipeline_mode = #tpu.pipeline_mode<synchronous>, transform_indices = @transform_2, window_bounds = array<i64: 1, 8>}, {transform_indices = @transform_3, window_bounds = array<i64: 1, 256, 8>}]} {
    %cst = arith.constant 0.000000e+00 : f32
    %0 = vector.broadcast %cst : f32 to vector<256x8xf32>
    %c0 = arith.constant 0 : index
    %c0_0 = arith.constant 0 : index
    %c0_1 = arith.constant 0 : index
    %c0_2 = arith.constant 0 : index
    %1 = vector.load %arg1[%c0, %c0_0, %c0_1, %c0_2] : memref<1x18x18x4xf32, #tpu.memory_space<vmem>>, vector<1x16x16x4xf32>
    %2 = vector.shape_cast %1 : vector<1x16x16x4xf32> to vector<256x4xf32>
    %3 = arith.truncf %2 : vector<256x4xf32> to vector<256x4xbf16>
    %c0_3 = arith.constant 0 : index
    %c0_4 = arith.constant 0 : index
    %c0_5 = arith.constant 0 : index
    %4 = vector.load %arg2[%c0_3, %c0_4, %c0_5] : memref<9x4x8xbf16, #tpu.memory_space<vmem>>, vector<1x4x8xbf16>
    %5 = vector.shape_cast %4 : vector<1x4x8xbf16> to vector<4x8xbf16>
    %cst_6 = arith.constant dense<0.000000e+00> : vector<256x8xf32>
    %6 = tpu.matmul %3, %5, %cst_6 {dimension_numbers = #tpu.dot_dimension_numbers<[1], [0], [0], [1], [0, 0, 1, 1], [], []>} : vector<256x4xbf16>, vector<4x8xbf16>, vector<256x8xf32> -> vector<256x8xf32>
    %7 = arith.addf %0, %6 : vector<256x8xf32>
    %c0_7 = arith.constant 0 : index
    %c0_8 = arith.constant 0 : index
    %c1 = arith.constant 1 : index
    %c0_9 = arith.constant 0 : index
    %8 = vector.load %arg1[%c0_7, %c0_8, %c1, %c0_9] : memref<1x18x18x4xf32, #tpu.memory_space<vmem>>, vector<1x16x16x4xf32>
    %9 = vector.shape_cast %8 : vector<1x16x16x4xf32> to vector<256x4xf32>
    %10 = arith.truncf %9 : vector<256x4xf32> to vector<256x4xbf16>
    %c1_10 = arith.constant 1 : index
    %c0_11 = arith.constant 0 : index
    %c0_12 = arith.constant 0 : index
    %11 = vector.load %arg2[%c1_10, %c0_11, %c0_12] : memref<9x4x8xbf16, #tpu.memory_space<vmem>>, vector<1x4x8xbf16>
    %12 = vector.shape_cast %11 : vector<1x4x8xbf16> to vector<4x8xbf16>
    %cst_13 = arith.constant dense<0.000000e+00> : vector<256x8xf32>
    %13 = tpu.matmul %10, %12, %cst_13 {dimension_numbers = #tpu.dot_dimension_numbers<[1], [0], [0], [1], [0, 0, 1, 1], [], []>} : vector<256x4xbf16>, vector<4x8xbf16>, vector<256x8xf32> -> vector<256x8xf32>
    %14 = arith.addf %7, %13 : vector<256x8xf32>
    %c0_14 = arith.constant 0 : index
    %c0_15 = arith.constant 0 : index
    %c2 = arith.constant 2 : index
    %c0_16 = arith.constant 0 : index
    %15 = vector.load %arg1[%c0_14, %c0_15, %c2, %c0_16] : memref<1x18x18x4xf32, #tpu.memory_space<vmem>>, vector<1x16x16x4xf32>
    %16 = vector.shape_cast %15 : vector<1x16x16x4xf32> to vector<256x4xf32>
    %17 = arith.truncf %16 : vector<256x4xf32> to vector<256x4xbf16>
    %c2_17 = arith.constant 2 : index
    %c0_18 = arith.constant 0 : index
    %c0_19 = arith.constant 0 : index
    %18 = vector.load %arg2[%c2_17, %c0_18, %c0_19] : memref<9x4x8xbf16, #tpu.memory_space<vmem>>, vector<1x4x8xbf16>
    %19 = vector.shape_cast %18 : vector<1x4x8xbf16> to vector<4x8xbf16>
    %cst_20 = arith.constant dense<0.000000e+00> : vector<256x8xf32>
    %20 = tpu.matmul %17, %19, %cst_20 {dimension_numbers = #tpu.dot_dimension_numbers<[1], [0], [0], [1], [0, 0, 1, 1], [], []>} : vector<256x4xbf16>, vector<4x8xbf16>, vector<256x8xf32> -> vector<256x8xf32>
    %21 = arith.addf %14, %20 : vector<256x8xf32>
    %c0_21 = arith.constant 0 : index
    %c1_22 = arith.constant 1 : index
    %c0_23 = arith.constant 0 : index
    %c0_24 = arith.constant 0 : index
    %22 = vector.load %arg1[%c0_21, %c1_22, %c0_23, %c0_24] : memref<1x18x18x4xf32, #tpu.memory_space<vmem>>, vector<1x16x16x4xf32>
    %23 = vector.shape_cast %22 : vector<1x16x16x4xf32> to vector<256x4xf32>
    %24 = arith.truncf %23 : vector<256x4xf32> to vector<256x4xbf16>
    %c3 = arith.constant 3 : index
    %c0_25 = arith.constant 0 : index
    %c0_26 = arith.constant 0 : index
    %25 = vector.load %arg2[%c3, %c0_25, %c0_26] : memref<9x4x8xbf16, #tpu.memory_space<vmem>>, vector<1x4x8xbf16>
    %26 = vector.shape_cast %25 : vector<1x4x8xbf16> to vector<4x8xbf16>
    %cst_27 = arith.constant dense<0.000000e+00> : vector<256x8xf32>
    %27 = tpu.matmul %24, %26, %cst_27 {dimension_numbers = #tpu.dot_dimension_numbers<[1], [0], [0], [1], [0, 0, 1, 1], [], []>} : vector<256x4xbf16>, vector<4x8xbf16>, vector<256x8xf32> -> vector<256x8xf32>
    %28 = arith.addf %21, %27 : vector<256x8xf32>
    %c0_28 = arith.constant 0 : index
    %c1_29 = arith.constant 1 : index
    %c1_30 = arith.constant 1 : index
    %c0_31 = arith.constant 0 : index
    %29 = vector.load %arg1[%c0_28, %c1_29, %c1_30, %c0_31] : memref<1x18x18x4xf32, #tpu.memory_space<vmem>>, vector<1x16x16x4xf32>
    %30 = vector.shape_cast %29 : vector<1x16x16x4xf32> to vector<256x4xf32>
    %31 = arith.truncf %30 : vector<256x4xf32> to vector<256x4xbf16>
    %c4 = arith.constant 4 : index
    %c0_32 = arith.constant 0 : index
    %c0_33 = arith.constant 0 : index
    %32 = vector.load %arg2[%c4, %c0_32, %c0_33] : memref<9x4x8xbf16, #tpu.memory_space<vmem>>, vector<1x4x8xbf16>
    %33 = vector.shape_cast %32 : vector<1x4x8xbf16> to vector<4x8xbf16>
    %cst_34 = arith.constant dense<0.000000e+00> : vector<256x8xf32>
    %34 = tpu.matmul %31, %33, %cst_34 {dimension_numbers = #tpu.dot_dimension_numbers<[1], [0], [0], [1], [0, 0, 1, 1], [], []>} : vector<256x4xbf16>, vector<4x8xbf16>, vector<256x8xf32> -> vector<256x8xf32>
    %35 = arith.addf %28, %34 : vector<256x8xf32>
    %c0_35 = arith.constant 0 : index
    %c1_36 = arith.constant 1 : index
    %c2_37 = arith.constant 2 : index
    %c0_38 = arith.constant 0 : index
    %36 = vector.load %arg1[%c0_35, %c1_36, %c2_37, %c0_38] : memref<1x18x18x4xf32, #tpu.memory_space<vmem>>, vector<1x16x16x4xf32>
    %37 = vector.shape_cast %36 : vector<1x16x16x4xf32> to vector<256x4xf32>
    %38 = arith.truncf %37 : vector<256x4xf32> to vector<256x4xbf16>
    %c5 = arith.constant 5 : index
    %c0_39 = arith.constant 0 : index
    %c0_40 = arith.constant 0 : index
    %39 = vector.load %arg2[%c5, %c0_39, %c0_40] : memref<9x4x8xbf16, #tpu.memory_space<vmem>>, vector<1x4x8xbf16>
    %40 = vector.shape_cast %39 : vector<1x4x8xbf16> to vector<4x8xbf16>
    %cst_41 = arith.constant dense<0.000000e+00> : vector<256x8xf32>
    %41 = tpu.matmul %38, %40, %cst_41 {dimension_numbers = #tpu.dot_dimension_numbers<[1], [0], [0], [1], [0, 0, 1, 1], [], []>} : vector<256x4xbf16>, vector<4x8xbf16>, vector<256x8xf32> -> vector<256x8xf32>
    %42 = arith.addf %35, %41 : vector<256x8xf32>
    %c0_42 = arith.constant 0 : index
    %c2_43 = arith.constant 2 : index
    %c0_44 = arith.constant 0 : index
    %c0_45 = arith.constant 0 : index
    %43 = vector.load %arg1[%c0_42, %c2_43, %c0_44, %c0_45] : memref<1x18x18x4xf32, #tpu.memory_space<vmem>>, vector<1x16x16x4xf32>
    %44 = vector.shape_cast %43 : vector<1x16x16x4xf32> to vector<256x4xf32>
    %45 = arith.truncf %44 : vector<256x4xf32> to vector<256x4xbf16>
    %c6 = arith.constant 6 : index
    %c0_46 = arith.constant 0 : index
    %c0_47 = arith.constant 0 : index
    %46 = vector.load %arg2[%c6, %c0_46, %c0_47] : memref<9x4x8xbf16, #tpu.memory_space<vmem>>, vector<1x4x8xbf16>
    %47 = vector.shape_cast %46 : vector<1x4x8xbf16> to vector<4x8xbf16>
    %cst_48 = arith.constant dense<0.000000e+00> : vector<256x8xf32>
    %48 = tpu.matmul %45, %47, %cst_48 {dimension_numbers = #tpu.dot_dimension_numbers<[1], [0], [0], [1], [0, 0, 1, 1], [], []>} : vector<256x4xbf16>, vector<4x8xbf16>, vector<256x8xf32> -> vector<256x8xf32>
    %49 = arith.addf %42, %48 : vector<256x8xf32>
    %c0_49 = arith.constant 0 : index
    %c2_50 = arith.constant 2 : index
    %c1_51 = arith.constant 1 : index
    %c0_52 = arith.constant 0 : index
    %50 = vector.load %arg1[%c0_49, %c2_50, %c1_51, %c0_52] : memref<1x18x18x4xf32, #tpu.memory_space<vmem>>, vector<1x16x16x4xf32>
    %51 = vector.shape_cast %50 : vector<1x16x16x4xf32> to vector<256x4xf32>
    %52 = arith.truncf %51 : vector<256x4xf32> to vector<256x4xbf16>
    %c7 = arith.constant 7 : index
    %c0_53 = arith.constant 0 : index
    %c0_54 = arith.constant 0 : index
    %53 = vector.load %arg2[%c7, %c0_53, %c0_54] : memref<9x4x8xbf16, #tpu.memory_space<vmem>>, vector<1x4x8xbf16>
    %54 = vector.shape_cast %53 : vector<1x4x8xbf16> to vector<4x8xbf16>
    %cst_55 = arith.constant dense<0.000000e+00> : vector<256x8xf32>
    %55 = tpu.matmul %52, %54, %cst_55 {dimension_numbers = #tpu.dot_dimension_numbers<[1], [0], [0], [1], [0, 0, 1, 1], [], []>} : vector<256x4xbf16>, vector<4x8xbf16>, vector<256x8xf32> -> vector<256x8xf32>
    %56 = arith.addf %49, %55 : vector<256x8xf32>
    %c0_56 = arith.constant 0 : index
    %c2_57 = arith.constant 2 : index
    %c2_58 = arith.constant 2 : index
    %c0_59 = arith.constant 0 : index
    %57 = vector.load %arg1[%c0_56, %c2_57, %c2_58, %c0_59] : memref<1x18x18x4xf32, #tpu.memory_space<vmem>>, vector<1x16x16x4xf32>
    %58 = vector.shape_cast %57 : vector<1x16x16x4xf32> to vector<256x4xf32>
    %59 = arith.truncf %58 : vector<256x4xf32> to vector<256x4xbf16>
    %c8 = arith.constant 8 : index
    %c0_60 = arith.constant 0 : index
    %c0_61 = arith.constant 0 : index
    %60 = vector.load %arg2[%c8, %c0_60, %c0_61] : memref<9x4x8xbf16, #tpu.memory_space<vmem>>, vector<1x4x8xbf16>
    %61 = vector.shape_cast %60 : vector<1x4x8xbf16> to vector<4x8xbf16>
    %cst_62 = arith.constant dense<0.000000e+00> : vector<256x8xf32>
    %62 = tpu.matmul %59, %61, %cst_62 {dimension_numbers = #tpu.dot_dimension_numbers<[1], [0], [0], [1], [0, 0, 1, 1], [], []>} : vector<256x4xbf16>, vector<4x8xbf16>, vector<256x8xf32> -> vector<256x8xf32>
    %63 = arith.addf %56, %62 : vector<256x8xf32>
    %c0_63 = arith.constant 0 : index
    %c0_64 = arith.constant 0 : index
    %64 = vector.load %arg3[%c0_63, %c0_64] : memref<1x8xf32, #tpu.memory_space<vmem>>, vector<1x8xf32>
    %65 = vector.broadcast %64 : vector<1x8xf32> to vector<256x8xf32>
    %66 = arith.addf %63, %65 : vector<256x8xf32>
    %67 = vector.shape_cast %66 : vector<256x8xf32> to vector<1x256x8xf32>
    %c0_65 = arith.constant 0 : index
    %c0_66 = arith.constant 0 : index
    %c0_67 = arith.constant 0 : index
    %68 = vector.load %arg4[%c0_65, %c0_66, %c0_67] : memref<1x256x8xf32, #tpu.memory_space<vmem>>, vector<1x256x8xf32>
    tpu.vector_store %arg4[%c0_65, %c0_66, %c0_67], %67 {strides = array<i32>} : memref<1x256x8xf32, #tpu.memory_space<vmem>>, vector<1x256x8xf32>,
    return
  }
  func.func @transform_0(%arg0: i32) -> (i32, i32, i32, i32) {
    %c0_i32 = arith.constant 0 : i32
    %c0_i32_0 = arith.constant 0 : i32
    %c0_i32_1 = arith.constant 0 : i32
    %c0_i32_2 = arith.constant 0 : i32
    return %arg0, %c0_i32, %c0_i32_0, %c0_i32_1 : i32, i32, i32, i32
  }
  func.func @transform_1(%arg0: i32) -> (i32, i32, i32) {
    %c0_i32 = arith.constant 0 : i32
    %c0_i32_0 = arith.constant 0 : i32
    %c0_i32_1 = arith.constant 0 : i32
    %c0_i32_2 = arith.constant 0 : i32
    return %c0_i32, %c0_i32_0, %c0_i32_1 : i32, i32, i32
  }
  func.func @transform_2(%arg0: i32) -> (i32, i32) {
    %c0_i32 = arith.constant 0 : i32
    %c0_i32_0 = arith.constant 0 : i32
    %c0_i32_1 = arith.constant 0 : i32
    return %c0_i32, %c0_i32_0 : i32, i32
  }
  func.func @transform_3(%arg0: i32) -> (i32, i32, i32) {
    %c0_i32 = arith.constant 0 : i32
    %c0_i32_0 = arith.constant 0 : i32
    %c0_i32_1 = arith.constant 0 : i32
    return %arg0, %c0_i32, %c0_i32_0 : i32, i32, i32
  }
}

module attributes {stable_mosaic.version = 11 : i64} {
  func.func @_in_relu_shortcut_kernel(%arg0: i32, %arg1: memref<1x8x2x8x16xf32, #tpu.memory_space<vmem>>, %arg2: memref<16x16xbf16, #tpu.memory_space<vmem>>, %arg3: memref<1x16xf32, #tpu.memory_space<vmem>>, %arg4: memref<1x8x2x8x16xf32, #tpu.memory_space<vmem>>, %arg5: memref<1x64x16xf32, #tpu.memory_space<vmem>>) attributes {dimension_semantics = [#tpu.dimension_semantics<parallel>], iteration_bounds = array<i64: 2>, scalar_prefetch = 0 : i64, scratch_operands = 0 : i64, tpu.core_type = #tpu.core_type<tc>, window_params = [{transform_indices = @transform_0, window_bounds = array<i64: 1, 8, 2, 8, 16>}, {pipeline_mode = #tpu.pipeline_mode<synchronous>, transform_indices = @transform_1, window_bounds = array<i64: 16, 16>}, {pipeline_mode = #tpu.pipeline_mode<synchronous>, transform_indices = @transform_2, window_bounds = array<i64: 1, 16>}, {transform_indices = @transform_3, window_bounds = array<i64: 1, 8, 2, 8, 16>}, {transform_indices = @transform_4, window_bounds = array<i64: 1, 64, 16>}]} {
    %c0 = arith.constant 0 : index
    %c0_0 = arith.constant 0 : index
    %c0_1 = arith.constant 0 : index
    %c0_2 = arith.constant 0 : index
    %c0_3 = arith.constant 0 : index
    %0 = vector.load %arg1[%c0, %c0_0, %c0_1, %c0_2, %c0_3] : memref<1x8x2x8x16xf32, #tpu.memory_space<vmem>>, vector<1x8x2x8x16xf32>
    %cst = arith.constant dense<0.000000e+00> : vector<1x16xf32>
    %1 = vector.multi_reduction <add>, %0, %cst [1, 2, 3] : vector<1x8x2x8x16xf32> to vector<1x16xf32>
    %2 = vector.shape_cast %1 : vector<1x16xf32> to vector<1x1x1x1x16xf32>
    %3 = vector.extract_strided_slice %2 {offsets = [0, 0, 0, 0, 0], sizes = [1, 1, 1, 1, 8], strides = [1, 1, 1, 1, 1]} : vector<1x1x1x1x16xf32> to vector<1x1x1x1x8xf32>
    %4 = vector.extract_strided_slice %2 {offsets = [0, 0, 0, 0, 8], sizes = [1, 1, 1, 1, 8], strides = [1, 1, 1, 1, 1]} : vector<1x1x1x1x16xf32> to vector<1x1x1x1x8xf32>
    %5 = arith.addf %3, %4 : vector<1x1x1x1x8xf32>
    %cst_4 = arith.constant 3.906250e-03 : f32
    %6 = vector.broadcast %cst_4 : f32 to vector<1x1x1x1x8xf32>
    %7 = arith.mulf %5, %6 : vector<1x1x1x1x8xf32>
    %8 = tpu.concatenate %7, %7 in 4 : vector<1x1x1x1x8xf32>, vector<1x1x1x1x8xf32> -> vector<1x1x1x1x16xf32>
    %9 = vector.broadcast %8 : vector<1x1x1x1x16xf32> to vector<1x8x2x8x16xf32>
    %10 = arith.subf %0, %9 : vector<1x8x2x8x16xf32>
    %11 = arith.mulf %10, %10 : vector<1x8x2x8x16xf32>
    %cst_5 = arith.constant dense<0.000000e+00> : vector<1x16xf32>
    %12 = vector.multi_reduction <add>, %11, %cst_5 [1, 2, 3] : vector<1x8x2x8x16xf32> to vector<1x16xf32>
    %13 = vector.shape_cast %12 : vector<1x16xf32> to vector<1x1x1x1x16xf32>
    %14 = vector.extract_strided_slice %13 {offsets = [0, 0, 0, 0, 0], sizes = [1, 1, 1, 1, 8], strides = [1, 1, 1, 1, 1]} : vector<1x1x1x1x16xf32> to vector<1x1x1x1x8xf32>
    %15 = vector.extract_strided_slice %13 {offsets = [0, 0, 0, 0, 8], sizes = [1, 1, 1, 1, 8], strides = [1, 1, 1, 1, 1]} : vector<1x1x1x1x16xf32> to vector<1x1x1x1x8xf32>
    %16 = arith.addf %14, %15 : vector<1x1x1x1x8xf32>
    %cst_6 = arith.constant 3.906250e-03 : f32
    %17 = vector.broadcast %cst_6 : f32 to vector<1x1x1x1x8xf32>
    %18 = arith.mulf %16, %17 : vector<1x1x1x1x8xf32>
    %cst_7 = arith.constant 9.99999974E-6 : f32
    %19 = vector.broadcast %cst_7 : f32 to vector<1x1x1x1x8xf32>
    %20 = arith.addf %18, %19 : vector<1x1x1x1x8xf32>
    %21 = math.rsqrt %20 : vector<1x1x1x1x8xf32>
    %22 = tpu.concatenate %21, %21 in 4 : vector<1x1x1x1x8xf32>, vector<1x1x1x1x8xf32> -> vector<1x1x1x1x16xf32>
    %23 = vector.broadcast %22 : vector<1x1x1x1x16xf32> to vector<1x8x2x8x16xf32>
    %24 = arith.mulf %10, %23 : vector<1x8x2x8x16xf32>
    %cst_8 = arith.constant 0.000000e+00 : f32
    %25 = vector.broadcast %cst_8 : f32 to vector<1x8x2x8x16xf32>
    %26 = arith.maximumf %24, %25 : vector<1x8x2x8x16xf32>
    %c0_9 = arith.constant 0 : index
    %c0_10 = arith.constant 0 : index
    %c0_11 = arith.constant 0 : index
    %c0_12 = arith.constant 0 : index
    %c0_13 = arith.constant 0 : index
    %27 = vector.load %arg4[%c0_9, %c0_10, %c0_11, %c0_12, %c0_13] : memref<1x8x2x8x16xf32, #tpu.memory_space<vmem>>, vector<1x8x2x8x16xf32>
    tpu.vector_store %arg4[%c0_9, %c0_10, %c0_11, %c0_12, %c0_13], %26 {strides = array<i32>} : memref<1x8x2x8x16xf32, #tpu.memory_space<vmem>>, vector<1x8x2x8x16xf32>,
    %28 = vector.extract_strided_slice %0 {offsets = [0, 0, 0, 0, 0], sizes = [1, 8, 1, 8, 16], strides = [1, 1, 1, 1, 1]} : vector<1x8x2x8x16xf32> to vector<1x8x1x8x16xf32>
    %29 = vector.shape_cast %28 : vector<1x8x1x8x16xf32> to vector<64x16xf32>
    %30 = arith.truncf %29 : vector<64x16xf32> to vector<64x16xbf16>
    %c0_14 = arith.constant 0 : index
    %c0_15 = arith.constant 0 : index
    %31 = vector.load %arg2[%c0_14, %c0_15] : memref<16x16xbf16, #tpu.memory_space<vmem>>, vector<16x16xbf16>
    %cst_16 = arith.constant dense<0.000000e+00> : vector<64x16xf32>
    %32 = tpu.matmul %30, %31, %cst_16 {dimension_numbers = #tpu.dot_dimension_numbers<[1], [0], [0], [1], [0, 0, 1, 1], [], []>} : vector<64x16xbf16>, vector<16x16xbf16>, vector<64x16xf32> -> vector<64x16xf32>
    %c0_17 = arith.constant 0 : index
    %c0_18 = arith.constant 0 : index
    %33 = vector.load %arg3[%c0_17, %c0_18] : memref<1x16xf32, #tpu.memory_space<vmem>>, vector<1x16xf32>
    %34 = vector.broadcast %33 : vector<1x16xf32> to vector<64x16xf32>
    %35 = arith.addf %32, %34 : vector<64x16xf32>
    %36 = vector.shape_cast %35 : vector<64x16xf32> to vector<1x64x16xf32>
    %c0_19 = arith.constant 0 : index
    %c0_20 = arith.constant 0 : index
    %c0_21 = arith.constant 0 : index
    %37 = vector.load %arg5[%c0_19, %c0_20, %c0_21] : memref<1x64x16xf32, #tpu.memory_space<vmem>>, vector<1x64x16xf32>
    tpu.vector_store %arg5[%c0_19, %c0_20, %c0_21], %36 {strides = array<i32>} : memref<1x64x16xf32, #tpu.memory_space<vmem>>, vector<1x64x16xf32>,
    return
  }
  func.func @transform_0(%arg0: i32) -> (i32, i32, i32, i32, i32) {
    %c0_i32 = arith.constant 0 : i32
    %c0_i32_0 = arith.constant 0 : i32
    %c0_i32_1 = arith.constant 0 : i32
    %c0_i32_2 = arith.constant 0 : i32
    %c0_i32_3 = arith.constant 0 : i32
    return %arg0, %c0_i32, %c0_i32_0, %c0_i32_1, %c0_i32_2 : i32, i32, i32, i32, i32
  }
  func.func @transform_1(%arg0: i32) -> (i32, i32) {
    %c0_i32 = arith.constant 0 : i32
    %c0_i32_0 = arith.constant 0 : i32
    %c0_i32_1 = arith.constant 0 : i32
    return %c0_i32, %c0_i32_0 : i32, i32
  }
  func.func @transform_2(%arg0: i32) -> (i32, i32) {
    %c0_i32 = arith.constant 0 : i32
    %c0_i32_0 = arith.constant 0 : i32
    %c0_i32_1 = arith.constant 0 : i32
    return %c0_i32, %c0_i32_0 : i32, i32
  }
  func.func @transform_3(%arg0: i32) -> (i32, i32, i32, i32, i32) {
    %c0_i32 = arith.constant 0 : i32
    %c0_i32_0 = arith.constant 0 : i32
    %c0_i32_1 = arith.constant 0 : i32
    %c0_i32_2 = arith.constant 0 : i32
    %c0_i32_3 = arith.constant 0 : i32
    return %arg0, %c0_i32, %c0_i32_0, %c0_i32_1, %c0_i32_2 : i32, i32, i32, i32, i32
  }
  func.func @transform_4(%arg0: i32) -> (i32, i32, i32) {
    %c0_i32 = arith.constant 0 : i32
    %c0_i32_0 = arith.constant 0 : i32
    %c0_i32_1 = arith.constant 0 : i32
    return %arg0, %c0_i32, %c0_i32_0 : i32, i32, i32
  }
}

module attributes {stable_mosaic.version = 11 : i64} {
  func.func @_conv3x3_s2_in_relu_kernel(%arg0: i32, %arg1: memref<1x9x2x9x16xf32, #tpu.memory_space<vmem>>, %arg2: memref<6x16x16xbf16, #tpu.memory_space<vmem>>, %arg3: memref<1x16xf32, #tpu.memory_space<vmem>>, %arg4: memref<1x64x16xf32, #tpu.memory_space<vmem>>) attributes {dimension_semantics = [#tpu.dimension_semantics<parallel>], iteration_bounds = array<i64: 2>, scalar_prefetch = 0 : i64, scratch_operands = 0 : i64, tpu.core_type = #tpu.core_type<tc>, window_params = [{transform_indices = @transform_0, window_bounds = array<i64: 1, 9, 2, 9, 16>}, {pipeline_mode = #tpu.pipeline_mode<synchronous>, transform_indices = @transform_1, window_bounds = array<i64: 6, 16, 16>}, {pipeline_mode = #tpu.pipeline_mode<synchronous>, transform_indices = @transform_2, window_bounds = array<i64: 1, 16>}, {transform_indices = @transform_3, window_bounds = array<i64: 1, 64, 16>}]} {
    %cst = arith.constant 0.000000e+00 : f32
    %0 = vector.broadcast %cst : f32 to vector<64x16xf32>
    %c0 = arith.constant 0 : index
    %c0_0 = arith.constant 0 : index
    %c0_1 = arith.constant 0 : index
    %c0_2 = arith.constant 0 : index
    %c0_3 = arith.constant 0 : index
    %1 = vector.load %arg1[%c0, %c0_0, %c0_1, %c0_2, %c0_3] : memref<1x9x2x9x16xf32, #tpu.memory_space<vmem>>, vector<1x8x1x8x16xf32>
    %2 = vector.shape_cast %1 : vector<1x8x1x8x16xf32> to vector<64x16xf32>
    %3 = arith.truncf %2 : vector<64x16xf32> to vector<64x16xbf16>
    %c0_4 = arith.constant 0 : index
    %c0_5 = arith.constant 0 : index
    %c0_6 = arith.constant 0 : index
    %4 = vector.load %arg2[%c0_4, %c0_5, %c0_6] : memref<6x16x16xbf16, #tpu.memory_space<vmem>>, vector<1x16x16xbf16>
    %5 = vector.shape_cast %4 : vector<1x16x16xbf16> to vector<16x16xbf16>
    %cst_7 = arith.constant dense<0.000000e+00> : vector<64x16xf32>
    %6 = tpu.matmul %3, %5, %cst_7 {dimension_numbers = #tpu.dot_dimension_numbers<[1], [0], [0], [1], [0, 0, 1, 1], [], []>} : vector<64x16xbf16>, vector<16x16xbf16>, vector<64x16xf32> -> vector<64x16xf32>
    %7 = arith.addf %0, %6 : vector<64x16xf32>
    %c0_8 = arith.constant 0 : index
    %c0_9 = arith.constant 0 : index
    %c0_10 = arith.constant 0 : index
    %c1 = arith.constant 1 : index
    %c0_11 = arith.constant 0 : index
    %8 = vector.load %arg1[%c0_8, %c0_9, %c0_10, %c1, %c0_11] : memref<1x9x2x9x16xf32, #tpu.memory_space<vmem>>, vector<1x8x1x8x16xf32>
    %9 = vector.shape_cast %8 : vector<1x8x1x8x16xf32> to vector<64x16xf32>
    %10 = arith.truncf %9 : vector<64x16xf32> to vector<64x16xbf16>
    %c1_12 = arith.constant 1 : index
    %c0_13 = arith.constant 0 : index
    %c0_14 = arith.constant 0 : index
    %11 = vector.load %arg2[%c1_12, %c0_13, %c0_14] : memref<6x16x16xbf16, #tpu.memory_space<vmem>>, vector<1x16x16xbf16>
    %12 = vector.shape_cast %11 : vector<1x16x16xbf16> to vector<16x16xbf16>
    %cst_15 = arith.constant dense<0.000000e+00> : vector<64x16xf32>
    %13 = tpu.matmul %10, %12, %cst_15 {dimension_numbers = #tpu.dot_dimension_numbers<[1], [0], [0], [1], [0, 0, 1, 1], [], []>} : vector<64x16xbf16>, vector<16x16xbf16>, vector<64x16xf32> -> vector<64x16xf32>
    %14 = arith.addf %7, %13 : vector<64x16xf32>
    %c0_16 = arith.constant 0 : index
    %c0_17 = arith.constant 0 : index
    %c1_18 = arith.constant 1 : index
    %c0_19 = arith.constant 0 : index
    %c0_20 = arith.constant 0 : index
    %15 = vector.load %arg1[%c0_16, %c0_17, %c1_18, %c0_19, %c0_20] : memref<1x9x2x9x16xf32, #tpu.memory_space<vmem>>, vector<1x8x1x8x16xf32>
    %16 = vector.shape_cast %15 : vector<1x8x1x8x16xf32> to vector<64x16xf32>
    %17 = arith.truncf %16 : vector<64x16xf32> to vector<64x16xbf16>
    %c2 = arith.constant 2 : index
    %c0_21 = arith.constant 0 : index
    %c0_22 = arith.constant 0 : index
    %18 = vector.load %arg2[%c2, %c0_21, %c0_22] : memref<6x16x16xbf16, #tpu.memory_space<vmem>>, vector<1x16x16xbf16>
    %19 = vector.shape_cast %18 : vector<1x16x16xbf16> to vector<16x16xbf16>
    %cst_23 = arith.constant dense<0.000000e+00> : vector<64x16xf32>
    %20 = tpu.matmul %17, %19, %cst_23 {dimension_numbers = #tpu.dot_dimension_numbers<[1], [0], [0], [1], [0, 0, 1, 1], [], []>} : vector<64x16xbf16>, vector<16x16xbf16>, vector<64x16xf32> -> vector<64x16xf32>
    %21 = arith.addf %14, %20 : vector<64x16xf32>
    %c0_24 = arith.constant 0 : index
    %c0_25 = arith.constant 0 : index
    %c1_26 = arith.constant 1 : index
    %c1_27 = arith.constant 1 : index
    %c0_28 = arith.constant 0 : index
    %22 = vector.load %arg1[%c0_24, %c0_25, %c1_26, %c1_27, %c0_28] : memref<1x9x2x9x16xf32, #tpu.memory_space<vmem>>, vector<1x8x1x8x16xf32>
    %23 = vector.shape_cast %22 : vector<1x8x1x8x16xf32> to vector<64x16xf32>
    %24 = arith.truncf %23 : vector<64x16xf32> to vector<64x16xbf16>
    %c3 = arith.constant 3 : index
    %c0_29 = arith.constant 0 : index
    %c0_30 = arith.constant 0 : index
    %25 = vector.load %arg2[%c3, %c0_29, %c0_30] : memref<6x16x16xbf16, #tpu.memory_space<vmem>>, vector<1x16x16xbf16>
    %26 = vector.shape_cast %25 : vector<1x16x16xbf16> to vector<16x16xbf16>
    %cst_31 = arith.constant dense<0.000000e+00> : vector<64x16xf32>
    %27 = tpu.matmul %24, %26, %cst_31 {dimension_numbers = #tpu.dot_dimension_numbers<[1], [0], [0], [1], [0, 0, 1, 1], [], []>} : vector<64x16xbf16>, vector<16x16xbf16>, vector<64x16xf32> -> vector<64x16xf32>
    %28 = arith.addf %21, %27 : vector<64x16xf32>
    %c0_32 = arith.constant 0 : index
    %c1_33 = arith.constant 1 : index
    %c0_34 = arith.constant 0 : index
    %c0_35 = arith.constant 0 : index
    %c0_36 = arith.constant 0 : index
    %29 = vector.load %arg1[%c0_32, %c1_33, %c0_34, %c0_35, %c0_36] : memref<1x9x2x9x16xf32, #tpu.memory_space<vmem>>, vector<1x8x1x8x16xf32>
    %30 = vector.shape_cast %29 : vector<1x8x1x8x16xf32> to vector<64x16xf32>
    %31 = arith.truncf %30 : vector<64x16xf32> to vector<64x16xbf16>
    %c4 = arith.constant 4 : index
    %c0_37 = arith.constant 0 : index
    %c0_38 = arith.constant 0 : index
    %32 = vector.load %arg2[%c4, %c0_37, %c0_38] : memref<6x16x16xbf16, #tpu.memory_space<vmem>>, vector<1x16x16xbf16>
    %33 = vector.shape_cast %32 : vector<1x16x16xbf16> to vector<16x16xbf16>
    %cst_39 = arith.constant dense<0.000000e+00> : vector<64x16xf32>
    %34 = tpu.matmul %31, %33, %cst_39 {dimension_numbers = #tpu.dot_dimension_numbers<[1], [0], [0], [1], [0, 0, 1, 1], [], []>} : vector<64x16xbf16>, vector<16x16xbf16>, vector<64x16xf32> -> vector<64x16xf32>
    %35 = arith.addf %28, %34 : vector<64x16xf32>
    %c0_40 = arith.constant 0 : index
    %c1_41 = arith.constant 1 : index
    %c0_42 = arith.constant 0 : index
    %c1_43 = arith.constant 1 : index
    %c0_44 = arith.constant 0 : index
    %36 = vector.load %arg1[%c0_40, %c1_41, %c0_42, %c1_43, %c0_44] : memref<1x9x2x9x16xf32, #tpu.memory_space<vmem>>, vector<1x8x1x8x16xf32>
    %37 = vector.shape_cast %36 : vector<1x8x1x8x16xf32> to vector<64x16xf32>
    %38 = arith.truncf %37 : vector<64x16xf32> to vector<64x16xbf16>
    %c5 = arith.constant 5 : index
    %c0_45 = arith.constant 0 : index
    %c0_46 = arith.constant 0 : index
    %39 = vector.load %arg2[%c5, %c0_45, %c0_46] : memref<6x16x16xbf16, #tpu.memory_space<vmem>>, vector<1x16x16xbf16>
    %40 = vector.shape_cast %39 : vector<1x16x16xbf16> to vector<16x16xbf16>
    %cst_47 = arith.constant dense<0.000000e+00> : vector<64x16xf32>
    %41 = tpu.matmul %38, %40, %cst_47 {dimension_numbers = #tpu.dot_dimension_numbers<[1], [0], [0], [1], [0, 0, 1, 1], [], []>} : vector<64x16xbf16>, vector<16x16xbf16>, vector<64x16xf32> -> vector<64x16xf32>
    %42 = arith.addf %35, %41 : vector<64x16xf32>
    %c0_48 = arith.constant 0 : index
    %c0_49 = arith.constant 0 : index
    %43 = vector.load %arg3[%c0_48, %c0_49] : memref<1x16xf32, #tpu.memory_space<vmem>>, vector<1x16xf32>
    %44 = vector.broadcast %43 : vector<1x16xf32> to vector<64x16xf32>
    %45 = arith.addf %42, %44 : vector<64x16xf32>
    %cst_50 = arith.constant dense<0.000000e+00> : vector<16xf32>
    %46 = vector.multi_reduction <add>, %45, %cst_50 [0] : vector<64x16xf32> to vector<16xf32>
    %47 = vector.shape_cast %46 : vector<16xf32> to vector<1x16xf32>
    %cst_51 = arith.constant 6.400000e+01 : f32
    %48 = vector.broadcast %cst_51 : f32 to vector<1x16xf32>
    %49 = arith.divf %47, %48 : vector<1x16xf32>
    %50 = vector.broadcast %49 : vector<1x16xf32> to vector<64x16xf32>
    %51 = arith.subf %45, %50 : vector<64x16xf32>
    %52 = arith.mulf %51, %51 : vector<64x16xf32>
    %cst_52 = arith.constant dense<0.000000e+00> : vector<16xf32>
    %53 = vector.multi_reduction <add>, %52, %cst_52 [0] : vector<64x16xf32> to vector<16xf32>
    %54 = vector.shape_cast %53 : vector<16xf32> to vector<1x16xf32>
    %cst_53 = arith.constant 6.400000e+01 : f32
    %55 = vector.broadcast %cst_53 : f32 to vector<1x16xf32>
    %56 = arith.divf %54, %55 : vector<1x16xf32>
    %cst_54 = arith.constant 9.99999974E-6 : f32
    %57 = vector.broadcast %cst_54 : f32 to vector<1x16xf32>
    %58 = arith.addf %56, %57 : vector<1x16xf32>
    %59 = math.rsqrt %58 : vector<1x16xf32>
    %60 = vector.broadcast %59 : vector<1x16xf32> to vector<64x16xf32>
    %61 = arith.mulf %51, %60 : vector<64x16xf32>
    %cst_55 = arith.constant 0.000000e+00 : f32
    %62 = vector.broadcast %cst_55 : f32 to vector<64x16xf32>
    %63 = arith.maximumf %61, %62 : vector<64x16xf32>
    %64 = vector.shape_cast %63 : vector<64x16xf32> to vector<1x64x16xf32>
    %c0_56 = arith.constant 0 : index
    %c0_57 = arith.constant 0 : index
    %c0_58 = arith.constant 0 : index
    %65 = vector.load %arg4[%c0_56, %c0_57, %c0_58] : memref<1x64x16xf32, #tpu.memory_space<vmem>>, vector<1x64x16xf32>
    tpu.vector_store %arg4[%c0_56, %c0_57, %c0_58], %64 {strides = array<i32>} : memref<1x64x16xf32, #tpu.memory_space<vmem>>, vector<1x64x16xf32>,
    return
  }
  func.func @transform_0(%arg0: i32) -> (i32, i32, i32, i32, i32) {
    %c0_i32 = arith.constant 0 : i32
    %c0_i32_0 = arith.constant 0 : i32
    %c0_i32_1 = arith.constant 0 : i32
    %c0_i32_2 = arith.constant 0 : i32
    %c0_i32_3 = arith.constant 0 : i32
    return %arg0, %c0_i32, %c0_i32_0, %c0_i32_1, %c0_i32_2 : i32, i32, i32, i32, i32
  }
  func.func @transform_1(%arg0: i32) -> (i32, i32, i32) {
    %c0_i32 = arith.constant 0 : i32
    %c0_i32_0 = arith.constant 0 : i32
    %c0_i32_1 = arith.constant 0 : i32
    %c0_i32_2 = arith.constant 0 : i32
    return %c0_i32, %c0_i32_0, %c0_i32_1 : i32, i32, i32
  }
  func.func @transform_2(%arg0: i32) -> (i32, i32) {
    %c0_i32 = arith.constant 0 : i32
    %c0_i32_0 = arith.constant 0 : i32
    %c0_i32_1 = arith.constant 0 : i32
    return %c0_i32, %c0_i32_0 : i32, i32
  }
  func.func @transform_3(%arg0: i32) -> (i32, i32, i32) {
    %c0_i32 = arith.constant 0 : i32
    %c0_i32_0 = arith.constant 0 : i32
    %c0_i32_1 = arith.constant 0 : i32
    return %arg0, %c0_i32, %c0_i32_0 : i32, i32, i32
  }
}

module attributes {stable_mosaic.version = 11 : i64} {
  func.func @_conv3x3_s1_res_kernel(%arg0: i32, %arg1: memref<1x10x10x16xf32, #tpu.memory_space<vmem>>, %arg2: memref<9x16x16xbf16, #tpu.memory_space<vmem>>, %arg3: memref<1x16xf32, #tpu.memory_space<vmem>>, %arg4: memref<1x64x16xf32, #tpu.memory_space<vmem>>, %arg5: memref<1x64x16xf32, #tpu.memory_space<vmem>>) attributes {dimension_semantics = [#tpu.dimension_semantics<parallel>], iteration_bounds = array<i64: 2>, scalar_prefetch = 0 : i64, scratch_operands = 0 : i64, tpu.core_type = #tpu.core_type<tc>, window_params = [{transform_indices = @transform_0, window_bounds = array<i64: 1, 10, 10, 16>}, {pipeline_mode = #tpu.pipeline_mode<synchronous>, transform_indices = @transform_1, window_bounds = array<i64: 9, 16, 16>}, {pipeline_mode = #tpu.pipeline_mode<synchronous>, transform_indices = @transform_2, window_bounds = array<i64: 1, 16>}, {transform_indices = @transform_3, window_bounds = array<i64: 1, 64, 16>}, {transform_indices = @transform_4, window_bounds = array<i64: 1, 64, 16>}]} {
    %cst = arith.constant 0.000000e+00 : f32
    %0 = vector.broadcast %cst : f32 to vector<64x16xf32>
    %c0 = arith.constant 0 : index
    %c0_0 = arith.constant 0 : index
    %c0_1 = arith.constant 0 : index
    %c0_2 = arith.constant 0 : index
    %1 = vector.load %arg1[%c0, %c0_0, %c0_1, %c0_2] : memref<1x10x10x16xf32, #tpu.memory_space<vmem>>, vector<1x8x8x16xf32>
    %2 = vector.shape_cast %1 : vector<1x8x8x16xf32> to vector<64x16xf32>
    %3 = arith.truncf %2 : vector<64x16xf32> to vector<64x16xbf16>
    %c0_3 = arith.constant 0 : index
    %c0_4 = arith.constant 0 : index
    %c0_5 = arith.constant 0 : index
    %4 = vector.load %arg2[%c0_3, %c0_4, %c0_5] : memref<9x16x16xbf16, #tpu.memory_space<vmem>>, vector<1x16x16xbf16>
    %5 = vector.shape_cast %4 : vector<1x16x16xbf16> to vector<16x16xbf16>
    %cst_6 = arith.constant dense<0.000000e+00> : vector<64x16xf32>
    %6 = tpu.matmul %3, %5, %cst_6 {dimension_numbers = #tpu.dot_dimension_numbers<[1], [0], [0], [1], [0, 0, 1, 1], [], []>} : vector<64x16xbf16>, vector<16x16xbf16>, vector<64x16xf32> -> vector<64x16xf32>
    %7 = arith.addf %0, %6 : vector<64x16xf32>
    %c0_7 = arith.constant 0 : index
    %c0_8 = arith.constant 0 : index
    %c1 = arith.constant 1 : index
    %c0_9 = arith.constant 0 : index
    %8 = vector.load %arg1[%c0_7, %c0_8, %c1, %c0_9] : memref<1x10x10x16xf32, #tpu.memory_space<vmem>>, vector<1x8x8x16xf32>
    %9 = vector.shape_cast %8 : vector<1x8x8x16xf32> to vector<64x16xf32>
    %10 = arith.truncf %9 : vector<64x16xf32> to vector<64x16xbf16>
    %c1_10 = arith.constant 1 : index
    %c0_11 = arith.constant 0 : index
    %c0_12 = arith.constant 0 : index
    %11 = vector.load %arg2[%c1_10, %c0_11, %c0_12] : memref<9x16x16xbf16, #tpu.memory_space<vmem>>, vector<1x16x16xbf16>
    %12 = vector.shape_cast %11 : vector<1x16x16xbf16> to vector<16x16xbf16>
    %cst_13 = arith.constant dense<0.000000e+00> : vector<64x16xf32>
    %13 = tpu.matmul %10, %12, %cst_13 {dimension_numbers = #tpu.dot_dimension_numbers<[1], [0], [0], [1], [0, 0, 1, 1], [], []>} : vector<64x16xbf16>, vector<16x16xbf16>, vector<64x16xf32> -> vector<64x16xf32>
    %14 = arith.addf %7, %13 : vector<64x16xf32>
    %c0_14 = arith.constant 0 : index
    %c0_15 = arith.constant 0 : index
    %c2 = arith.constant 2 : index
    %c0_16 = arith.constant 0 : index
    %15 = vector.load %arg1[%c0_14, %c0_15, %c2, %c0_16] : memref<1x10x10x16xf32, #tpu.memory_space<vmem>>, vector<1x8x8x16xf32>
    %16 = vector.shape_cast %15 : vector<1x8x8x16xf32> to vector<64x16xf32>
    %17 = arith.truncf %16 : vector<64x16xf32> to vector<64x16xbf16>
    %c2_17 = arith.constant 2 : index
    %c0_18 = arith.constant 0 : index
    %c0_19 = arith.constant 0 : index
    %18 = vector.load %arg2[%c2_17, %c0_18, %c0_19] : memref<9x16x16xbf16, #tpu.memory_space<vmem>>, vector<1x16x16xbf16>
    %19 = vector.shape_cast %18 : vector<1x16x16xbf16> to vector<16x16xbf16>
    %cst_20 = arith.constant dense<0.000000e+00> : vector<64x16xf32>
    %20 = tpu.matmul %17, %19, %cst_20 {dimension_numbers = #tpu.dot_dimension_numbers<[1], [0], [0], [1], [0, 0, 1, 1], [], []>} : vector<64x16xbf16>, vector<16x16xbf16>, vector<64x16xf32> -> vector<64x16xf32>
    %21 = arith.addf %14, %20 : vector<64x16xf32>
    %c0_21 = arith.constant 0 : index
    %c1_22 = arith.constant 1 : index
    %c0_23 = arith.constant 0 : index
    %c0_24 = arith.constant 0 : index
    %22 = vector.load %arg1[%c0_21, %c1_22, %c0_23, %c0_24] : memref<1x10x10x16xf32, #tpu.memory_space<vmem>>, vector<1x8x8x16xf32>
    %23 = vector.shape_cast %22 : vector<1x8x8x16xf32> to vector<64x16xf32>
    %24 = arith.truncf %23 : vector<64x16xf32> to vector<64x16xbf16>
    %c3 = arith.constant 3 : index
    %c0_25 = arith.constant 0 : index
    %c0_26 = arith.constant 0 : index
    %25 = vector.load %arg2[%c3, %c0_25, %c0_26] : memref<9x16x16xbf16, #tpu.memory_space<vmem>>, vector<1x16x16xbf16>
    %26 = vector.shape_cast %25 : vector<1x16x16xbf16> to vector<16x16xbf16>
    %cst_27 = arith.constant dense<0.000000e+00> : vector<64x16xf32>
    %27 = tpu.matmul %24, %26, %cst_27 {dimension_numbers = #tpu.dot_dimension_numbers<[1], [0], [0], [1], [0, 0, 1, 1], [], []>} : vector<64x16xbf16>, vector<16x16xbf16>, vector<64x16xf32> -> vector<64x16xf32>
    %28 = arith.addf %21, %27 : vector<64x16xf32>
    %c0_28 = arith.constant 0 : index
    %c1_29 = arith.constant 1 : index
    %c1_30 = arith.constant 1 : index
    %c0_31 = arith.constant 0 : index
    %29 = vector.load %arg1[%c0_28, %c1_29, %c1_30, %c0_31] : memref<1x10x10x16xf32, #tpu.memory_space<vmem>>, vector<1x8x8x16xf32>
    %30 = vector.shape_cast %29 : vector<1x8x8x16xf32> to vector<64x16xf32>
    %31 = arith.truncf %30 : vector<64x16xf32> to vector<64x16xbf16>
    %c4 = arith.constant 4 : index
    %c0_32 = arith.constant 0 : index
    %c0_33 = arith.constant 0 : index
    %32 = vector.load %arg2[%c4, %c0_32, %c0_33] : memref<9x16x16xbf16, #tpu.memory_space<vmem>>, vector<1x16x16xbf16>
    %33 = vector.shape_cast %32 : vector<1x16x16xbf16> to vector<16x16xbf16>
    %cst_34 = arith.constant dense<0.000000e+00> : vector<64x16xf32>
    %34 = tpu.matmul %31, %33, %cst_34 {dimension_numbers = #tpu.dot_dimension_numbers<[1], [0], [0], [1], [0, 0, 1, 1], [], []>} : vector<64x16xbf16>, vector<16x16xbf16>, vector<64x16xf32> -> vector<64x16xf32>
    %35 = arith.addf %28, %34 : vector<64x16xf32>
    %c0_35 = arith.constant 0 : index
    %c1_36 = arith.constant 1 : index
    %c2_37 = arith.constant 2 : index
    %c0_38 = arith.constant 0 : index
    %36 = vector.load %arg1[%c0_35, %c1_36, %c2_37, %c0_38] : memref<1x10x10x16xf32, #tpu.memory_space<vmem>>, vector<1x8x8x16xf32>
    %37 = vector.shape_cast %36 : vector<1x8x8x16xf32> to vector<64x16xf32>
    %38 = arith.truncf %37 : vector<64x16xf32> to vector<64x16xbf16>
    %c5 = arith.constant 5 : index
    %c0_39 = arith.constant 0 : index
    %c0_40 = arith.constant 0 : index
    %39 = vector.load %arg2[%c5, %c0_39, %c0_40] : memref<9x16x16xbf16, #tpu.memory_space<vmem>>, vector<1x16x16xbf16>
    %40 = vector.shape_cast %39 : vector<1x16x16xbf16> to vector<16x16xbf16>
    %cst_41 = arith.constant dense<0.000000e+00> : vector<64x16xf32>
    %41 = tpu.matmul %38, %40, %cst_41 {dimension_numbers = #tpu.dot_dimension_numbers<[1], [0], [0], [1], [0, 0, 1, 1], [], []>} : vector<64x16xbf16>, vector<16x16xbf16>, vector<64x16xf32> -> vector<64x16xf32>
    %42 = arith.addf %35, %41 : vector<64x16xf32>
    %c0_42 = arith.constant 0 : index
    %c2_43 = arith.constant 2 : index
    %c0_44 = arith.constant 0 : index
    %c0_45 = arith.constant 0 : index
    %43 = vector.load %arg1[%c0_42, %c2_43, %c0_44, %c0_45] : memref<1x10x10x16xf32, #tpu.memory_space<vmem>>, vector<1x8x8x16xf32>
    %44 = vector.shape_cast %43 : vector<1x8x8x16xf32> to vector<64x16xf32>
    %45 = arith.truncf %44 : vector<64x16xf32> to vector<64x16xbf16>
    %c6 = arith.constant 6 : index
    %c0_46 = arith.constant 0 : index
    %c0_47 = arith.constant 0 : index
    %46 = vector.load %arg2[%c6, %c0_46, %c0_47] : memref<9x16x16xbf16, #tpu.memory_space<vmem>>, vector<1x16x16xbf16>
    %47 = vector.shape_cast %46 : vector<1x16x16xbf16> to vector<16x16xbf16>
    %cst_48 = arith.constant dense<0.000000e+00> : vector<64x16xf32>
    %48 = tpu.matmul %45, %47, %cst_48 {dimension_numbers = #tpu.dot_dimension_numbers<[1], [0], [0], [1], [0, 0, 1, 1], [], []>} : vector<64x16xbf16>, vector<16x16xbf16>, vector<64x16xf32> -> vector<64x16xf32>
    %49 = arith.addf %42, %48 : vector<64x16xf32>
    %c0_49 = arith.constant 0 : index
    %c2_50 = arith.constant 2 : index
    %c1_51 = arith.constant 1 : index
    %c0_52 = arith.constant 0 : index
    %50 = vector.load %arg1[%c0_49, %c2_50, %c1_51, %c0_52] : memref<1x10x10x16xf32, #tpu.memory_space<vmem>>, vector<1x8x8x16xf32>
    %51 = vector.shape_cast %50 : vector<1x8x8x16xf32> to vector<64x16xf32>
    %52 = arith.truncf %51 : vector<64x16xf32> to vector<64x16xbf16>
    %c7 = arith.constant 7 : index
    %c0_53 = arith.constant 0 : index
    %c0_54 = arith.constant 0 : index
    %53 = vector.load %arg2[%c7, %c0_53, %c0_54] : memref<9x16x16xbf16, #tpu.memory_space<vmem>>, vector<1x16x16xbf16>
    %54 = vector.shape_cast %53 : vector<1x16x16xbf16> to vector<16x16xbf16>
    %cst_55 = arith.constant dense<0.000000e+00> : vector<64x16xf32>
    %55 = tpu.matmul %52, %54, %cst_55 {dimension_numbers = #tpu.dot_dimension_numbers<[1], [0], [0], [1], [0, 0, 1, 1], [], []>} : vector<64x16xbf16>, vector<16x16xbf16>, vector<64x16xf32> -> vector<64x16xf32>
    %56 = arith.addf %49, %55 : vector<64x16xf32>
    %c0_56 = arith.constant 0 : index
    %c2_57 = arith.constant 2 : index
    %c2_58 = arith.constant 2 : index
    %c0_59 = arith.constant 0 : index
    %57 = vector.load %arg1[%c0_56, %c2_57, %c2_58, %c0_59] : memref<1x10x10x16xf32, #tpu.memory_space<vmem>>, vector<1x8x8x16xf32>
    %58 = vector.shape_cast %57 : vector<1x8x8x16xf32> to vector<64x16xf32>
    %59 = arith.truncf %58 : vector<64x16xf32> to vector<64x16xbf16>
    %c8 = arith.constant 8 : index
    %c0_60 = arith.constant 0 : index
    %c0_61 = arith.constant 0 : index
    %60 = vector.load %arg2[%c8, %c0_60, %c0_61] : memref<9x16x16xbf16, #tpu.memory_space<vmem>>, vector<1x16x16xbf16>
    %61 = vector.shape_cast %60 : vector<1x16x16xbf16> to vector<16x16xbf16>
    %cst_62 = arith.constant dense<0.000000e+00> : vector<64x16xf32>
    %62 = tpu.matmul %59, %61, %cst_62 {dimension_numbers = #tpu.dot_dimension_numbers<[1], [0], [0], [1], [0, 0, 1, 1], [], []>} : vector<64x16xbf16>, vector<16x16xbf16>, vector<64x16xf32> -> vector<64x16xf32>
    %63 = arith.addf %56, %62 : vector<64x16xf32>
    %c0_63 = arith.constant 0 : index
    %c0_64 = arith.constant 0 : index
    %64 = vector.load %arg3[%c0_63, %c0_64] : memref<1x16xf32, #tpu.memory_space<vmem>>, vector<1x16xf32>
    %65 = vector.broadcast %64 : vector<1x16xf32> to vector<64x16xf32>
    %66 = arith.addf %63, %65 : vector<64x16xf32>
    %67 = vector.shape_cast %66 : vector<64x16xf32> to vector<1x64x16xf32>
    %c0_65 = arith.constant 0 : index
    %c0_66 = arith.constant 0 : index
    %c0_67 = arith.constant 0 : index
    %68 = vector.load %arg4[%c0_65, %c0_66, %c0_67] : memref<1x64x16xf32, #tpu.memory_space<vmem>>, vector<1x64x16xf32>
    %69 = arith.addf %67, %68 : vector<1x64x16xf32>
    %c0_68 = arith.constant 0 : index
    %c0_69 = arith.constant 0 : index
    %c0_70 = arith.constant 0 : index
    %70 = vector.load %arg5[%c0_68, %c0_69, %c0_70] : memref<1x64x16xf32, #tpu.memory_space<vmem>>, vector<1x64x16xf32>
    tpu.vector_store %arg5[%c0_68, %c0_69, %c0_70], %69 {strides = array<i32>} : memref<1x64x16xf32, #tpu.memory_space<vmem>>, vector<1x64x16xf32>,
    return
  }
  func.func @transform_0(%arg0: i32) -> (i32, i32, i32, i32) {
    %c0_i32 = arith.constant 0 : i32
    %c0_i32_0 = arith.constant 0 : i32
    %c0_i32_1 = arith.constant 0 : i32
    %c0_i32_2 = arith.constant 0 : i32
    return %arg0, %c0_i32, %c0_i32_0, %c0_i32_1 : i32, i32, i32, i32
  }
  func.func @transform_1(%arg0: i32) -> (i32, i32, i32) {
    %c0_i32 = arith.constant 0 : i32
    %c0_i32_0 = arith.constant 0 : i32
    %c0_i32_1 = arith.constant 0 : i32
    %c0_i32_2 = arith.constant 0 : i32
    return %c0_i32, %c0_i32_0, %c0_i32_1 : i32, i32, i32
  }
  func.func @transform_2(%arg0: i32) -> (i32, i32) {
    %c0_i32 = arith.constant 0 : i32
    %c0_i32_0 = arith.constant 0 : i32
    %c0_i32_1 = arith.constant 0 : i32
    return %c0_i32, %c0_i32_0 : i32, i32
  }
  func.func @transform_3(%arg0: i32) -> (i32, i32, i32) {
    %c0_i32 = arith.constant 0 : i32
    %c0_i32_0 = arith.constant 0 : i32
    %c0_i32_1 = arith.constant 0 : i32
    return %arg0, %c0_i32, %c0_i32_0 : i32, i32, i32
  }
  func.func @transform_4(%arg0: i32) -> (i32, i32, i32) {
    %c0_i32 = arith.constant 0 : i32
    %c0_i32_0 = arith.constant 0 : i32
    %c0_i32_1 = arith.constant 0 : i32
    return %arg0, %c0_i32, %c0_i32_0 : i32, i32, i32
  }
}

module attributes {stable_mosaic.version = 11 : i64} {
  func.func @_in_relu_shortcut_kernel(%arg0: i32, %arg1: memref<1x4x2x4x32xf32, #tpu.memory_space<vmem>>, %arg2: memref<32x32xbf16, #tpu.memory_space<vmem>>, %arg3: memref<1x32xf32, #tpu.memory_space<vmem>>, %arg4: memref<1x4x2x4x32xf32, #tpu.memory_space<vmem>>, %arg5: memref<1x16x32xf32, #tpu.memory_space<vmem>>) attributes {dimension_semantics = [#tpu.dimension_semantics<parallel>], iteration_bounds = array<i64: 2>, scalar_prefetch = 0 : i64, scratch_operands = 0 : i64, tpu.core_type = #tpu.core_type<tc>, window_params = [{transform_indices = @transform_0, window_bounds = array<i64: 1, 4, 2, 4, 32>}, {pipeline_mode = #tpu.pipeline_mode<synchronous>, transform_indices = @transform_1, window_bounds = array<i64: 32, 32>}, {pipeline_mode = #tpu.pipeline_mode<synchronous>, transform_indices = @transform_2, window_bounds = array<i64: 1, 32>}, {transform_indices = @transform_3, window_bounds = array<i64: 1, 4, 2, 4, 32>}, {transform_indices = @transform_4, window_bounds = array<i64: 1, 16, 32>}]} {
    %c0 = arith.constant 0 : index
    %c0_0 = arith.constant 0 : index
    %c0_1 = arith.constant 0 : index
    %c0_2 = arith.constant 0 : index
    %c0_3 = arith.constant 0 : index
    %0 = vector.load %arg1[%c0, %c0_0, %c0_1, %c0_2, %c0_3] : memref<1x4x2x4x32xf32, #tpu.memory_space<vmem>>, vector<1x4x2x4x32xf32>
    %cst = arith.constant dense<0.000000e+00> : vector<1x32xf32>
    %1 = vector.multi_reduction <add>, %0, %cst [1, 2, 3] : vector<1x4x2x4x32xf32> to vector<1x32xf32>
    %2 = vector.shape_cast %1 : vector<1x32xf32> to vector<1x1x1x1x32xf32>
    %3 = vector.extract_strided_slice %2 {offsets = [0, 0, 0, 0, 0], sizes = [1, 1, 1, 1, 16], strides = [1, 1, 1, 1, 1]} : vector<1x1x1x1x32xf32> to vector<1x1x1x1x16xf32>
    %4 = vector.extract_strided_slice %2 {offsets = [0, 0, 0, 0, 16], sizes = [1, 1, 1, 1, 16], strides = [1, 1, 1, 1, 1]} : vector<1x1x1x1x32xf32> to vector<1x1x1x1x16xf32>
    %5 = arith.addf %3, %4 : vector<1x1x1x1x16xf32>
    %cst_4 = arith.constant 1.562500e-02 : f32
    %6 = vector.broadcast %cst_4 : f32 to vector<1x1x1x1x16xf32>
    %7 = arith.mulf %5, %6 : vector<1x1x1x1x16xf32>
    %8 = tpu.concatenate %7, %7 in 4 : vector<1x1x1x1x16xf32>, vector<1x1x1x1x16xf32> -> vector<1x1x1x1x32xf32>
    %9 = vector.broadcast %8 : vector<1x1x1x1x32xf32> to vector<1x4x2x4x32xf32>
    %10 = arith.subf %0, %9 : vector<1x4x2x4x32xf32>
    %11 = arith.mulf %10, %10 : vector<1x4x2x4x32xf32>
    %cst_5 = arith.constant dense<0.000000e+00> : vector<1x32xf32>
    %12 = vector.multi_reduction <add>, %11, %cst_5 [1, 2, 3] : vector<1x4x2x4x32xf32> to vector<1x32xf32>
    %13 = vector.shape_cast %12 : vector<1x32xf32> to vector<1x1x1x1x32xf32>
    %14 = vector.extract_strided_slice %13 {offsets = [0, 0, 0, 0, 0], sizes = [1, 1, 1, 1, 16], strides = [1, 1, 1, 1, 1]} : vector<1x1x1x1x32xf32> to vector<1x1x1x1x16xf32>
    %15 = vector.extract_strided_slice %13 {offsets = [0, 0, 0, 0, 16], sizes = [1, 1, 1, 1, 16], strides = [1, 1, 1, 1, 1]} : vector<1x1x1x1x32xf32> to vector<1x1x1x1x16xf32>
    %16 = arith.addf %14, %15 : vector<1x1x1x1x16xf32>
    %cst_6 = arith.constant 1.562500e-02 : f32
    %17 = vector.broadcast %cst_6 : f32 to vector<1x1x1x1x16xf32>
    %18 = arith.mulf %16, %17 : vector<1x1x1x1x16xf32>
    %cst_7 = arith.constant 9.99999974E-6 : f32
    %19 = vector.broadcast %cst_7 : f32 to vector<1x1x1x1x16xf32>
    %20 = arith.addf %18, %19 : vector<1x1x1x1x16xf32>
    %21 = math.rsqrt %20 : vector<1x1x1x1x16xf32>
    %22 = tpu.concatenate %21, %21 in 4 : vector<1x1x1x1x16xf32>, vector<1x1x1x1x16xf32> -> vector<1x1x1x1x32xf32>
    %23 = vector.broadcast %22 : vector<1x1x1x1x32xf32> to vector<1x4x2x4x32xf32>
    %24 = arith.mulf %10, %23 : vector<1x4x2x4x32xf32>
    %cst_8 = arith.constant 0.000000e+00 : f32
    %25 = vector.broadcast %cst_8 : f32 to vector<1x4x2x4x32xf32>
    %26 = arith.maximumf %24, %25 : vector<1x4x2x4x32xf32>
    %c0_9 = arith.constant 0 : index
    %c0_10 = arith.constant 0 : index
    %c0_11 = arith.constant 0 : index
    %c0_12 = arith.constant 0 : index
    %c0_13 = arith.constant 0 : index
    %27 = vector.load %arg4[%c0_9, %c0_10, %c0_11, %c0_12, %c0_13] : memref<1x4x2x4x32xf32, #tpu.memory_space<vmem>>, vector<1x4x2x4x32xf32>
    tpu.vector_store %arg4[%c0_9, %c0_10, %c0_11, %c0_12, %c0_13], %26 {strides = array<i32>} : memref<1x4x2x4x32xf32, #tpu.memory_space<vmem>>, vector<1x4x2x4x32xf32>,
    %28 = vector.extract_strided_slice %0 {offsets = [0, 0, 0, 0, 0], sizes = [1, 4, 1, 4, 32], strides = [1, 1, 1, 1, 1]} : vector<1x4x2x4x32xf32> to vector<1x4x1x4x32xf32>
    %29 = vector.shape_cast %28 : vector<1x4x1x4x32xf32> to vector<16x32xf32>
    %30 = arith.truncf %29 : vector<16x32xf32> to vector<16x32xbf16>
    %c0_14 = arith.constant 0 : index
    %c0_15 = arith.constant 0 : index
    %31 = vector.load %arg2[%c0_14, %c0_15] : memref<32x32xbf16, #tpu.memory_space<vmem>>, vector<32x32xbf16>
    %cst_16 = arith.constant dense<0.000000e+00> : vector<16x32xf32>
    %32 = tpu.matmul %30, %31, %cst_16 {dimension_numbers = #tpu.dot_dimension_numbers<[1], [0], [0], [1], [0, 0, 1, 1], [], []>} : vector<16x32xbf16>, vector<32x32xbf16>, vector<16x32xf32> -> vector<16x32xf32>
    %c0_17 = arith.constant 0 : index
    %c0_18 = arith.constant 0 : index
    %33 = vector.load %arg3[%c0_17, %c0_18] : memref<1x32xf32, #tpu.memory_space<vmem>>, vector<1x32xf32>
    %34 = vector.broadcast %33 : vector<1x32xf32> to vector<16x32xf32>
    %35 = arith.addf %32, %34 : vector<16x32xf32>
    %36 = vector.shape_cast %35 : vector<16x32xf32> to vector<1x16x32xf32>
    %c0_19 = arith.constant 0 : index
    %c0_20 = arith.constant 0 : index
    %c0_21 = arith.constant 0 : index
    %37 = vector.load %arg5[%c0_19, %c0_20, %c0_21] : memref<1x16x32xf32, #tpu.memory_space<vmem>>, vector<1x16x32xf32>
    tpu.vector_store %arg5[%c0_19, %c0_20, %c0_21], %36 {strides = array<i32>} : memref<1x16x32xf32, #tpu.memory_space<vmem>>, vector<1x16x32xf32>,
    return
  }
  func.func @transform_0(%arg0: i32) -> (i32, i32, i32, i32, i32) {
    %c0_i32 = arith.constant 0 : i32
    %c0_i32_0 = arith.constant 0 : i32
    %c0_i32_1 = arith.constant 0 : i32
    %c0_i32_2 = arith.constant 0 : i32
    %c0_i32_3 = arith.constant 0 : i32
    return %arg0, %c0_i32, %c0_i32_0, %c0_i32_1, %c0_i32_2 : i32, i32, i32, i32, i32
  }
  func.func @transform_1(%arg0: i32) -> (i32, i32) {
    %c0_i32 = arith.constant 0 : i32
    %c0_i32_0 = arith.constant 0 : i32
    %c0_i32_1 = arith.constant 0 : i32
    return %c0_i32, %c0_i32_0 : i32, i32
  }
  func.func @transform_2(%arg0: i32) -> (i32, i32) {
    %c0_i32 = arith.constant 0 : i32
    %c0_i32_0 = arith.constant 0 : i32
    %c0_i32_1 = arith.constant 0 : i32
    return %c0_i32, %c0_i32_0 : i32, i32
  }
  func.func @transform_3(%arg0: i32) -> (i32, i32, i32, i32, i32) {
    %c0_i32 = arith.constant 0 : i32
    %c0_i32_0 = arith.constant 0 : i32
    %c0_i32_1 = arith.constant 0 : i32
    %c0_i32_2 = arith.constant 0 : i32
    %c0_i32_3 = arith.constant 0 : i32
    return %arg0, %c0_i32, %c0_i32_0, %c0_i32_1, %c0_i32_2 : i32, i32, i32, i32, i32
  }
  func.func @transform_4(%arg0: i32) -> (i32, i32, i32) {
    %c0_i32 = arith.constant 0 : i32
    %c0_i32_0 = arith.constant 0 : i32
    %c0_i32_1 = arith.constant 0 : i32
    return %arg0, %c0_i32, %c0_i32_0 : i32, i32, i32
  }
}

module attributes {stable_mosaic.version = 11 : i64} {
  func.func @_in_relu_kernel(%arg0: i32, %arg1: memref<1x4x4x32xf32, #tpu.memory_space<vmem>>, %arg2: memref<1x4x4x32xf32, #tpu.memory_space<vmem>>) attributes {dimension_semantics = [#tpu.dimension_semantics<parallel>], iteration_bounds = array<i64: 2>, scalar_prefetch = 0 : i64, scratch_operands = 0 : i64, tpu.core_type = #tpu.core_type<tc>, window_params = [{transform_indices = @transform_0, window_bounds = array<i64: 1, 4, 4, 32>}, {transform_indices = @transform_1, window_bounds = array<i64: 1, 4, 4, 32>}]} {
    %c0 = arith.constant 0 : index
    %c0_0 = arith.constant 0 : index
    %c0_1 = arith.constant 0 : index
    %c0_2 = arith.constant 0 : index
    %0 = vector.load %arg1[%c0, %c0_0, %c0_1, %c0_2] : memref<1x4x4x32xf32, #tpu.memory_space<vmem>>, vector<1x4x4x32xf32>
    %cst = arith.constant dense<0.000000e+00> : vector<1x32xf32>
    %1 = vector.multi_reduction <add>, %0, %cst [1, 2] : vector<1x4x4x32xf32> to vector<1x32xf32>
    %2 = vector.shape_cast %1 : vector<1x32xf32> to vector<1x1x1x32xf32>
    %cst_3 = arith.constant 1.600000e+01 : f32
    %3 = vector.broadcast %cst_3 : f32 to vector<1x1x1x32xf32>
    %4 = arith.divf %2, %3 : vector<1x1x1x32xf32>
    %5 = vector.broadcast %4 : vector<1x1x1x32xf32> to vector<1x4x4x32xf32>
    %6 = arith.subf %0, %5 : vector<1x4x4x32xf32>
    %7 = arith.mulf %6, %6 : vector<1x4x4x32xf32>
    %cst_4 = arith.constant dense<0.000000e+00> : vector<1x32xf32>
    %8 = vector.multi_reduction <add>, %7, %cst_4 [1, 2] : vector<1x4x4x32xf32> to vector<1x32xf32>
    %9 = vector.shape_cast %8 : vector<1x32xf32> to vector<1x1x1x32xf32>
    %cst_5 = arith.constant 1.600000e+01 : f32
    %10 = vector.broadcast %cst_5 : f32 to vector<1x1x1x32xf32>
    %11 = arith.divf %9, %10 : vector<1x1x1x32xf32>
    %cst_6 = arith.constant 9.99999974E-6 : f32
    %12 = vector.broadcast %cst_6 : f32 to vector<1x1x1x32xf32>
    %13 = arith.addf %11, %12 : vector<1x1x1x32xf32>
    %14 = math.rsqrt %13 : vector<1x1x1x32xf32>
    %15 = vector.broadcast %14 : vector<1x1x1x32xf32> to vector<1x4x4x32xf32>
    %16 = arith.mulf %6, %15 : vector<1x4x4x32xf32>
    %cst_7 = arith.constant 0.000000e+00 : f32
    %17 = vector.broadcast %cst_7 : f32 to vector<1x4x4x32xf32>
    %18 = arith.maximumf %16, %17 : vector<1x4x4x32xf32>
    %c0_8 = arith.constant 0 : index
    %c0_9 = arith.constant 0 : index
    %c0_10 = arith.constant 0 : index
    %c0_11 = arith.constant 0 : index
    %19 = vector.load %arg2[%c0_8, %c0_9, %c0_10, %c0_11] : memref<1x4x4x32xf32, #tpu.memory_space<vmem>>, vector<1x4x4x32xf32>
    tpu.vector_store %arg2[%c0_8, %c0_9, %c0_10, %c0_11], %18 {strides = array<i32>} : memref<1x4x4x32xf32, #tpu.memory_space<vmem>>, vector<1x4x4x32xf32>,
    return
  }
  func.func @transform_0(%arg0: i32) -> (i32, i32, i32, i32) {
    %c0_i32 = arith.constant 0 : i32
    %c0_i32_0 = arith.constant 0 : i32
    %c0_i32_1 = arith.constant 0 : i32
    %c0_i32_2 = arith.constant 0 : i32
    return %arg0, %c0_i32, %c0_i32_0, %c0_i32_1 : i32, i32, i32, i32
  }
  func.func @transform_1(%arg0: i32) -> (i32, i32, i32, i32) {
    %c0_i32 = arith.constant 0 : i32
    %c0_i32_0 = arith.constant 0 : i32
    %c0_i32_1 = arith.constant 0 : i32
    %c0_i32_2 = arith.constant 0 : i32
    return %arg0, %c0_i32, %c0_i32_0, %c0_i32_1 : i32, i32, i32, i32
  }
}

module attributes {stable_mosaic.version = 11 : i64} {
  func.func @_conv3x3_s2_in_relu_kernel(%arg0: i32, %arg1: memref<1x5x2x5x32xf32, #tpu.memory_space<vmem>>, %arg2: memref<6x32x32xbf16, #tpu.memory_space<vmem>>, %arg3: memref<1x32xf32, #tpu.memory_space<vmem>>, %arg4: memref<1x16x32xf32, #tpu.memory_space<vmem>>) attributes {dimension_semantics = [#tpu.dimension_semantics<parallel>], iteration_bounds = array<i64: 2>, scalar_prefetch = 0 : i64, scratch_operands = 0 : i64, tpu.core_type = #tpu.core_type<tc>, window_params = [{transform_indices = @transform_0, window_bounds = array<i64: 1, 5, 2, 5, 32>}, {pipeline_mode = #tpu.pipeline_mode<synchronous>, transform_indices = @transform_1, window_bounds = array<i64: 6, 32, 32>}, {pipeline_mode = #tpu.pipeline_mode<synchronous>, transform_indices = @transform_2, window_bounds = array<i64: 1, 32>}, {transform_indices = @transform_3, window_bounds = array<i64: 1, 16, 32>}]} {
    %cst = arith.constant 0.000000e+00 : f32
    %0 = vector.broadcast %cst : f32 to vector<16x32xf32>
    %c0 = arith.constant 0 : index
    %c0_0 = arith.constant 0 : index
    %c0_1 = arith.constant 0 : index
    %c0_2 = arith.constant 0 : index
    %c0_3 = arith.constant 0 : index
    %1 = vector.load %arg1[%c0, %c0_0, %c0_1, %c0_2, %c0_3] : memref<1x5x2x5x32xf32, #tpu.memory_space<vmem>>, vector<1x4x1x4x32xf32>
    %2 = vector.shape_cast %1 : vector<1x4x1x4x32xf32> to vector<16x32xf32>
    %3 = arith.truncf %2 : vector<16x32xf32> to vector<16x32xbf16>
    %c0_4 = arith.constant 0 : index
    %c0_5 = arith.constant 0 : index
    %c0_6 = arith.constant 0 : index
    %4 = vector.load %arg2[%c0_4, %c0_5, %c0_6] : memref<6x32x32xbf16, #tpu.memory_space<vmem>>, vector<1x32x32xbf16>
    %5 = vector.shape_cast %4 : vector<1x32x32xbf16> to vector<32x32xbf16>
    %cst_7 = arith.constant dense<0.000000e+00> : vector<16x32xf32>
    %6 = tpu.matmul %3, %5, %cst_7 {dimension_numbers = #tpu.dot_dimension_numbers<[1], [0], [0], [1], [0, 0, 1, 1], [], []>} : vector<16x32xbf16>, vector<32x32xbf16>, vector<16x32xf32> -> vector<16x32xf32>
    %7 = arith.addf %0, %6 : vector<16x32xf32>
    %c0_8 = arith.constant 0 : index
    %c0_9 = arith.constant 0 : index
    %c0_10 = arith.constant 0 : index
    %c1 = arith.constant 1 : index
    %c0_11 = arith.constant 0 : index
    %8 = vector.load %arg1[%c0_8, %c0_9, %c0_10, %c1, %c0_11] : memref<1x5x2x5x32xf32, #tpu.memory_space<vmem>>, vector<1x4x1x4x32xf32>
    %9 = vector.shape_cast %8 : vector<1x4x1x4x32xf32> to vector<16x32xf32>
    %10 = arith.truncf %9 : vector<16x32xf32> to vector<16x32xbf16>
    %c1_12 = arith.constant 1 : index
    %c0_13 = arith.constant 0 : index
    %c0_14 = arith.constant 0 : index
    %11 = vector.load %arg2[%c1_12, %c0_13, %c0_14] : memref<6x32x32xbf16, #tpu.memory_space<vmem>>, vector<1x32x32xbf16>
    %12 = vector.shape_cast %11 : vector<1x32x32xbf16> to vector<32x32xbf16>
    %cst_15 = arith.constant dense<0.000000e+00> : vector<16x32xf32>
    %13 = tpu.matmul %10, %12, %cst_15 {dimension_numbers = #tpu.dot_dimension_numbers<[1], [0], [0], [1], [0, 0, 1, 1], [], []>} : vector<16x32xbf16>, vector<32x32xbf16>, vector<16x32xf32> -> vector<16x32xf32>
    %14 = arith.addf %7, %13 : vector<16x32xf32>
    %c0_16 = arith.constant 0 : index
    %c0_17 = arith.constant 0 : index
    %c1_18 = arith.constant 1 : index
    %c0_19 = arith.constant 0 : index
    %c0_20 = arith.constant 0 : index
    %15 = vector.load %arg1[%c0_16, %c0_17, %c1_18, %c0_19, %c0_20] : memref<1x5x2x5x32xf32, #tpu.memory_space<vmem>>, vector<1x4x1x4x32xf32>
    %16 = vector.shape_cast %15 : vector<1x4x1x4x32xf32> to vector<16x32xf32>
    %17 = arith.truncf %16 : vector<16x32xf32> to vector<16x32xbf16>
    %c2 = arith.constant 2 : index
    %c0_21 = arith.constant 0 : index
    %c0_22 = arith.constant 0 : index
    %18 = vector.load %arg2[%c2, %c0_21, %c0_22] : memref<6x32x32xbf16, #tpu.memory_space<vmem>>, vector<1x32x32xbf16>
    %19 = vector.shape_cast %18 : vector<1x32x32xbf16> to vector<32x32xbf16>
    %cst_23 = arith.constant dense<0.000000e+00> : vector<16x32xf32>
    %20 = tpu.matmul %17, %19, %cst_23 {dimension_numbers = #tpu.dot_dimension_numbers<[1], [0], [0], [1], [0, 0, 1, 1], [], []>} : vector<16x32xbf16>, vector<32x32xbf16>, vector<16x32xf32> -> vector<16x32xf32>
    %21 = arith.addf %14, %20 : vector<16x32xf32>
    %c0_24 = arith.constant 0 : index
    %c0_25 = arith.constant 0 : index
    %c1_26 = arith.constant 1 : index
    %c1_27 = arith.constant 1 : index
    %c0_28 = arith.constant 0 : index
    %22 = vector.load %arg1[%c0_24, %c0_25, %c1_26, %c1_27, %c0_28] : memref<1x5x2x5x32xf32, #tpu.memory_space<vmem>>, vector<1x4x1x4x32xf32>
    %23 = vector.shape_cast %22 : vector<1x4x1x4x32xf32> to vector<16x32xf32>
    %24 = arith.truncf %23 : vector<16x32xf32> to vector<16x32xbf16>
    %c3 = arith.constant 3 : index
    %c0_29 = arith.constant 0 : index
    %c0_30 = arith.constant 0 : index
    %25 = vector.load %arg2[%c3, %c0_29, %c0_30] : memref<6x32x32xbf16, #tpu.memory_space<vmem>>, vector<1x32x32xbf16>
    %26 = vector.shape_cast %25 : vector<1x32x32xbf16> to vector<32x32xbf16>
    %cst_31 = arith.constant dense<0.000000e+00> : vector<16x32xf32>
    %27 = tpu.matmul %24, %26, %cst_31 {dimension_numbers = #tpu.dot_dimension_numbers<[1], [0], [0], [1], [0, 0, 1, 1], [], []>} : vector<16x32xbf16>, vector<32x32xbf16>, vector<16x32xf32> -> vector<16x32xf32>
    %28 = arith.addf %21, %27 : vector<16x32xf32>
    %c0_32 = arith.constant 0 : index
    %c1_33 = arith.constant 1 : index
    %c0_34 = arith.constant 0 : index
    %c0_35 = arith.constant 0 : index
    %c0_36 = arith.constant 0 : index
    %29 = vector.load %arg1[%c0_32, %c1_33, %c0_34, %c0_35, %c0_36] : memref<1x5x2x5x32xf32, #tpu.memory_space<vmem>>, vector<1x4x1x4x32xf32>
    %30 = vector.shape_cast %29 : vector<1x4x1x4x32xf32> to vector<16x32xf32>
    %31 = arith.truncf %30 : vector<16x32xf32> to vector<16x32xbf16>
    %c4 = arith.constant 4 : index
    %c0_37 = arith.constant 0 : index
    %c0_38 = arith.constant 0 : index
    %32 = vector.load %arg2[%c4, %c0_37, %c0_38] : memref<6x32x32xbf16, #tpu.memory_space<vmem>>, vector<1x32x32xbf16>
    %33 = vector.shape_cast %32 : vector<1x32x32xbf16> to vector<32x32xbf16>
    %cst_39 = arith.constant dense<0.000000e+00> : vector<16x32xf32>
    %34 = tpu.matmul %31, %33, %cst_39 {dimension_numbers = #tpu.dot_dimension_numbers<[1], [0], [0], [1], [0, 0, 1, 1], [], []>} : vector<16x32xbf16>, vector<32x32xbf16>, vector<16x32xf32> -> vector<16x32xf32>
    %35 = arith.addf %28, %34 : vector<16x32xf32>
    %c0_40 = arith.constant 0 : index
    %c1_41 = arith.constant 1 : index
    %c0_42 = arith.constant 0 : index
    %c1_43 = arith.constant 1 : index
    %c0_44 = arith.constant 0 : index
    %36 = vector.load %arg1[%c0_40, %c1_41, %c0_42, %c1_43, %c0_44] : memref<1x5x2x5x32xf32, #tpu.memory_space<vmem>>, vector<1x4x1x4x32xf32>
    %37 = vector.shape_cast %36 : vector<1x4x1x4x32xf32> to vector<16x32xf32>
    %38 = arith.truncf %37 : vector<16x32xf32> to vector<16x32xbf16>
    %c5 = arith.constant 5 : index
    %c0_45 = arith.constant 0 : index
    %c0_46 = arith.constant 0 : index
    %39 = vector.load %arg2[%c5, %c0_45, %c0_46] : memref<6x32x32xbf16, #tpu.memory_space<vmem>>, vector<1x32x32xbf16>
    %40 = vector.shape_cast %39 : vector<1x32x32xbf16> to vector<32x32xbf16>
    %cst_47 = arith.constant dense<0.000000e+00> : vector<16x32xf32>
    %41 = tpu.matmul %38, %40, %cst_47 {dimension_numbers = #tpu.dot_dimension_numbers<[1], [0], [0], [1], [0, 0, 1, 1], [], []>} : vector<16x32xbf16>, vector<32x32xbf16>, vector<16x32xf32> -> vector<16x32xf32>
    %42 = arith.addf %35, %41 : vector<16x32xf32>
    %c0_48 = arith.constant 0 : index
    %c0_49 = arith.constant 0 : index
    %43 = vector.load %arg3[%c0_48, %c0_49] : memref<1x32xf32, #tpu.memory_space<vmem>>, vector<1x32xf32>
    %44 = vector.broadcast %43 : vector<1x32xf32> to vector<16x32xf32>
    %45 = arith.addf %42, %44 : vector<16x32xf32>
    %cst_50 = arith.constant dense<0.000000e+00> : vector<32xf32>
    %46 = vector.multi_reduction <add>, %45, %cst_50 [0] : vector<16x32xf32> to vector<32xf32>
    %47 = vector.shape_cast %46 : vector<32xf32> to vector<1x32xf32>
    %cst_51 = arith.constant 1.600000e+01 : f32
    %48 = vector.broadcast %cst_51 : f32 to vector<1x32xf32>
    %49 = arith.divf %47, %48 : vector<1x32xf32>
    %50 = vector.broadcast %49 : vector<1x32xf32> to vector<16x32xf32>
    %51 = arith.subf %45, %50 : vector<16x32xf32>
    %52 = arith.mulf %51, %51 : vector<16x32xf32>
    %cst_52 = arith.constant dense<0.000000e+00> : vector<32xf32>
    %53 = vector.multi_reduction <add>, %52, %cst_52 [0] : vector<16x32xf32> to vector<32xf32>
    %54 = vector.shape_cast %53 : vector<32xf32> to vector<1x32xf32>
    %cst_53 = arith.constant 1.600000e+01 : f32
    %55 = vector.broadcast %cst_53 : f32 to vector<1x32xf32>
    %56 = arith.divf %54, %55 : vector<1x32xf32>
    %cst_54 = arith.constant 9.99999974E-6 : f32
    %57 = vector.broadcast %cst_54 : f32 to vector<1x32xf32>
    %58 = arith.addf %56, %57 : vector<1x32xf32>
    %59 = math.rsqrt %58 : vector<1x32xf32>
    %60 = vector.broadcast %59 : vector<1x32xf32> to vector<16x32xf32>
    %61 = arith.mulf %51, %60 : vector<16x32xf32>
    %cst_55 = arith.constant 0.000000e+00 : f32
    %62 = vector.broadcast %cst_55 : f32 to vector<16x32xf32>
    %63 = arith.maximumf %61, %62 : vector<16x32xf32>
    %64 = vector.shape_cast %63 : vector<16x32xf32> to vector<1x16x32xf32>
    %c0_56 = arith.constant 0 : index
    %c0_57 = arith.constant 0 : index
    %c0_58 = arith.constant 0 : index
    %65 = vector.load %arg4[%c0_56, %c0_57, %c0_58] : memref<1x16x32xf32, #tpu.memory_space<vmem>>, vector<1x16x32xf32>
    tpu.vector_store %arg4[%c0_56, %c0_57, %c0_58], %64 {strides = array<i32>} : memref<1x16x32xf32, #tpu.memory_space<vmem>>, vector<1x16x32xf32>,
    return
  }
  func.func @transform_0(%arg0: i32) -> (i32, i32, i32, i32, i32) {
    %c0_i32 = arith.constant 0 : i32
    %c0_i32_0 = arith.constant 0 : i32
    %c0_i32_1 = arith.constant 0 : i32
    %c0_i32_2 = arith.constant 0 : i32
    %c0_i32_3 = arith.constant 0 : i32
    return %arg0, %c0_i32, %c0_i32_0, %c0_i32_1, %c0_i32_2 : i32, i32, i32, i32, i32
  }
  func.func @transform_1(%arg0: i32) -> (i32, i32, i32) {
    %c0_i32 = arith.constant 0 : i32
    %c0_i32_0 = arith.constant 0 : i32
    %c0_i32_1 = arith.constant 0 : i32
    %c0_i32_2 = arith.constant 0 : i32
    return %c0_i32, %c0_i32_0, %c0_i32_1 : i32, i32, i32
  }
  func.func @transform_2(%arg0: i32) -> (i32, i32) {
    %c0_i32 = arith.constant 0 : i32
    %c0_i32_0 = arith.constant 0 : i32
    %c0_i32_1 = arith.constant 0 : i32
    return %c0_i32, %c0_i32_0 : i32, i32
  }
  func.func @transform_3(%arg0: i32) -> (i32, i32, i32) {
    %c0_i32 = arith.constant 0 : i32
    %c0_i32_0 = arith.constant 0 : i32
    %c0_i32_1 = arith.constant 0 : i32
    return %arg0, %c0_i32, %c0_i32_0 : i32, i32, i32
  }
}

module attributes {stable_mosaic.version = 11 : i64} {
  func.func @_conv3x3_s1_res_kernel(%arg0: i32, %arg1: memref<1x6x6x32xf32, #tpu.memory_space<vmem>>, %arg2: memref<9x32x32xbf16, #tpu.memory_space<vmem>>, %arg3: memref<1x32xf32, #tpu.memory_space<vmem>>, %arg4: memref<1x16x32xf32, #tpu.memory_space<vmem>>, %arg5: memref<1x16x32xf32, #tpu.memory_space<vmem>>) attributes {dimension_semantics = [#tpu.dimension_semantics<parallel>], iteration_bounds = array<i64: 2>, scalar_prefetch = 0 : i64, scratch_operands = 0 : i64, tpu.core_type = #tpu.core_type<tc>, window_params = [{transform_indices = @transform_0, window_bounds = array<i64: 1, 6, 6, 32>}, {pipeline_mode = #tpu.pipeline_mode<synchronous>, transform_indices = @transform_1, window_bounds = array<i64: 9, 32, 32>}, {pipeline_mode = #tpu.pipeline_mode<synchronous>, transform_indices = @transform_2, window_bounds = array<i64: 1, 32>}, {transform_indices = @transform_3, window_bounds = array<i64: 1, 16, 32>}, {transform_indices = @transform_4, window_bounds = array<i64: 1, 16, 32>}]} {
    %cst = arith.constant 0.000000e+00 : f32
    %0 = vector.broadcast %cst : f32 to vector<16x32xf32>
    %c0 = arith.constant 0 : index
    %c0_0 = arith.constant 0 : index
    %c0_1 = arith.constant 0 : index
    %c0_2 = arith.constant 0 : index
    %1 = vector.load %arg1[%c0, %c0_0, %c0_1, %c0_2] : memref<1x6x6x32xf32, #tpu.memory_space<vmem>>, vector<1x4x4x32xf32>
    %2 = vector.shape_cast %1 : vector<1x4x4x32xf32> to vector<16x32xf32>
    %3 = arith.truncf %2 : vector<16x32xf32> to vector<16x32xbf16>
    %c0_3 = arith.constant 0 : index
    %c0_4 = arith.constant 0 : index
    %c0_5 = arith.constant 0 : index
    %4 = vector.load %arg2[%c0_3, %c0_4, %c0_5] : memref<9x32x32xbf16, #tpu.memory_space<vmem>>, vector<1x32x32xbf16>
    %5 = vector.shape_cast %4 : vector<1x32x32xbf16> to vector<32x32xbf16>
    %cst_6 = arith.constant dense<0.000000e+00> : vector<16x32xf32>
    %6 = tpu.matmul %3, %5, %cst_6 {dimension_numbers = #tpu.dot_dimension_numbers<[1], [0], [0], [1], [0, 0, 1, 1], [], []>} : vector<16x32xbf16>, vector<32x32xbf16>, vector<16x32xf32> -> vector<16x32xf32>
    %7 = arith.addf %0, %6 : vector<16x32xf32>
    %c0_7 = arith.constant 0 : index
    %c0_8 = arith.constant 0 : index
    %c1 = arith.constant 1 : index
    %c0_9 = arith.constant 0 : index
    %8 = vector.load %arg1[%c0_7, %c0_8, %c1, %c0_9] : memref<1x6x6x32xf32, #tpu.memory_space<vmem>>, vector<1x4x4x32xf32>
    %9 = vector.shape_cast %8 : vector<1x4x4x32xf32> to vector<16x32xf32>
    %10 = arith.truncf %9 : vector<16x32xf32> to vector<16x32xbf16>
    %c1_10 = arith.constant 1 : index
    %c0_11 = arith.constant 0 : index
    %c0_12 = arith.constant 0 : index
    %11 = vector.load %arg2[%c1_10, %c0_11, %c0_12] : memref<9x32x32xbf16, #tpu.memory_space<vmem>>, vector<1x32x32xbf16>
    %12 = vector.shape_cast %11 : vector<1x32x32xbf16> to vector<32x32xbf16>
    %cst_13 = arith.constant dense<0.000000e+00> : vector<16x32xf32>
    %13 = tpu.matmul %10, %12, %cst_13 {dimension_numbers = #tpu.dot_dimension_numbers<[1], [0], [0], [1], [0, 0, 1, 1], [], []>} : vector<16x32xbf16>, vector<32x32xbf16>, vector<16x32xf32> -> vector<16x32xf32>
    %14 = arith.addf %7, %13 : vector<16x32xf32>
    %c0_14 = arith.constant 0 : index
    %c0_15 = arith.constant 0 : index
    %c2 = arith.constant 2 : index
    %c0_16 = arith.constant 0 : index
    %15 = vector.load %arg1[%c0_14, %c0_15, %c2, %c0_16] : memref<1x6x6x32xf32, #tpu.memory_space<vmem>>, vector<1x4x4x32xf32>
    %16 = vector.shape_cast %15 : vector<1x4x4x32xf32> to vector<16x32xf32>
    %17 = arith.truncf %16 : vector<16x32xf32> to vector<16x32xbf16>
    %c2_17 = arith.constant 2 : index
    %c0_18 = arith.constant 0 : index
    %c0_19 = arith.constant 0 : index
    %18 = vector.load %arg2[%c2_17, %c0_18, %c0_19] : memref<9x32x32xbf16, #tpu.memory_space<vmem>>, vector<1x32x32xbf16>
    %19 = vector.shape_cast %18 : vector<1x32x32xbf16> to vector<32x32xbf16>
    %cst_20 = arith.constant dense<0.000000e+00> : vector<16x32xf32>
    %20 = tpu.matmul %17, %19, %cst_20 {dimension_numbers = #tpu.dot_dimension_numbers<[1], [0], [0], [1], [0, 0, 1, 1], [], []>} : vector<16x32xbf16>, vector<32x32xbf16>, vector<16x32xf32> -> vector<16x32xf32>
    %21 = arith.addf %14, %20 : vector<16x32xf32>
    %c0_21 = arith.constant 0 : index
    %c1_22 = arith.constant 1 : index
    %c0_23 = arith.constant 0 : index
    %c0_24 = arith.constant 0 : index
    %22 = vector.load %arg1[%c0_21, %c1_22, %c0_23, %c0_24] : memref<1x6x6x32xf32, #tpu.memory_space<vmem>>, vector<1x4x4x32xf32>
    %23 = vector.shape_cast %22 : vector<1x4x4x32xf32> to vector<16x32xf32>
    %24 = arith.truncf %23 : vector<16x32xf32> to vector<16x32xbf16>
    %c3 = arith.constant 3 : index
    %c0_25 = arith.constant 0 : index
    %c0_26 = arith.constant 0 : index
    %25 = vector.load %arg2[%c3, %c0_25, %c0_26] : memref<9x32x32xbf16, #tpu.memory_space<vmem>>, vector<1x32x32xbf16>
    %26 = vector.shape_cast %25 : vector<1x32x32xbf16> to vector<32x32xbf16>
    %cst_27 = arith.constant dense<0.000000e+00> : vector<16x32xf32>
    %27 = tpu.matmul %24, %26, %cst_27 {dimension_numbers = #tpu.dot_dimension_numbers<[1], [0], [0], [1], [0, 0, 1, 1], [], []>} : vector<16x32xbf16>, vector<32x32xbf16>, vector<16x32xf32> -> vector<16x32xf32>
    %28 = arith.addf %21, %27 : vector<16x32xf32>
    %c0_28 = arith.constant 0 : index
    %c1_29 = arith.constant 1 : index
    %c1_30 = arith.constant 1 : index
    %c0_31 = arith.constant 0 : index
    %29 = vector.load %arg1[%c0_28, %c1_29, %c1_30, %c0_31] : memref<1x6x6x32xf32, #tpu.memory_space<vmem>>, vector<1x4x4x32xf32>
    %30 = vector.shape_cast %29 : vector<1x4x4x32xf32> to vector<16x32xf32>
    %31 = arith.truncf %30 : vector<16x32xf32> to vector<16x32xbf16>
    %c4 = arith.constant 4 : index
    %c0_32 = arith.constant 0 : index
    %c0_33 = arith.constant 0 : index
    %32 = vector.load %arg2[%c4, %c0_32, %c0_33] : memref<9x32x32xbf16, #tpu.memory_space<vmem>>, vector<1x32x32xbf16>
    %33 = vector.shape_cast %32 : vector<1x32x32xbf16> to vector<32x32xbf16>
    %cst_34 = arith.constant dense<0.000000e+00> : vector<16x32xf32>
    %34 = tpu.matmul %31, %33, %cst_34 {dimension_numbers = #tpu.dot_dimension_numbers<[1], [0], [0], [1], [0, 0, 1, 1], [], []>} : vector<16x32xbf16>, vector<32x32xbf16>, vector<16x32xf32> -> vector<16x32xf32>
    %35 = arith.addf %28, %34 : vector<16x32xf32>
    %c0_35 = arith.constant 0 : index
    %c1_36 = arith.constant 1 : index
    %c2_37 = arith.constant 2 : index
    %c0_38 = arith.constant 0 : index
    %36 = vector.load %arg1[%c0_35, %c1_36, %c2_37, %c0_38] : memref<1x6x6x32xf32, #tpu.memory_space<vmem>>, vector<1x4x4x32xf32>
    %37 = vector.shape_cast %36 : vector<1x4x4x32xf32> to vector<16x32xf32>
    %38 = arith.truncf %37 : vector<16x32xf32> to vector<16x32xbf16>
    %c5 = arith.constant 5 : index
    %c0_39 = arith.constant 0 : index
    %c0_40 = arith.constant 0 : index
    %39 = vector.load %arg2[%c5, %c0_39, %c0_40] : memref<9x32x32xbf16, #tpu.memory_space<vmem>>, vector<1x32x32xbf16>
    %40 = vector.shape_cast %39 : vector<1x32x32xbf16> to vector<32x32xbf16>
    %cst_41 = arith.constant dense<0.000000e+00> : vector<16x32xf32>
    %41 = tpu.matmul %38, %40, %cst_41 {dimension_numbers = #tpu.dot_dimension_numbers<[1], [0], [0], [1], [0, 0, 1, 1], [], []>} : vector<16x32xbf16>, vector<32x32xbf16>, vector<16x32xf32> -> vector<16x32xf32>
    %42 = arith.addf %35, %41 : vector<16x32xf32>
    %c0_42 = arith.constant 0 : index
    %c2_43 = arith.constant 2 : index
    %c0_44 = arith.constant 0 : index
    %c0_45 = arith.constant 0 : index
    %43 = vector.load %arg1[%c0_42, %c2_43, %c0_44, %c0_45] : memref<1x6x6x32xf32, #tpu.memory_space<vmem>>, vector<1x4x4x32xf32>
    %44 = vector.shape_cast %43 : vector<1x4x4x32xf32> to vector<16x32xf32>
    %45 = arith.truncf %44 : vector<16x32xf32> to vector<16x32xbf16>
    %c6 = arith.constant 6 : index
    %c0_46 = arith.constant 0 : index
    %c0_47 = arith.constant 0 : index
    %46 = vector.load %arg2[%c6, %c0_46, %c0_47] : memref<9x32x32xbf16, #tpu.memory_space<vmem>>, vector<1x32x32xbf16>
    %47 = vector.shape_cast %46 : vector<1x32x32xbf16> to vector<32x32xbf16>
    %cst_48 = arith.constant dense<0.000000e+00> : vector<16x32xf32>
    %48 = tpu.matmul %45, %47, %cst_48 {dimension_numbers = #tpu.dot_dimension_numbers<[1], [0], [0], [1], [0, 0, 1, 1], [], []>} : vector<16x32xbf16>, vector<32x32xbf16>, vector<16x32xf32> -> vector<16x32xf32>
    %49 = arith.addf %42, %48 : vector<16x32xf32>
    %c0_49 = arith.constant 0 : index
    %c2_50 = arith.constant 2 : index
    %c1_51 = arith.constant 1 : index
    %c0_52 = arith.constant 0 : index
    %50 = vector.load %arg1[%c0_49, %c2_50, %c1_51, %c0_52] : memref<1x6x6x32xf32, #tpu.memory_space<vmem>>, vector<1x4x4x32xf32>
    %51 = vector.shape_cast %50 : vector<1x4x4x32xf32> to vector<16x32xf32>
    %52 = arith.truncf %51 : vector<16x32xf32> to vector<16x32xbf16>
    %c7 = arith.constant 7 : index
    %c0_53 = arith.constant 0 : index
    %c0_54 = arith.constant 0 : index
    %53 = vector.load %arg2[%c7, %c0_53, %c0_54] : memref<9x32x32xbf16, #tpu.memory_space<vmem>>, vector<1x32x32xbf16>
    %54 = vector.shape_cast %53 : vector<1x32x32xbf16> to vector<32x32xbf16>
    %cst_55 = arith.constant dense<0.000000e+00> : vector<16x32xf32>
    %55 = tpu.matmul %52, %54, %cst_55 {dimension_numbers = #tpu.dot_dimension_numbers<[1], [0], [0], [1], [0, 0, 1, 1], [], []>} : vector<16x32xbf16>, vector<32x32xbf16>, vector<16x32xf32> -> vector<16x32xf32>
    %56 = arith.addf %49, %55 : vector<16x32xf32>
    %c0_56 = arith.constant 0 : index
    %c2_57 = arith.constant 2 : index
    %c2_58 = arith.constant 2 : index
    %c0_59 = arith.constant 0 : index
    %57 = vector.load %arg1[%c0_56, %c2_57, %c2_58, %c0_59] : memref<1x6x6x32xf32, #tpu.memory_space<vmem>>, vector<1x4x4x32xf32>
    %58 = vector.shape_cast %57 : vector<1x4x4x32xf32> to vector<16x32xf32>
    %59 = arith.truncf %58 : vector<16x32xf32> to vector<16x32xbf16>
    %c8 = arith.constant 8 : index
    %c0_60 = arith.constant 0 : index
    %c0_61 = arith.constant 0 : index
    %60 = vector.load %arg2[%c8, %c0_60, %c0_61] : memref<9x32x32xbf16, #tpu.memory_space<vmem>>, vector<1x32x32xbf16>
    %61 = vector.shape_cast %60 : vector<1x32x32xbf16> to vector<32x32xbf16>
    %cst_62 = arith.constant dense<0.000000e+00> : vector<16x32xf32>
    %62 = tpu.matmul %59, %61, %cst_62 {dimension_numbers = #tpu.dot_dimension_numbers<[1], [0], [0], [1], [0, 0, 1, 1], [], []>} : vector<16x32xbf16>, vector<32x32xbf16>, vector<16x32xf32> -> vector<16x32xf32>
    %63 = arith.addf %56, %62 : vector<16x32xf32>
    %c0_63 = arith.constant 0 : index
    %c0_64 = arith.constant 0 : index
    %64 = vector.load %arg3[%c0_63, %c0_64] : memref<1x32xf32, #tpu.memory_space<vmem>>, vector<1x32xf32>
    %65 = vector.broadcast %64 : vector<1x32xf32> to vector<16x32xf32>
    %66 = arith.addf %63, %65 : vector<16x32xf32>
    %67 = vector.shape_cast %66 : vector<16x32xf32> to vector<1x16x32xf32>
    %c0_65 = arith.constant 0 : index
    %c0_66 = arith.constant 0 : index
    %c0_67 = arith.constant 0 : index
    %68 = vector.load %arg4[%c0_65, %c0_66, %c0_67] : memref<1x16x32xf32, #tpu.memory_space<vmem>>, vector<1x16x32xf32>
    %69 = arith.addf %67, %68 : vector<1x16x32xf32>
    %c0_68 = arith.constant 0 : index
    %c0_69 = arith.constant 0 : index
    %c0_70 = arith.constant 0 : index
    %70 = vector.load %arg5[%c0_68, %c0_69, %c0_70] : memref<1x16x32xf32, #tpu.memory_space<vmem>>, vector<1x16x32xf32>
    tpu.vector_store %arg5[%c0_68, %c0_69, %c0_70], %69 {strides = array<i32>} : memref<1x16x32xf32, #tpu.memory_space<vmem>>, vector<1x16x32xf32>,
    return
  }
  func.func @transform_0(%arg0: i32) -> (i32, i32, i32, i32) {
    %c0_i32 = arith.constant 0 : i32
    %c0_i32_0 = arith.constant 0 : i32
    %c0_i32_1 = arith.constant 0 : i32
    %c0_i32_2 = arith.constant 0 : i32
    return %arg0, %c0_i32, %c0_i32_0, %c0_i32_1 : i32, i32, i32, i32
  }
  func.func @transform_1(%arg0: i32) -> (i32, i32, i32) {
    %c0_i32 = arith.constant 0 : i32
    %c0_i32_0 = arith.constant 0 : i32
    %c0_i32_1 = arith.constant 0 : i32
    %c0_i32_2 = arith.constant 0 : i32
    return %c0_i32, %c0_i32_0, %c0_i32_1 : i32, i32, i32
  }
  func.func @transform_2(%arg0: i32) -> (i32, i32) {
    %c0_i32 = arith.constant 0 : i32
    %c0_i32_0 = arith.constant 0 : i32
    %c0_i32_1 = arith.constant 0 : i32
    return %c0_i32, %c0_i32_0 : i32, i32
  }
  func.func @transform_3(%arg0: i32) -> (i32, i32, i32) {
    %c0_i32 = arith.constant 0 : i32
    %c0_i32_0 = arith.constant 0 : i32
    %c0_i32_1 = arith.constant 0 : i32
    return %arg0, %c0_i32, %c0_i32_0 : i32, i32, i32
  }
  func.func @transform_4(%arg0: i32) -> (i32, i32, i32) {
    %c0_i32 = arith.constant 0 : i32
    %c0_i32_0 = arith.constant 0 : i32
    %c0_i32_1 = arith.constant 0 : i32
    return %arg0, %c0_i32, %c0_i32_0 : i32, i32, i32
  }
}

</mosaic_0001>

<llo_original>
// kernel: encoder_forward.9
$region0: #{encoder_forward.9}
  #allocation0 [shape = 'u32[]', space=smem, size = 0x4, offset = 0x4, fixed_abs, tag = 'smem constant byte address 0x4 - core index']
  #allocation1 [shape = 'u32[144,128]{1,0:T(1,128)}', space=vmem, size = 0x12000, scoped, tag = 'internal scratch']
  %s0 = inlined_call_operand.vmem [shape: f32[2,8,2,8,16], index: 0, kind: input, shape index: {}]
  %s1 = inlined_call_operand.vmem [shape: bf16[16,16], index: 1, kind: input, shape index: {}]
  %s2 = inlined_call_operand.vmem [shape: f32[1,16], index: 2, kind: input, shape index: {}]
  %s3 = inlined_call_operand.vmem [shape: f32[2,8,2,8,16], index: 3, kind: output, shape index: {0}]
  %s4 = inlined_call_operand.vmem [shape: f32[2,64,16], index: 4, kind: output, shape index: {1}]
  %5 = xla_tuple %s3, %s4
  %s6 = sld [smem:[#allocation0]]
  $region53: #{encoder_forward.9} parent=0
    _
  %s8 = ssub.s32 1, %s6
  %s9 = scalar_select 0, %s8, %s6
  loop: start=0, step=1, limit=4
  $region2: #{encoder_forward.9} parent=0 // loop_pre_header
    _
  $region3: #{encoder_forward.9} parent=0 // loop_header
    %s11 = sphi 0, %s15
    %p12 = scmp.ge.s32.totalorder %s11, 4
    %s21 = sphi 0, %s23
    %s24 = sphi 0, %s21
    %s25 = sphi 0, %s24
    %s41 = sphi 0, %s25
    %s45 = sphi 0, %s45
    %s47 = sphi 0, %s45
    %s48 = sphi 0, %s47
    %s62 = sphi 0, %s48
    %s66 = sphi 0, %s66
    %s68 = sphi 0, %s66
    %s69 = sphi 0, %s68
    %s83 = sphi 0, %s69
    %s89 = sphi 0, %s91
    %s92 = sphi 0, %s89
    %s93 = sphi 0, %s92
    %s109 = sphi 0, %s93
    %s115 = sphi 0, %s117
    %s118 = sphi 0, %s115
    %s119 = sphi 0, %s118
    %s135 = sphi 0, %s119
  $region4: #{encoder_forward.9} parent=0 // loop_header_branch
    %14 = sbr.rel (%p12) target = $region8
  $region5: #{encoder_forward.9} parent=0 // loop_body
    %s16 = ssub.s32 %s11, 1
    %s17 = ssub.s32 %s11, 2
    %s18 = sadd.s32 %s11, 1
    %s19 = ssub.s32 %s11, %s18
    %p20 = scmp.eq.s32.totalorder %s19, 0
    %s22 = sadd.s32 %s21, 1
    %s23 = scalar_select %p20, %s21, %s22
    %p26 = pneg %p20
    %p27 = scmp.eq.s32.totalorder %s11, 1
    %p28 = por %p26, %p27
    %p29 = scmp.ne.s32.totalorder %s21, %s24
    %p30 = scmp.eq.s32.totalorder %s11, 0
    %p31 = por %p29, %p30
    %p32 = scmp.ne.s32.totalorder %s21, %s24
    %p33 = scmp.eq.s32.totalorder %s16, 1
    %p34 = por %p32, %p33
    %p35 = scmp.ne.s32.totalorder %s24, %s25
    %p36 = scmp.eq.s32.totalorder %s16, 0
    %p37 = por %p35, %p36
    %p38 = scmp.ne.s32.totalorder %s24, %s25
    %p39 = scmp.eq.s32.totalorder %s17, 1
    %p40 = por %p38, %p39
    %p42 = scmp.ne.s32.totalorder %s25, %s41
    %p43 = scmp.eq.s32.totalorder %s17, 0
    %p44 = por %p42, %p43
    %s46 = sadd.s32 %s45, 1
    %p49 = scmp.eq.s32.totalorder %s11, 1
    %p50 = scmp.ne.s32.totalorder %s45, %s47
    %p51 = scmp.eq.s32.totalorder %s11, 0
    %p52 = por %p50, %p51
    %p53 = scmp.ne.s32.totalorder %s45, %s47
    %p54 = scmp.eq.s32.totalorder %s16, 1
    %p55 = por %p53, %p54
    %p56 = scmp.ne.s32.totalorder %s47, %s48
    %p57 = scmp.eq.s32.totalorder %s16, 0
    %p58 = por %p56, %p57
    %p59 = scmp.ne.s32.totalorder %s47, %s48
    %p60 = scmp.eq.s32.totalorder %s17, 1
    %p61 = por %p59, %p60
    %p63 = scmp.ne.s32.totalorder %s48, %s62
    %p64 = scmp.eq.s32.totalorder %s17, 0
    %p65 = por %p63, %p64
    %s67 = sadd.s32 %s66, 1
    %p70 = scmp.eq.s32.totalorder %s11, 1
    %p71 = scmp.ne.s32.totalorder %s66, %s68
    %p72 = scmp.eq.s32.totalorder %s11, 0
    %p73 = por %p71, %p72
    %p74 = scmp.ne.s32.totalorder %s66, %s68
    %p75 = scmp.eq.s32.totalorder %s16, 1
    %p76 = por %p74, %p75
    %p77 = scmp.ne.s32.totalorder %s68, %s69
    %p78 = scmp.eq.s32.totalorder %s16, 0
    %p79 = por %p77, %p78
    %p80 = scmp.ne.s32.totalorder %s68, %s69
    %p81 = scmp.eq.s32.totalorder %s17, 1
    %p82 = por %p80, %p81
    %p84 = scmp.ne.s32.totalorder %s69, %s83
    %p85 = scmp.eq.s32.totalorder %s17, 0
    %p86 = por %p84, %p85
    %s87 = ssub.s32 %s11, %s18
    %p88 = scmp.eq.s32.totalorder %s87, 0
    %s90 = sadd.s32 %s89, 1
    %s91 = scalar_select %p88, %s89, %s90
    %p94 = pneg %p88
    %p95 = scmp.eq.s32.totalorder %s11, 1
    %p96 = por %p94, %p95
    %p97 = scmp.ne.s32.totalorder %s89, %s92
    %p98 = scmp.eq.s32.totalorder %s11, 0
    %p99 = por %p97, %p98
    %p100 = scmp.ne.s32.totalorder %s89, %s92
    %p101 = scmp.eq.s32.totalorder %s16, 1
    %p102 = por %p100, %p101
    %p103 = scmp.ne.s32.totalorder %s92, %s93
    %p104 = scmp.eq.s32.totalorder %s16, 0
    %p105 = por %p103, %p104
    %p106 = scmp.ne.s32.totalorder %s92, %s93
    %p107 = scmp.eq.s32.totalorder %s17, 1
    %p108 = por %p106, %p107
    %p110 = scmp.ne.s32.totalorder %s93, %s109
    %p111 = scmp.eq.s32.totalorder %s17, 0
    %p112 = por %p110, %p111
    %s113 = ssub.s32 %s11, %s18
    %p114 = scmp.eq.s32.totalorder %s113, 0
    %s116 = sadd.s32 %s115, 1
    %s117 = scalar_select %p114, %s115, %s116
    %p120 = pneg %p114
    %p121 = scmp.eq.s32.totalorder %s11, 1
    %p122 = por %p120, %p121
    %p123 = scmp.ne.s32.totalorder %s115, %s118
    %p124 = scmp.eq.s32.totalorder %s11, 0
    %p125 = por %p123, %p124
    %p126 = scmp.ne.s32.totalorder %s115, %s118
    %p127 = scmp.eq.s32.totalorder %s16, 1
    %p128 = por %p126, %p127
    %p129 = scmp.ne.s32.totalorder %s118, %s119
    %p130 = scmp.eq.s32.totalorder %s16, 0
    %p131 = por %p129, %p130
    %p132 = scmp.ne.s32.totalorder %s118, %s119
    %p133 = scmp.eq.s32.totalorder %s17, 1
    %p134 = por %p132, %p133
    %p136 = scmp.ne.s32.totalorder %s119, %s135
    %p137 = scmp.eq.s32.totalorder %s17, 0
    %p138 = por %p136, %p137
    %p139 = scmp.le.s32.totalorder 1, %s11
    %p140 = scmp.lt.s32.totalorder %s11, 3
    %p141 = pnand %p139, %p140
    %p142 = pneg %p141
    // Predicated region
    $region9: #{encoder_forward.9} parent=5 // pred_check
      _
    $region10: #{encoder_forward.9} parent=5 // pred_check_branch
      %144 = sbr.rel (%p141) target = $region12
    $region11: #{encoder_forward.9} parent=5 // pred_region
      %s145 = ssub.s32 %s11, 1
      // Predicated region
      $region13: #{encoder_forward.9} parent=11 // pred_check
        %p146 = pneg %p58
      $region14: #{encoder_forward.9} parent=11 // pred_check_branch
        %148 = sbr.rel (%p146) target = $region16
      $region15: #{encoder_forward.9} parent=11 // pred_region
        _
      $region16: #{encoder_forward.9} parent=11 // pred_fallthru
        _
      // Predicated region
      $region17: #{encoder_forward.9} parent=11 // pred_check
        %p149 = pneg %p79
      $region18: #{encoder_forward.9} parent=11 // pred_check_branch
        %151 = sbr.rel (%p149) target = $region20
      $region19: #{encoder_forward.9} parent=11 // pred_region
        _
      $region20: #{encoder_forward.9} parent=11 // pred_fallthru
        _
    $region12: #{encoder_forward.9} parent=5 // pred_fallthru
      _
    %p152 = scmp.lt.s32.totalorder %s11, 2
    // Predicated region
    $region21: #{encoder_forward.9} parent=5 // pred_check
      %p153 = pneg %p152
    $region22: #{encoder_forward.9} parent=5 // pred_check_branch
      %155 = sbr.rel (%p153) target = $region24
    $region23: #{encoder_forward.9} parent=5 // pred_region
      // Predicated region
      $region25: #{encoder_forward.9} parent=23 // pred_check
        %p156 = pneg %p31
      $region26: #{encoder_forward.9} parent=23 // pred_check_branch
        %158 = sbr.rel (%p156) target = $region28
      $region27: #{encoder_forward.9} parent=23 // pred_region
        %p159 = scmp.lt.s32.totalorder %s11, 1
        %s160 = scalar_select %p159, %s11, 1
        %s161 = smul.addr %s160, 16
        %s162 = smul.addr %s161, 8
        %s163 = scalar_lea.vmem %s0, %s162
      $region28: #{encoder_forward.9} parent=23 // pred_fallthru
        _
    $region24: #{encoder_forward.9} parent=5 // pred_fallthru
      _
    %p164 = scmp.le.s32.totalorder 1, %s11
    %p165 = scmp.lt.s32.totalorder %s11, 3
    %p166 = pnand %p164, %p165
    %p167 = pneg %p166
    // Predicated region
    $region29: #{encoder_forward.9} parent=5 // pred_check
      _
    $region30: #{encoder_forward.9} parent=5 // pred_check_branch
      %169 = sbr.rel (%p166) target = $region32
    $region31: #{encoder_forward.9} parent=5 // pred_region
      %s170 = ssub.s32 %s11, 1
      %p171 = scmp.lt.s32.totalorder %s16, 1
      %s172 = scalar_select %p171, %s16, 1
      %s173 = smul.addr %s172, 16
      %s174 = smul.addr %s173, 8
      %s175 = scalar_lea.vmem %s0, %s174
      %p176 = pneg %p37
      %p177 = pneg %p34
      %p178 = pneg %p58
      %p179 = pneg %p55
      %p180 = pneg %p79
      %p181 = pneg %p76
      %p182 = pneg %p105
      %p183 = pneg %p102
      %p184 = scmp.lt.s32.totalorder %s16, 1
      %s185 = scalar_select %p184, %s16, 1
      %s186 = smul.addr %s185, 16
      %s187 = smul.addr %s186, 8
      %s188 = scalar_lea.vmem %s3, %s187
      %p189 = pneg %p131
      %p190 = pneg %p128
      %p191 = scmp.lt.s32.totalorder %s16, 1
      %s192 = scalar_select %p191, %s16, 1
      %s193 = smul.addr %s192, 8
      %s194 = smul.addr %s193, 8
      %s195 = scalar_lea.vmem %s4, %s194
      %p196 = scmp.lt.s32.totalorder %s16, 1
      %s197 = scalar_select %p196, %s16, 1
      %s198 = smul.addr %s197, 16
      %s199 = smul.addr %s198, 8
      %s200 = scalar_lea.vmem %s0, %s199
      %p201 = scmp.lt.s32.totalorder %s16, 1
      %s202 = scalar_select %p201, %s16, 1
      %s203 = smul.addr %s202, 16
      %s204 = smul.addr %s203, 8
      %s205 = scalar_lea.vmem %s3, %s204
      %p206 = scmp.lt.s32.totalorder %s16, 1
      %s207 = scalar_select %p206, %s16, 1
      %s208 = smul.addr %s207, 8
      %s209 = smul.addr %s208, 8
      %s210 = scalar_lea.vmem %s4, %s209
      %v212 = vld [vmem:[%s200] sm:$0xff]
      %v213 = vld [vmem:[%s200 + $0x8] sm:$0xff]
      %v214 = vld [vmem:[%s200 + $0x10] sm:$0xff]
      %v215 = vld [vmem:[%s200 + $0x18] sm:$0xff]
      %v216 = vld [vmem:[%s200 + $0x20] sm:$0xff]
      %v217 = vld [vmem:[%s200 + $0x28] sm:$0xff]
      %v218 = vld [vmem:[%s200 + $0x30] sm:$0xff]
      %v219 = vld [vmem:[%s200 + $0x38] sm:$0xff]
      %v220 = vld [vmem:[%s200 + $0x40] sm:$0xff]
      %v221 = vld [vmem:[%s200 + $0x48] sm:$0xff]
      %v222 = vld [vmem:[%s200 + $0x50] sm:$0xff]
      %v223 = vld [vmem:[%s200 + $0x58] sm:$0xff]
      %v224 = vld [vmem:[%s200 + $0x60] sm:$0xff]
      %v225 = vld [vmem:[%s200 + $0x68] sm:$0xff]
      %v226 = vld [vmem:[%s200 + $0x70] sm:$0xff]
      %v227 = vld [vmem:[%s200 + $0x78] sm:$0xff]
      %vm228 = vcmask 130048
      %v229 = vsel %vm228, %v212, 0.0
      %v230 = vsel %vm228, %v213, 0.0
      %v231 = vadd.f32 %v229, %v230
      %v232 = vsel %vm228, %v214, 0.0
      %v233 = vadd.f32 %v231, %v232
      %v234 = vsel %vm228, %v215, 0.0
      %v235 = vadd.f32 %v233, %v234
      %v236 = vsel %vm228, %v216, 0.0
      %v237 = vadd.f32 %v235, %v236
      %v238 = vsel %vm228, %v217, 0.0
      %v239 = vadd.f32 %v237, %v238
      %v240 = vsel %vm228, %v218, 0.0
      %v241 = vadd.f32 %v239, %v240
      %v242 = vsel %vm228, %v219, 0.0
      %v243 = vadd.f32 %v241, %v242
      %v244 = vsel %vm228, %v220, 0.0
      %v245 = vadd.f32 %v243, %v244
      %v246 = vsel %vm228, %v221, 0.0
      %v247 = vadd.f32 %v245, %v246
      %v248 = vsel %vm228, %v222, 0.0
      %v249 = vadd.f32 %v247, %v248
      %v250 = vsel %vm228, %v223, 0.0
      %v251 = vadd.f32 %v249, %v250
      %v252 = vsel %vm228, %v224, 0.0
      %v253 = vadd.f32 %v251, %v252
      %v254 = vsel %vm228, %v225, 0.0
      %v255 = vadd.f32 %v253, %v254
      %v256 = vsel %vm228, %v226, 0.0
      %v257 = vadd.f32 %v255, %v256
      %v258 = vsel %vm228, %v227, 0.0
      %v259 = vadd.f32 %v257, %v258
      %v260 = vrot.slane %v259, 4
      %v261 = vadd.f32 %v259, %v260
      %v262 = vrot.slane %v261, 2
      %v263 = vadd.f32 %v261, %v262
      %v264 = vrot.slane %v263, 1
      %v265 = vadd.f32 %v263, %v264
      %267 = vrot.lane.b32.xlu0 %v265, 120
      %v268 = vpop.permute.xlu0 %267
      %v270 = vadd.f32 %v265, %v268
      %v271 = vmul.f32 %v270, 0.00390625
      %273 = vrot.lane.b32.xlu0 %v271, 8
      %v274 = vpop.permute.xlu0 %273
      %vm276 = vcmask 64512
      %v277 = vsel %vm276, %v271, %v274
      %v278 = vlaneseq
      %v279 = vshrl.u32 %v278, 7
      %v280 = vsub.s32 0, %v279
      %v281 = vrot.slane %v277, %v280
      %v282 = vsub.f32 %v212, %v281
      %v283 = vsub.f32 %v213, %v281
      %v284 = vsub.f32 %v214, %v281
      %v285 = vsub.f32 %v215, %v281
      %v286 = vsub.f32 %v216, %v281
      %v287 = vsub.f32 %v217, %v281
      %v288 = vsub.f32 %v218, %v281
      %v289 = vsub.f32 %v219, %v281
      %v290 = vsub.f32 %v220, %v281
      %v291 = vsub.f32 %v221, %v281
      %v292 = vsub.f32 %v222, %v281
      %v293 = vsub.f32 %v223, %v281
      %v294 = vsub.f32 %v224, %v281
      %v295 = vsub.f32 %v225, %v281
      %v296 = vsub.f32 %v226, %v281
      %v297 = vsub.f32 %v227, %v281
      %v298 = vmul.f32 %v282, %v282
      %v299 = vmul.f32 %v283, %v283
      %v300 = vmul.f32 %v284, %v284
      %v301 = vmul.f32 %v285, %v285
      %v302 = vmul.f32 %v286, %v286
      %v303 = vmul.f32 %v287, %v287
      %v304 = vmul.f32 %v288, %v288
      %v305 = vmul.f32 %v289, %v289
      %v306 = vmul.f32 %v290, %v290
      %v307 = vmul.f32 %v291, %v291
      %v308 = vmul.f32 %v292, %v292
      %v309 = vmul.f32 %v293, %v293
      %v310 = vmul.f32 %v294, %v294
      %v311 = vmul.f32 %v295, %v295
      %v312 = vmul.f32 %v296, %v296
      %v313 = vmul.f32 %v297, %v297
      %v314 = vsel %vm228, %v298, 0.0
      %v315 = vsel %vm228, %v299, 0.0
      %v316 = vadd.f32 %v314, %v315
      %v317 = vsel %vm228, %v300, 0.0
      %v318 = vadd.f32 %v316, %v317
      %v319 = vsel %vm228, %v301, 0.0
      %v320 = vadd.f32 %v318, %v319
      %v321 = vsel %vm228, %v302, 0.0
      %v322 = vadd.f32 %v320, %v321
      %v323 = vsel %vm228, %v303, 0.0
      %v324 = vadd.f32 %v322, %v323
      %v325 = vsel %vm228, %v304, 0.0
      %v326 = vadd.f32 %v324, %v325
      %v327 = vsel %vm228, %v305, 0.0
      %v328 = vadd.f32 %v326, %v327
      %v329 = vsel %vm228, %v306, 0.0
      %v330 = vadd.f32 %v328, %v329
      %v331 = vsel %vm228, %v307, 0.0
      %v332 = vadd.f32 %v330, %v331
      %v333 = vsel %vm228, %v308, 0.0
      %v334 = vadd.f32 %v332, %v333
      %v335 = vsel %vm228, %v309, 0.0
      %v336 = vadd.f32 %v334, %v335
      %v337 = vsel %vm228, %v310, 0.0
      %v338 = vadd.f32 %v336, %v337
      %v339 = vsel %vm228, %v311, 0.0
      %v340 = vadd.f32 %v338, %v339
      %v341 = vsel %vm228, %v312, 0.0
      %v342 = vadd.f32 %v340, %v341
      %v343 = vsel %vm228, %v313, 0.0
      %v344 = vadd.f32 %v342, %v343
      %v345 = vrot.slane %v344, 4
      %v346 = vadd.f32 %v344, %v345
      %v347 = vrot.slane %v346, 2
      %v348 = vadd.f32 %v346, %v347
      %v349 = vrot.slane %v348, 1
      %v350 = vadd.f32 %v348, %v349
      %352 = vrot.lane.b32.xlu0 %v350, 120
      %v353 = vpop.permute.xlu0 %352
      %v355 = vadd.f32 %v350, %v353
      %v356 = vmul.f32 %v355, 0.00390625
      %v357 = vadd.f32 %v356, 1e-05
      %v358 = vrsqrt.pop %v357
      %360 = vrot.lane.b32.xlu0 %v358, 8
      %v361 = vpop.permute.xlu0 %360
      %v363 = vsel %vm276, %v358, %v361
      %v364 = vlaneseq
      %v365 = vshrl.u32 %v364, 7
      %v366 = vsub.s32 0, %v365
      %v367 = vrot.slane %v363, %v366
      %v368 = vmul.f32 %v282, %v367
      %v369 = vmul.f32 %v283, %v367
      %v370 = vmul.f32 %v284, %v367
      %v371 = vmul.f32 %v285, %v367
      %v372 = vmul.f32 %v286, %v367
      %v373 = vmul.f32 %v287, %v367
      %v374 = vmul.f32 %v288, %v367
      %v375 = vmul.f32 %v289, %v367
      %v376 = vmul.f32 %v290, %v367
      %v377 = vmul.f32 %v291, %v367
      %v378 = vmul.f32 %v292, %v367
      %v379 = vmul.f32 %v293, %v367
      %v380 = vmul.f32 %v294, %v367
      %v381 = vmul.f32 %v295, %v367
      %v382 = vmul.f32 %v296, %v367
      %v383 = vmul.f32 %v297, %v367
      %v384 = vmax.f32 %v368, 0.0
      %v385 = vmax.f32 %v369, 0.0
      %v386 = vmax.f32 %v370, 0.0
      %v387 = vmax.f32 %v371, 0.0
      %v388 = vmax.f32 %v372, 0.0
      %v389 = vmax.f32 %v373, 0.0
      %v390 = vmax.f32 %v374, 0.0
      %v391 = vmax.f32 %v375, 0.0
      %v392 = vmax.f32 %v376, 0.0
      %v393 = vmax.f32 %v377, 0.0
      %v394 = vmax.f32 %v378, 0.0
      %v395 = vmax.f32 %v379, 0.0
      %v396 = vmax.f32 %v380, 0.0
      %v397 = vmax.f32 %v381, 0.0
      %v398 = vmax.f32 %v382, 0.0
      %v399 = vmax.f32 %v383, 0.0
      %400 = vst.msk [vmem:[%s205] sm:$0xff] %vm228, %v384
      %401 = vst.msk [vmem:[%s205 + $0x8] sm:$0xff] %vm228, %v385
      %402 = vst.msk [vmem:[%s205 + $0x10] sm:$0xff] %vm228, %v386
      %403 = vst.msk [vmem:[%s205 + $0x18] sm:$0xff] %vm228, %v387
      %404 = vst.msk [vmem:[%s205 + $0x20] sm:$0xff] %vm228, %v388
      %405 = vst.msk [vmem:[%s205 + $0x28] sm:$0xff] %vm228, %v389
      %406 = vst.msk [vmem:[%s205 + $0x30] sm:$0xff] %vm228, %v390
      %407 = vst.msk [vmem:[%s205 + $0x38] sm:$0xff] %vm228, %v391
      %408 = vst.msk [vmem:[%s205 + $0x40] sm:$0xff] %vm228, %v392
      %409 = vst.msk [vmem:[%s205 + $0x48] sm:$0xff] %vm228, %v393
      %410 = vst.msk [vmem:[%s205 + $0x50] sm:$0xff] %vm228, %v394
      %411 = vst.msk [vmem:[%s205 + $0x58] sm:$0xff] %vm228, %v395
      %412 = vst.msk [vmem:[%s205 + $0x60] sm:$0xff] %vm228, %v396
      %413 = vst.msk [vmem:[%s205 + $0x68] sm:$0xff] %vm228, %v397
      %414 = vst.msk [vmem:[%s205 + $0x70] sm:$0xff] %vm228, %v398
      %415 = vst.msk [vmem:[%s205 + $0x78] sm:$0xff] %vm228, %v399
      %v416 = vpack.c.bf16 %v214, %v212
      %v417 = vpack.c.bf16 %v218, %v216
      %v418 = vpack.c.bf16 %v222, %v220
      %v419 = vpack.c.bf16 %v226, %v224
      %v420 = vld [vmem:[%s1] sm:$0xf]
      %v421 = vld [vmem:[%s1 + $0x4] sm:$0xf]
      %v422 = vld [vmem:[%s2] sm:$0x1]
      %v424 = vlaneseq
      %v425 = vshrl.u32 %v424, 7
      %v426 = vsub.s32 0, %v425
      %v427 = vrot.slane %v422, %v426
      %v431 = vunpack.c.l.b16 %v420
      %v432 = vunpack.c.l.b16 %v421
      %v433 = vpack.c.b16 %v432, %v431
      %v436 = vsel %vm228, %v416, 0
      %v439 = vsel %vm228, %v417, 0
      %v442 = vsel %vm228, %v418, 0
      %v445 = vsel %vm228, %v419, 0
      %447 = vmatprep.subr.bf16.mxu0 0
      %448 = vmatpush1.bf16.msra.mxu0 0
      %449 = vmatprep.subr.bf16.mxu0 0
      %450 = vmatpush1.bf16.msra.mxu0 0
      %451 = vmatprep.subr.bf16.mxu0 0
      %452 = vmatpush1.bf16.msra.mxu0 0
      %453 = vmatprep.subr.bf16.mxu0 0
      %454 = vmatpush1.bf16.msra.mxu0 0
      %455 = vmatprep.subr.bf16.mxu0 0
      %456 = vmatpush1.bf16.msra.mxu0 0
      %457 = vmatprep.subr.bf16.mxu0 0
      %458 = vmatpush1.bf16.msra.mxu0 0
      %459 = vmatprep.subr.bf16.mxu0 0
      %460 = vmatpush1.bf16.msra.mxu0 0
      %461 = vmatprep.subr.bf16.mxu0 0
      %462 = vmatpush1.bf16.msra.mxu0 %v433
      %463 = vmatprep.subr.bf16.mxu0 0
      %464 = vmatpush2.bf16.msra.mxu0 0
      %465 = vmatprep.subr.bf16.mxu0 0
      %466 = vmatpush2.bf16.msra.mxu0 0
      %467 = vmatprep.subr.bf16.mxu0 0
      %468 = vmatpush2.bf16.msra.mxu0 0
      %469 = vmatprep.subr.bf16.mxu0 0
      %470 = vmatpush2.bf16.msra.mxu0 0
      %471 = vmatprep.subr.bf16.mxu0 0
      %472 = vmatpush2.bf16.msra.mxu0 0
      %473 = vmatprep.subr.bf16.mxu0 0
      %474 = vmatpush2.bf16.msra.mxu0 0
      %475 = vmatprep.subr.bf16.mxu0 0
      %476 = vmatpush2.bf16.msra.mxu0 0
      %477 = vmatprep.subr.bf16.mxu0 0
      %478 = vmatpush2.bf16.msra.mxu0 0
      %479 = vmatprep.mubr.bf16.mxu0 0
      %480 = vmatmul.mubr.bf16.gmra.mxu0 %v436
      %v481 = vpop.f32.mrf.mxu0
      %v482 = vadd.f32 %v427, %v481
      %v483 = vpop.f32.mrf.mxu0
      %v484 = vpop.f32.mrf.mxu0
      %v485 = vadd.f32 %v427, %v484
      %v486 = vpop.f32.mrf.mxu0
      %487 = vmatprep.mubr.bf16.mxu0 0
      %488 = vmatmul.mubr.bf16.gmra.mxu0 %v439
      %v489 = vpop.f32.mrf.mxu0
      %v490 = vadd.f32 %v427, %v489
      %v491 = vpop.f32.mrf.mxu0
      %v492 = vpop.f32.mrf.mxu0
      %v493 = vadd.f32 %v427, %v492
      %v494 = vpop.f32.mrf.mxu0
      %495 = vmatprep.mubr.bf16.mxu0 0
      %496 = vmatmul.mubr.bf16.gmra.mxu0 %v442
      %v497 = vpop.f32.mrf.mxu0
      %v498 = vadd.f32 %v427, %v497
      %v499 = vpop.f32.mrf.mxu0
      %v500 = vpop.f32.mrf.mxu0
      %v501 = vadd.f32 %v427, %v500
      %v502 = vpop.f32.mrf.mxu0
      %503 = vmatprep.mubr.bf16.mxu0 0
      %504 = vmatmul.mubr.bf16.gmra.mxu0 %v445
      %v505 = vpop.f32.mrf.mxu0
      %v506 = vadd.f32 %v427, %v505
      %v507 = vpop.f32.mrf.mxu0
      %v508 = vpop.f32.mrf.mxu0
      %v509 = vadd.f32 %v427, %v508
      %v510 = vpop.f32.mrf.mxu0
      %511 = vdwg.mxu0
      %512 = vst.msk [vmem:[%s210] sm:$0xff] %vm228, %v482
      %513 = vst.msk [vmem:[%s210 + $0x8] sm:$0xff] %vm228, %v485
      %514 = vst.msk [vmem:[%s210 + $0x10] sm:$0xff] %vm228, %v490
      %515 = vst.msk [vmem:[%s210 + $0x18] sm:$0xff] %vm228, %v493
      %516 = vst.msk [vmem:[%s210 + $0x20] sm:$0xff] %vm228, %v498
      %517 = vst.msk [vmem:[%s210 + $0x28] sm:$0xff] %vm228, %v501
      %518 = vst.msk [vmem:[%s210 + $0x30] sm:$0xff] %vm228, %v506
      %519 = vst.msk [vmem:[%s210 + $0x38] sm:$0xff] %vm228, %v509
      %p520 = scmp.lt.s32.totalorder %s16, 1
      %s521 = scalar_select %p520, %s16, 1
      %s522 = smul.addr %s521, 16
      %s523 = smul.addr %s522, 8
      %s524 = scalar_lea.vmem %s3, %s523
      %p525 = scmp.lt.s32.totalorder %s16, 1
      %s526 = scalar_select %p525, %s16, 1
      %s527 = smul.addr %s526, 8
      %s528 = smul.addr %s527, 8
      %s529 = scalar_lea.vmem %s4, %s528
      // Predicated region
      $region33: #{encoder_forward.9} parent=31 // pred_check
        %p530 = pneg %p102
      $region34: #{encoder_forward.9} parent=31 // pred_check_branch
        %532 = sbr.rel (%p530) target = $region36
      $region35: #{encoder_forward.9} parent=31 // pred_region
        _
      $region36: #{encoder_forward.9} parent=31 // pred_fallthru
        _
      // Predicated region
      $region37: #{encoder_forward.9} parent=31 // pred_check
        %p533 = pneg %p128
      $region38: #{encoder_forward.9} parent=31 // pred_check_branch
        %535 = sbr.rel (%p533) target = $region40
      $region39: #{encoder_forward.9} parent=31 // pred_region
        _
      $region40: #{encoder_forward.9} parent=31 // pred_fallthru
        _
    $region32: #{encoder_forward.9} parent=5 // pred_fallthru
      _
    %p536 = scmp.le.s32.totalorder 2, %s11
    // Predicated region
    $region41: #{encoder_forward.9} parent=5 // pred_check
      %p537 = pneg %p536
    $region42: #{encoder_forward.9} parent=5 // pred_check_branch
      %539 = sbr.rel (%p537) target = $region44
    $region43: #{encoder_forward.9} parent=5 // pred_region
      %s540 = ssub.s32 %s11, 2
      // Predicated region
      $region45: #{encoder_forward.9} parent=43 // pred_check
        %p541 = pneg %p108
      $region46: #{encoder_forward.9} parent=43 // pred_check_branch
        %543 = sbr.rel (%p541) target = $region48
      $region47: #{encoder_forward.9} parent=43 // pred_region
        %p544 = scmp.lt.s32.totalorder %s17, 1
        %s545 = scalar_select %p544, %s17, 1
        %s546 = smul.addr %s545, 16
        %s547 = smul.addr %s546, 8
        %s548 = scalar_lea.vmem %s3, %s547
      $region48: #{encoder_forward.9} parent=43 // pred_fallthru
        _
      // Predicated region
      $region49: #{encoder_forward.9} parent=43 // pred_check
        %p549 = pneg %p134
      $region50: #{encoder_forward.9} parent=43 // pred_check_branch
        %551 = sbr.rel (%p549) target = $region52
      $region51: #{encoder_forward.9} parent=43 // pred_region
        %p552 = scmp.lt.s32.totalorder %s17, 1
        %s553 = scalar_select %p552, %s17, 1
        %s554 = smul.addr %s553, 8
        %s555 = smul.addr %s554, 8
        %s556 = scalar_lea.vmem %s4, %s555
      $region52: #{encoder_forward.9} parent=43 // pred_fallthru
        _
    $region44: #{encoder_forward.9} parent=5 // pred_fallthru
      _
  $region6: #{encoder_forward.9} parent=0 // loop_footer
    %s15 = sadd.s32 1, %s11
  $region7: #{encoder_forward.9} parent=0 // loop_footer_branch
    %10 = sbr.rel target = $region3
  $region8: #{encoder_forward.9} parent=0 // loop_exit
    _

// kernel: encoder_forward.10
$region0: #{encoder_forward.10}
  #allocation0 [shape = 'u32[]', space=smem, size = 0x4, offset = 0x4, fixed_abs, tag = 'smem constant byte address 0x4 - core index']
  #allocation1 [shape = 'u32[144,128]{1,0:T(1,128)}', space=vmem, size = 0x12000, scoped, tag = 'internal scratch']
  %s0 = inlined_call_operand.vmem [shape: f32[2,9,2,9,16], index: 0, kind: input, shape index: {}]
  %s1 = inlined_call_operand.vmem [shape: bf16[6,16,16], index: 1, kind: input, shape index: {}]
  %s2 = inlined_call_operand.vmem [shape: f32[1,16], index: 2, kind: input, shape index: {}]
  %s3 = inlined_call_operand.vmem [shape: f32[2,64,16], index: 3, kind: output, shape index: {}]
  %s4 = sld [smem:[#allocation0]]
  $region45: #{encoder_forward.10} parent=0
    _
  %s6 = ssub.s32 1, %s4
  %s7 = scalar_select 0, %s6, %s4
  loop: start=0, step=1, limit=4
  $region2: #{encoder_forward.10} parent=0 // loop_pre_header
    _
  $region3: #{encoder_forward.10} parent=0 // loop_header
    %s9 = sphi 0, %s13
    %p10 = scmp.ge.s32.totalorder %s9, 4
    %s19 = sphi 0, %s21
    %s22 = sphi 0, %s19
    %s23 = sphi 0, %s22
    %s39 = sphi 0, %s23
    %s43 = sphi 0, %s43
    %s45 = sphi 0, %s43
    %s46 = sphi 0, %s45
    %s60 = sphi 0, %s46
    %s64 = sphi 0, %s64
    %s66 = sphi 0, %s64
    %s67 = sphi 0, %s66
    %s81 = sphi 0, %s67
    %s87 = sphi 0, %s89
    %s90 = sphi 0, %s87
    %s91 = sphi 0, %s90
    %s107 = sphi 0, %s91
  $region4: #{encoder_forward.10} parent=0 // loop_header_branch
    %12 = sbr.rel (%p10) target = $region8
  $region5: #{encoder_forward.10} parent=0 // loop_body
    %s14 = ssub.s32 %s9, 1
    %s15 = ssub.s32 %s9, 2
    %s16 = sadd.s32 %s9, 1
    %s17 = ssub.s32 %s9, %s16
    %p18 = scmp.eq.s32.totalorder %s17, 0
    %s20 = sadd.s32 %s19, 1
    %s21 = scalar_select %p18, %s19, %s20
    %p24 = pneg %p18
    %p25 = scmp.eq.s32.totalorder %s9, 1
    %p26 = por %p24, %p25
    %p27 = scmp.ne.s32.totalorder %s19, %s22
    %p28 = scmp.eq.s32.totalorder %s9, 0
    %p29 = por %p27, %p28
    %p30 = scmp.ne.s32.totalorder %s19, %s22
    %p31 = scmp.eq.s32.totalorder %s14, 1
    %p32 = por %p30, %p31
    %p33 = scmp.ne.s32.totalorder %s22, %s23
    %p34 = scmp.eq.s32.totalorder %s14, 0
    %p35 = por %p33, %p34
    %p36 = scmp.ne.s32.totalorder %s22, %s23
    %p37 = scmp.eq.s32.totalorder %s15, 1
    %p38 = por %p36, %p37
    %p40 = scmp.ne.s32.totalorder %s23, %s39
    %p41 = scmp.eq.s32.totalorder %s15, 0
    %p42 = por %p40, %p41
    %s44 = sadd.s32 %s43, 1
    %p47 = scmp.eq.s32.totalorder %s9, 1
    %p48 = scmp.ne.s32.totalorder %s43, %s45
    %p49 = scmp.eq.s32.totalorder %s9, 0
    %p50 = por %p48, %p49
    %p51 = scmp.ne.s32.totalorder %s43, %s45
    %p52 = scmp.eq.s32.totalorder %s14, 1
    %p53 = por %p51, %p52
    %p54 = scmp.ne.s32.totalorder %s45, %s46
    %p55 = scmp.eq.s32.totalorder %s14, 0
    %p56 = por %p54, %p55
    %p57 = scmp.ne.s32.totalorder %s45, %s46
    %p58 = scmp.eq.s32.totalorder %s15, 1
    %p59 = por %p57, %p58
    %p61 = scmp.ne.s32.totalorder %s46, %s60
    %p62 = scmp.eq.s32.totalorder %s15, 0
    %p63 = por %p61, %p62
    %s65 = sadd.s32 %s64, 1
    %p68 = scmp.eq.s32.totalorder %s9, 1
    %p69 = scmp.ne.s32.totalorder %s64, %s66
    %p70 = scmp.eq.s32.totalorder %s9, 0
    %p71 = por %p69, %p70
    %p72 = scmp.ne.s32.totalorder %s64, %s66
    %p73 = scmp.eq.s32.totalorder %s14, 1
    %p74 = por %p72, %p73
    %p75 = scmp.ne.s32.totalorder %s66, %s67
    %p76 = scmp.eq.s32.totalorder %s14, 0
    %p77 = por %p75, %p76
    %p78 = scmp.ne.s32.totalorder %s66, %s67
    %p79 = scmp.eq.s32.totalorder %s15, 1
    %p80 = por %p78, %p79
    %p82 = scmp.ne.s32.totalorder %s67, %s81
    %p83 = scmp.eq.s32.totalorder %s15, 0
    %p84 = por %p82, %p83
    %s85 = ssub.s32 %s9, %s16
    %p86 = scmp.eq.s32.totalorder %s85, 0
    %s88 = sadd.s32 %s87, 1
    %s89 = scalar_select %p86, %s87, %s88
    %p92 = pneg %p86
    %p93 = scmp.eq.s32.totalorder %s9, 1
    %p94 = por %p92, %p93
    %p95 = scmp.ne.s32.totalorder %s87, %s90
    %p96 = scmp.eq.s32.totalorder %s9, 0
    %p97 = por %p95, %p96
    %p98 = scmp.ne.s32.totalorder %s87, %s90
    %p99 = scmp.eq.s32.totalorder %s14, 1
    %p100 = por %p98, %p99
    %p101 = scmp.ne.s32.totalorder %s90, %s91
    %p102 = scmp.eq.s32.totalorder %s14, 0
    %p103 = por %p101, %p102
    %p104 = scmp.ne.s32.totalorder %s90, %s91
    %p105 = scmp.eq.s32.totalorder %s15, 1
    %p106 = por %p104, %p105
    %p108 = scmp.ne.s32.totalorder %s91, %s107
    %p109 = scmp.eq.s32.totalorder %s15, 0
    %p110 = por %p108, %p109
    %p111 = scmp.le.s32.totalorder 1, %s9
    %p112 = scmp.lt.s32.totalorder %s9, 3
    %p113 = pnand %p111, %p112
    %p114 = pneg %p113
    // Predicated region
    $region9: #{encoder_forward.10} parent=5 // pred_check
      _
    $region10: #{encoder_forward.10} parent=5 // pred_check_branch
      %116 = sbr.rel (%p113) target = $region12
    $region11: #{encoder_forward.10} parent=5 // pred_region
      %s117 = ssub.s32 %s9, 1
      // Predicated region
      $region13: #{encoder_forward.10} parent=11 // pred_check
        %p118 = pneg %p56
      $region14: #{encoder_forward.10} parent=11 // pred_check_branch
        %120 = sbr.rel (%p118) target = $region16
      $region15: #{encoder_forward.10} parent=11 // pred_region
        _
      $region16: #{encoder_forward.10} parent=11 // pred_fallthru
        _
      // Predicated region
      $region17: #{encoder_forward.10} parent=11 // pred_check
        %p121 = pneg %p77
      $region18: #{encoder_forward.10} parent=11 // pred_check_branch
        %123 = sbr.rel (%p121) target = $region20
      $region19: #{encoder_forward.10} parent=11 // pred_region
        _
      $region20: #{encoder_forward.10} parent=11 // pred_fallthru
        _
    $region12: #{encoder_forward.10} parent=5 // pred_fallthru
      _
    %p124 = scmp.lt.s32.totalorder %s9, 2
    // Predicated region
    $region21: #{encoder_forward.10} parent=5 // pred_check
      %p125 = pneg %p124
    $region22: #{encoder_forward.10} parent=5 // pred_check_branch
      %127 = sbr.rel (%p125) target = $region24
    $region23: #{encoder_forward.10} parent=5 // pred_region
      // Predicated region
      $region25: #{encoder_forward.10} parent=23 // pred_check
        %p128 = pneg %p29
      $region26: #{encoder_forward.10} parent=23 // pred_check_branch
        %130 = sbr.rel (%p128) target = $region28
      $region27: #{encoder_forward.10} parent=23 // pred_region
        %p131 = scmp.lt.s32.totalorder %s9, 1
        %s132 = scalar_select %p131, %s9, 1
        %s133 = smul.addr %s132, 36
        %s134 = smul.addr %s133, 8
        %s135 = scalar_lea.vmem %s0, %s134
      $region28: #{encoder_forward.10} parent=23 // pred_fallthru
        _
    $region24: #{encoder_forward.10} parent=5 // pred_fallthru
      _
    %p136 = scmp.le.s32.totalorder 1, %s9
    %p137 = scmp.lt.s32.totalorder %s9, 3
    %p138 = pnand %p136, %p137
    %p139 = pneg %p138
    // Predicated region
    $region29: #{encoder_forward.10} parent=5 // pred_check
      _
    $region30: #{encoder_forward.10} parent=5 // pred_check_branch
      %141 = sbr.rel (%p138) target = $region32
    $region31: #{encoder_forward.10} parent=5 // pred_region
      %s142 = ssub.s32 %s9, 1
      %p143 = scmp.lt.s32.totalorder %s14, 1
      %s144 = scalar_select %p143, %s14, 1
      %s145 = smul.addr %s144, 36
      %s146 = smul.addr %s145, 8
      %s147 = scalar_lea.vmem %s0, %s146
      %p148 = pneg %p35
      %p149 = pneg %p32
      %p150 = pneg %p56
      %p151 = pneg %p53
      %p152 = pneg %p77
      %p153 = pneg %p74
      %p154 = pneg %p103
      %p155 = pneg %p100
      %p156 = scmp.lt.s32.totalorder %s14, 1
      %s157 = scalar_select %p156, %s14, 1
      %s158 = smul.addr %s157, 8
      %s159 = smul.addr %s158, 8
      %s160 = scalar_lea.vmem %s3, %s159
      %p161 = scmp.lt.s32.totalorder %s14, 1
      %s162 = scalar_select %p161, %s14, 1
      %s163 = smul.addr %s162, 36
      %s164 = smul.addr %s163, 8
      %s165 = scalar_lea.vmem %s0, %s164
      %p166 = scmp.lt.s32.totalorder %s14, 1
      %s167 = scalar_select %p166, %s14, 1
      %s168 = smul.addr %s167, 8
      %s169 = smul.addr %s168, 8
      %s170 = scalar_lea.vmem %s3, %s169
      %v172 = vld [vmem:[%s165] sm:$0xff]
      %v173 = vld [vmem:[%s165 + $0x20] sm:$0xff]
      %v174 = vld [vmem:[%s165 + $0x40] sm:$0xff]
      %v175 = vld [vmem:[%s165 + $0x60] sm:$0xff]
      %v176 = vld [vmem:[%s165 + $0x80] sm:$0xff]
      %v177 = vld [vmem:[%s165 + $0xa0] sm:$0xff]
      %v178 = vld [vmem:[%s165 + $0xc0] sm:$0xff]
      %v179 = vld [vmem:[%s165 + $0xe0] sm:$0xff]
      %v180 = vpack.c.bf16 %v173, %v172
      %v181 = vpack.c.bf16 %v175, %v174
      %v182 = vpack.c.bf16 %v177, %v176
      %v183 = vpack.c.bf16 %v179, %v178
      %v184 = vld [vmem:[%s1] sm:$0xf]
      %v185 = vld [vmem:[%s1 + $0x4] sm:$0xf]
      %v186 = vld [vmem:[%s165 + $0x1] sm:$0xff]
      %v187 = vld [vmem:[%s165 + $0x21] sm:$0xff]
      %v188 = vld [vmem:[%s165 + $0x41] sm:$0xff]
      %v189 = vld [vmem:[%s165 + $0x61] sm:$0xff]
      %v190 = vld [vmem:[%s165 + $0x81] sm:$0xff]
      %v191 = vld [vmem:[%s165 + $0xa1] sm:$0xff]
      %v192 = vld [vmem:[%s165 + $0xc1] sm:$0xff]
      %v193 = vld [vmem:[%s165 + $0xe1] sm:$0xff]
      %v194 = vpack.c.bf16 %v187, %v186
      %v195 = vpack.c.bf16 %v189, %v188
      %v196 = vpack.c.bf16 %v191, %v190
      %v197 = vpack.c.bf16 %v193, %v192
      %s198 = scalar_lea.vmem %s1, 8
      %v199 = vld [vmem:[%s198] sm:$0xf]
      %v200 = vld [vmem:[%s198 + $0x4] sm:$0xf]
      %v203 = vunpack.c.l.b16 %v199
      %v204 = vunpack.c.l.b16 %v200
      %v205 = vpack.c.b16 %v204, %v203
      %vm207 = vcmask 130048
      %v209 = vsel %vm207, %v194, 0
      %v212 = vsel %vm207, %v195, 0
      %v215 = vsel %vm207, %v196, 0
      %v218 = vsel %vm207, %v197, 0
      %220 = vmatprep.subr.bf16.mxu0 0
      %221 = vmatpush1.bf16.msra.mxu0 0
      %222 = vmatprep.subr.bf16.mxu0 0
      %223 = vmatpush1.bf16.msra.mxu0 0
      %224 = vmatprep.subr.bf16.mxu0 0
      %225 = vmatpush1.bf16.msra.mxu0 0
      %226 = vmatprep.subr.bf16.mxu0 0
      %227 = vmatpush1.bf16.msra.mxu0 0
      %228 = vmatprep.subr.bf16.mxu0 0
      %229 = vmatpush1.bf16.msra.mxu0 0
      %230 = vmatprep.subr.bf16.mxu0 0
      %231 = vmatpush1.bf16.msra.mxu0 0
      %232 = vmatprep.subr.bf16.mxu0 0
      %233 = vmatpush1.bf16.msra.mxu0 0
      %234 = vmatprep.subr.bf16.mxu0 0
      %235 = vmatpush1.bf16.msra.mxu0 %v205
      %236 = vmatprep.subr.bf16.mxu0 0
      %237 = vmatpush2.bf16.msra.mxu0 0
      %238 = vmatprep.subr.bf16.mxu0 0
      %239 = vmatpush2.bf16.msra.mxu0 0
      %240 = vmatprep.subr.bf16.mxu0 0
      %241 = vmatpush2.bf16.msra.mxu0 0
      %242 = vmatprep.subr.bf16.mxu0 0
      %243 = vmatpush2.bf16.msra.mxu0 0
      %244 = vmatprep.subr.bf16.mxu0 0
      %245 = vmatpush2.bf16.msra.mxu0 0
      %246 = vmatprep.subr.bf16.mxu0 0
      %247 = vmatpush2.bf16.msra.mxu0 0
      %248 = vmatprep.subr.bf16.mxu0 0
      %249 = vmatpush2.bf16.msra.mxu0 0
      %250 = vmatprep.subr.bf16.mxu0 0
      %251 = vmatpush2.bf16.msra.mxu0 0
      %252 = vmatprep.mubr.bf16.mxu0 0
      %253 = vmatmul.mubr.bf16.gmra.mxu0 %v209
      %v254 = vpop.f32.mrf.mxu0
      %v255 = vadd.f32 0.0, %v254
      %v256 = vpop.f32.mrf.mxu0
      %v257 = vpop.f32.mrf.mxu0
      %v258 = vadd.f32 0.0, %v257
      %v259 = vpop.f32.mrf.mxu0
      %260 = vmatprep.mubr.bf16.mxu0 0
      %261 = vmatmul.mubr.bf16.gmra.mxu0 %v212
      %v262 = vpop.f32.mrf.mxu0
      %v263 = vadd.f32 0.0, %v262
      %v264 = vpop.f32.mrf.mxu0
      %v265 = vpop.f32.mrf.mxu0
      %v266 = vadd.f32 0.0, %v265
      %v267 = vpop.f32.mrf.mxu0
      %268 = vmatprep.mubr.bf16.mxu0 0
      %269 = vmatmul.mubr.bf16.gmra.mxu0 %v215
      %v270 = vpop.f32.mrf.mxu0
      %v271 = vadd.f32 0.0, %v270
      %v272 = vpop.f32.mrf.mxu0
      %v273 = vpop.f32.mrf.mxu0
      %v274 = vadd.f32 0.0, %v273
      %v275 = vpop.f32.mrf.mxu0
      %276 = vmatprep.mubr.bf16.mxu0 0
      %277 = vmatmul.mubr.bf16.gmra.mxu0 %v218
      %v278 = vpop.f32.mrf.mxu0
      %v279 = vadd.f32 0.0, %v278
      %v280 = vpop.f32.mrf.mxu0
      %v281 = vpop.f32.mrf.mxu0
      %v282 = vadd.f32 0.0, %v281
      %v283 = vpop.f32.mrf.mxu0
      %284 = vdwg.mxu0
      %v287 = vunpack.c.l.b16 %v184
      %v288 = vunpack.c.l.b16 %v185
      %v289 = vpack.c.b16 %v288, %v287
      %v292 = vsel %vm207, %v180, 0
      %v295 = vsel %vm207, %v181, 0
      %v298 = vsel %vm207, %v182, 0
      %v301 = vsel %vm207, %v183, 0
      %303 = vmatprep.subr.bf16.mxu0 0
      %304 = vmatpush1.bf16.msra.mxu0 0
      %305 = vmatprep.subr.bf16.mxu0 0
      %306 = vmatpush1.bf16.msra.mxu0 0
      %307 = vmatprep.subr.bf16.mxu0 0
      %308 = vmatpush1.bf16.msra.mxu0 0
      %309 = vmatprep.subr.bf16.mxu0 0
      %310 = vmatpush1.bf16.msra.mxu0 0
      %311 = vmatprep.subr.bf16.mxu0 0
      %312 = vmatpush1.bf16.msra.mxu0 0
      %313 = vmatprep.subr.bf16.mxu0 0
      %314 = vmatpush1.bf16.msra.mxu0 0
      %315 = vmatprep.subr.bf16.mxu0 0
      %316 = vmatpush1.bf16.msra.mxu0 0
      %317 = vmatprep.subr.bf16.mxu0 0
      %318 = vmatpush1.bf16.msra.mxu0 %v289
      %319 = vmatprep.subr.bf16.mxu0 0
      %320 = vmatpush2.bf16.msra.mxu0 0
      %321 = vmatprep.subr.bf16.mxu0 0
      %322 = vmatpush2.bf16.msra.mxu0 0
      %323 = vmatprep.subr.bf16.mxu0 0
      %324 = vmatpush2.bf16.msra.mxu0 0
      %325 = vmatprep.subr.bf16.mxu0 0
      %326 = vmatpush2.bf16.msra.mxu0 0
      %327 = vmatprep.subr.bf16.mxu0 0
      %328 = vmatpush2.bf16.msra.mxu0 0
      %329 = vmatprep.subr.bf16.mxu0 0
      %330 = vmatpush2.bf16.msra.mxu0 0
      %331 = vmatprep.subr.bf16.mxu0 0
      %332 = vmatpush2.bf16.msra.mxu0 0
      %333 = vmatprep.subr.bf16.mxu0 0
      %334 = vmatpush2.bf16.msra.mxu0 0
      %335 = vmatprep.mubr.bf16.mxu0 0
      %336 = vmatmul.mubr.bf16.gmra.mxu0 %v292
      %v337 = vpop.f32.mrf.mxu0
      %v338 = vadd.f32 %v255, %v337
      %v339 = vpop.f32.mrf.mxu0
      %v340 = vpop.f32.mrf.mxu0
      %v341 = vadd.f32 %v258, %v340
      %v342 = vpop.f32.mrf.mxu0
      %343 = vmatprep.mubr.bf16.mxu0 0
      %344 = vmatmul.mubr.bf16.gmra.mxu0 %v295
      %v345 = vpop.f32.mrf.mxu0
      %v346 = vadd.f32 %v263, %v345
      %v347 = vpop.f32.mrf.mxu0
      %v348 = vpop.f32.mrf.mxu0
      %v349 = vadd.f32 %v266, %v348
      %v350 = vpop.f32.mrf.mxu0
      %351 = vmatprep.mubr.bf16.mxu0 0
      %352 = vmatmul.mubr.bf16.gmra.mxu0 %v298
      %v353 = vpop.f32.mrf.mxu0
      %v354 = vadd.f32 %v271, %v353
      %v355 = vpop.f32.mrf.mxu0
      %v356 = vpop.f32.mrf.mxu0
      %v357 = vadd.f32 %v274, %v356
      %v358 = vpop.f32.mrf.mxu0
      %359 = vmatprep.mubr.bf16.mxu0 0
      %360 = vmatmul.mubr.bf16.gmra.mxu0 %v301
      %v361 = vpop.f32.mrf.mxu0
      %v362 = vadd.f32 %v279, %v361
      %v363 = vpop.f32.mrf.mxu0
      %v364 = vpop.f32.mrf.mxu0
      %v365 = vadd.f32 %v282, %v364
      %v366 = vpop.f32.mrf.mxu0
      %367 = vdwg.mxu0
      %s368 = scalar_lea.vmem %s165, 16
      %v369 = vld [vmem:[%s368] sm:$0xff]
      %v370 = vld [vmem:[%s368 + $0x20] sm:$0xff]
      %v371 = vld [vmem:[%s368 + $0x40] sm:$0xff]
      %v372 = vld [vmem:[%s368 + $0x60] sm:$0xff]
      %v373 = vld [vmem:[%s368 + $0x80] sm:$0xff]
      %v374 = vld [vmem:[%s368 + $0xa0] sm:$0xff]
      %v375 = vld [vmem:[%s368 + $0xc0] sm:$0xff]
      %v376 = vld [vmem:[%s368 + $0xe0] sm:$0xff]
      %v377 = vpack.c.bf16 %v370, %v369
      %v378 = vpack.c.bf16 %v372, %v371
      %v379 = vpack.c.bf16 %v374, %v373
      %v380 = vpack.c.bf16 %v376, %v375
      %s381 = scalar_lea.vmem %s1, 16
      %v382 = vld [vmem:[%s381] sm:$0xf]
      %v383 = vld [vmem:[%s381 + $0x4] sm:$0xf]
      %v386 = vunpack.c.l.b16 %v382
      %v387 = vunpack.c.l.b16 %v383
      %v388 = vpack.c.b16 %v387, %v386
      %v391 = vsel %vm207, %v377, 0
      %v394 = vsel %vm207, %v378, 0
      %v397 = vsel %vm207, %v379, 0
      %v400 = vsel %vm207, %v380, 0
      %402 = vmatprep.subr.bf16.mxu0 0
      %403 = vmatpush1.bf16.msra.mxu0 0
      %404 = vmatprep.subr.bf16.mxu0 0
      %405 = vmatpush1.bf16.msra.mxu0 0
      %406 = vmatprep.subr.bf16.mxu0 0
      %407 = vmatpush1.bf16.msra.mxu0 0
      %408 = vmatprep.subr.bf16.mxu0 0
      %409 = vmatpush1.bf16.msra.mxu0 0
      %410 = vmatprep.subr.bf16.mxu0 0
      %411 = vmatpush1.bf16.msra.mxu0 0
      %412 = vmatprep.subr.bf16.mxu0 0
      %413 = vmatpush1.bf16.msra.mxu0 0
      %414 = vmatprep.subr.bf16.mxu0 0
      %415 = vmatpush1.bf16.msra.mxu0 0
      %416 = vmatprep.subr.bf16.mxu0 0
      %417 = vmatpush1.bf16.msra.mxu0 %v388
      %418 = vmatprep.subr.bf16.mxu0 0
      %419 = vmatpush2.bf16.msra.mxu0 0
      %420 = vmatprep.subr.bf16.mxu0 0
      %421 = vmatpush2.bf16.msra.mxu0 0
      %422 = vmatprep.subr.bf16.mxu0 0
      %423 = vmatpush2.bf16.msra.mxu0 0
      %424 = vmatprep.subr.bf16.mxu0 0
      %425 = vmatpush2.bf16.msra.mxu0 0
      %426 = vmatprep.subr.bf16.mxu0 0
      %427 = vmatpush2.bf16.msra.mxu0 0
      %428 = vmatprep.subr.bf16.mxu0 0
      %429 = vmatpush2.bf16.msra.mxu0 0
      %430 = vmatprep.subr.bf16.mxu0 0
      %431 = vmatpush2.bf16.msra.mxu0 0
      %432 = vmatprep.subr.bf16.mxu0 0
      %433 = vmatpush2.bf16.msra.mxu0 0
      %434 = vmatprep.mubr.bf16.mxu0 0
      %435 = vmatmul.mubr.bf16.gmra.mxu0 %v391
      %v436 = vpop.f32.mrf.mxu0
      %v437 = vadd.f32 0.0, %v436
      %v438 = vpop.f32.mrf.mxu0
      %v439 = vpop.f32.mrf.mxu0
      %v440 = vadd.f32 0.0, %v439
      %v441 = vpop.f32.mrf.mxu0
      %442 = vmatprep.mubr.bf16.mxu0 0
      %443 = vmatmul.mubr.bf16.gmra.mxu0 %v394
      %v444 = vpop.f32.mrf.mxu0
      %v445 = vadd.f32 0.0, %v444
      %v446 = vpop.f32.mrf.mxu0
      %v447 = vpop.f32.mrf.mxu0
      %v448 = vadd.f32 0.0, %v447
      %v449 = vpop.f32.mrf.mxu0
      %450 = vmatprep.mubr.bf16.mxu0 0
      %451 = vmatmul.mubr.bf16.gmra.mxu0 %v397
      %v452 = vpop.f32.mrf.mxu0
      %v453 = vadd.f32 0.0, %v452
      %v454 = vpop.f32.mrf.mxu0
      %v455 = vpop.f32.mrf.mxu0
      %v456 = vadd.f32 0.0, %v455
      %v457 = vpop.f32.mrf.mxu0
      %458 = vmatprep.mubr.bf16.mxu0 0
      %459 = vmatmul.mubr.bf16.gmra.mxu0 %v400
      %v460 = vpop.f32.mrf.mxu0
      %v461 = vadd.f32 0.0, %v460
      %v462 = vpop.f32.mrf.mxu0
      %v463 = vpop.f32.mrf.mxu0
      %v464 = vadd.f32 0.0, %v463
      %v465 = vpop.f32.mrf.mxu0
      %466 = vdwg.mxu0
      %v467 = vadd.f32 %v338, %v437
      %v468 = vadd.f32 %v341, %v440
      %v469 = vadd.f32 %v346, %v445
      %v470 = vadd.f32 %v349, %v448
      %v471 = vadd.f32 %v354, %v453
      %v472 = vadd.f32 %v357, %v456
      %v473 = vadd.f32 %v362, %v461
      %v474 = vadd.f32 %v365, %v464
      %v475 = vld [vmem:[%s368 + $0x1] sm:$0xff]
      %v476 = vld [vmem:[%s368 + $0x21] sm:$0xff]
      %v477 = vld [vmem:[%s368 + $0x41] sm:$0xff]
      %v478 = vld [vmem:[%s368 + $0x61] sm:$0xff]
      %v479 = vld [vmem:[%s368 + $0x81] sm:$0xff]
      %v480 = vld [vmem:[%s368 + $0xa1] sm:$0xff]
      %v481 = vld [vmem:[%s368 + $0xc1] sm:$0xff]
      %v482 = vld [vmem:[%s368 + $0xe1] sm:$0xff]
      %v483 = vpack.c.bf16 %v476, %v475
      %v484 = vpack.c.bf16 %v478, %v477
      %v485 = vpack.c.bf16 %v480, %v479
      %v486 = vpack.c.bf16 %v482, %v481
      %s487 = scalar_lea.vmem %s1, 24
      %v488 = vld [vmem:[%s487] sm:$0xf]
      %v489 = vld [vmem:[%s487 + $0x4] sm:$0xf]
      %v492 = vunpack.c.l.b16 %v488
      %v493 = vunpack.c.l.b16 %v489
      %v494 = vpack.c.b16 %v493, %v492
      %v497 = vsel %vm207, %v483, 0
      %v500 = vsel %vm207, %v484, 0
      %v503 = vsel %vm207, %v485, 0
      %v506 = vsel %vm207, %v486, 0
      %508 = vmatprep.subr.bf16.mxu0 0
      %509 = vmatpush1.bf16.msra.mxu0 0
      %510 = vmatprep.subr.bf16.mxu0 0
      %511 = vmatpush1.bf16.msra.mxu0 0
      %512 = vmatprep.subr.bf16.mxu0 0
      %513 = vmatpush1.bf16.msra.mxu0 0
      %514 = vmatprep.subr.bf16.mxu0 0
      %515 = vmatpush1.bf16.msra.mxu0 0
      %516 = vmatprep.subr.bf16.mxu0 0
      %517 = vmatpush1.bf16.msra.mxu0 0
      %518 = vmatprep.subr.bf16.mxu0 0
      %519 = vmatpush1.bf16.msra.mxu0 0
      %520 = vmatprep.subr.bf16.mxu0 0
      %521 = vmatpush1.bf16.msra.mxu0 0
      %522 = vmatprep.subr.bf16.mxu0 0
      %523 = vmatpush1.bf16.msra.mxu0 %v494
      %524 = vmatprep.subr.bf16.mxu0 0
      %525 = vmatpush2.bf16.msra.mxu0 0
      %526 = vmatprep.subr.bf16.mxu0 0
      %527 = vmatpush2.bf16.msra.mxu0 0
      %528 = vmatprep.subr.bf16.mxu0 0
      %529 = vmatpush2.bf16.msra.mxu0 0
      %530 = vmatprep.subr.bf16.mxu0 0
      %531 = vmatpush2.bf16.msra.mxu0 0
      %532 = vmatprep.subr.bf16.mxu0 0
      %533 = vmatpush2.bf16.msra.mxu0 0
      %534 = vmatprep.subr.bf16.mxu0 0
      %535 = vmatpush2.bf16.msra.mxu0 0
      %536 = vmatprep.subr.bf16.mxu0 0
      %537 = vmatpush2.bf16.msra.mxu0 0
      %538 = vmatprep.subr.bf16.mxu0 0
      %539 = vmatpush2.bf16.msra.mxu0 0
      %540 = vmatprep.mubr.bf16.mxu0 0
      %541 = vmatmul.mubr.bf16.gmra.mxu0 %v497
      %v542 = vpop.f32.mrf.mxu0
      %v543 = vadd.f32 0.0, %v542
      %v544 = vpop.f32.mrf.mxu0
      %v545 = vpop.f32.mrf.mxu0
      %v546 = vadd.f32 0.0, %v545
      %v547 = vpop.f32.mrf.mxu0
      %548 = vmatprep.mubr.bf16.mxu0 0
      %549 = vmatmul.mubr.bf16.gmra.mxu0 %v500
      %v550 = vpop.f32.mrf.mxu0
      %v551 = vadd.f32 0.0, %v550
      %v552 = vpop.f32.mrf.mxu0
      %v553 = vpop.f32.mrf.mxu0
      %v554 = vadd.f32 0.0, %v553
      %v555 = vpop.f32.mrf.mxu0
      %556 = vmatprep.mubr.bf16.mxu0 0
      %557 = vmatmul.mubr.bf16.gmra.mxu0 %v503
      %v558 = vpop.f32.mrf.mxu0
      %v559 = vadd.f32 0.0, %v558
      %v560 = vpop.f32.mrf.mxu0
      %v561 = vpop.f32.mrf.mxu0
      %v562 = vadd.f32 0.0, %v561
      %v563 = vpop.f32.mrf.mxu0
      %564 = vmatprep.mubr.bf16.mxu0 0
      %565 = vmatmul.mubr.bf16.gmra.mxu0 %v506
      %v566 = vpop.f32.mrf.mxu0
      %v567 = vadd.f32 0.0, %v566
      %v568 = vpop.f32.mrf.mxu0
      %v569 = vpop.f32.mrf.mxu0
      %v570 = vadd.f32 0.0, %v569
      %v571 = vpop.f32.mrf.mxu0
      %572 = vdwg.mxu0
      %v573 = vadd.f32 %v467, %v543
      %v574 = vadd.f32 %v468, %v546
      %v575 = vadd.f32 %v469, %v551
      %v576 = vadd.f32 %v470, %v554
      %v577 = vadd.f32 %v471, %v559
      %v578 = vadd.f32 %v472, %v562
      %v579 = vadd.f32 %v473, %v567
      %v580 = vadd.f32 %v474, %v570
      %s581 = scalar_lea.vmem %s165, 32
      %v582 = vld [vmem:[%s581] sm:$0xff]
      %v583 = vld [vmem:[%s581 + $0x20] sm:$0xff]
      %v584 = vld [vmem:[%s581 + $0x40] sm:$0xff]
      %v585 = vld [vmem:[%s581 + $0x60] sm:$0xff]
      %v586 = vld [vmem:[%s581 + $0x80] sm:$0xff]
      %v587 = vld [vmem:[%s581 + $0xa0] sm:$0xff]
      %v588 = vld [vmem:[%s581 + $0xc0] sm:$0xff]
      %v589 = vld [vmem:[%s581 + $0xe0] sm:$0xff]
      %v590 = vpack.c.bf16 %v583, %v582
      %v591 = vpack.c.bf16 %v585, %v584
      %v592 = vpack.c.bf16 %v587, %v586
      %v593 = vpack.c.bf16 %v589, %v588
      %s594 = scalar_lea.vmem %s1, 32
      %v595 = vld [vmem:[%s594] sm:$0xf]
      %v596 = vld [vmem:[%s594 + $0x4] sm:$0xf]
      %v599 = vunpack.c.l.b16 %v595
      %v600 = vunpack.c.l.b16 %v596
      %v601 = vpack.c.b16 %v600, %v599
      %v604 = vsel %vm207, %v590, 0
      %v607 = vsel %vm207, %v591, 0
      %v610 = vsel %vm207, %v592, 0
      %v613 = vsel %vm207, %v593, 0
      %615 = vmatprep.subr.bf16.mxu0 0
      %616 = vmatpush1.bf16.msra.mxu0 0
      %617 = vmatprep.subr.bf16.mxu0 0
      %618 = vmatpush1.bf16.msra.mxu0 0
      %619 = vmatprep.subr.bf16.mxu0 0
      %620 = vmatpush1.bf16.msra.mxu0 0
      %621 = vmatprep.subr.bf16.mxu0 0
      %622 = vmatpush1.bf16.msra.mxu0 0
      %623 = vmatprep.subr.bf16.mxu0 0
      %624 = vmatpush1.bf16.msra.mxu0 0
      %625 = vmatprep.subr.bf16.mxu0 0
      %626 = vmatpush1.bf16.msra.mxu0 0
      %627 = vmatprep.subr.bf16.mxu0 0
      %628 = vmatpush1.bf16.msra.mxu0 0
      %629 = vmatprep.subr.bf16.mxu0 0
      %630 = vmatpush1.bf16.msra.mxu0 %v601
      %631 = vmatprep.subr.bf16.mxu0 0
      %632 = vmatpush2.bf16.msra.mxu0 0
      %633 = vmatprep.subr.bf16.mxu0 0
      %634 = vmatpush2.bf16.msra.mxu0 0
      %635 = vmatprep.subr.bf16.mxu0 0
      %636 = vmatpush2.bf16.msra.mxu0 0
      %637 = vmatprep.subr.bf16.mxu0 0
      %638 = vmatpush2.bf16.msra.mxu0 0
      %639 = vmatprep.subr.bf16.mxu0 0
      %640 = vmatpush2.bf16.msra.mxu0 0
      %641 = vmatprep.subr.bf16.mxu0 0
      %642 = vmatpush2.bf16.msra.mxu0 0
      %643 = vmatprep.subr.bf16.mxu0 0
      %644 = vmatpush2.bf16.msra.mxu0 0
      %645 = vmatprep.subr.bf16.mxu0 0
      %646 = vmatpush2.bf16.msra.mxu0 0
      %647 = vmatprep.mubr.bf16.mxu0 0
      %648 = vmatmul.mubr.bf16.gmra.mxu0 %v604
      %v649 = vpop.f32.mrf.mxu0
      %v650 = vadd.f32 0.0, %v649
      %v651 = vpop.f32.mrf.mxu0
      %v652 = vpop.f32.mrf.mxu0
      %v653 = vadd.f32 0.0, %v652
      %v654 = vpop.f32.mrf.mxu0
      %655 = vmatprep.mubr.bf16.mxu0 0
      %656 = vmatmul.mubr.bf16.gmra.mxu0 %v607
      %v657 = vpop.f32.mrf.mxu0
      %v658 = vadd.f32 0.0, %v657
      %v659 = vpop.f32.mrf.mxu0
      %v660 = vpop.f32.mrf.mxu0
      %v661 = vadd.f32 0.0, %v660
      %v662 = vpop.f32.mrf.mxu0
      %663 = vmatprep.mubr.bf16.mxu0 0
      %664 = vmatmul.mubr.bf16.gmra.mxu0 %v610
      %v665 = vpop.f32.mrf.mxu0
      %v666 = vadd.f32 0.0, %v665
      %v667 = vpop.f32.mrf.mxu0
      %v668 = vpop.f32.mrf.mxu0
      %v669 = vadd.f32 0.0, %v668
      %v670 = vpop.f32.mrf.mxu0
      %671 = vmatprep.mubr.bf16.mxu0 0
      %672 = vmatmul.mubr.bf16.gmra.mxu0 %v613
      %v673 = vpop.f32.mrf.mxu0
      %v674 = vadd.f32 0.0, %v673
      %v675 = vpop.f32.mrf.mxu0
      %v676 = vpop.f32.mrf.mxu0
      %v677 = vadd.f32 0.0, %v676
      %v678 = vpop.f32.mrf.mxu0
      %679 = vdwg.mxu0
      %v680 = vadd.f32 %v573, %v650
      %v681 = vadd.f32 %v574, %v653
      %v682 = vadd.f32 %v575, %v658
      %v683 = vadd.f32 %v576, %v661
      %v684 = vadd.f32 %v577, %v666
      %v685 = vadd.f32 %v578, %v669
      %v686 = vadd.f32 %v579, %v674
      %v687 = vadd.f32 %v580, %v677
      %v688 = vld [vmem:[%s581 + $0x1] sm:$0xff]
      %v689 = vld [vmem:[%s581 + $0x21] sm:$0xff]
      %v690 = vld [vmem:[%s581 + $0x41] sm:$0xff]
      %v691 = vld [vmem:[%s581 + $0x61] sm:$0xff]
      %v692 = vld [vmem:[%s581 + $0x81] sm:$0xff]
      %v693 = vld [vmem:[%s581 + $0xa1] sm:$0xff]
      %v694 = vld [vmem:[%s581 + $0xc1] sm:$0xff]
      %v695 = vld [vmem:[%s581 + $0xe1] sm:$0xff]
      %v696 = vpack.c.bf16 %v689, %v688
      %v697 = vpack.c.bf16 %v691, %v690
      %v698 = vpack.c.bf16 %v693, %v692
      %v699 = vpack.c.bf16 %v695, %v694
      %s700 = scalar_lea.vmem %s1, 40
      %v701 = vld [vmem:[%s700] sm:$0xf]
      %v702 = vld [vmem:[%s700 + $0x4] sm:$0xf]
      %v705 = vunpack.c.l.b16 %v701
      %v706 = vunpack.c.l.b16 %v702
      %v707 = vpack.c.b16 %v706, %v705
      %v710 = vsel %vm207, %v696, 0
      %v713 = vsel %vm207, %v697, 0
      %v716 = vsel %vm207, %v698, 0
      %v719 = vsel %vm207, %v699, 0
      %721 = vmatprep.subr.bf16.mxu0 0
      %722 = vmatpush1.bf16.msra.mxu0 0
      %723 = vmatprep.subr.bf16.mxu0 0
      %724 = vmatpush1.bf16.msra.mxu0 0
      %725 = vmatprep.subr.bf16.mxu0 0
      %726 = vmatpush1.bf16.msra.mxu0 0
      %727 = vmatprep.subr.bf16.mxu0 0
      %728 = vmatpush1.bf16.msra.mxu0 0
      %729 = vmatprep.subr.bf16.mxu0 0
      %730 = vmatpush1.bf16.msra.mxu0 0
      %731 = vmatprep.subr.bf16.mxu0 0
      %732 = vmatpush1.bf16.msra.mxu0 0
      %733 = vmatprep.subr.bf16.mxu0 0
      %734 = vmatpush1.bf16.msra.mxu0 0
      %735 = vmatprep.subr.bf16.mxu0 0
      %736 = vmatpush1.bf16.msra.mxu0 %v707
      %737 = vmatprep.subr.bf16.mxu0 0
      %738 = vmatpush2.bf16.msra.mxu0 0
      %739 = vmatprep.subr.bf16.mxu0 0
      %740 = vmatpush2.bf16.msra.mxu0 0
      %741 = vmatprep.subr.bf16.mxu0 0
      %742 = vmatpush2.bf16.msra.mxu0 0
      %743 = vmatprep.subr.bf16.mxu0 0
      %744 = vmatpush2.bf16.msra.mxu0 0
      %745 = vmatprep.subr.bf16.mxu0 0
      %746 = vmatpush2.bf16.msra.mxu0 0
      %747 = vmatprep.subr.bf16.mxu0 0
      %748 = vmatpush2.bf16.msra.mxu0 0
      %749 = vmatprep.subr.bf16.mxu0 0
      %750 = vmatpush2.bf16.msra.mxu0 0
      %751 = vmatprep.subr.bf16.mxu0 0
      %752 = vmatpush2.bf16.msra.mxu0 0
      %753 = vmatprep.mubr.bf16.mxu0 0
      %754 = vmatmul.mubr.bf16.gmra.mxu0 %v710
      %v755 = vpop.f32.mrf.mxu0
      %v756 = vadd.f32 0.0, %v755
      %v757 = vpop.f32.mrf.mxu0
      %v758 = vpop.f32.mrf.mxu0
      %v759 = vadd.f32 0.0, %v758
      %v760 = vpop.f32.mrf.mxu0
      %761 = vmatprep.mubr.bf16.mxu0 0
      %762 = vmatmul.mubr.bf16.gmra.mxu0 %v713
      %v763 = vpop.f32.mrf.mxu0
      %v764 = vadd.f32 0.0, %v763
      %v765 = vpop.f32.mrf.mxu0
      %v766 = vpop.f32.mrf.mxu0
      %v767 = vadd.f32 0.0, %v766
      %v768 = vpop.f32.mrf.mxu0
      %769 = vmatprep.mubr.bf16.mxu0 0
      %770 = vmatmul.mubr.bf16.gmra.mxu0 %v716
      %v771 = vpop.f32.mrf.mxu0
      %v772 = vadd.f32 0.0, %v771
      %v773 = vpop.f32.mrf.mxu0
      %v774 = vpop.f32.mrf.mxu0
      %v775 = vadd.f32 0.0, %v774
      %v776 = vpop.f32.mrf.mxu0
      %777 = vmatprep.mubr.bf16.mxu0 0
      %778 = vmatmul.mubr.bf16.gmra.mxu0 %v719
      %v779 = vpop.f32.mrf.mxu0
      %v780 = vadd.f32 0.0, %v779
      %v781 = vpop.f32.mrf.mxu0
      %v782 = vpop.f32.mrf.mxu0
      %v783 = vadd.f32 0.0, %v782
      %v784 = vpop.f32.mrf.mxu0
      %785 = vdwg.mxu0
      %v786 = vadd.f32 %v680, %v756
      %v787 = vadd.f32 %v681, %v759
      %v788 = vadd.f32 %v682, %v764
      %v789 = vadd.f32 %v683, %v767
      %v790 = vadd.f32 %v684, %v772
      %v791 = vadd.f32 %v685, %v775
      %v792 = vadd.f32 %v686, %v780
      %v793 = vadd.f32 %v687, %v783
      %v794 = vld [vmem:[%s2] sm:$0x1]
      %v796 = vlaneseq
      %v797 = vshrl.u32 %v796, 7
      %v798 = vsub.s32 0, %v797
      %v799 = vrot.slane %v794, %v798
      %v801 = vadd.f32 %v786, %v799
      %v802 = vadd.f32 %v787, %v799
      %v803 = vadd.f32 %v788, %v799
      %v804 = vadd.f32 %v789, %v799
      %v805 = vadd.f32 %v790, %v799
      %v806 = vadd.f32 %v791, %v799
      %v807 = vadd.f32 %v792, %v799
      %v808 = vadd.f32 %v793, %v799
      %v809 = vsel %vm207, %v801, 0.0
      %v810 = vsel %vm207, %v802, 0.0
      %v811 = vadd.f32 %v809, %v810
      %v812 = vsel %vm207, %v803, 0.0
      %v813 = vadd.f32 %v811, %v812
      %v814 = vsel %vm207, %v804, 0.0
      %v815 = vadd.f32 %v813, %v814
      %v816 = vsel %vm207, %v805, 0.0
      %v817 = vadd.f32 %v815, %v816
      %v818 = vsel %vm207, %v806, 0.0
      %v819 = vadd.f32 %v817, %v818
      %v820 = vsel %vm207, %v807, 0.0
      %v821 = vadd.f32 %v819, %v820
      %v822 = vsel %vm207, %v808, 0.0
      %v823 = vadd.f32 %v821, %v822
      %v824 = vrot.slane %v823, 4
      %v825 = vadd.f32 %v823, %v824
      %v826 = vrot.slane %v825, 2
      %v827 = vadd.f32 %v825, %v826
      %v828 = vrot.slane %v827, 1
      %v829 = vadd.f32 %v827, %v828
      %v830 = vrcp.pop 64.0
      %v831 = vmul.f32 %v829, %v830
      %v832 = vsub.f32 %v801, %v831
      %v833 = vsub.f32 %v802, %v831
      %v834 = vsub.f32 %v803, %v831
      %v835 = vsub.f32 %v804, %v831
      %v836 = vsub.f32 %v805, %v831
      %v837 = vsub.f32 %v806, %v831
      %v838 = vsub.f32 %v807, %v831
      %v839 = vsub.f32 %v808, %v831
      %v840 = vmul.f32 %v832, %v832
      %v841 = vmul.f32 %v833, %v833
      %v842 = vmul.f32 %v834, %v834
      %v843 = vmul.f32 %v835, %v835
      %v844 = vmul.f32 %v836, %v836
      %v845 = vmul.f32 %v837, %v837
      %v846 = vmul.f32 %v838, %v838
      %v847 = vmul.f32 %v839, %v839
      %v848 = vsel %vm207, %v840, 0.0
      %v849 = vsel %vm207, %v841, 0.0
      %v850 = vadd.f32 %v848, %v849
      %v851 = vsel %vm207, %v842, 0.0
      %v852 = vadd.f32 %v850, %v851
      %v853 = vsel %vm207, %v843, 0.0
      %v854 = vadd.f32 %v852, %v853
      %v855 = vsel %vm207, %v844, 0.0
      %v856 = vadd.f32 %v854, %v855
      %v857 = vsel %vm207, %v845, 0.0
      %v858 = vadd.f32 %v856, %v857
      %v859 = vsel %vm207, %v846, 0.0
      %v860 = vadd.f32 %v858, %v859
      %v861 = vsel %vm207, %v847, 0.0
      %v862 = vadd.f32 %v860, %v861
      %v863 = vrot.slane %v862, 4
      %v864 = vadd.f32 %v862, %v863
      %v865 = vrot.slane %v864, 2
      %v866 = vadd.f32 %v864, %v865
      %v867 = vrot.slane %v866, 1
      %v868 = vadd.f32 %v866, %v867
      %v869 = vmul.f32 %v868, %v830
      %v870 = vadd.f32 %v869, 1e-05
      %v871 = vrsqrt.pop %v870
      %v872 = vmul.f32 %v832, %v871
      %v873 = vmul.f32 %v833, %v871
      %v874 = vmul.f32 %v834, %v871
      %v875 = vmul.f32 %v835, %v871
      %v876 = vmul.f32 %v836, %v871
      %v877 = vmul.f32 %v837, %v871
      %v878 = vmul.f32 %v838, %v871
      %v879 = vmul.f32 %v839, %v871
      %v880 = vmax.f32 %v872, 0.0
      %v881 = vmax.f32 %v873, 0.0
      %v882 = vmax.f32 %v874, 0.0
      %v883 = vmax.f32 %v875, 0.0
      %v884 = vmax.f32 %v876, 0.0
      %v885 = vmax.f32 %v877, 0.0
      %v886 = vmax.f32 %v878, 0.0
      %v887 = vmax.f32 %v879, 0.0
      %888 = vst.msk [vmem:[%s170] sm:$0xff] %vm207, %v880
      %889 = vst.msk [vmem:[%s170 + $0x8] sm:$0xff] %vm207, %v881
      %890 = vst.msk [vmem:[%s170 + $0x10] sm:$0xff] %vm207, %v882
      %891 = vst.msk [vmem:[%s170 + $0x18] sm:$0xff] %vm207, %v883
      %892 = vst.msk [vmem:[%s170 + $0x20] sm:$0xff] %vm207, %v884
      %893 = vst.msk [vmem:[%s170 + $0x28] sm:$0xff] %vm207, %v885
      %894 = vst.msk [vmem:[%s170 + $0x30] sm:$0xff] %vm207, %v886
      %895 = vst.msk [vmem:[%s170 + $0x38] sm:$0xff] %vm207, %v887
      %p896 = scmp.lt.s32.totalorder %s14, 1
      %s897 = scalar_select %p896, %s14, 1
      %s898 = smul.addr %s897, 8
      %s899 = smul.addr %s898, 8
      %s900 = scalar_lea.vmem %s3, %s899
      // Predicated region
      $region33: #{encoder_forward.10} parent=31 // pred_check
        %p901 = pneg %p100
      $region34: #{encoder_forward.10} parent=31 // pred_check_branch
        %903 = sbr.rel (%p901) target = $region36
      $region35: #{encoder_forward.10} parent=31 // pred_region
        _
      $region36: #{encoder_forward.10} parent=31 // pred_fallthru
        _
    $region32: #{encoder_forward.10} parent=5 // pred_fallthru
      _
    %p904 = scmp.le.s32.totalorder 2, %s9
    // Predicated region
    $region37: #{encoder_forward.10} parent=5 // pred_check
      %p905 = pneg %p904
    $region38: #{encoder_forward.10} parent=5 // pred_check_branch
      %907 = sbr.rel (%p905) target = $region40
    $region39: #{encoder_forward.10} parent=5 // pred_region
      %s908 = ssub.s32 %s9, 2
      // Predicated region
      $region41: #{encoder_forward.10} parent=39 // pred_check
        %p909 = pneg %p106
      $region42: #{encoder_forward.10} parent=39 // pred_check_branch
        %911 = sbr.rel (%p909) target = $region44
      $region43: #{encoder_forward.10} parent=39 // pred_region
        %p912 = scmp.lt.s32.totalorder %s15, 1
        %s913 = scalar_select %p912, %s15, 1
        %s914 = smul.addr %s913, 8
        %s915 = smul.addr %s914, 8
        %s916 = scalar_lea.vmem %s3, %s915
      $region44: #{encoder_forward.10} parent=39 // pred_fallthru
        _
    $region40: #{encoder_forward.10} parent=5 // pred_fallthru
      _
  $region6: #{encoder_forward.10} parent=0 // loop_footer
    %s13 = sadd.s32 1, %s9
  $region7: #{encoder_forward.10} parent=0 // loop_footer_branch
    %8 = sbr.rel target = $region3
  $region8: #{encoder_forward.10} parent=0 // loop_exit
    _

// kernel: encoder_forward.8
$region0: #{encoder_forward.8}
  #allocation0 [shape = 'u32[]', space=smem, size = 0x4, offset = 0x4, fixed_abs, tag = 'smem constant byte address 0x4 - core index']
  #allocation1 [shape = 'u32[144,128]{1,0:T(1,128)}', space=vmem, size = 0x12000, scoped, tag = 'internal scratch']
  %s0 = inlined_call_operand.vmem [shape: f32[2,18,18,4], index: 0, kind: input, shape index: {}]
  %s1 = inlined_call_operand.vmem [shape: bf16[9,4,8], index: 1, kind: input, shape index: {}]
  %s2 = inlined_call_operand.vmem [shape: f32[1,8], index: 2, kind: input, shape index: {}]
  %s3 = inlined_call_operand.vmem [shape: f32[2,256,8], index: 3, kind: output, shape index: {}]
  %s4 = sld [smem:[#allocation0]]
  $region45: #{encoder_forward.8} parent=0
    _
  %s6 = ssub.s32 1, %s4
  %s7 = scalar_select 0, %s6, %s4
  loop: start=0, step=1, limit=4
  $region2: #{encoder_forward.8} parent=0 // loop_pre_header
    _
  $region3: #{encoder_forward.8} parent=0 // loop_header
    %s9 = sphi 0, %s13
    %p10 = scmp.ge.s32.totalorder %s9, 4
    %s19 = sphi 0, %s21
    %s22 = sphi 0, %s19
    %s23 = sphi 0, %s22
    %s39 = sphi 0, %s23
    %s43 = sphi 0, %s43
    %s45 = sphi 0, %s43
    %s46 = sphi 0, %s45
    %s60 = sphi 0, %s46
    %s64 = sphi 0, %s64
    %s66 = sphi 0, %s64
    %s67 = sphi 0, %s66
    %s81 = sphi 0, %s67
    %s87 = sphi 0, %s89
    %s90 = sphi 0, %s87
    %s91 = sphi 0, %s90
    %s107 = sphi 0, %s91
  $region4: #{encoder_forward.8} parent=0 // loop_header_branch
    %12 = sbr.rel (%p10) target = $region8
  $region5: #{encoder_forward.8} parent=0 // loop_body
    %s14 = ssub.s32 %s9, 1
    %s15 = ssub.s32 %s9, 2
    %s16 = sadd.s32 %s9, 1
    %s17 = ssub.s32 %s9, %s16
    %p18 = scmp.eq.s32.totalorder %s17, 0
    %s20 = sadd.s32 %s19, 1
    %s21 = scalar_select %p18, %s19, %s20
    %p24 = pneg %p18
    %p25 = scmp.eq.s32.totalorder %s9, 1
    %p26 = por %p24, %p25
    %p27 = scmp.ne.s32.totalorder %s19, %s22
    %p28 = scmp.eq.s32.totalorder %s9, 0
    %p29 = por %p27, %p28
    %p30 = scmp.ne.s32.totalorder %s19, %s22
    %p31 = scmp.eq.s32.totalorder %s14, 1
    %p32 = por %p30, %p31
    %p33 = scmp.ne.s32.totalorder %s22, %s23
    %p34 = scmp.eq.s32.totalorder %s14, 0
    %p35 = por %p33, %p34
    %p36 = scmp.ne.s32.totalorder %s22, %s23
    %p37 = scmp.eq.s32.totalorder %s15, 1
    %p38 = por %p36, %p37
    %p40 = scmp.ne.s32.totalorder %s23, %s39
    %p41 = scmp.eq.s32.totalorder %s15, 0
    %p42 = por %p40, %p41
    %s44 = sadd.s32 %s43, 1
    %p47 = scmp.eq.s32.totalorder %s9, 1
    %p48 = scmp.ne.s32.totalorder %s43, %s45
    %p49 = scmp.eq.s32.totalorder %s9, 0
    %p50 = por %p48, %p49
    %p51 = scmp.ne.s32.totalorder %s43, %s45
    %p52 = scmp.eq.s32.totalorder %s14, 1
    %p53 = por %p51, %p52
    %p54 = scmp.ne.s32.totalorder %s45, %s46
    %p55 = scmp.eq.s32.totalorder %s14, 0
    %p56 = por %p54, %p55
    %p57 = scmp.ne.s32.totalorder %s45, %s46
    %p58 = scmp.eq.s32.totalorder %s15, 1
    %p59 = por %p57, %p58
    %p61 = scmp.ne.s32.totalorder %s46, %s60
    %p62 = scmp.eq.s32.totalorder %s15, 0
    %p63 = por %p61, %p62
    %s65 = sadd.s32 %s64, 1
    %p68 = scmp.eq.s32.totalorder %s9, 1
    %p69 = scmp.ne.s32.totalorder %s64, %s66
    %p70 = scmp.eq.s32.totalorder %s9, 0
    %p71 = por %p69, %p70
    %p72 = scmp.ne.s32.totalorder %s64, %s66
    %p73 = scmp.eq.s32.totalorder %s14, 1
    %p74 = por %p72, %p73
    %p75 = scmp.ne.s32.totalorder %s66, %s67
    %p76 = scmp.eq.s32.totalorder %s14, 0
    %p77 = por %p75, %p76
    %p78 = scmp.ne.s32.totalorder %s66, %s67
    %p79 = scmp.eq.s32.totalorder %s15, 1
    %p80 = por %p78, %p79
    %p82 = scmp.ne.s32.totalorder %s67, %s81
    %p83 = scmp.eq.s32.totalorder %s15, 0
    %p84 = por %p82, %p83
    %s85 = ssub.s32 %s9, %s16
    %p86 = scmp.eq.s32.totalorder %s85, 0
    %s88 = sadd.s32 %s87, 1
    %s89 = scalar_select %p86, %s87, %s88
    %p92 = pneg %p86
    %p93 = scmp.eq.s32.totalorder %s9, 1
    %p94 = por %p92, %p93
    %p95 = scmp.ne.s32.totalorder %s87, %s90
    %p96 = scmp.eq.s32.totalorder %s9, 0
    %p97 = por %p95, %p96
    %p98 = scmp.ne.s32.totalorder %s87, %s90
    %p99 = scmp.eq.s32.totalorder %s14, 1
    %p100 = por %p98, %p99
    %p101 = scmp.ne.s32.totalorder %s90, %s91
    %p102 = scmp.eq.s32.totalorder %s14, 0
    %p103 = por %p101, %p102
    %p104 = scmp.ne.s32.totalorder %s90, %s91
    %p105 = scmp.eq.s32.totalorder %s15, 1
    %p106 = por %p104, %p105
    %p108 = scmp.ne.s32.totalorder %s91, %s107
    %p109 = scmp.eq.s32.totalorder %s15, 0
    %p110 = por %p108, %p109
    %p111 = scmp.le.s32.totalorder 1, %s9
    %p112 = scmp.lt.s32.totalorder %s9, 3
    %p113 = pnand %p111, %p112
    %p114 = pneg %p113
    // Predicated region
    $region9: #{encoder_forward.8} parent=5 // pred_check
      _
    $region10: #{encoder_forward.8} parent=5 // pred_check_branch
      %116 = sbr.rel (%p113) target = $region12
    $region11: #{encoder_forward.8} parent=5 // pred_region
      %s117 = ssub.s32 %s9, 1
      // Predicated region
      $region13: #{encoder_forward.8} parent=11 // pred_check
        %p118 = pneg %p56
      $region14: #{encoder_forward.8} parent=11 // pred_check_branch
        %120 = sbr.rel (%p118) target = $region16
      $region15: #{encoder_forward.8} parent=11 // pred_region
        _
      $region16: #{encoder_forward.8} parent=11 // pred_fallthru
        _
      // Predicated region
      $region17: #{encoder_forward.8} parent=11 // pred_check
        %p121 = pneg %p77
      $region18: #{encoder_forward.8} parent=11 // pred_check_branch
        %123 = sbr.rel (%p121) target = $region20
      $region19: #{encoder_forward.8} parent=11 // pred_region
        _
      $region20: #{encoder_forward.8} parent=11 // pred_fallthru
        _
    $region12: #{encoder_forward.8} parent=5 // pred_fallthru
      _
    %p124 = scmp.lt.s32.totalorder %s9, 2
    // Predicated region
    $region21: #{encoder_forward.8} parent=5 // pred_check
      %p125 = pneg %p124
    $region22: #{encoder_forward.8} parent=5 // pred_check_branch
      %127 = sbr.rel (%p125) target = $region24
    $region23: #{encoder_forward.8} parent=5 // pred_region
      // Predicated region
      $region25: #{encoder_forward.8} parent=23 // pred_check
        %p128 = pneg %p29
      $region26: #{encoder_forward.8} parent=23 // pred_check_branch
        %130 = sbr.rel (%p128) target = $region28
      $region27: #{encoder_forward.8} parent=23 // pred_region
        %p131 = scmp.lt.s32.totalorder %s9, 1
        %s132 = scalar_select %p131, %s9, 1
        %s133 = smul.addr %s132, 54
        %s134 = smul.addr %s133, 8
        %s135 = scalar_lea.vmem %s0, %s134
      $region28: #{encoder_forward.8} parent=23 // pred_fallthru
        _
    $region24: #{encoder_forward.8} parent=5 // pred_fallthru
      _
    %p136 = scmp.le.s32.totalorder 1, %s9
    %p137 = scmp.lt.s32.totalorder %s9, 3
    %p138 = pnand %p136, %p137
    %p139 = pneg %p138
    // Predicated region
    $region29: #{encoder_forward.8} parent=5 // pred_check
      _
    $region30: #{encoder_forward.8} parent=5 // pred_check_branch
      %141 = sbr.rel (%p138) target = $region32
    $region31: #{encoder_forward.8} parent=5 // pred_region
      %s142 = ssub.s32 %s9, 1
      %p143 = scmp.lt.s32.totalorder %s14, 1
      %s144 = scalar_select %p143, %s14, 1
      %s145 = smul.addr %s144, 54
      %s146 = smul.addr %s145, 8
      %s147 = scalar_lea.vmem %s0, %s146
      %p148 = pneg %p35
      %p149 = pneg %p32
      %p150 = pneg %p56
      %p151 = pneg %p53
      %p152 = pneg %p77
      %p153 = pneg %p74
      %p154 = pneg %p103
      %p155 = pneg %p100
      %p156 = scmp.lt.s32.totalorder %s14, 1
      %s157 = scalar_select %p156, %s14, 1
      %s158 = smul.addr %s157, 32
      %s159 = smul.addr %s158, 8
      %s160 = scalar_lea.vmem %s3, %s159
      %p161 = scmp.lt.s32.totalorder %s14, 1
      %s162 = scalar_select %p161, %s14, 1
      %s163 = smul.addr %s162, 54
      %s164 = smul.addr %s163, 8
      %s165 = scalar_lea.vmem %s0, %s164
      %p166 = scmp.lt.s32.totalorder %s14, 1
      %s167 = scalar_select %p166, %s14, 1
      %s168 = smul.addr %s167, 32
      %s169 = smul.addr %s168, 8
      %s170 = scalar_lea.vmem %s3, %s169
      %v172 = vld [vmem:[%s165] sm:$0xff]
      %v173 = vld [vmem:[%s165 + $0x8] sm:$0xff]
      %v174 = vld [vmem:[%s165 + $0x18] sm:$0xff]
      %v175 = vld [vmem:[%s165 + $0x20] sm:$0xff]
      %v176 = vld [vmem:[%s165 + $0x30] sm:$0xff]
      %v177 = vld [vmem:[%s165 + $0x38] sm:$0xff]
      %v178 = vld [vmem:[%s165 + $0x48] sm:$0xff]
      %v179 = vld [vmem:[%s165 + $0x50] sm:$0xff]
      %v180 = vld [vmem:[%s165 + $0x60] sm:$0xff]
      %v181 = vld [vmem:[%s165 + $0x68] sm:$0xff]
      %v182 = vld [vmem:[%s165 + $0x78] sm:$0xff]
      %v183 = vld [vmem:[%s165 + $0x80] sm:$0xff]
      %v184 = vld [vmem:[%s165 + $0x90] sm:$0xff]
      %v185 = vld [vmem:[%s165 + $0x98] sm:$0xff]
      %v186 = vld [vmem:[%s165 + $0xa8] sm:$0xff]
      %v187 = vld [vmem:[%s165 + $0xb0] sm:$0xff]
      %v188 = vld [vmem:[%s165 + $0xc0] sm:$0xff]
      %v189 = vld [vmem:[%s165 + $0xc8] sm:$0xff]
      %v190 = vld [vmem:[%s165 + $0xd8] sm:$0xff]
      %v191 = vld [vmem:[%s165 + $0xe0] sm:$0xff]
      %v192 = vld [vmem:[%s165 + $0xf0] sm:$0xff]
      %v193 = vld [vmem:[%s165 + $0xf8] sm:$0xff]
      %v194 = vld [vmem:[%s165 + $0x108] sm:$0xff]
      %v195 = vld [vmem:[%s165 + $0x110] sm:$0xff]
      %v196 = vld [vmem:[%s165 + $0x120] sm:$0xff]
      %v197 = vld [vmem:[%s165 + $0x128] sm:$0xff]
      %v198 = vld [vmem:[%s165 + $0x138] sm:$0xff]
      %v199 = vld [vmem:[%s165 + $0x140] sm:$0xff]
      %v200 = vld [vmem:[%s165 + $0x150] sm:$0xff]
      %v201 = vld [vmem:[%s165 + $0x158] sm:$0xff]
      %v202 = vld [vmem:[%s165 + $0x168] sm:$0xff]
      %v203 = vld [vmem:[%s165 + $0x170] sm:$0xff]
      %v204 = vpack.c.bf16 %v173, %v172
      %v205 = vpack.c.bf16 %v175, %v174
      %v206 = vpack.c.bf16 %v177, %v176
      %v207 = vpack.c.bf16 %v179, %v178
      %v208 = vpack.c.bf16 %v181, %v180
      %v209 = vpack.c.bf16 %v183, %v182
      %v210 = vpack.c.bf16 %v185, %v184
      %v211 = vpack.c.bf16 %v187, %v186
      %v212 = vpack.c.bf16 %v189, %v188
      %v213 = vpack.c.bf16 %v191, %v190
      %v214 = vpack.c.bf16 %v193, %v192
      %v215 = vpack.c.bf16 %v195, %v194
      %v216 = vpack.c.bf16 %v197, %v196
      %v217 = vpack.c.bf16 %v199, %v198
      %v218 = vpack.c.bf16 %v201, %v200
      %v219 = vpack.c.bf16 %v203, %v202
      %v220 = vld [vmem:[%s1] sm:$0x3]
      %v221 = vld [vmem:[%s165 + $0x1] sm:$0xff]
      %v222 = vld [vmem:[%s165 + $0x9] sm:$0xff]
      %v223 = vld [vmem:[%s165 + $0x19] sm:$0xff]
      %v224 = vld [vmem:[%s165 + $0x21] sm:$0xff]
      %v225 = vld [vmem:[%s165 + $0x31] sm:$0xff]
      %v226 = vld [vmem:[%s165 + $0x39] sm:$0xff]
      %v227 = vld [vmem:[%s165 + $0x49] sm:$0xff]
      %v228 = vld [vmem:[%s165 + $0x51] sm:$0xff]
      %v229 = vld [vmem:[%s165 + $0x61] sm:$0xff]
      %v230 = vld [vmem:[%s165 + $0x69] sm:$0xff]
      %v231 = vld [vmem:[%s165 + $0x79] sm:$0xff]
      %v232 = vld [vmem:[%s165 + $0x81] sm:$0xff]
      %v233 = vld [vmem:[%s165 + $0x91] sm:$0xff]
      %v234 = vld [vmem:[%s165 + $0x99] sm:$0xff]
      %v235 = vld [vmem:[%s165 + $0xa9] sm:$0xff]
      %v236 = vld [vmem:[%s165 + $0xb1] sm:$0xff]
      %v237 = vld [vmem:[%s165 + $0xc1] sm:$0xff]
      %v238 = vld [vmem:[%s165 + $0xc9] sm:$0xff]
      %v239 = vld [vmem:[%s165 + $0xd9] sm:$0xff]
      %v240 = vld [vmem:[%s165 + $0xe1] sm:$0xff]
      %v241 = vld [vmem:[%s165 + $0xf1] sm:$0xff]
      %v242 = vld [vmem:[%s165 + $0xf9] sm:$0xff]
      %v243 = vld [vmem:[%s165 + $0x109] sm:$0xff]
      %v244 = vld [vmem:[%s165 + $0x111] sm:$0xff]
      %v245 = vld [vmem:[%s165 + $0x121] sm:$0xff]
      %v246 = vld [vmem:[%s165 + $0x129] sm:$0xff]
      %v247 = vld [vmem:[%s165 + $0x139] sm:$0xff]
      %v248 = vld [vmem:[%s165 + $0x141] sm:$0xff]
      %v249 = vld [vmem:[%s165 + $0x151] sm:$0xff]
      %v250 = vld [vmem:[%s165 + $0x159] sm:$0xff]
      %v251 = vld [vmem:[%s165 + $0x169] sm:$0xff]
      %v252 = vld [vmem:[%s165 + $0x171] sm:$0xff]
      %v253 = vpack.c.bf16 %v222, %v221
      %v254 = vpack.c.bf16 %v224, %v223
      %v255 = vpack.c.bf16 %v226, %v225
      %v256 = vpack.c.bf16 %v228, %v227
      %v257 = vpack.c.bf16 %v230, %v229
      %v258 = vpack.c.bf16 %v232, %v231
      %v259 = vpack.c.bf16 %v234, %v233
      %v260 = vpack.c.bf16 %v236, %v235
      %v261 = vpack.c.bf16 %v238, %v237
      %v262 = vpack.c.bf16 %v240, %v239
      %v263 = vpack.c.bf16 %v242, %v241
      %v264 = vpack.c.bf16 %v244, %v243
      %v265 = vpack.c.bf16 %v246, %v245
      %v266 = vpack.c.bf16 %v248, %v247
      %v267 = vpack.c.bf16 %v250, %v249
      %v268 = vpack.c.bf16 %v252, %v251
      %s269 = scalar_lea.vmem %s1, 2
      %v270 = vld [vmem:[%s269] sm:$0x3]
      %vm271 = vcmask 31744
      %v273 = vsel %vm271, %v253, 0
      %v276 = vsel %vm271, %v254, 0
      %v279 = vsel %vm271, %v255, 0
      %v282 = vsel %vm271, %v256, 0
      %v285 = vsel %vm271, %v257, 0
      %v288 = vsel %vm271, %v258, 0
      %v291 = vsel %vm271, %v259, 0
      %v294 = vsel %vm271, %v260, 0
      %v297 = vsel %vm271, %v261, 0
      %v300 = vsel %vm271, %v262, 0
      %v303 = vsel %vm271, %v263, 0
      %v306 = vsel %vm271, %v264, 0
      %v309 = vsel %vm271, %v265, 0
      %v312 = vsel %vm271, %v266, 0
      %v315 = vsel %vm271, %v267, 0
      %v318 = vsel %vm271, %v268, 0
      %vm320 = vcmask 1041408
      %v322 = vsel %vm320, %v270, 0
      %324 = vmatprep.subr.bf16.mxu0 0
      %325 = vmatpush1.bf16.msra.mxu0 0
      %326 = vmatprep.subr.bf16.mxu0 0
      %327 = vmatpush1.bf16.msra.mxu0 0
      %328 = vmatprep.subr.bf16.mxu0 0
      %329 = vmatpush1.bf16.msra.mxu0 0
      %330 = vmatprep.subr.bf16.mxu0 0
      %331 = vmatpush1.bf16.msra.mxu0 0
      %332 = vmatprep.subr.bf16.mxu0 0
      %333 = vmatpush1.bf16.msra.mxu0 0
      %334 = vmatprep.subr.bf16.mxu0 0
      %335 = vmatpush1.bf16.msra.mxu0 0
      %336 = vmatprep.subr.bf16.mxu0 0
      %337 = vmatpush1.bf16.msra.mxu0 0
      %338 = vmatprep.subr.bf16.mxu0 0
      %339 = vmatpush1.bf16.msra.mxu0 %v322
      %340 = vmatprep.subr.bf16.mxu0 0
      %341 = vmatpush2.bf16.msra.mxu0 0
      %342 = vmatprep.subr.bf16.mxu0 0
      %343 = vmatpush2.bf16.msra.mxu0 0
      %344 = vmatprep.subr.bf16.mxu0 0
      %345 = vmatpush2.bf16.msra.mxu0 0
      %346 = vmatprep.subr.bf16.mxu0 0
      %347 = vmatpush2.bf16.msra.mxu0 0
      %348 = vmatprep.subr.bf16.mxu0 0
      %349 = vmatpush2.bf16.msra.mxu0 0
      %350 = vmatprep.subr.bf16.mxu0 0
      %351 = vmatpush2.bf16.msra.mxu0 0
      %352 = vmatprep.subr.bf16.mxu0 0
      %353 = vmatpush2.bf16.msra.mxu0 0
      %354 = vmatprep.subr.bf16.mxu0 0
      %355 = vmatpush2.bf16.msra.mxu0 0
      %356 = vmatprep.mubr.bf16.mxu0 0
      %357 = vmatmul.mubr.bf16.gmra.mxu0 %v273
      %v358 = vpop.f32.mrf.mxu0
      %v359 = vadd.f32 0.0, %v358
      %v360 = vpop.f32.mrf.mxu0
      %v361 = vpop.f32.mrf.mxu0
      %v362 = vadd.f32 0.0, %v361
      %v363 = vpop.f32.mrf.mxu0
      %364 = vmatprep.mubr.bf16.mxu0 0
      %365 = vmatmul.mubr.bf16.gmra.mxu0 %v276
      %v366 = vpop.f32.mrf.mxu0
      %v367 = vadd.f32 0.0, %v366
      %v368 = vpop.f32.mrf.mxu0
      %v369 = vpop.f32.mrf.mxu0
      %v370 = vadd.f32 0.0, %v369
      %v371 = vpop.f32.mrf.mxu0
      %372 = vmatprep.mubr.bf16.mxu0 0
      %373 = vmatmul.mubr.bf16.gmra.mxu0 %v279
      %v374 = vpop.f32.mrf.mxu0
      %v375 = vadd.f32 0.0, %v374
      %v376 = vpop.f32.mrf.mxu0
      %v377 = vpop.f32.mrf.mxu0
      %v378 = vadd.f32 0.0, %v377
      %v379 = vpop.f32.mrf.mxu0
      %380 = vmatprep.mubr.bf16.mxu0 0
      %381 = vmatmul.mubr.bf16.gmra.mxu0 %v282
      %v382 = vpop.f32.mrf.mxu0
      %v383 = vadd.f32 0.0, %v382
      %v384 = vpop.f32.mrf.mxu0
      %v385 = vpop.f32.mrf.mxu0
      %v386 = vadd.f32 0.0, %v385
      %v387 = vpop.f32.mrf.mxu0
      %388 = vmatprep.mubr.bf16.mxu0 0
      %389 = vmatmul.mubr.bf16.gmra.mxu0 %v285
      %v390 = vpop.f32.mrf.mxu0
      %v391 = vadd.f32 0.0, %v390
      %v392 = vpop.f32.mrf.mxu0
      %v393 = vpop.f32.mrf.mxu0
      %v394 = vadd.f32 0.0, %v393
      %v395 = vpop.f32.mrf.mxu0
      %396 = vmatprep.mubr.bf16.mxu0 0
      %397 = vmatmul.mubr.bf16.gmra.mxu0 %v288
      %v398 = vpop.f32.mrf.mxu0
      %v399 = vadd.f32 0.0, %v398
      %v400 = vpop.f32.mrf.mxu0
      %v401 = vpop.f32.mrf.mxu0
      %v402 = vadd.f32 0.0, %v401
      %v403 = vpop.f32.mrf.mxu0
      %404 = vmatprep.mubr.bf16.mxu0 0
      %405 = vmatmul.mubr.bf16.gmra.mxu0 %v291
      %v406 = vpop.f32.mrf.mxu0
      %v407 = vadd.f32 0.0, %v406
      %v408 = vpop.f32.mrf.mxu0
      %v409 = vpop.f32.mrf.mxu0
      %v410 = vadd.f32 0.0, %v409
      %v411 = vpop.f32.mrf.mxu0
      %412 = vmatprep.mubr.bf16.mxu0 0
      %413 = vmatmul.mubr.bf16.gmra.mxu0 %v294
      %v414 = vpop.f32.mrf.mxu0
      %v415 = vadd.f32 0.0, %v414
      %v416 = vpop.f32.mrf.mxu0
      %v417 = vpop.f32.mrf.mxu0
      %v418 = vadd.f32 0.0, %v417
      %v419 = vpop.f32.mrf.mxu0
      %420 = vmatprep.mubr.bf16.mxu0 0
      %421 = vmatmul.mubr.bf16.gmra.mxu0 %v297
      %v422 = vpop.f32.mrf.mxu0
      %v423 = vadd.f32 0.0, %v422
      %v424 = vpop.f32.mrf.mxu0
      %v425 = vpop.f32.mrf.mxu0
      %v426 = vadd.f32 0.0, %v425
      %v427 = vpop.f32.mrf.mxu0
      %428 = vmatprep.mubr.bf16.mxu0 0
      %429 = vmatmul.mubr.bf16.gmra.mxu0 %v300
      %v430 = vpop.f32.mrf.mxu0
      %v431 = vadd.f32 0.0, %v430
      %v432 = vpop.f32.mrf.mxu0
      %v433 = vpop.f32.mrf.mxu0
      %v434 = vadd.f32 0.0, %v433
      %v435 = vpop.f32.mrf.mxu0
      %436 = vmatprep.mubr.bf16.mxu0 0
      %437 = vmatmul.mubr.bf16.gmra.mxu0 %v303
      %v438 = vpop.f32.mrf.mxu0
      %v439 = vadd.f32 0.0, %v438
      %v440 = vpop.f32.mrf.mxu0
      %v441 = vpop.f32.mrf.mxu0
      %v442 = vadd.f32 0.0, %v441
      %v443 = vpop.f32.mrf.mxu0
      %444 = vmatprep.mubr.bf16.mxu0 0
      %445 = vmatmul.mubr.bf16.gmra.mxu0 %v306
      %v446 = vpop.f32.mrf.mxu0
      %v447 = vadd.f32 0.0, %v446
      %v448 = vpop.f32.mrf.mxu0
      %v449 = vpop.f32.mrf.mxu0
      %v450 = vadd.f32 0.0, %v449
      %v451 = vpop.f32.mrf.mxu0
      %452 = vmatprep.mubr.bf16.mxu0 0
      %453 = vmatmul.mubr.bf16.gmra.mxu0 %v309
      %v454 = vpop.f32.mrf.mxu0
      %v455 = vadd.f32 0.0, %v454
      %v456 = vpop.f32.mrf.mxu0
      %v457 = vpop.f32.mrf.mxu0
      %v458 = vadd.f32 0.0, %v457
      %v459 = vpop.f32.mrf.mxu0
      %460 = vmatprep.mubr.bf16.mxu0 0
      %461 = vmatmul.mubr.bf16.gmra.mxu0 %v312
      %v462 = vpop.f32.mrf.mxu0
      %v463 = vadd.f32 0.0, %v462
      %v464 = vpop.f32.mrf.mxu0
      %v465 = vpop.f32.mrf.mxu0
      %v466 = vadd.f32 0.0, %v465
      %v467 = vpop.f32.mrf.mxu0
      %468 = vmatprep.mubr.bf16.mxu0 0
      %469 = vmatmul.mubr.bf16.gmra.mxu0 %v315
      %v470 = vpop.f32.mrf.mxu0
      %v471 = vadd.f32 0.0, %v470
      %v472 = vpop.f32.mrf.mxu0
      %v473 = vpop.f32.mrf.mxu0
      %v474 = vadd.f32 0.0, %v473
      %v475 = vpop.f32.mrf.mxu0
      %476 = vmatprep.mubr.bf16.mxu0 0
      %477 = vmatmul.mubr.bf16.gmra.mxu0 %v318
      %v478 = vpop.f32.mrf.mxu0
      %v479 = vadd.f32 0.0, %v478
      %v480 = vpop.f32.mrf.mxu0
      %v481 = vpop.f32.mrf.mxu0
      %v482 = vadd.f32 0.0, %v481
      %v483 = vpop.f32.mrf.mxu0
      %484 = vdwg.mxu0
      %v486 = vsel %vm271, %v204, 0
      %v489 = vsel %vm271, %v205, 0
      %v492 = vsel %vm271, %v206, 0
      %v495 = vsel %vm271, %v207, 0
      %v498 = vsel %vm271, %v208, 0
      %v501 = vsel %vm271, %v209, 0
      %v504 = vsel %vm271, %v210, 0
      %v507 = vsel %vm271, %v211, 0
      %v510 = vsel %vm271, %v212, 0
      %v513 = vsel %vm271, %v213, 0
      %v516 = vsel %vm271, %v214, 0
      %v519 = vsel %vm271, %v215, 0
      %v522 = vsel %vm271, %v216, 0
      %v525 = vsel %vm271, %v217, 0
      %v528 = vsel %vm271, %v218, 0
      %v531 = vsel %vm271, %v219, 0
      %v534 = vsel %vm320, %v220, 0
      %536 = vmatprep.subr.bf16.mxu0 0
      %537 = vmatpush1.bf16.msra.mxu0 0
      %538 = vmatprep.subr.bf16.mxu0 0
      %539 = vmatpush1.bf16.msra.mxu0 0
      %540 = vmatprep.subr.bf16.mxu0 0
      %541 = vmatpush1.bf16.msra.mxu0 0
      %542 = vmatprep.subr.bf16.mxu0 0
      %543 = vmatpush1.bf16.msra.mxu0 0
      %544 = vmatprep.subr.bf16.mxu0 0
      %545 = vmatpush1.bf16.msra.mxu0 0
      %546 = vmatprep.subr.bf16.mxu0 0
      %547 = vmatpush1.bf16.msra.mxu0 0
      %548 = vmatprep.subr.bf16.mxu0 0
      %549 = vmatpush1.bf16.msra.mxu0 0
      %550 = vmatprep.subr.bf16.mxu0 0
      %551 = vmatpush1.bf16.msra.mxu0 %v534
      %552 = vmatprep.subr.bf16.mxu0 0
      %553 = vmatpush2.bf16.msra.mxu0 0
      %554 = vmatprep.subr.bf16.mxu0 0
      %555 = vmatpush2.bf16.msra.mxu0 0
      %556 = vmatprep.subr.bf16.mxu0 0
      %557 = vmatpush2.bf16.msra.mxu0 0
      %558 = vmatprep.subr.bf16.mxu0 0
      %559 = vmatpush2.bf16.msra.mxu0 0
      %560 = vmatprep.subr.bf16.mxu0 0
      %561 = vmatpush2.bf16.msra.mxu0 0
      %562 = vmatprep.subr.bf16.mxu0 0
      %563 = vmatpush2.bf16.msra.mxu0 0
      %564 = vmatprep.subr.bf16.mxu0 0
      %565 = vmatpush2.bf16.msra.mxu0 0
      %566 = vmatprep.subr.bf16.mxu0 0
      %567 = vmatpush2.bf16.msra.mxu0 0
      %568 = vmatprep.mubr.bf16.mxu0 0
      %569 = vmatmul.mubr.bf16.gmra.mxu0 %v486
      %v570 = vpop.f32.mrf.mxu0
      %v571 = vadd.f32 %v359, %v570
      %v572 = vpop.f32.mrf.mxu0
      %v573 = vpop.f32.mrf.mxu0
      %v574 = vadd.f32 %v362, %v573
      %v575 = vpop.f32.mrf.mxu0
      %576 = vmatprep.mubr.bf16.mxu0 0
      %577 = vmatmul.mubr.bf16.gmra.mxu0 %v489
      %v578 = vpop.f32.mrf.mxu0
      %v579 = vadd.f32 %v367, %v578
      %v580 = vpop.f32.mrf.mxu0
      %v581 = vpop.f32.mrf.mxu0
      %v582 = vadd.f32 %v370, %v581
      %v583 = vpop.f32.mrf.mxu0
      %584 = vmatprep.mubr.bf16.mxu0 0
      %585 = vmatmul.mubr.bf16.gmra.mxu0 %v492
      %v586 = vpop.f32.mrf.mxu0
      %v587 = vadd.f32 %v375, %v586
      %v588 = vpop.f32.mrf.mxu0
      %v589 = vpop.f32.mrf.mxu0
      %v590 = vadd.f32 %v378, %v589
      %v591 = vpop.f32.mrf.mxu0
      %592 = vmatprep.mubr.bf16.mxu0 0
      %593 = vmatmul.mubr.bf16.gmra.mxu0 %v495
      %v594 = vpop.f32.mrf.mxu0
      %v595 = vadd.f32 %v383, %v594
      %v596 = vpop.f32.mrf.mxu0
      %v597 = vpop.f32.mrf.mxu0
      %v598 = vadd.f32 %v386, %v597
      %v599 = vpop.f32.mrf.mxu0
      %600 = vmatprep.mubr.bf16.mxu0 0
      %601 = vmatmul.mubr.bf16.gmra.mxu0 %v498
      %v602 = vpop.f32.mrf.mxu0
      %v603 = vadd.f32 %v391, %v602
      %v604 = vpop.f32.mrf.mxu0
      %v605 = vpop.f32.mrf.mxu0
      %v606 = vadd.f32 %v394, %v605
      %v607 = vpop.f32.mrf.mxu0
      %608 = vmatprep.mubr.bf16.mxu0 0
      %609 = vmatmul.mubr.bf16.gmra.mxu0 %v501
      %v610 = vpop.f32.mrf.mxu0
      %v611 = vadd.f32 %v399, %v610
      %v612 = vpop.f32.mrf.mxu0
      %v613 = vpop.f32.mrf.mxu0
      %v614 = vadd.f32 %v402, %v613
      %v615 = vpop.f32.mrf.mxu0
      %616 = vmatprep.mubr.bf16.mxu0 0
      %617 = vmatmul.mubr.bf16.gmra.mxu0 %v504
      %v618 = vpop.f32.mrf.mxu0
      %v619 = vadd.f32 %v407, %v618
      %v620 = vpop.f32.mrf.mxu0
      %v621 = vpop.f32.mrf.mxu0
      %v622 = vadd.f32 %v410, %v621
      %v623 = vpop.f32.mrf.mxu0
      %624 = vmatprep.mubr.bf16.mxu0 0
      %625 = vmatmul.mubr.bf16.gmra.mxu0 %v507
      %v626 = vpop.f32.mrf.mxu0
      %v627 = vadd.f32 %v415, %v626
      %v628 = vpop.f32.mrf.mxu0
      %v629 = vpop.f32.mrf.mxu0
      %v630 = vadd.f32 %v418, %v629
      %v631 = vpop.f32.mrf.mxu0
      %632 = vmatprep.mubr.bf16.mxu0 0
      %633 = vmatmul.mubr.bf16.gmra.mxu0 %v510
      %v634 = vpop.f32.mrf.mxu0
      %v635 = vadd.f32 %v423, %v634
      %v636 = vpop.f32.mrf.mxu0
      %v637 = vpop.f32.mrf.mxu0
      %v638 = vadd.f32 %v426, %v637
      %v639 = vpop.f32.mrf.mxu0
      %640 = vmatprep.mubr.bf16.mxu0 0
      %641 = vmatmul.mubr.bf16.gmra.mxu0 %v513
      %v642 = vpop.f32.mrf.mxu0
      %v643 = vadd.f32 %v431, %v642
      %v644 = vpop.f32.mrf.mxu0
      %v645 = vpop.f32.mrf.mxu0
      %v646 = vadd.f32 %v434, %v645
      %v647 = vpop.f32.mrf.mxu0
      %648 = vmatprep.mubr.bf16.mxu0 0
      %649 = vmatmul.mubr.bf16.gmra.mxu0 %v516
      %v650 = vpop.f32.mrf.mxu0
      %v651 = vadd.f32 %v439, %v650
      %v652 = vpop.f32.mrf.mxu0
      %v653 = vpop.f32.mrf.mxu0
      %v654 = vadd.f32 %v442, %v653
      %v655 = vpop.f32.mrf.mxu0
      %656 = vmatprep.mubr.bf16.mxu0 0
      %657 = vmatmul.mubr.bf16.gmra.mxu0 %v519
      %v658 = vpop.f32.mrf.mxu0
      %v659 = vadd.f32 %v447, %v658
      %v660 = vpop.f32.mrf.mxu0
      %v661 = vpop.f32.mrf.mxu0
      %v662 = vadd.f32 %v450, %v661
      %v663 = vpop.f32.mrf.mxu0
      %664 = vmatprep.mubr.bf16.mxu0 0
      %665 = vmatmul.mubr.bf16.gmra.mxu0 %v522
      %v666 = vpop.f32.mrf.mxu0
      %v667 = vadd.f32 %v455, %v666
      %v668 = vpop.f32.mrf.mxu0
      %v669 = vpop.f32.mrf.mxu0
      %v670 = vadd.f32 %v458, %v669
      %v671 = vpop.f32.mrf.mxu0
      %672 = vmatprep.mubr.bf16.mxu0 0
      %673 = vmatmul.mubr.bf16.gmra.mxu0 %v525
      %v674 = vpop.f32.mrf.mxu0
      %v675 = vadd.f32 %v463, %v674
      %v676 = vpop.f32.mrf.mxu0
      %v677 = vpop.f32.mrf.mxu0
      %v678 = vadd.f32 %v466, %v677
      %v679 = vpop.f32.mrf.mxu0
      %680 = vmatprep.mubr.bf16.mxu0 0
      %681 = vmatmul.mubr.bf16.gmra.mxu0 %v528
      %v682 = vpop.f32.mrf.mxu0
      %v683 = vadd.f32 %v471, %v682
      %v684 = vpop.f32.mrf.mxu0
      %v685 = vpop.f32.mrf.mxu0
      %v686 = vadd.f32 %v474, %v685
      %v687 = vpop.f32.mrf.mxu0
      %688 = vmatprep.mubr.bf16.mxu0 0
      %689 = vmatmul.mubr.bf16.gmra.mxu0 %v531
      %v690 = vpop.f32.mrf.mxu0
      %v691 = vadd.f32 %v479, %v690
      %v692 = vpop.f32.mrf.mxu0
      %v693 = vpop.f32.mrf.mxu0
      %v694 = vadd.f32 %v482, %v693
      %v695 = vpop.f32.mrf.mxu0
      %696 = vdwg.mxu0
      %v697 = vld [vmem:[%s165 + $0x2] sm:$0xff]
      %v698 = vld [vmem:[%s165 + $0xa] sm:$0xff]
      %v699 = vld [vmem:[%s165 + $0x1a] sm:$0xff]
      %v700 = vld [vmem:[%s165 + $0x22] sm:$0xff]
      %v701 = vld [vmem:[%s165 + $0x32] sm:$0xff]
      %v702 = vld [vmem:[%s165 + $0x3a] sm:$0xff]
      %v703 = vld [vmem:[%s165 + $0x4a] sm:$0xff]
      %v704 = vld [vmem:[%s165 + $0x52] sm:$0xff]
      %v705 = vld [vmem:[%s165 + $0x62] sm:$0xff]
      %v706 = vld [vmem:[%s165 + $0x6a] sm:$0xff]
      %v707 = vld [vmem:[%s165 + $0x7a] sm:$0xff]
      %v708 = vld [vmem:[%s165 + $0x82] sm:$0xff]
      %v709 = vld [vmem:[%s165 + $0x92] sm:$0xff]
      %v710 = vld [vmem:[%s165 + $0x9a] sm:$0xff]
      %v711 = vld [vmem:[%s165 + $0xaa] sm:$0xff]
      %v712 = vld [vmem:[%s165 + $0xb2] sm:$0xff]
      %v713 = vld [vmem:[%s165 + $0xc2] sm:$0xff]
      %v714 = vld [vmem:[%s165 + $0xca] sm:$0xff]
      %v715 = vld [vmem:[%s165 + $0xda] sm:$0xff]
      %v716 = vld [vmem:[%s165 + $0xe2] sm:$0xff]
      %v717 = vld [vmem:[%s165 + $0xf2] sm:$0xff]
      %v718 = vld [vmem:[%s165 + $0xfa] sm:$0xff]
      %v719 = vld [vmem:[%s165 + $0x10a] sm:$0xff]
      %v720 = vld [vmem:[%s165 + $0x112] sm:$0xff]
      %v721 = vld [vmem:[%s165 + $0x122] sm:$0xff]
      %v722 = vld [vmem:[%s165 + $0x12a] sm:$0xff]
      %v723 = vld [vmem:[%s165 + $0x13a] sm:$0xff]
      %v724 = vld [vmem:[%s165 + $0x142] sm:$0xff]
      %v725 = vld [vmem:[%s165 + $0x152] sm:$0xff]
      %v726 = vld [vmem:[%s165 + $0x15a] sm:$0xff]
      %v727 = vld [vmem:[%s165 + $0x16a] sm:$0xff]
      %v728 = vld [vmem:[%s165 + $0x172] sm:$0xff]
      %v729 = vpack.c.bf16 %v698, %v697
      %v730 = vpack.c.bf16 %v700, %v699
      %v731 = vpack.c.bf16 %v702, %v701
      %v732 = vpack.c.bf16 %v704, %v703
      %v733 = vpack.c.bf16 %v706, %v705
      %v734 = vpack.c.bf16 %v708, %v707
      %v735 = vpack.c.bf16 %v710, %v709
      %v736 = vpack.c.bf16 %v712, %v711
      %v737 = vpack.c.bf16 %v714, %v713
      %v738 = vpack.c.bf16 %v716, %v715
      %v739 = vpack.c.bf16 %v718, %v717
      %v740 = vpack.c.bf16 %v720, %v719
      %v741 = vpack.c.bf16 %v722, %v721
      %v742 = vpack.c.bf16 %v724, %v723
      %v743 = vpack.c.bf16 %v726, %v725
      %v744 = vpack.c.bf16 %v728, %v727
      %s745 = scalar_lea.vmem %s1, 4
      %v746 = vld [vmem:[%s745] sm:$0x3]
      %v748 = vsel %vm271, %v729, 0
      %v751 = vsel %vm271, %v730, 0
      %v754 = vsel %vm271, %v731, 0
      %v757 = vsel %vm271, %v732, 0
      %v760 = vsel %vm271, %v733, 0
      %v763 = vsel %vm271, %v734, 0
      %v766 = vsel %vm271, %v735, 0
      %v769 = vsel %vm271, %v736, 0
      %v772 = vsel %vm271, %v737, 0
      %v775 = vsel %vm271, %v738, 0
      %v778 = vsel %vm271, %v739, 0
      %v781 = vsel %vm271, %v740, 0
      %v784 = vsel %vm271, %v741, 0
      %v787 = vsel %vm271, %v742, 0
      %v790 = vsel %vm271, %v743, 0
      %v793 = vsel %vm271, %v744, 0
      %v796 = vsel %vm320, %v746, 0
      %798 = vmatprep.subr.bf16.mxu0 0
      %799 = vmatpush1.bf16.msra.mxu0 0
      %800 = vmatprep.subr.bf16.mxu0 0
      %801 = vmatpush1.bf16.msra.mxu0 0
      %802 = vmatprep.subr.bf16.mxu0 0
      %803 = vmatpush1.bf16.msra.mxu0 0
      %804 = vmatprep.subr.bf16.mxu0 0
      %805 = vmatpush1.bf16.msra.mxu0 0
      %806 = vmatprep.subr.bf16.mxu0 0
      %807 = vmatpush1.bf16.msra.mxu0 0
      %808 = vmatprep.subr.bf16.mxu0 0
      %809 = vmatpush1.bf16.msra.mxu0 0
      %810 = vmatprep.subr.bf16.mxu0 0
      %811 = vmatpush1.bf16.msra.mxu0 0
      %812 = vmatprep.subr.bf16.mxu0 0
      %813 = vmatpush1.bf16.msra.mxu0 %v796
      %814 = vmatprep.subr.bf16.mxu0 0
      %815 = vmatpush2.bf16.msra.mxu0 0
      %816 = vmatprep.subr.bf16.mxu0 0
      %817 = vmatpush2.bf16.msra.mxu0 0
      %818 = vmatprep.subr.bf16.mxu0 0
      %819 = vmatpush2.bf16.msra.mxu0 0
      %820 = vmatprep.subr.bf16.mxu0 0
      %821 = vmatpush2.bf16.msra.mxu0 0
      %822 = vmatprep.subr.bf16.mxu0 0
      %823 = vmatpush2.bf16.msra.mxu0 0
      %824 = vmatprep.subr.bf16.mxu0 0
      %825 = vmatpush2.bf16.msra.mxu0 0
      %826 = vmatprep.subr.bf16.mxu0 0
      %827 = vmatpush2.bf16.msra.mxu0 0
      %828 = vmatprep.subr.bf16.mxu0 0
      %829 = vmatpush2.bf16.msra.mxu0 0
      %830 = vmatprep.mubr.bf16.mxu0 0
      %831 = vmatmul.mubr.bf16.gmra.mxu0 %v748
      %v832 = vpop.f32.mrf.mxu0
      %v833 = vadd.f32 0.0, %v832
      %v834 = vpop.f32.mrf.mxu0
      %v835 = vpop.f32.mrf.mxu0
      %v836 = vadd.f32 0.0, %v835
      %v837 = vpop.f32.mrf.mxu0
      %838 = vmatprep.mubr.bf16.mxu0 0
      %839 = vmatmul.mubr.bf16.gmra.mxu0 %v751
      %v840 = vpop.f32.mrf.mxu0
      %v841 = vadd.f32 0.0, %v840
      %v842 = vpop.f32.mrf.mxu0
      %v843 = vpop.f32.mrf.mxu0
      %v844 = vadd.f32 0.0, %v843
      %v845 = vpop.f32.mrf.mxu0
      %846 = vmatprep.mubr.bf16.mxu0 0
      %847 = vmatmul.mubr.bf16.gmra.mxu0 %v754
      %v848 = vpop.f32.mrf.mxu0
      %v849 = vadd.f32 0.0, %v848
      %v850 = vpop.f32.mrf.mxu0
      %v851 = vpop.f32.mrf.mxu0
      %v852 = vadd.f32 0.0, %v851
      %v853 = vpop.f32.mrf.mxu0
      %854 = vmatprep.mubr.bf16.mxu0 0
      %855 = vmatmul.mubr.bf16.gmra.mxu0 %v757
      %v856 = vpop.f32.mrf.mxu0
      %v857 = vadd.f32 0.0, %v856
      %v858 = vpop.f32.mrf.mxu0
      %v859 = vpop.f32.mrf.mxu0
      %v860 = vadd.f32 0.0, %v859
      %v861 = vpop.f32.mrf.mxu0
      %862 = vmatprep.mubr.bf16.mxu0 0
      %863 = vmatmul.mubr.bf16.gmra.mxu0 %v760
      %v864 = vpop.f32.mrf.mxu0
      %v865 = vadd.f32 0.0, %v864
      %v866 = vpop.f32.mrf.mxu0
      %v867 = vpop.f32.mrf.mxu0
      %v868 = vadd.f32 0.0, %v867
      %v869 = vpop.f32.mrf.mxu0
      %870 = vmatprep.mubr.bf16.mxu0 0
      %871 = vmatmul.mubr.bf16.gmra.mxu0 %v763
      %v872 = vpop.f32.mrf.mxu0
      %v873 = vadd.f32 0.0, %v872
      %v874 = vpop.f32.mrf.mxu0
      %v875 = vpop.f32.mrf.mxu0
      %v876 = vadd.f32 0.0, %v875
      %v877 = vpop.f32.mrf.mxu0
      %878 = vmatprep.mubr.bf16.mxu0 0
      %879 = vmatmul.mubr.bf16.gmra.mxu0 %v766
      %v880 = vpop.f32.mrf.mxu0
      %v881 = vadd.f32 0.0, %v880
      %v882 = vpop.f32.mrf.mxu0
      %v883 = vpop.f32.mrf.mxu0
      %v884 = vadd.f32 0.0, %v883
      %v885 = vpop.f32.mrf.mxu0
      %886 = vmatprep.mubr.bf16.mxu0 0
      %887 = vmatmul.mubr.bf16.gmra.mxu0 %v769
      %v888 = vpop.f32.mrf.mxu0
      %v889 = vadd.f32 0.0, %v888
      %v890 = vpop.f32.mrf.mxu0
      %v891 = vpop.f32.mrf.mxu0
      %v892 = vadd.f32 0.0, %v891
      %v893 = vpop.f32.mrf.mxu0
      %894 = vmatprep.mubr.bf16.mxu0 0
      %895 = vmatmul.mubr.bf16.gmra.mxu0 %v772
      %v896 = vpop.f32.mrf.mxu0
      %v897 = vadd.f32 0.0, %v896
      %v898 = vpop.f32.mrf.mxu0
      %v899 = vpop.f32.mrf.mxu0
      %v900 = vadd.f32 0.0, %v899
      %v901 = vpop.f32.mrf.mxu0
      %902 = vmatprep.mubr.bf16.mxu0 0
      %903 = vmatmul.mubr.bf16.gmra.mxu0 %v775
      %v904 = vpop.f32.mrf.mxu0
      %v905 = vadd.f32 0.0, %v904
      %v906 = vpop.f32.mrf.mxu0
      %v907 = vpop.f32.mrf.mxu0
      %v908 = vadd.f32 0.0, %v907
      %v909 = vpop.f32.mrf.mxu0
      %910 = vmatprep.mubr.bf16.mxu0 0
      %911 = vmatmul.mubr.bf16.gmra.mxu0 %v778
      %v912 = vpop.f32.mrf.mxu0
      %v913 = vadd.f32 0.0, %v912
      %v914 = vpop.f32.mrf.mxu0
      %v915 = vpop.f32.mrf.mxu0
      %v916 = vadd.f32 0.0, %v915
      %v917 = vpop.f32.mrf.mxu0
      %918 = vmatprep.mubr.bf16.mxu0 0
      %919 = vmatmul.mubr.bf16.gmra.mxu0 %v781
      %v920 = vpop.f32.mrf.mxu0
      %v921 = vadd.f32 0.0, %v920
      %v922 = vpop.f32.mrf.mxu0
      %v923 = vpop.f32.mrf.mxu0
      %v924 = vadd.f32 0.0, %v923
      %v925 = vpop.f32.mrf.mxu0
      %926 = vmatprep.mubr.bf16.mxu0 0
      %927 = vmatmul.mubr.bf16.gmra.mxu0 %v784
      %v928 = vpop.f32.mrf.mxu0
      %v929 = vadd.f32 0.0, %v928
      %v930 = vpop.f32.mrf.mxu0
      %v931 = vpop.f32.mrf.mxu0
      %v932 = vadd.f32 0.0, %v931
      %v933 = vpop.f32.mrf.mxu0
      %934 = vmatprep.mubr.bf16.mxu0 0
      %935 = vmatmul.mubr.bf16.gmra.mxu0 %v787
      %v936 = vpop.f32.mrf.mxu0
      %v937 = vadd.f32 0.0, %v936
      %v938 = vpop.f32.mrf.mxu0
      %v939 = vpop.f32.mrf.mxu0
      %v940 = vadd.f32 0.0, %v939
      %v941 = vpop.f32.mrf.mxu0
      %942 = vmatprep.mubr.bf16.mxu0 0
      %943 = vmatmul.mubr.bf16.gmra.mxu0 %v790
      %v944 = vpop.f32.mrf.mxu0
      %v945 = vadd.f32 0.0, %v944
      %v946 = vpop.f32.mrf.mxu0
      %v947 = vpop.f32.mrf.mxu0
      %v948 = vadd.f32 0.0, %v947
      %v949 = vpop.f32.mrf.mxu0
      %950 = vmatprep.mubr.bf16.mxu0 0
      %951 = vmatmul.mubr.bf16.gmra.mxu0 %v793
      %v952 = vpop.f32.mrf.mxu0
      %v953 = vadd.f32 0.0, %v952
      %v954 = vpop.f32.mrf.mxu0
      %v955 = vpop.f32.mrf.mxu0
      %v956 = vadd.f32 0.0, %v955
      %v957 = vpop.f32.mrf.mxu0
      %958 = vdwg.mxu0
      %v959 = vadd.f32 %v571, %v833
      %v960 = vadd.f32 %v574, %v836
      %v961 = vadd.f32 %v579, %v841
      %v962 = vadd.f32 %v582, %v844
      %v963 = vadd.f32 %v587, %v849
      %v964 = vadd.f32 %v590, %v852
      %v965 = vadd.f32 %v595, %v857
      %v966 = vadd.f32 %v598, %v860
      %v967 = vadd.f32 %v603, %v865
      %v968 = vadd.f32 %v606, %v868
      %v969 = vadd.f32 %v611, %v873
      %v970 = vadd.f32 %v614, %v876
      %v971 = vadd.f32 %v619, %v881
      %v972 = vadd.f32 %v622, %v884
      %v973 = vadd.f32 %v627, %v889
      %v974 = vadd.f32 %v630, %v892
      %v975 = vadd.f32 %v635, %v897
      %v976 = vadd.f32 %v638, %v900
      %v977 = vadd.f32 %v643, %v905
      %v978 = vadd.f32 %v646, %v908
      %v979 = vadd.f32 %v651, %v913
      %v980 = vadd.f32 %v654, %v916
      %v981 = vadd.f32 %v659, %v921
      %v982 = vadd.f32 %v662, %v924
      %v983 = vadd.f32 %v667, %v929
      %v984 = vadd.f32 %v670, %v932
      %v985 = vadd.f32 %v675, %v937
      %v986 = vadd.f32 %v678, %v940
      %v987 = vadd.f32 %v683, %v945
      %v988 = vadd.f32 %v686, %v948
      %v989 = vadd.f32 %v691, %v953
      %v990 = vadd.f32 %v694, %v956
      %s991 = scalar_lea.vmem %s165, 24
      %v992 = vld [vmem:[%s991] sm:$0xff]
      %v993 = vld [vmem:[%s991 + $0x8] sm:$0xff]
      %v994 = vld [vmem:[%s991 + $0x18] sm:$0xff]
      %v995 = vld [vmem:[%s991 + $0x20] sm:$0xff]
      %v996 = vld [vmem:[%s991 + $0x30] sm:$0xff]
      %v997 = vld [vmem:[%s991 + $0x38] sm:$0xff]
      %v998 = vld [vmem:[%s991 + $0x48] sm:$0xff]
      %v999 = vld [vmem:[%s991 + $0x50] sm:$0xff]
      %v1000 = vld [vmem:[%s991 + $0x60] sm:$0xff]
      %v1001 = vld [vmem:[%s991 + $0x68] sm:$0xff]
      %v1002 = vld [vmem:[%s991 + $0x78] sm:$0xff]
      %v1003 = vld [vmem:[%s991 + $0x80] sm:$0xff]
      %v1004 = vld [vmem:[%s991 + $0x90] sm:$0xff]
      %v1005 = vld [vmem:[%s991 + $0x98] sm:$0xff]
      %v1006 = vld [vmem:[%s991 + $0xa8] sm:$0xff]
      %v1007 = vld [vmem:[%s991 + $0xb0] sm:$0xff]
      %v1008 = vld [vmem:[%s991 + $0xc0] sm:$0xff]
      %v1009 = vld [vmem:[%s991 + $0xc8] sm:$0xff]
      %v1010 = vld [vmem:[%s991 + $0xd8] sm:$0xff]
      %v1011 = vld [vmem:[%s991 + $0xe0] sm:$0xff]
      %v1012 = vld [vmem:[%s991 + $0xf0] sm:$0xff]
      %v1013 = vld [vmem:[%s991 + $0xf8] sm:$0xff]
      %v1014 = vld [vmem:[%s991 + $0x108] sm:$0xff]
      %v1015 = vld [vmem:[%s991 + $0x110] sm:$0xff]
      %v1016 = vld [vmem:[%s991 + $0x120] sm:$0xff]
      %v1017 = vld [vmem:[%s991 + $0x128] sm:$0xff]
      %v1018 = vld [vmem:[%s991 + $0x138] sm:$0xff]
      %v1019 = vld [vmem:[%s991 + $0x140] sm:$0xff]
      %v1020 = vld [vmem:[%s991 + $0x150] sm:$0xff]
      %v1021 = vld [vmem:[%s991 + $0x158] sm:$0xff]
      %v1022 = vld [vmem:[%s991 + $0x168] sm:$0xff]
      %v1023 = vld [vmem:[%s991 + $0x170] sm:$0xff]
      %v1024 = vpack.c.bf16 %v993, %v992
      %v1025 = vpack.c.bf16 %v995, %v994
      %v1026 = vpack.c.bf16 %v997, %v996
      %v1027 = vpack.c.bf16 %v999, %v998
      %v1028 = vpack.c.bf16 %v1001, %v1000
      %v1029 = vpack.c.bf16 %v1003, %v1002
      %v1030 = vpack.c.bf16 %v1005, %v1004
      %v1031 = vpack.c.bf16 %v1007, %v1006
      %v1032 = vpack.c.bf16 %v1009, %v1008
      %v1033 = vpack.c.bf16 %v1011, %v1010
      %v1034 = vpack.c.bf16 %v1013, %v1012
      %v1035 = vpack.c.bf16 %v1015, %v1014
      %v1036 = vpack.c.bf16 %v1017, %v1016
      %v1037 = vpack.c.bf16 %v1019, %v1018
      %v1038 = vpack.c.bf16 %v1021, %v1020
      %v1039 = vpack.c.bf16 %v1023, %v1022
      %s1040 = scalar_lea.vmem %s1, 6
      %v1041 = vld [vmem:[%s1040] sm:$0x3]
      %v1043 = vsel %vm271, %v1024, 0
      %v1046 = vsel %vm271, %v1025, 0
      %v1049 = vsel %vm271, %v1026, 0
      %v1052 = vsel %vm271, %v1027, 0
      %v1055 = vsel %vm271, %v1028, 0
      %v1058 = vsel %vm271, %v1029, 0
      %v1061 = vsel %vm271, %v1030, 0
      %v1064 = vsel %vm271, %v1031, 0
      %v1067 = vsel %vm271, %v1032, 0
      %v1070 = vsel %vm271, %v1033, 0
      %v1073 = vsel %vm271, %v1034, 0
      %v1076 = vsel %vm271, %v1035, 0
      %v1079 = vsel %vm271, %v1036, 0
      %v1082 = vsel %vm271, %v1037, 0
      %v1085 = vsel %vm271, %v1038, 0
      %v1088 = vsel %vm271, %v1039, 0
      %v1091 = vsel %vm320, %v1041, 0
      %1093 = vmatprep.subr.bf16.mxu0 0
      %1094 = vmatpush1.bf16.msra.mxu0 0
      %1095 = vmatprep.subr.bf16.mxu0 0
      %1096 = vmatpush1.bf16.msra.mxu0 0
      %1097 = vmatprep.subr.bf16.mxu0 0
      %1098 = vmatpush1.bf16.msra.mxu0 0
      %1099 = vmatprep.subr.bf16.mxu0 0
      %1100 = vmatpush1.bf16.msra.mxu0 0
      %1101 = vmatprep.subr.bf16.mxu0 0
      %1102 = vmatpush1.bf16.msra.mxu0 0
      %1103 = vmatprep.subr.bf16.mxu0 0
      %1104 = vmatpush1.bf16.msra.mxu0 0
      %1105 = vmatprep.subr.bf16.mxu0 0
      %1106 = vmatpush1.bf16.msra.mxu0 0
      %1107 = vmatprep.subr.bf16.mxu0 0
      %1108 = vmatpush1.bf16.msra.mxu0 %v1091
      %1109 = vmatprep.subr.bf16.mxu0 0
      %1110 = vmatpush2.bf16.msra.mxu0 0
      %1111 = vmatprep.subr.bf16.mxu0 0
      %1112 = vmatpush2.bf16.msra.mxu0 0
      %1113 = vmatprep.subr.bf16.mxu0 0
      %1114 = vmatpush2.bf16.msra.mxu0 0
      %1115 = vmatprep.subr.bf16.mxu0 0
      %1116 = vmatpush2.bf16.msra.mxu0 0
      %1117 = vmatprep.subr.bf16.mxu0 0
      %1118 = vmatpush2.bf16.msra.mxu0 0
      %1119 = vmatprep.subr.bf16.mxu0 0
      %1120 = vmatpush2.bf16.msra.mxu0 0
      %1121 = vmatprep.subr.bf16.mxu0 0
      %1122 = vmatpush2.bf16.msra.mxu0 0
      %1123 = vmatprep.subr.bf16.mxu0 0
      %1124 = vmatpush2.bf16.msra.mxu0 0
      %1125 = vmatprep.mubr.bf16.mxu0 0
      %1126 = vmatmul.mubr.bf16.gmra.mxu0 %v1043
      %v1127 = vpop.f32.mrf.mxu0
      %v1128 = vadd.f32 0.0, %v1127
      %v1129 = vpop.f32.mrf.mxu0
      %v1130 = vpop.f32.mrf.mxu0
      %v1131 = vadd.f32 0.0, %v1130
      %v1132 = vpop.f32.mrf.mxu0
      %1133 = vmatprep.mubr.bf16.mxu0 0
      %1134 = vmatmul.mubr.bf16.gmra.mxu0 %v1046
      %v1135 = vpop.f32.mrf.mxu0
      %v1136 = vadd.f32 0.0, %v1135
      %v1137 = vpop.f32.mrf.mxu0
      %v1138 = vpop.f32.mrf.mxu0
      %v1139 = vadd.f32 0.0, %v1138
      %v1140 = vpop.f32.mrf.mxu0
      %1141 = vmatprep.mubr.bf16.mxu0 0
      %1142 = vmatmul.mubr.bf16.gmra.mxu0 %v1049
      %v1143 = vpop.f32.mrf.mxu0
      %v1144 = vadd.f32 0.0, %v1143
      %v1145 = vpop.f32.mrf.mxu0
      %v1146 = vpop.f32.mrf.mxu0
      %v1147 = vadd.f32 0.0, %v1146
      %v1148 = vpop.f32.mrf.mxu0
      %1149 = vmatprep.mubr.bf16.mxu0 0
      %1150 = vmatmul.mubr.bf16.gmra.mxu0 %v1052
      %v1151 = vpop.f32.mrf.mxu0
      %v1152 = vadd.f32 0.0, %v1151
      %v1153 = vpop.f32.mrf.mxu0
      %v1154 = vpop.f32.mrf.mxu0
      %v1155 = vadd.f32 0.0, %v1154
      %v1156 = vpop.f32.mrf.mxu0
      %1157 = vmatprep.mubr.bf16.mxu0 0
      %1158 = vmatmul.mubr.bf16.gmra.mxu0 %v1055
      %v1159 = vpop.f32.mrf.mxu0
      %v1160 = vadd.f32 0.0, %v1159
      %v1161 = vpop.f32.mrf.mxu0
      %v1162 = vpop.f32.mrf.mxu0
      %v1163 = vadd.f32 0.0, %v1162
      %v1164 = vpop.f32.mrf.mxu0
      %1165 = vmatprep.mubr.bf16.mxu0 0
      %1166 = vmatmul.mubr.bf16.gmra.mxu0 %v1058
      %v1167 = vpop.f32.mrf.mxu0
      %v1168 = vadd.f32 0.0, %v1167
      %v1169 = vpop.f32.mrf.mxu0
      %v1170 = vpop.f32.mrf.mxu0
      %v1171 = vadd.f32 0.0, %v1170
      %v1172 = vpop.f32.mrf.mxu0
      %1173 = vmatprep.mubr.bf16.mxu0 0
      %1174 = vmatmul.mubr.bf16.gmra.mxu0 %v1061
      %v1175 = vpop.f32.mrf.mxu0
      %v1176 = vadd.f32 0.0, %v1175
      %v1177 = vpop.f32.mrf.mxu0
      %v1178 = vpop.f32.mrf.mxu0
      %v1179 = vadd.f32 0.0, %v1178
      %v1180 = vpop.f32.mrf.mxu0
      %1181 = vmatprep.mubr.bf16.mxu0 0
      %1182 = vmatmul.mubr.bf16.gmra.mxu0 %v1064
      %v1183 = vpop.f32.mrf.mxu0
      %v1184 = vadd.f32 0.0, %v1183
      %v1185 = vpop.f32.mrf.mxu0
      %v1186 = vpop.f32.mrf.mxu0
      %v1187 = vadd.f32 0.0, %v1186
      %v1188 = vpop.f32.mrf.mxu0
      %1189 = vmatprep.mubr.bf16.mxu0 0
      %1190 = vmatmul.mubr.bf16.gmra.mxu0 %v1067
      %v1191 = vpop.f32.mrf.mxu0
      %v1192 = vadd.f32 0.0, %v1191
      %v1193 = vpop.f32.mrf.mxu0
      %v1194 = vpop.f32.mrf.mxu0
      %v1195 = vadd.f32 0.0, %v1194
      %v1196 = vpop.f32.mrf.mxu0
      %1197 = vmatprep.mubr.bf16.mxu0 0
      %1198 = vmatmul.mubr.bf16.gmra.mxu0 %v1070
      %v1199 = vpop.f32.mrf.mxu0
      %v1200 = vadd.f32 0.0, %v1199
      %v1201 = vpop.f32.mrf.mxu0
      %v1202 = vpop.f32.mrf.mxu0
      %v1203 = vadd.f32 0.0, %v1202
      %v1204 = vpop.f32.mrf.mxu0
      %1205 = vmatprep.mubr.bf16.mxu0 0
      %1206 = vmatmul.mubr.bf16.gmra.mxu0 %v1073
      %v1207 = vpop.f32.mrf.mxu0
      %v1208 = vadd.f32 0.0, %v1207
      %v1209 = vpop.f32.mrf.mxu0
      %v1210 = vpop.f32.mrf.mxu0
      %v1211 = vadd.f32 0.0, %v1210
      %v1212 = vpop.f32.mrf.mxu0
      %1213 = vmatprep.mubr.bf16.mxu0 0
      %1214 = vmatmul.mubr.bf16.gmra.mxu0 %v1076
      %v1215 = vpop.f32.mrf.mxu0
      %v1216 = vadd.f32 0.0, %v1215
      %v1217 = vpop.f32.mrf.mxu0
      %v1218 = vpop.f32.mrf.mxu0
      %v1219 = vadd.f32 0.0, %v1218
      %v1220 = vpop.f32.mrf.mxu0
      %1221 = vmatprep.mubr.bf16.mxu0 0
      %1222 = vmatmul.mubr.bf16.gmra.mxu0 %v1079
      %v1223 = vpop.f32.mrf.mxu0
      %v1224 = vadd.f32 0.0, %v1223
      %v1225 = vpop.f32.mrf.mxu0
      %v1226 = vpop.f32.mrf.mxu0
      %v1227 = vadd.f32 0.0, %v1226
      %v1228 = vpop.f32.mrf.mxu0
      %1229 = vmatprep.mubr.bf16.mxu0 0
      %1230 = vmatmul.mubr.bf16.gmra.mxu0 %v1082
      %v1231 = vpop.f32.mrf.mxu0
      %v1232 = vadd.f32 0.0, %v1231
      %v1233 = vpop.f32.mrf.mxu0
      %v1234 = vpop.f32.mrf.mxu0
      %v1235 = vadd.f32 0.0, %v1234
      %v1236 = vpop.f32.mrf.mxu0
      %1237 = vmatprep.mubr.bf16.mxu0 0
      %1238 = vmatmul.mubr.bf16.gmra.mxu0 %v1085
      %v1239 = vpop.f32.mrf.mxu0
      %v1240 = vadd.f32 0.0, %v1239
      %v1241 = vpop.f32.mrf.mxu0
      %v1242 = vpop.f32.mrf.mxu0
      %v1243 = vadd.f32 0.0, %v1242
      %v1244 = vpop.f32.mrf.mxu0
      %1245 = vmatprep.mubr.bf16.mxu0 0
      %1246 = vmatmul.mubr.bf16.gmra.mxu0 %v1088
      %v1247 = vpop.f32.mrf.mxu0
      %v1248 = vadd.f32 0.0, %v1247
      %v1249 = vpop.f32.mrf.mxu0
      %v1250 = vpop.f32.mrf.mxu0
      %v1251 = vadd.f32 0.0, %v1250
      %v1252 = vpop.f32.mrf.mxu0
      %1253 = vdwg.mxu0
      %v1254 = vadd.f32 %v959, %v1128
      %v1255 = vadd.f32 %v960, %v1131
      %v1256 = vadd.f32 %v961, %v1136
      %v1257 = vadd.f32 %v962, %v1139
      %v1258 = vadd.f32 %v963, %v1144
      %v1259 = vadd.f32 %v964, %v1147
      %v1260 = vadd.f32 %v965, %v1152
      %v1261 = vadd.f32 %v966, %v1155
      %v1262 = vadd.f32 %v967, %v1160
      %v1263 = vadd.f32 %v968, %v1163
      %v1264 = vadd.f32 %v969, %v1168
      %v1265 = vadd.f32 %v970, %v1171
      %v1266 = vadd.f32 %v971, %v1176
      %v1267 = vadd.f32 %v972, %v1179
      %v1268 = vadd.f32 %v973, %v1184
      %v1269 = vadd.f32 %v974, %v1187
      %v1270 = vadd.f32 %v975, %v1192
      %v1271 = vadd.f32 %v976, %v1195
      %v1272 = vadd.f32 %v977, %v1200
      %v1273 = vadd.f32 %v978, %v1203
      %v1274 = vadd.f32 %v979, %v1208
      %v1275 = vadd.f32 %v980, %v1211
      %v1276 = vadd.f32 %v981, %v1216
      %v1277 = vadd.f32 %v982, %v1219
      %v1278 = vadd.f32 %v983, %v1224
      %v1279 = vadd.f32 %v984, %v1227
      %v1280 = vadd.f32 %v985, %v1232
      %v1281 = vadd.f32 %v986, %v1235
      %v1282 = vadd.f32 %v987, %v1240
      %v1283 = vadd.f32 %v988, %v1243
      %v1284 = vadd.f32 %v989, %v1248
      %v1285 = vadd.f32 %v990, %v1251
      %v1286 = vld [vmem:[%s991 + $0x1] sm:$0xff]
      %v1287 = vld [vmem:[%s991 + $0x9] sm:$0xff]
      %v1288 = vld [vmem:[%s991 + $0x19] sm:$0xff]
      %v1289 = vld [vmem:[%s991 + $0x21] sm:$0xff]
      %v1290 = vld [vmem:[%s991 + $0x31] sm:$0xff]
      %v1291 = vld [vmem:[%s991 + $0x39] sm:$0xff]
      %v1292 = vld [vmem:[%s991 + $0x49] sm:$0xff]
      %v1293 = vld [vmem:[%s991 + $0x51] sm:$0xff]
      %v1294 = vld [vmem:[%s991 + $0x61] sm:$0xff]
      %v1295 = vld [vmem:[%s991 + $0x69] sm:$0xff]
      %v1296 = vld [vmem:[%s991 + $0x79] sm:$0xff]
      %v1297 = vld [vmem:[%s991 + $0x81] sm:$0xff]
      %v1298 = vld [vmem:[%s991 + $0x91] sm:$0xff]
      %v1299 = vld [vmem:[%s991 + $0x99] sm:$0xff]
      %v1300 = vld [vmem:[%s991 + $0xa9] sm:$0xff]
      %v1301 = vld [vmem:[%s991 + $0xb1] sm:$0xff]
      %v1302 = vld [vmem:[%s991 + $0xc1] sm:$0xff]
      %v1303 = vld [vmem:[%s991 + $0xc9] sm:$0xff]
      %v1304 = vld [vmem:[%s991 + $0xd9] sm:$0xff]
      %v1305 = vld [vmem:[%s991 + $0xe1] sm:$0xff]
      %v1306 = vld [vmem:[%s991 + $0xf1] sm:$0xff]
      %v1307 = vld [vmem:[%s991 + $0xf9] sm:$0xff]
      %v1308 = vld [vmem:[%s991 + $0x109] sm:$0xff]
      %v1309 = vld [vmem:[%s991 + $0x111] sm:$0xff]
      %v1310 = vld [vmem:[%s991 + $0x121] sm:$0xff]
      %v1311 = vld [vmem:[%s991 + $0x129] sm:$0xff]
      %v1312 = vld [vmem:[%s991 + $0x139] sm:$0xff]
      %v1313 = vld [vmem:[%s991 + $0x141] sm:$0xff]
      %v1314 = vld [vmem:[%s991 + $0x151] sm:$0xff]
      %v1315 = vld [vmem:[%s991 + $0x159] sm:$0xff]
      %v1316 = vld [vmem:[%s991 + $0x169] sm:$0xff]
      %v1317 = vld [vmem:[%s991 + $0x171] sm:$0xff]
      %v1318 = vpack.c.bf16 %v1287, %v1286
      %v1319 = vpack.c.bf16 %v1289, %v1288
      %v1320 = vpack.c.bf16 %v1291, %v1290
      %v1321 = vpack.c.bf16 %v1293, %v1292
      %v1322 = vpack.c.bf16 %v1295, %v1294
      %v1323 = vpack.c.bf16 %v1297, %v1296
      %v1324 = vpack.c.bf16 %v1299, %v1298
      %v1325 = vpack.c.bf16 %v1301, %v1300
      %v1326 = vpack.c.bf16 %v1303, %v1302
      %v1327 = vpack.c.bf16 %v1305, %v1304
      %v1328 = vpack.c.bf16 %v1307, %v1306
      %v1329 = vpack.c.bf16 %v1309, %v1308
      %v1330 = vpack.c.bf16 %v1311, %v1310
      %v1331 = vpack.c.bf16 %v1313, %v1312
      %v1332 = vpack.c.bf16 %v1315, %v1314
      %v1333 = vpack.c.bf16 %v1317, %v1316
      %s1334 = scalar_lea.vmem %s1, 8
      %v1335 = vld [vmem:[%s1334] sm:$0x3]
      %v1337 = vsel %vm271, %v1318, 0
      %v1340 = vsel %vm271, %v1319, 0
      %v1343 = vsel %vm271, %v1320, 0
      %v1346 = vsel %vm271, %v1321, 0
      %v1349 = vsel %vm271, %v1322, 0
      %v1352 = vsel %vm271, %v1323, 0
      %v1355 = vsel %vm271, %v1324, 0
      %v1358 = vsel %vm271, %v1325, 0
      %v1361 = vsel %vm271, %v1326, 0
      %v1364 = vsel %vm271, %v1327, 0
      %v1367 = vsel %vm271, %v1328, 0
      %v1370 = vsel %vm271, %v1329, 0
      %v1373 = vsel %vm271, %v1330, 0
      %v1376 = vsel %vm271, %v1331, 0
      %v1379 = vsel %vm271, %v1332, 0
      %v1382 = vsel %vm271, %v1333, 0
      %v1385 = vsel %vm320, %v1335, 0
      %1387 = vmatprep.subr.bf16.mxu0 0
      %1388 = vmatpush1.bf16.msra.mxu0 0
      %1389 = vmatprep.subr.bf16.mxu0 0
      %1390 = vmatpush1.bf16.msra.mxu0 0
      %1391 = vmatprep.subr.bf16.mxu0 0
      %1392 = vmatpush1.bf16.msra.mxu0 0
      %1393 = vmatprep.subr.bf16.mxu0 0
      %1394 = vmatpush1.bf16.msra.mxu0 0
      %1395 = vmatprep.subr.bf16.mxu0 0
      %1396 = vmatpush1.bf16.msra.mxu0 0
      %1397 = vmatprep.subr.bf16.mxu0 0
      %1398 = vmatpush1.bf16.msra.mxu0 0
      %1399 = vmatprep.subr.bf16.mxu0 0
      %1400 = vmatpush1.bf16.msra.mxu0 0
      %1401 = vmatprep.subr.bf16.mxu0 0
      %1402 = vmatpush1.bf16.msra.mxu0 %v1385
      %1403 = vmatprep.subr.bf16.mxu0 0
      %1404 = vmatpush2.bf16.msra.mxu0 0
      %1405 = vmatprep.subr.bf16.mxu0 0
      %1406 = vmatpush2.bf16.msra.mxu0 0
      %1407 = vmatprep.subr.bf16.mxu0 0
      %1408 = vmatpush2.bf16.msra.mxu0 0
      %1409 = vmatprep.subr.bf16.mxu0 0
      %1410 = vmatpush2.bf16.msra.mxu0 0
      %1411 = vmatprep.subr.bf16.mxu0 0
      %1412 = vmatpush2.bf16.msra.mxu0 0
      %1413 = vmatprep.subr.bf16.mxu0 0
      %1414 = vmatpush2.bf16.msra.mxu0 0
      %1415 = vmatprep.subr.bf16.mxu0 0
      %1416 = vmatpush2.bf16.msra.mxu0 0
      %1417 = vmatprep.subr.bf16.mxu0 0
      %1418 = vmatpush2.bf16.msra.mxu0 0
      %1419 = vmatprep.mubr.bf16.mxu0 0
      %1420 = vmatmul.mubr.bf16.gmra.mxu0 %v1337
      %v1421 = vpop.f32.mrf.mxu0
      %v1422 = vadd.f32 0.0, %v1421
      %v1423 = vpop.f32.mrf.mxu0
      %v1424 = vpop.f32.mrf.mxu0
      %v1425 = vadd.f32 0.0, %v1424
      %v1426 = vpop.f32.mrf.mxu0
      %1427 = vmatprep.mubr.bf16.mxu0 0
      %1428 = vmatmul.mubr.bf16.gmra.mxu0 %v1340
      %v1429 = vpop.f32.mrf.mxu0
      %v1430 = vadd.f32 0.0, %v1429
      %v1431 = vpop.f32.mrf.mxu0
      %v1432 = vpop.f32.mrf.mxu0
      %v1433 = vadd.f32 0.0, %v1432
      %v1434 = vpop.f32.mrf.mxu0
      %1435 = vmatprep.mubr.bf16.mxu0 0
      %1436 = vmatmul.mubr.bf16.gmra.mxu0 %v1343
      %v1437 = vpop.f32.mrf.mxu0
      %v1438 = vadd.f32 0.0, %v1437
      %v1439 = vpop.f32.mrf.mxu0
      %v1440 = vpop.f32.mrf.mxu0
      %v1441 = vadd.f32 0.0, %v1440
      %v1442 = vpop.f32.mrf.mxu0
      %1443 = vmatprep.mubr.bf16.mxu0 0
      %1444 = vmatmul.mubr.bf16.gmra.mxu0 %v1346
      %v1445 = vpop.f32.mrf.mxu0
      %v1446 = vadd.f32 0.0, %v1445
      %v1447 = vpop.f32.mrf.mxu0
      %v1448 = vpop.f32.mrf.mxu0
      %v1449 = vadd.f32 0.0, %v1448
      %v1450 = vpop.f32.mrf.mxu0
      %1451 = vmatprep.mubr.bf16.mxu0 0
      %1452 = vmatmul.mubr.bf16.gmra.mxu0 %v1349
      %v1453 = vpop.f32.mrf.mxu0
      %v1454 = vadd.f32 0.0, %v1453
      %v1455 = vpop.f32.mrf.mxu0
      %v1456 = vpop.f32.mrf.mxu0
      %v1457 = vadd.f32 0.0, %v1456
      %v1458 = vpop.f32.mrf.mxu0
      %1459 = vmatprep.mubr.bf16.mxu0 0
      %1460 = vmatmul.mubr.bf16.gmra.mxu0 %v1352
      %v1461 = vpop.f32.mrf.mxu0
      %v1462 = vadd.f32 0.0, %v1461
      %v1463 = vpop.f32.mrf.mxu0
      %v1464 = vpop.f32.mrf.mxu0
      %v1465 = vadd.f32 0.0, %v1464
      %v1466 = vpop.f32.mrf.mxu0
      %1467 = vmatprep.mubr.bf16.mxu0 0
      %1468 = vmatmul.mubr.bf16.gmra.mxu0 %v1355
      %v1469 = vpop.f32.mrf.mxu0
      %v1470 = vadd.f32 0.0, %v1469
      %v1471 = vpop.f32.mrf.mxu0
      %v1472 = vpop.f32.mrf.mxu0
      %v1473 = vadd.f32 0.0, %v1472
      %v1474 = vpop.f32.mrf.mxu0
      %1475 = vmatprep.mubr.bf16.mxu0 0
      %1476 = vmatmul.mubr.bf16.gmra.mxu0 %v1358
      %v1477 = vpop.f32.mrf.mxu0
      %v1478 = vadd.f32 0.0, %v1477
      %v1479 = vpop.f32.mrf.mxu0
      %v1480 = vpop.f32.mrf.mxu0
      %v1481 = vadd.f32 0.0, %v1480
      %v1482 = vpop.f32.mrf.mxu0
      %1483 = vmatprep.mubr.bf16.mxu0 0
      %1484 = vmatmul.mubr.bf16.gmra.mxu0 %v1361
      %v1485 = vpop.f32.mrf.mxu0
      %v1486 = vadd.f32 0.0, %v1485
      %v1487 = vpop.f32.mrf.mxu0
      %v1488 = vpop.f32.mrf.mxu0
      %v1489 = vadd.f32 0.0, %v1488
      %v1490 = vpop.f32.mrf.mxu0
      %1491 = vmatprep.mubr.bf16.mxu0 0
      %1492 = vmatmul.mubr.bf16.gmra.mxu0 %v1364
      %v1493 = vpop.f32.mrf.mxu0
      %v1494 = vadd.f32 0.0, %v1493
      %v1495 = vpop.f32.mrf.mxu0
      %v1496 = vpop.f32.mrf.mxu0
      %v1497 = vadd.f32 0.0, %v1496
      %v1498 = vpop.f32.mrf.mxu0
      %1499 = vmatprep.mubr.bf16.mxu0 0
      %1500 = vmatmul.mubr.bf16.gmra.mxu0 %v1367
      %v1501 = vpop.f32.mrf.mxu0
      %v1502 = vadd.f32 0.0, %v1501
      %v1503 = vpop.f32.mrf.mxu0
      %v1504 = vpop.f32.mrf.mxu0
      %v1505 = vadd.f32 0.0, %v1504
      %v1506 = vpop.f32.mrf.mxu0
      %1507 = vmatprep.mubr.bf16.mxu0 0
      %1508 = vmatmul.mubr.bf16.gmra.mxu0 %v1370
      %v1509 = vpop.f32.mrf.mxu0
      %v1510 = vadd.f32 0.0, %v1509
      %v1511 = vpop.f32.mrf.mxu0
      %v1512 = vpop.f32.mrf.mxu0
      %v1513 = vadd.f32 0.0, %v1512
      %v1514 = vpop.f32.mrf.mxu0
      %1515 = vmatprep.mubr.bf16.mxu0 0
      %1516 = vmatmul.mubr.bf16.gmra.mxu0 %v1373
      %v1517 = vpop.f32.mrf.mxu0
      %v1518 = vadd.f32 0.0, %v1517
      %v1519 = vpop.f32.mrf.mxu0
      %v1520 = vpop.f32.mrf.mxu0
      %v1521 = vadd.f32 0.0, %v1520
      %v1522 = vpop.f32.mrf.mxu0
      %1523 = vmatprep.mubr.bf16.mxu0 0
      %1524 = vmatmul.mubr.bf16.gmra.mxu0 %v1376
      %v1525 = vpop.f32.mrf.mxu0
      %v1526 = vadd.f32 0.0, %v1525
      %v1527 = vpop.f32.mrf.mxu0
      %v1528 = vpop.f32.mrf.mxu0
      %v1529 = vadd.f32 0.0, %v1528
      %v1530 = vpop.f32.mrf.mxu0
      %1531 = vmatprep.mubr.bf16.mxu0 0
      %1532 = vmatmul.mubr.bf16.gmra.mxu0 %v1379
      %v1533 = vpop.f32.mrf.mxu0
      %v1534 = vadd.f32 0.0, %v1533
      %v1535 = vpop.f32.mrf.mxu0
      %v1536 = vpop.f32.mrf.mxu0
      %v1537 = vadd.f32 0.0, %v1536
      %v1538 = vpop.f32.mrf.mxu0
      %1539 = vmatprep.mubr.bf16.mxu0 0
      %1540 = vmatmul.mubr.bf16.gmra.mxu0 %v1382
      %v1541 = vpop.f32.mrf.mxu0
      %v1542 = vadd.f32 0.0, %v1541
      %v1543 = vpop.f32.mrf.mxu0
      %v1544 = vpop.f32.mrf.mxu0
      %v1545 = vadd.f32 0.0, %v1544
      %v1546 = vpop.f32.mrf.mxu0
      %1547 = vdwg.mxu0
      %v1548 = vadd.f32 %v1254, %v1422
      %v1549 = vadd.f32 %v1255, %v1425
      %v1550 = vadd.f32 %v1256, %v1430
      %v1551 = vadd.f32 %v1257, %v1433
      %v1552 = vadd.f32 %v1258, %v1438
      %v1553 = vadd.f32 %v1259, %v1441
      %v1554 = vadd.f32 %v1260, %v1446
      %v1555 = vadd.f32 %v1261, %v1449
      %v1556 = vadd.f32 %v1262, %v1454
      %v1557 = vadd.f32 %v1263, %v1457
      %v1558 = vadd.f32 %v1264, %v1462
      %v1559 = vadd.f32 %v1265, %v1465
      %v1560 = vadd.f32 %v1266, %v1470
      %v1561 = vadd.f32 %v1267, %v1473
      %v1562 = vadd.f32 %v1268, %v1478
      %v1563 = vadd.f32 %v1269, %v1481
      %v1564 = vadd.f32 %v1270, %v1486
      %v1565 = vadd.f32 %v1271, %v1489
      %v1566 = vadd.f32 %v1272, %v1494
      %v1567 = vadd.f32 %v1273, %v1497
      %v1568 = vadd.f32 %v1274, %v1502
      %v1569 = vadd.f32 %v1275, %v1505
      %v1570 = vadd.f32 %v1276, %v1510
      %v1571 = vadd.f32 %v1277, %v1513
      %v1572 = vadd.f32 %v1278, %v1518
      %v1573 = vadd.f32 %v1279, %v1521
      %v1574 = vadd.f32 %v1280, %v1526
      %v1575 = vadd.f32 %v1281, %v1529
      %v1576 = vadd.f32 %v1282, %v1534
      %v1577 = vadd.f32 %v1283, %v1537
      %v1578 = vadd.f32 %v1284, %v1542
      %v1579 = vadd.f32 %v1285, %v1545
      %v1580 = vld [vmem:[%s991 + $0x2] sm:$0xff]
      %v1581 = vld [vmem:[%s991 + $0xa] sm:$0xff]
      %v1582 = vld [vmem:[%s991 + $0x1a] sm:$0xff]
      %v1583 = vld [vmem:[%s991 + $0x22] sm:$0xff]
      %v1584 = vld [vmem:[%s991 + $0x32] sm:$0xff]
      %v1585 = vld [vmem:[%s991 + $0x3a] sm:$0xff]
      %v1586 = vld [vmem:[%s991 + $0x4a] sm:$0xff]
      %v1587 = vld [vmem:[%s991 + $0x52] sm:$0xff]
      %v1588 = vld [vmem:[%s991 + $0x62] sm:$0xff]
      %v1589 = vld [vmem:[%s991 + $0x6a] sm:$0xff]
      %v1590 = vld [vmem:[%s991 + $0x7a] sm:$0xff]
      %v1591 = vld [vmem:[%s991 + $0x82] sm:$0xff]
      %v1592 = vld [vmem:[%s991 + $0x92] sm:$0xff]
      %v1593 = vld [vmem:[%s991 + $0x9a] sm:$0xff]
      %v1594 = vld [vmem:[%s991 + $0xaa] sm:$0xff]
      %v1595 = vld [vmem:[%s991 + $0xb2] sm:$0xff]
      %v1596 = vld [vmem:[%s991 + $0xc2] sm:$0xff]
      %v1597 = vld [vmem:[%s991 + $0xca] sm:$0xff]
      %v1598 = vld [vmem:[%s991 + $0xda] sm:$0xff]
      %v1599 = vld [vmem:[%s991 + $0xe2] sm:$0xff]
      %v1600 = vld [vmem:[%s991 + $0xf2] sm:$0xff]
      %v1601 = vld [vmem:[%s991 + $0xfa] sm:$0xff]
      %v1602 = vld [vmem:[%s991 + $0x10a] sm:$0xff]
      %v1603 = vld [vmem:[%s991 + $0x112] sm:$0xff]
      %v1604 = vld [vmem:[%s991 + $0x122] sm:$0xff]
      %v1605 = vld [vmem:[%s991 + $0x12a] sm:$0xff]
      %v1606 = vld [vmem:[%s991 + $0x13a] sm:$0xff]
      %v1607 = vld [vmem:[%s991 + $0x142] sm:$0xff]
      %v1608 = vld [vmem:[%s991 + $0x152] sm:$0xff]
      %v1609 = vld [vmem:[%s991 + $0x15a] sm:$0xff]
      %v1610 = vld [vmem:[%s991 + $0x16a] sm:$0xff]
      %v1611 = vld [vmem:[%s991 + $0x172] sm:$0xff]
      %v1612 = vpack.c.bf16 %v1581, %v1580
      %v1613 = vpack.c.bf16 %v1583, %v1582
      %v1614 = vpack.c.bf16 %v1585, %v1584
      %v1615 = vpack.c.bf16 %v1587, %v1586
      %v1616 = vpack.c.bf16 %v1589, %v1588
      %v1617 = vpack.c.bf16 %v1591, %v1590
      %v1618 = vpack.c.bf16 %v1593, %v1592
      %v1619 = vpack.c.bf16 %v1595, %v1594
      %v1620 = vpack.c.bf16 %v1597, %v1596
      %v1621 = vpack.c.bf16 %v1599, %v1598
      %v1622 = vpack.c.bf16 %v1601, %v1600
      %v1623 = vpack.c.bf16 %v1603, %v1602
      %v1624 = vpack.c.bf16 %v1605, %v1604
      %v1625 = vpack.c.bf16 %v1607, %v1606
      %v1626 = vpack.c.bf16 %v1609, %v1608
      %v1627 = vpack.c.bf16 %v1611, %v1610
      %s1628 = scalar_lea.vmem %s1, 10
      %v1629 = vld [vmem:[%s1628] sm:$0x3]
      %v1631 = vsel %vm271, %v1612, 0
      %v1634 = vsel %vm271, %v1613, 0
      %v1637 = vsel %vm271, %v1614, 0
      %v1640 = vsel %vm271, %v1615, 0
      %v1643 = vsel %vm271, %v1616, 0
      %v1646 = vsel %vm271, %v1617, 0
      %v1649 = vsel %vm271, %v1618, 0
      %v1652 = vsel %vm271, %v1619, 0
      %v1655 = vsel %vm271, %v1620, 0
      %v1658 = vsel %vm271, %v1621, 0
      %v1661 = vsel %vm271, %v1622, 0
      %v1664 = vsel %vm271, %v1623, 0
      %v1667 = vsel %vm271, %v1624, 0
      %v1670 = vsel %vm271, %v1625, 0
      %v1673 = vsel %vm271, %v1626, 0
      %v1676 = vsel %vm271, %v1627, 0
      %v1679 = vsel %vm320, %v1629, 0
      %1681 = vmatprep.subr.bf16.mxu0 0
      %1682 = vmatpush1.bf16.msra.mxu0 0
      %1683 = vmatprep.subr.bf16.mxu0 0
      %1684 = vmatpush1.bf16.msra.mxu0 0
      %1685 = vmatprep.subr.bf16.mxu0 0
      %1686 = vmatpush1.bf16.msra.mxu0 0
      %1687 = vmatprep.subr.bf16.mxu0 0
      %1688 = vmatpush1.bf16.msra.mxu0 0
      %1689 = vmatprep.subr.bf16.mxu0 0
      %1690 = vmatpush1.bf16.msra.mxu0 0
      %1691 = vmatprep.subr.bf16.mxu0 0
      %1692 = vmatpush1.bf16.msra.mxu0 0
      %1693 = vmatprep.subr.bf16.mxu0 0
      %1694 = vmatpush1.bf16.msra.mxu0 0
      %1695 = vmatprep.subr.bf16.mxu0 0
      %1696 = vmatpush1.bf16.msra.mxu0 %v1679
      %1697 = vmatprep.subr.bf16.mxu0 0
      %1698 = vmatpush2.bf16.msra.mxu0 0
      %1699 = vmatprep.subr.bf16.mxu0 0
      %1700 = vmatpush2.bf16.msra.mxu0 0
      %1701 = vmatprep.subr.bf16.mxu0 0
      %1702 = vmatpush2.bf16.msra.mxu0 0
      %1703 = vmatprep.subr.bf16.mxu0 0
      %1704 = vmatpush2.bf16.msra.mxu0 0
      %1705 = vmatprep.subr.bf16.mxu0 0
      %1706 = vmatpush2.bf16.msra.mxu0 0
      %1707 = vmatprep.subr.bf16.mxu0 0
      %1708 = vmatpush2.bf16.msra.mxu0 0
      %1709 = vmatprep.subr.bf16.mxu0 0
      %1710 = vmatpush2.bf16.msra.mxu0 0
      %1711 = vmatprep.subr.bf16.mxu0 0
      %1712 = vmatpush2.bf16.msra.mxu0 0
      %1713 = vmatprep.mubr.bf16.mxu0 0
      %1714 = vmatmul.mubr.bf16.gmra.mxu0 %v1631
      %v1715 = vpop.f32.mrf.mxu0
      %v1716 = vadd.f32 0.0, %v1715
      %v1717 = vpop.f32.mrf.mxu0
      %v1718 = vpop.f32.mrf.mxu0
      %v1719 = vadd.f32 0.0, %v1718
      %v1720 = vpop.f32.mrf.mxu0
      %1721 = vmatprep.mubr.bf16.mxu0 0
      %1722 = vmatmul.mubr.bf16.gmra.mxu0 %v1634
      %v1723 = vpop.f32.mrf.mxu0
      %v1724 = vadd.f32 0.0, %v1723
      %v1725 = vpop.f32.mrf.mxu0
      %v1726 = vpop.f32.mrf.mxu0
      %v1727 = vadd.f32 0.0, %v1726
      %v1728 = vpop.f32.mrf.mxu0
      %1729 = vmatprep.mubr.bf16.mxu0 0
      %1730 = vmatmul.mubr.bf16.gmra.mxu0 %v1637
      %v1731 = vpop.f32.mrf.mxu0
      %v1732 = vadd.f32 0.0, %v1731
      %v1733 = vpop.f32.mrf.mxu0
      %v1734 = vpop.f32.mrf.mxu0
      %v1735 = vadd.f32 0.0, %v1734
      %v1736 = vpop.f32.mrf.mxu0
      %1737 = vmatprep.mubr.bf16.mxu0 0
      %1738 = vmatmul.mubr.bf16.gmra.mxu0 %v1640
      %v1739 = vpop.f32.mrf.mxu0
      %v1740 = vadd.f32 0.0, %v1739
      %v1741 = vpop.f32.mrf.mxu0
      %v1742 = vpop.f32.mrf.mxu0
      %v1743 = vadd.f32 0.0, %v1742
      %v1744 = vpop.f32.mrf.mxu0
      %1745 = vmatprep.mubr.bf16.mxu0 0
      %1746 = vmatmul.mubr.bf16.gmra.mxu0 %v1643
      %v1747 = vpop.f32.mrf.mxu0
      %v1748 = vadd.f32 0.0, %v1747
      %v1749 = vpop.f32.mrf.mxu0
      %v1750 = vpop.f32.mrf.mxu0
      %v1751 = vadd.f32 0.0, %v1750
      %v1752 = vpop.f32.mrf.mxu0
      %1753 = vmatprep.mubr.bf16.mxu0 0
      %1754 = vmatmul.mubr.bf16.gmra.mxu0 %v1646
      %v1755 = vpop.f32.mrf.mxu0
      %v1756 = vadd.f32 0.0, %v1755
      %v1757 = vpop.f32.mrf.mxu0
      %v1758 = vpop.f32.mrf.mxu0
      %v1759 = vadd.f32 0.0, %v1758
      %v1760 = vpop.f32.mrf.mxu0
      %1761 = vmatprep.mubr.bf16.mxu0 0
      %1762 = vmatmul.mubr.bf16.gmra.mxu0 %v1649
      %v1763 = vpop.f32.mrf.mxu0
      %v1764 = vadd.f32 0.0, %v1763
      %v1765 = vpop.f32.mrf.mxu0
      %v1766 = vpop.f32.mrf.mxu0
      %v1767 = vadd.f32 0.0, %v1766
      %v1768 = vpop.f32.mrf.mxu0
      %1769 = vmatprep.mubr.bf16.mxu0 0
      %1770 = vmatmul.mubr.bf16.gmra.mxu0 %v1652
      %v1771 = vpop.f32.mrf.mxu0
      %v1772 = vadd.f32 0.0, %v1771
      %v1773 = vpop.f32.mrf.mxu0
      %v1774 = vpop.f32.mrf.mxu0
      %v1775 = vadd.f32 0.0, %v1774
      %v1776 = vpop.f32.mrf.mxu0
      %1777 = vmatprep.mubr.bf16.mxu0 0
      %1778 = vmatmul.mubr.bf16.gmra.mxu0 %v1655
      %v1779 = vpop.f32.mrf.mxu0
      %v1780 = vadd.f32 0.0, %v1779
      %v1781 = vpop.f32.mrf.mxu0
      %v1782 = vpop.f32.mrf.mxu0
      %v1783 = vadd.f32 0.0, %v1782
      %v1784 = vpop.f32.mrf.mxu0
      %1785 = vmatprep.mubr.bf16.mxu0 0
      %1786 = vmatmul.mubr.bf16.gmra.mxu0 %v1658
      %v1787 = vpop.f32.mrf.mxu0
      %v1788 = vadd.f32 0.0, %v1787
      %v1789 = vpop.f32.mrf.mxu0
      %v1790 = vpop.f32.mrf.mxu0
      %v1791 = vadd.f32 0.0, %v1790
      %v1792 = vpop.f32.mrf.mxu0
      %1793 = vmatprep.mubr.bf16.mxu0 0
      %1794 = vmatmul.mubr.bf16.gmra.mxu0 %v1661
      %v1795 = vpop.f32.mrf.mxu0
      %v1796 = vadd.f32 0.0, %v1795
      %v1797 = vpop.f32.mrf.mxu0
      %v1798 = vpop.f32.mrf.mxu0
      %v1799 = vadd.f32 0.0, %v1798
      %v1800 = vpop.f32.mrf.mxu0
      %1801 = vmatprep.mubr.bf16.mxu0 0
      %1802 = vmatmul.mubr.bf16.gmra.mxu0 %v1664
      %v1803 = vpop.f32.mrf.mxu0
      %v1804 = vadd.f32 0.0, %v1803
      %v1805 = vpop.f32.mrf.mxu0
      %v1806 = vpop.f32.mrf.mxu0
      %v1807 = vadd.f32 0.0, %v1806
      %v1808 = vpop.f32.mrf.mxu0
      %1809 = vmatprep.mubr.bf16.mxu0 0
      %1810 = vmatmul.mubr.bf16.gmra.mxu0 %v1667
      %v1811 = vpop.f32.mrf.mxu0
      %v1812 = vadd.f32 0.0, %v1811
      %v1813 = vpop.f32.mrf.mxu0
      %v1814 = vpop.f32.mrf.mxu0
      %v1815 = vadd.f32 0.0, %v1814
      %v1816 = vpop.f32.mrf.mxu0
      %1817 = vmatprep.mubr.bf16.mxu0 0
      %1818 = vmatmul.mubr.bf16.gmra.mxu0 %v1670
      %v1819 = vpop.f32.mrf.mxu0
      %v1820 = vadd.f32 0.0, %v1819
      %v1821 = vpop.f32.mrf.mxu0
      %v1822 = vpop.f32.mrf.mxu0
      %v1823 = vadd.f32 0.0, %v1822
      %v1824 = vpop.f32.mrf.mxu0
      %1825 = vmatprep.mubr.bf16.mxu0 0
      %1826 = vmatmul.mubr.bf16.gmra.mxu0 %v1673
      %v1827 = vpop.f32.mrf.mxu0
      %v1828 = vadd.f32 0.0, %v1827
      %v1829 = vpop.f32.mrf.mxu0
      %v1830 = vpop.f32.mrf.mxu0
      %v1831 = vadd.f32 0.0, %v1830
      %v1832 = vpop.f32.mrf.mxu0
      %1833 = vmatprep.mubr.bf16.mxu0 0
      %1834 = vmatmul.mubr.bf16.gmra.mxu0 %v1676
      %v1835 = vpop.f32.mrf.mxu0
      %v1836 = vadd.f32 0.0, %v1835
      %v1837 = vpop.f32.mrf.mxu0
      %v1838 = vpop.f32.mrf.mxu0
      %v1839 = vadd.f32 0.0, %v1838
      %v1840 = vpop.f32.mrf.mxu0
      %1841 = vdwg.mxu0
      %v1842 = vadd.f32 %v1548, %v1716
      %v1843 = vadd.f32 %v1549, %v1719
      %v1844 = vadd.f32 %v1550, %v1724
      %v1845 = vadd.f32 %v1551, %v1727
      %v1846 = vadd.f32 %v1552, %v1732
      %v1847 = vadd.f32 %v1553, %v1735
      %v1848 = vadd.f32 %v1554, %v1740
      %v1849 = vadd.f32 %v1555, %v1743
      %v1850 = vadd.f32 %v1556, %v1748
      %v1851 = vadd.f32 %v1557, %v1751
      %v1852 = vadd.f32 %v1558, %v1756
      %v1853 = vadd.f32 %v1559, %v1759
      %v1854 = vadd.f32 %v1560, %v1764
      %v1855 = vadd.f32 %v1561, %v1767
      %v1856 = vadd.f32 %v1562, %v1772
      %v1857 = vadd.f32 %v1563, %v1775
      %v1858 = vadd.f32 %v1564, %v1780
      %v1859 = vadd.f32 %v1565, %v1783
      %v1860 = vadd.f32 %v1566, %v1788
      %v1861 = vadd.f32 %v1567, %v1791
      %v1862 = vadd.f32 %v1568, %v1796
      %v1863 = vadd.f32 %v1569, %v1799
      %v1864 = vadd.f32 %v1570, %v1804
      %v1865 = vadd.f32 %v1571, %v1807
      %v1866 = vadd.f32 %v1572, %v1812
      %v1867 = vadd.f32 %v1573, %v1815
      %v1868 = vadd.f32 %v1574, %v1820
      %v1869 = vadd.f32 %v1575, %v1823
      %v1870 = vadd.f32 %v1576, %v1828
      %v1871 = vadd.f32 %v1577, %v1831
      %v1872 = vadd.f32 %v1578, %v1836
      %v1873 = vadd.f32 %v1579, %v1839
      %s1874 = scalar_lea.vmem %s165, 48
      %v1875 = vld [vmem:[%s1874] sm:$0xff]
      %v1876 = vld [vmem:[%s1874 + $0x8] sm:$0xff]
      %v1877 = vld [vmem:[%s1874 + $0x18] sm:$0xff]
      %v1878 = vld [vmem:[%s1874 + $0x20] sm:$0xff]
      %v1879 = vld [vmem:[%s1874 + $0x30] sm:$0xff]
      %v1880 = vld [vmem:[%s1874 + $0x38] sm:$0xff]
      %v1881 = vld [vmem:[%s1874 + $0x48] sm:$0xff]
      %v1882 = vld [vmem:[%s1874 + $0x50] sm:$0xff]
      %v1883 = vld [vmem:[%s1874 + $0x60] sm:$0xff]
      %v1884 = vld [vmem:[%s1874 + $0x68] sm:$0xff]
      %v1885 = vld [vmem:[%s1874 + $0x78] sm:$0xff]
      %v1886 = vld [vmem:[%s1874 + $0x80] sm:$0xff]
      %v1887 = vld [vmem:[%s1874 + $0x90] sm:$0xff]
      %v1888 = vld [vmem:[%s1874 + $0x98] sm:$0xff]
      %v1889 = vld [vmem:[%s1874 + $0xa8] sm:$0xff]
      %v1890 = vld [vmem:[%s1874 + $0xb0] sm:$0xff]
      %v1891 = vld [vmem:[%s1874 + $0xc0] sm:$0xff]
      %v1892 = vld [vmem:[%s1874 + $0xc8] sm:$0xff]
      %v1893 = vld [vmem:[%s1874 + $0xd8] sm:$0xff]
      %v1894 = vld [vmem:[%s1874 + $0xe0] sm:$0xff]
      %v1895 = vld [vmem:[%s1874 + $0xf0] sm:$0xff]
      %v1896 = vld [vmem:[%s1874 + $0xf8] sm:$0xff]
      %v1897 = vld [vmem:[%s1874 + $0x108] sm:$0xff]
      %v1898 = vld [vmem:[%s1874 + $0x110] sm:$0xff]
      %v1899 = vld [vmem:[%s1874 + $0x120] sm:$0xff]
      %v1900 = vld [vmem:[%s1874 + $0x128] sm:$0xff]
      %v1901 = vld [vmem:[%s1874 + $0x138] sm:$0xff]
      %v1902 = vld [vmem:[%s1874 + $0x140] sm:$0xff]
      %v1903 = vld [vmem:[%s1874 + $0x150] sm:$0xff]
      %v1904 = vld [vmem:[%s1874 + $0x158] sm:$0xff]
      %v1905 = vld [vmem:[%s1874 + $0x168] sm:$0xff]
      %v1906 = vld [vmem:[%s1874 + $0x170] sm:$0xff]
      %v1907 = vpack.c.bf16 %v1876, %v1875
      %v1908 = vpack.c.bf16 %v1878, %v1877
      %v1909 = vpack.c.bf16 %v1880, %v1879
      %v1910 = vpack.c.bf16 %v1882, %v1881
      %v1911 = vpack.c.bf16 %v1884, %v1883
      %v1912 = vpack.c.bf16 %v1886, %v1885
      %v1913 = vpack.c.bf16 %v1888, %v1887
      %v1914 = vpack.c.bf16 %v1890, %v1889
      %v1915 = vpack.c.bf16 %v1892, %v1891
      %v1916 = vpack.c.bf16 %v1894, %v1893
      %v1917 = vpack.c.bf16 %v1896, %v1895
      %v1918 = vpack.c.bf16 %v1898, %v1897
      %v1919 = vpack.c.bf16 %v1900, %v1899
      %v1920 = vpack.c.bf16 %v1902, %v1901
      %v1921 = vpack.c.bf16 %v1904, %v1903
      %v1922 = vpack.c.bf16 %v1906, %v1905
      %s1923 = scalar_lea.vmem %s1, 12
      %v1924 = vld [vmem:[%s1923] sm:$0x3]
      %v1926 = vsel %vm271, %v1907, 0
      %v1929 = vsel %vm271, %v1908, 0
      %v1932 = vsel %vm271, %v1909, 0
      %v1935 = vsel %vm271, %v1910, 0
      %v1938 = vsel %vm271, %v1911, 0
      %v1941 = vsel %vm271, %v1912, 0
      %v1944 = vsel %vm271, %v1913, 0
      %v1947 = vsel %vm271, %v1914, 0
      %v1950 = vsel %vm271, %v1915, 0
      %v1953 = vsel %vm271, %v1916, 0
      %v1956 = vsel %vm271, %v1917, 0
      %v1959 = vsel %vm271, %v1918, 0
      %v1962 = vsel %vm271, %v1919, 0
      %v1965 = vsel %vm271, %v1920, 0
      %v1968 = vsel %vm271, %v1921, 0
      %v1971 = vsel %vm271, %v1922, 0
      %v1974 = vsel %vm320, %v1924, 0
      %1976 = vmatprep.subr.bf16.mxu0 0
      %1977 = vmatpush1.bf16.msra.mxu0 0
      %1978 = vmatprep.subr.bf16.mxu0 0
      %1979 = vmatpush1.bf16.msra.mxu0 0
      %1980 = vmatprep.subr.bf16.mxu0 0
      %1981 = vmatpush1.bf16.msra.mxu0 0
      %1982 = vmatprep.subr.bf16.mxu0 0
      %1983 = vmatpush1.bf16.msra.mxu0 0
      %1984 = vmatprep.subr.bf16.mxu0 0
      %1985 = vmatpush1.bf16.msra.mxu0 0
      %1986 = vmatprep.subr.bf16.mxu0 0
      %1987 = vmatpush1.bf16.msra.mxu0 0
      %1988 = vmatprep.subr.bf16.mxu0 0
      %1989 = vmatpush1.bf16.msra.mxu0 0
      %1990 = vmatprep.subr.bf16.mxu0 0
      %1991 = vmatpush1.bf16.msra.mxu0 %v1974
      %1992 = vmatprep.subr.bf16.mxu0 0
      %1993 = vmatpush2.bf16.msra.mxu0 0
      %1994 = vmatprep.subr.bf16.mxu0 0
      %1995 = vmatpush2.bf16.msra.mxu0 0
      %1996 = vmatprep.subr.bf16.mxu0 0
      %1997 = vmatpush2.bf16.msra.mxu0 0
      %1998 = vmatprep.subr.bf16.mxu0 0
      %1999 = vmatpush2.bf16.msra.mxu0 0
      %2000 = vmatprep.subr.bf16.mxu0 0
      %2001 = vmatpush2.bf16.msra.mxu0 0
      %2002 = vmatprep.subr.bf16.mxu0 0
      %2003 = vmatpush2.bf16.msra.mxu0 0
      %2004 = vmatprep.subr.bf16.mxu0 0
      %2005 = vmatpush2.bf16.msra.mxu0 0
      %2006 = vmatprep.subr.bf16.mxu0 0
      %2007 = vmatpush2.bf16.msra.mxu0 0
      %2008 = vmatprep.mubr.bf16.mxu0 0
      %2009 = vmatmul.mubr.bf16.gmra.mxu0 %v1926
      %v2010 = vpop.f32.mrf.mxu0
      %v2011 = vadd.f32 0.0, %v2010
      %v2012 = vpop.f32.mrf.mxu0
      %v2013 = vpop.f32.mrf.mxu0
      %v2014 = vadd.f32 0.0, %v2013
      %v2015 = vpop.f32.mrf.mxu0
      %2016 = vmatprep.mubr.bf16.mxu0 0
      %2017 = vmatmul.mubr.bf16.gmra.mxu0 %v1929
      %v2018 = vpop.f32.mrf.mxu0
      %v2019 = vadd.f32 0.0, %v2018
      %v2020 = vpop.f32.mrf.mxu0
      %v2021 = vpop.f32.mrf.mxu0
      %v2022 = vadd.f32 0.0, %v2021
      %v2023 = vpop.f32.mrf.mxu0
      %2024 = vmatprep.mubr.bf16.mxu0 0
      %2025 = vmatmul.mubr.bf16.gmra.mxu0 %v1932
      %v2026 = vpop.f32.mrf.mxu0
      %v2027 = vadd.f32 0.0, %v2026
      %v2028 = vpop.f32.mrf.mxu0
      %v2029 = vpop.f32.mrf.mxu0
      %v2030 = vadd.f32 0.0, %v2029
      %v2031 = vpop.f32.mrf.mxu0
      %2032 = vmatprep.mubr.bf16.mxu0 0
      %2033 = vmatmul.mubr.bf16.gmra.mxu0 %v1935
      %v2034 = vpop.f32.mrf.mxu0
      %v2035 = vadd.f32 0.0, %v2034
      %v2036 = vpop.f32.mrf.mxu0
      %v2037 = vpop.f32.mrf.mxu0
      %v2038 = vadd.f32 0.0, %v2037
      %v2039 = vpop.f32.mrf.mxu0
      %2040 = vmatprep.mubr.bf16.mxu0 0
      %2041 = vmatmul.mubr.bf16.gmra.mxu0 %v1938
      %v2042 = vpop.f32.mrf.mxu0
      %v2043 = vadd.f32 0.0, %v2042
      %v2044 = vpop.f32.mrf.mxu0
      %v2045 = vpop.f32.mrf.mxu0
      %v2046 = vadd.f32 0.0, %v2045
      %v2047 = vpop.f32.mrf.mxu0
      %2048 = vmatprep.mubr.bf16.mxu0 0
      %2049 = vmatmul.mubr.bf16.gmra.mxu0 %v1941
      %v2050 = vpop.f32.mrf.mxu0
      %v2051 = vadd.f32 0.0, %v2050
      %v2052 = vpop.f32.mrf.mxu0
      %v2053 = vpop.f32.mrf.mxu0
      %v2054 = vadd.f32 0.0, %v2053
      %v2055 = vpop.f32.mrf.mxu0
      %2056 = vmatprep.mubr.bf16.mxu0 0
      %2057 = vmatmul.mubr.bf16.gmra.mxu0 %v1944
      %v2058 = vpop.f32.mrf.mxu0
      %v2059 = vadd.f32 0.0, %v2058
      %v2060 = vpop.f32.mrf.mxu0
      %v2061 = vpop.f32.mrf.mxu0
      %v2062 = vadd.f32 0.0, %v2061
      %v2063 = vpop.f32.mrf.mxu0
      %2064 = vmatprep.mubr.bf16.mxu0 0
      %2065 = vmatmul.mubr.bf16.gmra.mxu0 %v1947
      %v2066 = vpop.f32.mrf.mxu0
      %v2067 = vadd.f32 0.0, %v2066
      %v2068 = vpop.f32.mrf.mxu0
      %v2069 = vpop.f32.mrf.mxu0
      %v2070 = vadd.f32 0.0, %v2069
      %v2071 = vpop.f32.mrf.mxu0
      %2072 = vmatprep.mubr.bf16.mxu0 0
      %2073 = vmatmul.mubr.bf16.gmra.mxu0 %v1950
      %v2074 = vpop.f32.mrf.mxu0
      %v2075 = vadd.f32 0.0, %v2074
      %v2076 = vpop.f32.mrf.mxu0
      %v2077 = vpop.f32.mrf.mxu0
      %v2078 = vadd.f32 0.0, %v2077
      %v2079 = vpop.f32.mrf.mxu0
      %2080 = vmatprep.mubr.bf16.mxu0 0
      %2081 = vmatmul.mubr.bf16.gmra.mxu0 %v1953
      %v2082 = vpop.f32.mrf.mxu0
      %v2083 = vadd.f32 0.0, %v2082
      %v2084 = vpop.f32.mrf.mxu0
      %v2085 = vpop.f32.mrf.mxu0
      %v2086 = vadd.f32 0.0, %v2085
      %v2087 = vpop.f32.mrf.mxu0
      %2088 = vmatprep.mubr.bf16.mxu0 0
      %2089 = vmatmul.mubr.bf16.gmra.mxu0 %v1956
      %v2090 = vpop.f32.mrf.mxu0
      %v2091 = vadd.f32 0.0, %v2090
      %v2092 = vpop.f32.mrf.mxu0
      %v2093 = vpop.f32.mrf.mxu0
      %v2094 = vadd.f32 0.0, %v2093
      %v2095 = vpop.f32.mrf.mxu0
      %2096 = vmatprep.mubr.bf16.mxu0 0
      %2097 = vmatmul.mubr.bf16.gmra.mxu0 %v1959
      %v2098 = vpop.f32.mrf.mxu0
      %v2099 = vadd.f32 0.0, %v2098
      %v2100 = vpop.f32.mrf.mxu0
      %v2101 = vpop.f32.mrf.mxu0
      %v2102 = vadd.f32 0.0, %v2101
      %v2103 = vpop.f32.mrf.mxu0
      %2104 = vmatprep.mubr.bf16.mxu0 0
      %2105 = vmatmul.mubr.bf16.gmra.mxu0 %v1962
      %v2106 = vpop.f32.mrf.mxu0
      %v2107 = vadd.f32 0.0, %v2106
      %v2108 = vpop.f32.mrf.mxu0
      %v2109 = vpop.f32.mrf.mxu0
      %v2110 = vadd.f32 0.0, %v2109
      %v2111 = vpop.f32.mrf.mxu0
      %2112 = vmatprep.mubr.bf16.mxu0 0
      %2113 = vmatmul.mubr.bf16.gmra.mxu0 %v1965
      %v2114 = vpop.f32.mrf.mxu0
      %v2115 = vadd.f32 0.0, %v2114
      %v2116 = vpop.f32.mrf.mxu0
      %v2117 = vpop.f32.mrf.mxu0
      %v2118 = vadd.f32 0.0, %v2117
      %v2119 = vpop.f32.mrf.mxu0
      %2120 = vmatprep.mubr.bf16.mxu0 0
      %2121 = vmatmul.mubr.bf16.gmra.mxu0 %v1968
      %v2122 = vpop.f32.mrf.mxu0
      %v2123 = vadd.f32 0.0, %v2122
      %v2124 = vpop.f32.mrf.mxu0
      %v2125 = vpop.f32.mrf.mxu0
      %v2126 = vadd.f32 0.0, %v2125
      %v2127 = vpop.f32.mrf.mxu0
      %2128 = vmatprep.mubr.bf16.mxu0 0
      %2129 = vmatmul.mubr.bf16.gmra.mxu0 %v1971
      %v2130 = vpop.f32.mrf.mxu0
      %v2131 = vadd.f32 0.0, %v2130
      %v2132 = vpop.f32.mrf.mxu0
      %v2133 = vpop.f32.mrf.mxu0
      %v2134 = vadd.f32 0.0, %v2133
      %v2135 = vpop.f32.mrf.mxu0
      %2136 = vdwg.mxu0
      %v2137 = vadd.f32 %v1842, %v2011
      %v2138 = vadd.f32 %v1843, %v2014
      %v2139 = vadd.f32 %v1844, %v2019
      %v2140 = vadd.f32 %v1845, %v2022
      %v2141 = vadd.f32 %v1846, %v2027
      %v2142 = vadd.f32 %v1847, %v2030
      %v2143 = vadd.f32 %v1848, %v2035
      %v2144 = vadd.f32 %v1849, %v2038
      %v2145 = vadd.f32 %v1850, %v2043
      %v2146 = vadd.f32 %v1851, %v2046
      %v2147 = vadd.f32 %v1852, %v2051
      %v2148 = vadd.f32 %v1853, %v2054
      %v2149 = vadd.f32 %v1854, %v2059
      %v2150 = vadd.f32 %v1855, %v2062
      %v2151 = vadd.f32 %v1856, %v2067
      %v2152 = vadd.f32 %v1857, %v2070
      %v2153 = vadd.f32 %v1858, %v2075
      %v2154 = vadd.f32 %v1859, %v2078
      %v2155 = vadd.f32 %v1860, %v2083
      %v2156 = vadd.f32 %v1861, %v2086
      %v2157 = vadd.f32 %v1862, %v2091
      %v2158 = vadd.f32 %v1863, %v2094
      %v2159 = vadd.f32 %v1864, %v2099
      %v2160 = vadd.f32 %v1865, %v2102
      %v2161 = vadd.f32 %v1866, %v2107
      %v2162 = vadd.f32 %v1867, %v2110
      %v2163 = vadd.f32 %v1868, %v2115
      %v2164 = vadd.f32 %v1869, %v2118
      %v2165 = vadd.f32 %v1870, %v2123
      %v2166 = vadd.f32 %v1871, %v2126
      %v2167 = vadd.f32 %v1872, %v2131
      %v2168 = vadd.f32 %v1873, %v2134
      %v2169 = vld [vmem:[%s1874 + $0x1] sm:$0xff]
      %v2170 = vld [vmem:[%s1874 + $0x9] sm:$0xff]
      %v2171 = vld [vmem:[%s1874 + $0x19] sm:$0xff]
      %v2172 = vld [vmem:[%s1874 + $0x21] sm:$0xff]
      %v2173 = vld [vmem:[%s1874 + $0x31] sm:$0xff]
      %v2174 = vld [vmem:[%s1874 + $0x39] sm:$0xff]
      %v2175 = vld [vmem:[%s1874 + $0x49] sm:$0xff]
      %v2176 = vld [vmem:[%s1874 + $0x51] sm:$0xff]
      %v2177 = vld [vmem:[%s1874 + $0x61] sm:$0xff]
      %v2178 = vld [vmem:[%s1874 + $0x69] sm:$0xff]
      %v2179 = vld [vmem:[%s1874 + $0x79] sm:$0xff]
      %v2180 = vld [vmem:[%s1874 + $0x81] sm:$0xff]
      %v2181 = vld [vmem:[%s1874 + $0x91] sm:$0xff]
      %v2182 = vld [vmem:[%s1874 + $0x99] sm:$0xff]
      %v2183 = vld [vmem:[%s1874 + $0xa9] sm:$0xff]
      %v2184 = vld [vmem:[%s1874 + $0xb1] sm:$0xff]
      %v2185 = vld [vmem:[%s1874 + $0xc1] sm:$0xff]
      %v2186 = vld [vmem:[%s1874 + $0xc9] sm:$0xff]
      %v2187 = vld [vmem:[%s1874 + $0xd9] sm:$0xff]
      %v2188 = vld [vmem:[%s1874 + $0xe1] sm:$0xff]
      %v2189 = vld [vmem:[%s1874 + $0xf1] sm:$0xff]
      %v2190 = vld [vmem:[%s1874 + $0xf9] sm:$0xff]
      %v2191 = vld [vmem:[%s1874 + $0x109] sm:$0xff]
      %v2192 = vld [vmem:[%s1874 + $0x111] sm:$0xff]
      %v2193 = vld [vmem:[%s1874 + $0x121] sm:$0xff]
      %v2194 = vld [vmem:[%s1874 + $0x129] sm:$0xff]
      %v2195 = vld [vmem:[%s1874 + $0x139] sm:$0xff]
      %v2196 = vld [vmem:[%s1874 + $0x141] sm:$0xff]
      %v2197 = vld [vmem:[%s1874 + $0x151] sm:$0xff]
      %v2198 = vld [vmem:[%s1874 + $0x159] sm:$0xff]
      %v2199 = vld [vmem:[%s1874 + $0x169] sm:$0xff]
      %v2200 = vld [vmem:[%s1874 + $0x171] sm:$0xff]
      %v2201 = vpack.c.bf16 %v2170, %v2169
      %v2202 = vpack.c.bf16 %v2172, %v2171
      %v2203 = vpack.c.bf16 %v2174, %v2173
      %v2204 = vpack.c.bf16 %v2176, %v2175
      %v2205 = vpack.c.bf16 %v2178, %v2177
      %v2206 = vpack.c.bf16 %v2180, %v2179
      %v2207 = vpack.c.bf16 %v2182, %v2181
      %v2208 = vpack.c.bf16 %v2184, %v2183
      %v2209 = vpack.c.bf16 %v2186, %v2185
      %v2210 = vpack.c.bf16 %v2188, %v2187
      %v2211 = vpack.c.bf16 %v2190, %v2189
      %v2212 = vpack.c.bf16 %v2192, %v2191
      %v2213 = vpack.c.bf16 %v2194, %v2193
      %v2214 = vpack.c.bf16 %v2196, %v2195
      %v2215 = vpack.c.bf16 %v2198, %v2197
      %v2216 = vpack.c.bf16 %v2200, %v2199
      %s2217 = scalar_lea.vmem %s1, 14
      %v2218 = vld [vmem:[%s2217] sm:$0x3]
      %v2220 = vsel %vm271, %v2201, 0
      %v2223 = vsel %vm271, %v2202, 0
      %v2226 = vsel %vm271, %v2203, 0
      %v2229 = vsel %vm271, %v2204, 0
      %v2232 = vsel %vm271, %v2205, 0
      %v2235 = vsel %vm271, %v2206, 0
      %v2238 = vsel %vm271, %v2207, 0
      %v2241 = vsel %vm271, %v2208, 0
      %v2244 = vsel %vm271, %v2209, 0
      %v2247 = vsel %vm271, %v2210, 0
      %v2250 = vsel %vm271, %v2211, 0
      %v2253 = vsel %vm271, %v2212, 0
      %v2256 = vsel %vm271, %v2213, 0
      %v2259 = vsel %vm271, %v2214, 0
      %v2262 = vsel %vm271, %v2215, 0
      %v2265 = vsel %vm271, %v2216, 0
      %v2268 = vsel %vm320, %v2218, 0
      %2270 = vmatprep.subr.bf16.mxu0 0
      %2271 = vmatpush1.bf16.msra.mxu0 0
      %2272 = vmatprep.subr.bf16.mxu0 0
      %2273 = vmatpush1.bf16.msra.mxu0 0
      %2274 = vmatprep.subr.bf16.mxu0 0
      %2275 = vmatpush1.bf16.msra.mxu0 0
      %2276 = vmatprep.subr.bf16.mxu0 0
      %2277 = vmatpush1.bf16.msra.mxu0 0
      %2278 = vmatprep.subr.bf16.mxu0 0
      %2279 = vmatpush1.bf16.msra.mxu0 0
      %2280 = vmatprep.subr.bf16.mxu0 0
      %2281 = vmatpush1.bf16.msra.mxu0 0
      %2282 = vmatprep.subr.bf16.mxu0 0
      %2283 = vmatpush1.bf16.msra.mxu0 0
      %2284 = vmatprep.subr.bf16.mxu0 0
      %2285 = vmatpush1.bf16.msra.mxu0 %v2268
      %2286 = vmatprep.subr.bf16.mxu0 0
      %2287 = vmatpush2.bf16.msra.mxu0 0
      %2288 = vmatprep.subr.bf16.mxu0 0
      %2289 = vmatpush2.bf16.msra.mxu0 0
      %2290 = vmatprep.subr.bf16.mxu0 0
      %2291 = vmatpush2.bf16.msra.mxu0 0
      %2292 = vmatprep.subr.bf16.mxu0 0
      %2293 = vmatpush2.bf16.msra.mxu0 0
      %2294 = vmatprep.subr.bf16.mxu0 0
      %2295 = vmatpush2.bf16.msra.mxu0 0
      %2296 = vmatprep.subr.bf16.mxu0 0
      %2297 = vmatpush2.bf16.msra.mxu0 0
      %2298 = vmatprep.subr.bf16.mxu0 0
      %2299 = vmatpush2.bf16.msra.mxu0 0
      %2300 = vmatprep.subr.bf16.mxu0 0
      %2301 = vmatpush2.bf16.msra.mxu0 0
      %2302 = vmatprep.mubr.bf16.mxu0 0
      %2303 = vmatmul.mubr.bf16.gmra.mxu0 %v2220
      %v2304 = vpop.f32.mrf.mxu0
      %v2305 = vadd.f32 0.0, %v2304
      %v2306 = vpop.f32.mrf.mxu0
      %v2307 = vpop.f32.mrf.mxu0
      %v2308 = vadd.f32 0.0, %v2307
      %v2309 = vpop.f32.mrf.mxu0
      %2310 = vmatprep.mubr.bf16.mxu0 0
      %2311 = vmatmul.mubr.bf16.gmra.mxu0 %v2223
      %v2312 = vpop.f32.mrf.mxu0
      %v2313 = vadd.f32 0.0, %v2312
      %v2314 = vpop.f32.mrf.mxu0
      %v2315 = vpop.f32.mrf.mxu0
      %v2316 = vadd.f32 0.0, %v2315
      %v2317 = vpop.f32.mrf.mxu0
      %2318 = vmatprep.mubr.bf16.mxu0 0
      %2319 = vmatmul.mubr.bf16.gmra.mxu0 %v2226
      %v2320 = vpop.f32.mrf.mxu0
      %v2321 = vadd.f32 0.0, %v2320
      %v2322 = vpop.f32.mrf.mxu0
      %v2323 = vpop.f32.mrf.mxu0
      %v2324 = vadd.f32 0.0, %v2323
      %v2325 = vpop.f32.mrf.mxu0
      %2326 = vmatprep.mubr.bf16.mxu0 0
      %2327 = vmatmul.mubr.bf16.gmra.mxu0 %v2229
      %v2328 = vpop.f32.mrf.mxu0
      %v2329 = vadd.f32 0.0, %v2328
      %v2330 = vpop.f32.mrf.mxu0
      %v2331 = vpop.f32.mrf.mxu0
      %v2332 = vadd.f32 0.0, %v2331
      %v2333 = vpop.f32.mrf.mxu0
      %2334 = vmatprep.mubr.bf16.mxu0 0
      %2335 = vmatmul.mubr.bf16.gmra.mxu0 %v2232
      %v2336 = vpop.f32.mrf.mxu0
      %v2337 = vadd.f32 0.0, %v2336
      %v2338 = vpop.f32.mrf.mxu0
      %v2339 = vpop.f32.mrf.mxu0
      %v2340 = vadd.f32 0.0, %v2339
      %v2341 = vpop.f32.mrf.mxu0
      %2342 = vmatprep.mubr.bf16.mxu0 0
      %2343 = vmatmul.mubr.bf16.gmra.mxu0 %v2235
      %v2344 = vpop.f32.mrf.mxu0
      %v2345 = vadd.f32 0.0, %v2344
      %v2346 = vpop.f32.mrf.mxu0
      %v2347 = vpop.f32.mrf.mxu0
      %v2348 = vadd.f32 0.0, %v2347
      %v2349 = vpop.f32.mrf.mxu0
      %2350 = vmatprep.mubr.bf16.mxu0 0
      %2351 = vmatmul.mubr.bf16.gmra.mxu0 %v2238
      %v2352 = vpop.f32.mrf.mxu0
      %v2353 = vadd.f32 0.0, %v2352
      %v2354 = vpop.f32.mrf.mxu0
      %v2355 = vpop.f32.mrf.mxu0
      %v2356 = vadd.f32 0.0, %v2355
      %v2357 = vpop.f32.mrf.mxu0
      %2358 = vmatprep.mubr.bf16.mxu0 0
      %2359 = vmatmul.mubr.bf16.gmra.mxu0 %v2241
      %v2360 = vpop.f32.mrf.mxu0
      %v2361 = vadd.f32 0.0, %v2360
      %v2362 = vpop.f32.mrf.mxu0
      %v2363 = vpop.f32.mrf.mxu0
      %v2364 = vadd.f32 0.0, %v2363
      %v2365 = vpop.f32.mrf.mxu0
      %2366 = vmatprep.mubr.bf16.mxu0 0
      %2367 = vmatmul.mubr.bf16.gmra.mxu0 %v2244
      %v2368 = vpop.f32.mrf.mxu0
      %v2369 = vadd.f32 0.0, %v2368
      %v2370 = vpop.f32.mrf.mxu0
      %v2371 = vpop.f32.mrf.mxu0
      %v2372 = vadd.f32 0.0, %v2371
      %v2373 = vpop.f32.mrf.mxu0
      %2374 = vmatprep.mubr.bf16.mxu0 0
      %2375 = vmatmul.mubr.bf16.gmra.mxu0 %v2247
      %v2376 = vpop.f32.mrf.mxu0
      %v2377 = vadd.f32 0.0, %v2376
      %v2378 = vpop.f32.mrf.mxu0
      %v2379 = vpop.f32.mrf.mxu0
      %v2380 = vadd.f32 0.0, %v2379
      %v2381 = vpop.f32.mrf.mxu0
      %2382 = vmatprep.mubr.bf16.mxu0 0
      %2383 = vmatmul.mubr.bf16.gmra.mxu0 %v2250
      %v2384 = vpop.f32.mrf.mxu0
      %v2385 = vadd.f32 0.0, %v2384
      %v2386 = vpop.f32.mrf.mxu0
      %v2387 = vpop.f32.mrf.mxu0
      %v2388 = vadd.f32 0.0, %v2387
      %v2389 = vpop.f32.mrf.mxu0
      %2390 = vmatprep.mubr.bf16.mxu0 0
      %2391 = vmatmul.mubr.bf16.gmra.mxu0 %v2253
      %v2392 = vpop.f32.mrf.mxu0
      %v2393 = vadd.f32 0.0, %v2392
      %v2394 = vpop.f32.mrf.mxu0
      %v2395 = vpop.f32.mrf.mxu0
      %v2396 = vadd.f32 0.0, %v2395
      %v2397 = vpop.f32.mrf.mxu0
      %2398 = vmatprep.mubr.bf16.mxu0 0
      %2399 = vmatmul.mubr.bf16.gmra.mxu0 %v2256
      %v2400 = vpop.f32.mrf.mxu0
      %v2401 = vadd.f32 0.0, %v2400
      %v2402 = vpop.f32.mrf.mxu0
      %v2403 = vpop.f32.mrf.mxu0
      %v2404 = vadd.f32 0.0, %v2403
      %v2405 = vpop.f32.mrf.mxu0
      %2406 = vmatprep.mubr.bf16.mxu0 0
      %2407 = vmatmul.mubr.bf16.gmra.mxu0 %v2259
      %v2408 = vpop.f32.mrf.mxu0
      %v2409 = vadd.f32 0.0, %v2408
      %v2410 = vpop.f32.mrf.mxu0
      %v2411 = vpop.f32.mrf.mxu0
      %v2412 = vadd.f32 0.0, %v2411
      %v2413 = vpop.f32.mrf.mxu0
      %2414 = vmatprep.mubr.bf16.mxu0 0
      %2415 = vmatmul.mubr.bf16.gmra.mxu0 %v2262
      %v2416 = vpop.f32.mrf.mxu0
      %v2417 = vadd.f32 0.0, %v2416
      %v2418 = vpop.f32.mrf.mxu0
      %v2419 = vpop.f32.mrf.mxu0
      %v2420 = vadd.f32 0.0, %v2419
      %v2421 = vpop.f32.mrf.mxu0
      %2422 = vmatprep.mubr.bf16.mxu0 0
      %2423 = vmatmul.mubr.bf16.gmra.mxu0 %v2265
      %v2424 = vpop.f32.mrf.mxu0
      %v2425 = vadd.f32 0.0, %v2424
      %v2426 = vpop.f32.mrf.mxu0
      %v2427 = vpop.f32.mrf.mxu0
      %v2428 = vadd.f32 0.0, %v2427
      %v2429 = vpop.f32.mrf.mxu0
      %2430 = vdwg.mxu0
      %v2431 = vadd.f32 %v2137, %v2305
      %v2432 = vadd.f32 %v2138, %v2308
      %v2433 = vadd.f32 %v2139, %v2313
      %v2434 = vadd.f32 %v2140, %v2316
      %v2435 = vadd.f32 %v2141, %v2321
      %v2436 = vadd.f32 %v2142, %v2324
      %v2437 = vadd.f32 %v2143, %v2329
      %v2438 = vadd.f32 %v2144, %v2332
      %v2439 = vadd.f32 %v2145, %v2337
      %v2440 = vadd.f32 %v2146, %v2340
      %v2441 = vadd.f32 %v2147, %v2345
      %v2442 = vadd.f32 %v2148, %v2348
      %v2443 = vadd.f32 %v2149, %v2353
      %v2444 = vadd.f32 %v2150, %v2356
      %v2445 = vadd.f32 %v2151, %v2361
      %v2446 = vadd.f32 %v2152, %v2364
      %v2447 = vadd.f32 %v2153, %v2369
      %v2448 = vadd.f32 %v2154, %v2372
      %v2449 = vadd.f32 %v2155, %v2377
      %v2450 = vadd.f32 %v2156, %v2380
      %v2451 = vadd.f32 %v2157, %v2385
      %v2452 = vadd.f32 %v2158, %v2388
      %v2453 = vadd.f32 %v2159, %v2393
      %v2454 = vadd.f32 %v2160, %v2396
      %v2455 = vadd.f32 %v2161, %v2401
      %v2456 = vadd.f32 %v2162, %v2404
      %v2457 = vadd.f32 %v2163, %v2409
      %v2458 = vadd.f32 %v2164, %v2412
      %v2459 = vadd.f32 %v2165, %v2417
      %v2460 = vadd.f32 %v2166, %v2420
      %v2461 = vadd.f32 %v2167, %v2425
      %v2462 = vadd.f32 %v2168, %v2428
      %v2463 = vld [vmem:[%s1874 + $0x2] sm:$0xff]
      %v2464 = vld [vmem:[%s1874 + $0xa] sm:$0xff]
      %v2465 = vld [vmem:[%s1874 + $0x1a] sm:$0xff]
      %v2466 = vld [vmem:[%s1874 + $0x22] sm:$0xff]
      %v2467 = vld [vmem:[%s1874 + $0x32] sm:$0xff]
      %v2468 = vld [vmem:[%s1874 + $0x3a] sm:$0xff]
      %v2469 = vld [vmem:[%s1874 + $0x4a] sm:$0xff]
      %v2470 = vld [vmem:[%s1874 + $0x52] sm:$0xff]
      %v2471 = vld [vmem:[%s1874 + $0x62] sm:$0xff]
      %v2472 = vld [vmem:[%s1874 + $0x6a] sm:$0xff]
      %v2473 = vld [vmem:[%s1874 + $0x7a] sm:$0xff]
      %v2474 = vld [vmem:[%s1874 + $0x82] sm:$0xff]
      %v2475 = vld [vmem:[%s1874 + $0x92] sm:$0xff]
      %v2476 = vld [vmem:[%s1874 + $0x9a] sm:$0xff]
      %v2477 = vld [vmem:[%s1874 + $0xaa] sm:$0xff]
      %v2478 = vld [vmem:[%s1874 + $0xb2] sm:$0xff]
      %v2479 = vld [vmem:[%s1874 + $0xc2] sm:$0xff]
      %v2480 = vld [vmem:[%s1874 + $0xca] sm:$0xff]
      %v2481 = vld [vmem:[%s1874 + $0xda] sm:$0xff]
      %v2482 = vld [vmem:[%s1874 + $0xe2] sm:$0xff]
      %v2483 = vld [vmem:[%s1874 + $0xf2] sm:$0xff]
      %v2484 = vld [vmem:[%s1874 + $0xfa] sm:$0xff]
      %v2485 = vld [vmem:[%s1874 + $0x10a] sm:$0xff]
      %v2486 = vld [vmem:[%s1874 + $0x112] sm:$0xff]
      %v2487 = vld [vmem:[%s1874 + $0x122] sm:$0xff]
      %v2488 = vld [vmem:[%s1874 + $0x12a] sm:$0xff]
      %v2489 = vld [vmem:[%s1874 + $0x13a] sm:$0xff]
      %v2490 = vld [vmem:[%s1874 + $0x142] sm:$0xff]
      %v2491 = vld [vmem:[%s1874 + $0x152] sm:$0xff]
      %v2492 = vld [vmem:[%s1874 + $0x15a] sm:$0xff]
      %v2493 = vld [vmem:[%s1874 + $0x16a] sm:$0xff]
      %v2494 = vld [vmem:[%s1874 + $0x172] sm:$0xff]
      %v2495 = vpack.c.bf16 %v2464, %v2463
      %v2496 = vpack.c.bf16 %v2466, %v2465
      %v2497 = vpack.c.bf16 %v2468, %v2467
      %v2498 = vpack.c.bf16 %v2470, %v2469
      %v2499 = vpack.c.bf16 %v2472, %v2471
      %v2500 = vpack.c.bf16 %v2474, %v2473
      %v2501 = vpack.c.bf16 %v2476, %v2475
      %v2502 = vpack.c.bf16 %v2478, %v2477
      %v2503 = vpack.c.bf16 %v2480, %v2479
      %v2504 = vpack.c.bf16 %v2482, %v2481
      %v2505 = vpack.c.bf16 %v2484, %v2483
      %v2506 = vpack.c.bf16 %v2486, %v2485
      %v2507 = vpack.c.bf16 %v2488, %v2487
      %v2508 = vpack.c.bf16 %v2490, %v2489
      %v2509 = vpack.c.bf16 %v2492, %v2491
      %v2510 = vpack.c.bf16 %v2494, %v2493
      %s2511 = scalar_lea.vmem %s1, 16
      %v2512 = vld [vmem:[%s2511] sm:$0x3]
      %v2514 = vsel %vm271, %v2495, 0
      %v2517 = vsel %vm271, %v2496, 0
      %v2520 = vsel %vm271, %v2497, 0
      %v2523 = vsel %vm271, %v2498, 0
      %v2526 = vsel %vm271, %v2499, 0
      %v2529 = vsel %vm271, %v2500, 0
      %v2532 = vsel %vm271, %v2501, 0
      %v2535 = vsel %vm271, %v2502, 0
      %v2538 = vsel %vm271, %v2503, 0
      %v2541 = vsel %vm271, %v2504, 0
      %v2544 = vsel %vm271, %v2505, 0
      %v2547 = vsel %vm271, %v2506, 0
      %v2550 = vsel %vm271, %v2507, 0
      %v2553 = vsel %vm271, %v2508, 0
      %v2556 = vsel %vm271, %v2509, 0
      %v2559 = vsel %vm271, %v2510, 0
      %v2562 = vsel %vm320, %v2512, 0
      %2564 = vmatprep.subr.bf16.mxu0 0
      %2565 = vmatpush1.bf16.msra.mxu0 0
      %2566 = vmatprep.subr.bf16.mxu0 0
      %2567 = vmatpush1.bf16.msra.mxu0 0
      %2568 = vmatprep.subr.bf16.mxu0 0
      %2569 = vmatpush1.bf16.msra.mxu0 0
      %2570 = vmatprep.subr.bf16.mxu0 0
      %2571 = vmatpush1.bf16.msra.mxu0 0
      %2572 = vmatprep.subr.bf16.mxu0 0
      %2573 = vmatpush1.bf16.msra.mxu0 0
      %2574 = vmatprep.subr.bf16.mxu0 0
      %2575 = vmatpush1.bf16.msra.mxu0 0
      %2576 = vmatprep.subr.bf16.mxu0 0
      %2577 = vmatpush1.bf16.msra.mxu0 0
      %2578 = vmatprep.subr.bf16.mxu0 0
      %2579 = vmatpush1.bf16.msra.mxu0 %v2562
      %2580 = vmatprep.subr.bf16.mxu0 0
      %2581 = vmatpush2.bf16.msra.mxu0 0
      %2582 = vmatprep.subr.bf16.mxu0 0
      %2583 = vmatpush2.bf16.msra.mxu0 0
      %2584 = vmatprep.subr.bf16.mxu0 0
      %2585 = vmatpush2.bf16.msra.mxu0 0
      %2586 = vmatprep.subr.bf16.mxu0 0
      %2587 = vmatpush2.bf16.msra.mxu0 0
      %2588 = vmatprep.subr.bf16.mxu0 0
      %2589 = vmatpush2.bf16.msra.mxu0 0
      %2590 = vmatprep.subr.bf16.mxu0 0
      %2591 = vmatpush2.bf16.msra.mxu0 0
      %2592 = vmatprep.subr.bf16.mxu0 0
      %2593 = vmatpush2.bf16.msra.mxu0 0
      %2594 = vmatprep.subr.bf16.mxu0 0
      %2595 = vmatpush2.bf16.msra.mxu0 0
      %2596 = vmatprep.mubr.bf16.mxu0 0
      %2597 = vmatmul.mubr.bf16.gmra.mxu0 %v2514
      %v2598 = vpop.f32.mrf.mxu0
      %v2599 = vadd.f32 0.0, %v2598
      %v2600 = vpop.f32.mrf.mxu0
      %v2601 = vpop.f32.mrf.mxu0
      %v2602 = vadd.f32 0.0, %v2601
      %v2603 = vpop.f32.mrf.mxu0
      %2604 = vmatprep.mubr.bf16.mxu0 0
      %2605 = vmatmul.mubr.bf16.gmra.mxu0 %v2517
      %v2606 = vpop.f32.mrf.mxu0
      %v2607 = vadd.f32 0.0, %v2606
      %v2608 = vpop.f32.mrf.mxu0
      %v2609 = vpop.f32.mrf.mxu0
      %v2610 = vadd.f32 0.0, %v2609
      %v2611 = vpop.f32.mrf.mxu0
      %2612 = vmatprep.mubr.bf16.mxu0 0
      %2613 = vmatmul.mubr.bf16.gmra.mxu0 %v2520
      %v2614 = vpop.f32.mrf.mxu0
      %v2615 = vadd.f32 0.0, %v2614
      %v2616 = vpop.f32.mrf.mxu0
      %v2617 = vpop.f32.mrf.mxu0
      %v2618 = vadd.f32 0.0, %v2617
      %v2619 = vpop.f32.mrf.mxu0
      %2620 = vmatprep.mubr.bf16.mxu0 0
      %2621 = vmatmul.mubr.bf16.gmra.mxu0 %v2523
      %v2622 = vpop.f32.mrf.mxu0
      %v2623 = vadd.f32 0.0, %v2622
      %v2624 = vpop.f32.mrf.mxu0
      %v2625 = vpop.f32.mrf.mxu0
      %v2626 = vadd.f32 0.0, %v2625
      %v2627 = vpop.f32.mrf.mxu0
      %2628 = vmatprep.mubr.bf16.mxu0 0
      %2629 = vmatmul.mubr.bf16.gmra.mxu0 %v2526
      %v2630 = vpop.f32.mrf.mxu0
      %v2631 = vadd.f32 0.0, %v2630
      %v2632 = vpop.f32.mrf.mxu0
      %v2633 = vpop.f32.mrf.mxu0
      %v2634 = vadd.f32 0.0, %v2633
      %v2635 = vpop.f32.mrf.mxu0
      %2636 = vmatprep.mubr.bf16.mxu0 0
      %2637 = vmatmul.mubr.bf16.gmra.mxu0 %v2529
      %v2638 = vpop.f32.mrf.mxu0
      %v2639 = vadd.f32 0.0, %v2638
      %v2640 = vpop.f32.mrf.mxu0
      %v2641 = vpop.f32.mrf.mxu0
      %v2642 = vadd.f32 0.0, %v2641
      %v2643 = vpop.f32.mrf.mxu0
      %2644 = vmatprep.mubr.bf16.mxu0 0
      %2645 = vmatmul.mubr.bf16.gmra.mxu0 %v2532
      %v2646 = vpop.f32.mrf.mxu0
      %v2647 = vadd.f32 0.0, %v2646
      %v2648 = vpop.f32.mrf.mxu0
      %v2649 = vpop.f32.mrf.mxu0
      %v2650 = vadd.f32 0.0, %v2649
      %v2651 = vpop.f32.mrf.mxu0
      %2652 = vmatprep.mubr.bf16.mxu0 0
      %2653 = vmatmul.mubr.bf16.gmra.mxu0 %v2535
      %v2654 = vpop.f32.mrf.mxu0
      %v2655 = vadd.f32 0.0, %v2654
      %v2656 = vpop.f32.mrf.mxu0
      %v2657 = vpop.f32.mrf.mxu0
      %v2658 = vadd.f32 0.0, %v2657
      %v2659 = vpop.f32.mrf.mxu0
      %2660 = vmatprep.mubr.bf16.mxu0 0
      %2661 = vmatmul.mubr.bf16.gmra.mxu0 %v2538
      %v2662 = vpop.f32.mrf.mxu0
      %v2663 = vadd.f32 0.0, %v2662
      %v2664 = vpop.f32.mrf.mxu0
      %v2665 = vpop.f32.mrf.mxu0
      %v2666 = vadd.f32 0.0, %v2665
      %v2667 = vpop.f32.mrf.mxu0
      %2668 = vmatprep.mubr.bf16.mxu0 0
      %2669 = vmatmul.mubr.bf16.gmra.mxu0 %v2541
      %v2670 = vpop.f32.mrf.mxu0
      %v2671 = vadd.f32 0.0, %v2670
      %v2672 = vpop.f32.mrf.mxu0
      %v2673 = vpop.f32.mrf.mxu0
      %v2674 = vadd.f32 0.0, %v2673
      %v2675 = vpop.f32.mrf.mxu0
      %2676 = vmatprep.mubr.bf16.mxu0 0
      %2677 = vmatmul.mubr.bf16.gmra.mxu0 %v2544
      %v2678 = vpop.f32.mrf.mxu0
      %v2679 = vadd.f32 0.0, %v2678
      %v2680 = vpop.f32.mrf.mxu0
      %v2681 = vpop.f32.mrf.mxu0
      %v2682 = vadd.f32 0.0, %v2681
      %v2683 = vpop.f32.mrf.mxu0
      %2684 = vmatprep.mubr.bf16.mxu0 0
      %2685 = vmatmul.mubr.bf16.gmra.mxu0 %v2547
      %v2686 = vpop.f32.mrf.mxu0
      %v2687 = vadd.f32 0.0, %v2686
      %v2688 = vpop.f32.mrf.mxu0
      %v2689 = vpop.f32.mrf.mxu0
      %v2690 = vadd.f32 0.0, %v2689
      %v2691 = vpop.f32.mrf.mxu0
      %2692 = vmatprep.mubr.bf16.mxu0 0
      %2693 = vmatmul.mubr.bf16.gmra.mxu0 %v2550
      %v2694 = vpop.f32.mrf.mxu0
      %v2695 = vadd.f32 0.0, %v2694
      %v2696 = vpop.f32.mrf.mxu0
      %v2697 = vpop.f32.mrf.mxu0
      %v2698 = vadd.f32 0.0, %v2697
      %v2699 = vpop.f32.mrf.mxu0
      %2700 = vmatprep.mubr.bf16.mxu0 0
      %2701 = vmatmul.mubr.bf16.gmra.mxu0 %v2553
      %v2702 = vpop.f32.mrf.mxu0
      %v2703 = vadd.f32 0.0, %v2702
      %v2704 = vpop.f32.mrf.mxu0
      %v2705 = vpop.f32.mrf.mxu0
      %v2706 = vadd.f32 0.0, %v2705
      %v2707 = vpop.f32.mrf.mxu0
      %2708 = vmatprep.mubr.bf16.mxu0 0
      %2709 = vmatmul.mubr.bf16.gmra.mxu0 %v2556
      %v2710 = vpop.f32.mrf.mxu0
      %v2711 = vadd.f32 0.0, %v2710
      %v2712 = vpop.f32.mrf.mxu0
      %v2713 = vpop.f32.mrf.mxu0
      %v2714 = vadd.f32 0.0, %v2713
      %v2715 = vpop.f32.mrf.mxu0
      %2716 = vmatprep.mubr.bf16.mxu0 0
      %2717 = vmatmul.mubr.bf16.gmra.mxu0 %v2559
      %v2718 = vpop.f32.mrf.mxu0
      %v2719 = vadd.f32 0.0, %v2718
      %v2720 = vpop.f32.mrf.mxu0
      %v2721 = vpop.f32.mrf.mxu0
      %v2722 = vadd.f32 0.0, %v2721
      %v2723 = vpop.f32.mrf.mxu0
      %2724 = vdwg.mxu0
      %v2725 = vadd.f32 %v2431, %v2599
      %v2726 = vadd.f32 %v2432, %v2602
      %v2727 = vadd.f32 %v2433, %v2607
      %v2728 = vadd.f32 %v2434, %v2610
      %v2729 = vadd.f32 %v2435, %v2615
      %v2730 = vadd.f32 %v2436, %v2618
      %v2731 = vadd.f32 %v2437, %v2623
      %v2732 = vadd.f32 %v2438, %v2626
      %v2733 = vadd.f32 %v2439, %v2631
      %v2734 = vadd.f32 %v2440, %v2634
      %v2735 = vadd.f32 %v2441, %v2639
      %v2736 = vadd.f32 %v2442, %v2642
      %v2737 = vadd.f32 %v2443, %v2647
      %v2738 = vadd.f32 %v2444, %v2650
      %v2739 = vadd.f32 %v2445, %v2655
      %v2740 = vadd.f32 %v2446, %v2658
      %v2741 = vadd.f32 %v2447, %v2663
      %v2742 = vadd.f32 %v2448, %v2666
      %v2743 = vadd.f32 %v2449, %v2671
      %v2744 = vadd.f32 %v2450, %v2674
      %v2745 = vadd.f32 %v2451, %v2679
      %v2746 = vadd.f32 %v2452, %v2682
      %v2747 = vadd.f32 %v2453, %v2687
      %v2748 = vadd.f32 %v2454, %v2690
      %v2749 = vadd.f32 %v2455, %v2695
      %v2750 = vadd.f32 %v2456, %v2698
      %v2751 = vadd.f32 %v2457, %v2703
      %v2752 = vadd.f32 %v2458, %v2706
      %v2753 = vadd.f32 %v2459, %v2711
      %v2754 = vadd.f32 %v2460, %v2714
      %v2755 = vadd.f32 %v2461, %v2719
      %v2756 = vadd.f32 %v2462, %v2722
      %v2757 = vld [vmem:[%s2] sm:$0x1]
      %v2759 = vlaneseq
      %v2760 = vshrl.u32 %v2759, 7
      %v2761 = vsub.s32 0, %v2760
      %v2762 = vrot.slane %v2757, %v2761
      %v2764 = vadd.f32 %v2725, %v2762
      %v2765 = vadd.f32 %v2726, %v2762
      %v2766 = vadd.f32 %v2727, %v2762
      %v2767 = vadd.f32 %v2728, %v2762
      %v2768 = vadd.f32 %v2729, %v2762
      %v2769 = vadd.f32 %v2730, %v2762
      %v2770 = vadd.f32 %v2731, %v2762
      %v2771 = vadd.f32 %v2732, %v2762
      %v2772 = vadd.f32 %v2733, %v2762
      %v2773 = vadd.f32 %v2734, %v2762
      %v2774 = vadd.f32 %v2735, %v2762
      %v2775 = vadd.f32 %v2736, %v2762
      %v2776 = vadd.f32 %v2737, %v2762
      %v2777 = vadd.f32 %v2738, %v2762
      %v2778 = vadd.f32 %v2739, %v2762
      %v2779 = vadd.f32 %v2740, %v2762
      %v2780 = vadd.f32 %v2741, %v2762
      %v2781 = vadd.f32 %v2742, %v2762
      %v2782 = vadd.f32 %v2743, %v2762
      %v2783 = vadd.f32 %v2744, %v2762
      %v2784 = vadd.f32 %v2745, %v2762
      %v2785 = vadd.f32 %v2746, %v2762
      %v2786 = vadd.f32 %v2747, %v2762
      %v2787 = vadd.f32 %v2748, %v2762
      %v2788 = vadd.f32 %v2749, %v2762
      %v2789 = vadd.f32 %v2750, %v2762
      %v2790 = vadd.f32 %v2751, %v2762
      %v2791 = vadd.f32 %v2752, %v2762
      %v2792 = vadd.f32 %v2753, %v2762
      %v2793 = vadd.f32 %v2754, %v2762
      %v2794 = vadd.f32 %v2755, %v2762
      %v2795 = vadd.f32 %v2756, %v2762
      %vm2796 = vcmask 64512
      %2797 = vst.msk [vmem:[%s170] sm:$0xff] %vm2796, %v2764
      %2798 = vst.msk [vmem:[%s170 + $0x8] sm:$0xff] %vm2796, %v2765
      %2799 = vst.msk [vmem:[%s170 + $0x10] sm:$0xff] %vm2796, %v2766
      %2800 = vst.msk [vmem:[%s170 + $0x18] sm:$0xff] %vm2796, %v2767
      %2801 = vst.msk [vmem:[%s170 + $0x20] sm:$0xff] %vm2796, %v2768
      %2802 = vst.msk [vmem:[%s170 + $0x28] sm:$0xff] %vm2796, %v2769
      %2803 = vst.msk [vmem:[%s170 + $0x30] sm:$0xff] %vm2796, %v2770
      %2804 = vst.msk [vmem:[%s170 + $0x38] sm:$0xff] %vm2796, %v2771
      %2805 = vst.msk [vmem:[%s170 + $0x40] sm:$0xff] %vm2796, %v2772
      %2806 = vst.msk [vmem:[%s170 + $0x48] sm:$0xff] %vm2796, %v2773
      %2807 = vst.msk [vmem:[%s170 + $0x50] sm:$0xff] %vm2796, %v2774
      %2808 = vst.msk [vmem:[%s170 + $0x58] sm:$0xff] %vm2796, %v2775
      %2809 = vst.msk [vmem:[%s170 + $0x60] sm:$0xff] %vm2796, %v2776
      %2810 = vst.msk [vmem:[%s170 + $0x68] sm:$0xff] %vm2796, %v2777
      %2811 = vst.msk [vmem:[%s170 + $0x70] sm:$0xff] %vm2796, %v2778
      %2812 = vst.msk [vmem:[%s170 + $0x78] sm:$0xff] %vm2796, %v2779
      %2813 = vst.msk [vmem:[%s170 + $0x80] sm:$0xff] %vm2796, %v2780
      %2814 = vst.msk [vmem:[%s170 + $0x88] sm:$0xff] %vm2796, %v2781
      %2815 = vst.msk [vmem:[%s170 + $0x90] sm:$0xff] %vm2796, %v2782
      %2816 = vst.msk [vmem:[%s170 + $0x98] sm:$0xff] %vm2796, %v2783
      %2817 = vst.msk [vmem:[%s170 + $0xa0] sm:$0xff] %vm2796, %v2784
      %2818 = vst.msk [vmem:[%s170 + $0xa8] sm:$0xff] %vm2796, %v2785
      %2819 = vst.msk [vmem:[%s170 + $0xb0] sm:$0xff] %vm2796, %v2786
      %2820 = vst.msk [vmem:[%s170 + $0xb8] sm:$0xff] %vm2796, %v2787
      %2821 = vst.msk [vmem:[%s170 + $0xc0] sm:$0xff] %vm2796, %v2788
      %2822 = vst.msk [vmem:[%s170 + $0xc8] sm:$0xff] %vm2796, %v2789
      %2823 = vst.msk [vmem:[%s170 + $0xd0] sm:$0xff] %vm2796, %v2790
      %2824 = vst.msk [vmem:[%s170 + $0xd8] sm:$0xff] %vm2796, %v2791
      %2825 = vst.msk [vmem:[%s170 + $0xe0] sm:$0xff] %vm2796, %v2792
      %2826 = vst.msk [vmem:[%s170 + $0xe8] sm:$0xff] %vm2796, %v2793
      %2827 = vst.msk [vmem:[%s170 + $0xf0] sm:$0xff] %vm2796, %v2794
      %2828 = vst.msk [vmem:[%s170 + $0xf8] sm:$0xff] %vm2796, %v2795
      %p2829 = scmp.lt.s32.totalorder %s14, 1
      %s2830 = scalar_select %p2829, %s14, 1
      %s2831 = smul.addr %s2830, 32
      %s2832 = smul.addr %s2831, 8
      %s2833 = scalar_lea.vmem %s3, %s2832
      // Predicated region
      $region33: #{encoder_forward.8} parent=31 // pred_check
        %p2834 = pneg %p100
      $region34: #{encoder_forward.8} parent=31 // pred_check_branch
        %2836 = sbr.rel (%p2834) target = $region36
      $region35: #{encoder_forward.8} parent=31 // pred_region
        _
      $region36: #{encoder_forward.8} parent=31 // pred_fallthru
        _
    $region32: #{encoder_forward.8} parent=5 // pred_fallthru
      _
    %p2837 = scmp.le.s32.totalorder 2, %s9
    // Predicated region
    $region37: #{encoder_forward.8} parent=5 // pred_check
      %p2838 = pneg %p2837
    $region38: #{encoder_forward.8} parent=5 // pred_check_branch
      %2840 = sbr.rel (%p2838) target = $region40
    $region39: #{encoder_forward.8} parent=5 // pred_region
      %s2841 = ssub.s32 %s9, 2
      // Predicated region
      $region41: #{encoder_forward.8} parent=39 // pred_check
        %p2842 = pneg %p106
      $region42: #{encoder_forward.8} parent=39 // pred_check_branch
        %2844 = sbr.rel (%p2842) target = $region44
      $region43: #{encoder_forward.8} parent=39 // pred_region
        %p2845 = scmp.lt.s32.totalorder %s15, 1
        %s2846 = scalar_select %p2845, %s15, 1
        %s2847 = smul.addr %s2846, 32
        %s2848 = smul.addr %s2847, 8
        %s2849 = scalar_lea.vmem %s3, %s2848
      $region44: #{encoder_forward.8} parent=39 // pred_fallthru
        _
    $region40: #{encoder_forward.8} parent=5 // pred_fallthru
      _
  $region6: #{encoder_forward.8} parent=0 // loop_footer
    %s13 = sadd.s32 1, %s9
  $region7: #{encoder_forward.8} parent=0 // loop_footer_branch
    %8 = sbr.rel target = $region3
  $region8: #{encoder_forward.8} parent=0 // loop_exit
    _

// kernel: encoder_forward.12
$region0: #{encoder_forward.12}
  #allocation0 [shape = 'u32[]', space=smem, size = 0x4, offset = 0x4, fixed_abs, tag = 'smem constant byte address 0x4 - core index']
  #allocation1 [shape = 'u32[144,128]{1,0:T(1,128)}', space=vmem, size = 0x12000, scoped, tag = 'internal scratch']
  %s0 = inlined_call_operand.vmem [shape: f32[2,4,2,4,32], index: 0, kind: input, shape index: {}]
  %s1 = inlined_call_operand.vmem [shape: bf16[32,32], index: 1, kind: input, shape index: {}]
  %s2 = inlined_call_operand.vmem [shape: f32[1,32], index: 2, kind: input, shape index: {}]
  %s3 = inlined_call_operand.vmem [shape: f32[2,4,2,4,32], index: 3, kind: output, shape index: {0}]
  %s4 = inlined_call_operand.vmem [shape: f32[2,16,32], index: 4, kind: output, shape index: {1}]
  %5 = xla_tuple %s3, %s4
  %s6 = sld [smem:[#allocation0]]
  $region53: #{encoder_forward.12} parent=0
    _
  %s8 = ssub.s32 1, %s6
  %s9 = scalar_select 0, %s8, %s6
  loop: start=0, step=1, limit=4
  $region2: #{encoder_forward.12} parent=0 // loop_pre_header
    _
  $region3: #{encoder_forward.12} parent=0 // loop_header
    %s11 = sphi 0, %s15
    %p12 = scmp.ge.s32.totalorder %s11, 4
    %s21 = sphi 0, %s23
    %s24 = sphi 0, %s21
    %s25 = sphi 0, %s24
    %s41 = sphi 0, %s25
    %s45 = sphi 0, %s45
    %s47 = sphi 0, %s45
    %s48 = sphi 0, %s47
    %s62 = sphi 0, %s48
    %s66 = sphi 0, %s66
    %s68 = sphi 0, %s66
    %s69 = sphi 0, %s68
    %s83 = sphi 0, %s69
    %s89 = sphi 0, %s91
    %s92 = sphi 0, %s89
    %s93 = sphi 0, %s92
    %s109 = sphi 0, %s93
    %s115 = sphi 0, %s117
    %s118 = sphi 0, %s115
    %s119 = sphi 0, %s118
    %s135 = sphi 0, %s119
  $region4: #{encoder_forward.12} parent=0 // loop_header_branch
    %14 = sbr.rel (%p12) target = $region8
  $region5: #{encoder_forward.12} parent=0 // loop_body
    %s16 = ssub.s32 %s11, 1
    %s17 = ssub.s32 %s11, 2
    %s18 = sadd.s32 %s11, 1
    %s19 = ssub.s32 %s11, %s18
    %p20 = scmp.eq.s32.totalorder %s19, 0
    %s22 = sadd.s32 %s21, 1
    %s23 = scalar_select %p20, %s21, %s22
    %p26 = pneg %p20
    %p27 = scmp.eq.s32.totalorder %s11, 1
    %p28 = por %p26, %p27
    %p29 = scmp.ne.s32.totalorder %s21, %s24
    %p30 = scmp.eq.s32.totalorder %s11, 0
    %p31 = por %p29, %p30
    %p32 = scmp.ne.s32.totalorder %s21, %s24
    %p33 = scmp.eq.s32.totalorder %s16, 1
    %p34 = por %p32, %p33
    %p35 = scmp.ne.s32.totalorder %s24, %s25
    %p36 = scmp.eq.s32.totalorder %s16, 0
    %p37 = por %p35, %p36
    %p38 = scmp.ne.s32.totalorder %s24, %s25
    %p39 = scmp.eq.s32.totalorder %s17, 1
    %p40 = por %p38, %p39
    %p42 = scmp.ne.s32.totalorder %s25, %s41
    %p43 = scmp.eq.s32.totalorder %s17, 0
    %p44 = por %p42, %p43
    %s46 = sadd.s32 %s45, 1
    %p49 = scmp.eq.s32.totalorder %s11, 1
    %p50 = scmp.ne.s32.totalorder %s45, %s47
    %p51 = scmp.eq.s32.totalorder %s11, 0
    %p52 = por %p50, %p51
    %p53 = scmp.ne.s32.totalorder %s45, %s47
    %p54 = scmp.eq.s32.totalorder %s16, 1
    %p55 = por %p53, %p54
    %p56 = scmp.ne.s32.totalorder %s47, %s48
    %p57 = scmp.eq.s32.totalorder %s16, 0
    %p58 = por %p56, %p57
    %p59 = scmp.ne.s32.totalorder %s47, %s48
    %p60 = scmp.eq.s32.totalorder %s17, 1
    %p61 = por %p59, %p60
    %p63 = scmp.ne.s32.totalorder %s48, %s62
    %p64 = scmp.eq.s32.totalorder %s17, 0
    %p65 = por %p63, %p64
    %s67 = sadd.s32 %s66, 1
    %p70 = scmp.eq.s32.totalorder %s11, 1
    %p71 = scmp.ne.s32.totalorder %s66, %s68
    %p72 = scmp.eq.s32.totalorder %s11, 0
    %p73 = por %p71, %p72
    %p74 = scmp.ne.s32.totalorder %s66, %s68
    %p75 = scmp.eq.s32.totalorder %s16, 1
    %p76 = por %p74, %p75
    %p77 = scmp.ne.s32.totalorder %s68, %s69
    %p78 = scmp.eq.s32.totalorder %s16, 0
    %p79 = por %p77, %p78
    %p80 = scmp.ne.s32.totalorder %s68, %s69
    %p81 = scmp.eq.s32.totalorder %s17, 1
    %p82 = por %p80, %p81
    %p84 = scmp.ne.s32.totalorder %s69, %s83
    %p85 = scmp.eq.s32.totalorder %s17, 0
    %p86 = por %p84, %p85
    %s87 = ssub.s32 %s11, %s18
    %p88 = scmp.eq.s32.totalorder %s87, 0
    %s90 = sadd.s32 %s89, 1
    %s91 = scalar_select %p88, %s89, %s90
    %p94 = pneg %p88
    %p95 = scmp.eq.s32.totalorder %s11, 1
    %p96 = por %p94, %p95
    %p97 = scmp.ne.s32.totalorder %s89, %s92
    %p98 = scmp.eq.s32.totalorder %s11, 0
    %p99 = por %p97, %p98
    %p100 = scmp.ne.s32.totalorder %s89, %s92
    %p101 = scmp.eq.s32.totalorder %s16, 1
    %p102 = por %p100, %p101
    %p103 = scmp.ne.s32.totalorder %s92, %s93
    %p104 = scmp.eq.s32.totalorder %s16, 0
    %p105 = por %p103, %p104
    %p106 = scmp.ne.s32.totalorder %s92, %s93
    %p107 = scmp.eq.s32.totalorder %s17, 1
    %p108 = por %p106, %p107
    %p110 = scmp.ne.s32.totalorder %s93, %s109
    %p111 = scmp.eq.s32.totalorder %s17, 0
    %p112 = por %p110, %p111
    %s113 = ssub.s32 %s11, %s18
    %p114 = scmp.eq.s32.totalorder %s113, 0
    %s116 = sadd.s32 %s115, 1
    %s117 = scalar_select %p114, %s115, %s116
    %p120 = pneg %p114
    %p121 = scmp.eq.s32.totalorder %s11, 1
    %p122 = por %p120, %p121
    %p123 = scmp.ne.s32.totalorder %s115, %s118
    %p124 = scmp.eq.s32.totalorder %s11, 0
    %p125 = por %p123, %p124
    %p126 = scmp.ne.s32.totalorder %s115, %s118
    %p127 = scmp.eq.s32.totalorder %s16, 1
    %p128 = por %p126, %p127
    %p129 = scmp.ne.s32.totalorder %s118, %s119
    %p130 = scmp.eq.s32.totalorder %s16, 0
    %p131 = por %p129, %p130
    %p132 = scmp.ne.s32.totalorder %s118, %s119
    %p133 = scmp.eq.s32.totalorder %s17, 1
    %p134 = por %p132, %p133
    %p136 = scmp.ne.s32.totalorder %s119, %s135
    %p137 = scmp.eq.s32.totalorder %s17, 0
    %p138 = por %p136, %p137
    %p139 = scmp.le.s32.totalorder 1, %s11
    %p140 = scmp.lt.s32.totalorder %s11, 3
    %p141 = pnand %p139, %p140
    %p142 = pneg %p141
    // Predicated region
    $region9: #{encoder_forward.12} parent=5 // pred_check
      _
    $region10: #{encoder_forward.12} parent=5 // pred_check_branch
      %144 = sbr.rel (%p141) target = $region12
    $region11: #{encoder_forward.12} parent=5 // pred_region
      %s145 = ssub.s32 %s11, 1
      // Predicated region
      $region13: #{encoder_forward.12} parent=11 // pred_check
        %p146 = pneg %p58
      $region14: #{encoder_forward.12} parent=11 // pred_check_branch
        %148 = sbr.rel (%p146) target = $region16
      $region15: #{encoder_forward.12} parent=11 // pred_region
        _
      $region16: #{encoder_forward.12} parent=11 // pred_fallthru
        _
      // Predicated region
      $region17: #{encoder_forward.12} parent=11 // pred_check
        %p149 = pneg %p79
      $region18: #{encoder_forward.12} parent=11 // pred_check_branch
        %151 = sbr.rel (%p149) target = $region20
      $region19: #{encoder_forward.12} parent=11 // pred_region
        _
      $region20: #{encoder_forward.12} parent=11 // pred_fallthru
        _
    $region12: #{encoder_forward.12} parent=5 // pred_fallthru
      _
    %p152 = scmp.lt.s32.totalorder %s11, 2
    // Predicated region
    $region21: #{encoder_forward.12} parent=5 // pred_check
      %p153 = pneg %p152
    $region22: #{encoder_forward.12} parent=5 // pred_check_branch
      %155 = sbr.rel (%p153) target = $region24
    $region23: #{encoder_forward.12} parent=5 // pred_region
      // Predicated region
      $region25: #{encoder_forward.12} parent=23 // pred_check
        %p156 = pneg %p31
      $region26: #{encoder_forward.12} parent=23 // pred_check_branch
        %158 = sbr.rel (%p156) target = $region28
      $region27: #{encoder_forward.12} parent=23 // pred_region
        %p159 = scmp.lt.s32.totalorder %s11, 1
        %s160 = scalar_select %p159, %s11, 1
        %s161 = smul.addr %s160, 8
        %s162 = smul.addr %s161, 4
        %s163 = scalar_lea.vmem %s0, %s162
      $region28: #{encoder_forward.12} parent=23 // pred_fallthru
        _
    $region24: #{encoder_forward.12} parent=5 // pred_fallthru
      _
    %p164 = scmp.le.s32.totalorder 1, %s11
    %p165 = scmp.lt.s32.totalorder %s11, 3
    %p166 = pnand %p164, %p165
    %p167 = pneg %p166
    // Predicated region
    $region29: #{encoder_forward.12} parent=5 // pred_check
      _
    $region30: #{encoder_forward.12} parent=5 // pred_check_branch
      %169 = sbr.rel (%p166) target = $region32
    $region31: #{encoder_forward.12} parent=5 // pred_region
      %s170 = ssub.s32 %s11, 1
      %p171 = scmp.lt.s32.totalorder %s16, 1
      %s172 = scalar_select %p171, %s16, 1
      %s173 = smul.addr %s172, 8
      %s174 = smul.addr %s173, 4
      %s175 = scalar_lea.vmem %s0, %s174
      %p176 = pneg %p37
      %p177 = pneg %p34
      %p178 = pneg %p58
      %p179 = pneg %p55
      %p180 = pneg %p79
      %p181 = pneg %p76
      %p182 = pneg %p105
      %p183 = pneg %p102
      %p184 = scmp.lt.s32.totalorder %s16, 1
      %s185 = scalar_select %p184, %s16, 1
      %s186 = smul.addr %s185, 8
      %s187 = smul.addr %s186, 4
      %s188 = scalar_lea.vmem %s3, %s187
      %p189 = pneg %p131
      %p190 = pneg %p128
      %p191 = scmp.lt.s32.totalorder %s16, 1
      %s192 = scalar_select %p191, %s16, 1
      %s193 = smul.addr %s192, 2
      %s194 = smul.addr %s193, 8
      %s195 = scalar_lea.vmem %s4, %s194
      %p196 = scmp.lt.s32.totalorder %s16, 1
      %s197 = scalar_select %p196, %s16, 1
      %s198 = smul.addr %s197, 8
      %s199 = smul.addr %s198, 4
      %s200 = scalar_lea.vmem %s0, %s199
      %p201 = scmp.lt.s32.totalorder %s16, 1
      %s202 = scalar_select %p201, %s16, 1
      %s203 = smul.addr %s202, 8
      %s204 = smul.addr %s203, 4
      %s205 = scalar_lea.vmem %s3, %s204
      %p206 = scmp.lt.s32.totalorder %s16, 1
      %s207 = scalar_select %p206, %s16, 1
      %s208 = smul.addr %s207, 2
      %s209 = smul.addr %s208, 8
      %s210 = scalar_lea.vmem %s4, %s209
      %v212 = vld [vmem:[%s200] sm:$0xf]
      %v213 = vld [vmem:[%s200 + $0x4] sm:$0xf]
      %v214 = vld [vmem:[%s200 + $0x8] sm:$0xf]
      %v215 = vld [vmem:[%s200 + $0xc] sm:$0xf]
      %v216 = vld [vmem:[%s200 + $0x10] sm:$0xf]
      %v217 = vld [vmem:[%s200 + $0x14] sm:$0xf]
      %v218 = vld [vmem:[%s200 + $0x18] sm:$0xf]
      %v219 = vld [vmem:[%s200 + $0x1c] sm:$0xf]
      %vm220 = vcmask 257024
      %v221 = vsel %vm220, %v212, 0.0
      %v222 = vsel %vm220, %v213, 0.0
      %v223 = vadd.f32 %v221, %v222
      %v224 = vsel %vm220, %v214, 0.0
      %v225 = vadd.f32 %v223, %v224
      %v226 = vsel %vm220, %v215, 0.0
      %v227 = vadd.f32 %v225, %v226
      %v228 = vsel %vm220, %v216, 0.0
      %v229 = vadd.f32 %v227, %v228
      %v230 = vsel %vm220, %v217, 0.0
      %v231 = vadd.f32 %v229, %v230
      %v232 = vsel %vm220, %v218, 0.0
      %v233 = vadd.f32 %v231, %v232
      %v234 = vsel %vm220, %v219, 0.0
      %v235 = vadd.f32 %v233, %v234
      %v236 = vrot.slane %v235, 4
      %v237 = vadd.f32 %v235, %v236
      %v238 = vrot.slane %v237, 2
      %v239 = vadd.f32 %v237, %v238
      %v240 = vrot.slane %v239, 1
      %v241 = vadd.f32 %v239, %v240
      %243 = vrot.lane.b32.xlu0 %v241, 112
      %v244 = vpop.permute.xlu0 %243
      %v246 = vadd.f32 %v241, %v244
      %v247 = vmul.f32 %v246, 0.015625
      %249 = vrot.lane.b32.xlu0 %v247, 16
      %v250 = vpop.permute.xlu0 %249
      %vm252 = vcmask 130048
      %v253 = vsel %vm252, %v247, %v250
      %v254 = vlaneseq
      %v255 = vshrl.u32 %v254, 7
      %v256 = vsub.s32 0, %v255
      %v257 = vrot.slane %v253, %v256
      %v258 = vsub.f32 %v212, %v257
      %v259 = vsub.f32 %v213, %v257
      %v260 = vsub.f32 %v214, %v257
      %v261 = vsub.f32 %v215, %v257
      %v262 = vsub.f32 %v216, %v257
      %v263 = vsub.f32 %v217, %v257
      %v264 = vsub.f32 %v218, %v257
      %v265 = vsub.f32 %v219, %v257
      %v266 = vmul.f32 %v258, %v258
      %v267 = vmul.f32 %v259, %v259
      %v268 = vmul.f32 %v260, %v260
      %v269 = vmul.f32 %v261, %v261
      %v270 = vmul.f32 %v262, %v262
      %v271 = vmul.f32 %v263, %v263
      %v272 = vmul.f32 %v264, %v264
      %v273 = vmul.f32 %v265, %v265
      %v274 = vsel %vm220, %v266, 0.0
      %v275 = vsel %vm220, %v267, 0.0
      %v276 = vadd.f32 %v274, %v275
      %v277 = vsel %vm220, %v268, 0.0
      %v278 = vadd.f32 %v276, %v277
      %v279 = vsel %vm220, %v269, 0.0
      %v280 = vadd.f32 %v278, %v279
      %v281 = vsel %vm220, %v270, 0.0
      %v282 = vadd.f32 %v280, %v281
      %v283 = vsel %vm220, %v271, 0.0
      %v284 = vadd.f32 %v282, %v283
      %v285 = vsel %vm220, %v272, 0.0
      %v286 = vadd.f32 %v284, %v285
      %v287 = vsel %vm220, %v273, 0.0
      %v288 = vadd.f32 %v286, %v287
      %v289 = vrot.slane %v288, 4
      %v290 = vadd.f32 %v288, %v289
      %v291 = vrot.slane %v290, 2
      %v292 = vadd.f32 %v290, %v291
      %v293 = vrot.slane %v292, 1
      %v294 = vadd.f32 %v292, %v293
      %296 = vrot.lane.b32.xlu0 %v294, 112
      %v297 = vpop.permute.xlu0 %296
      %v299 = vadd.f32 %v294, %v297
      %v300 = vmul.f32 %v299, 0.015625
      %v301 = vadd.f32 %v300, 1e-05
      %v302 = vrsqrt.pop %v301
      %304 = vrot.lane.b32.xlu0 %v302, 16
      %v305 = vpop.permute.xlu0 %304
      %v307 = vsel %vm252, %v302, %v305
      %v308 = vlaneseq
      %v309 = vshrl.u32 %v308, 7
      %v310 = vsub.s32 0, %v309
      %v311 = vrot.slane %v307, %v310
      %v312 = vmul.f32 %v258, %v311
      %v313 = vmul.f32 %v259, %v311
      %v314 = vmul.f32 %v260, %v311
      %v315 = vmul.f32 %v261, %v311
      %v316 = vmul.f32 %v262, %v311
      %v317 = vmul.f32 %v263, %v311
      %v318 = vmul.f32 %v264, %v311
      %v319 = vmul.f32 %v265, %v311
      %v320 = vmax.f32 %v312, 0.0
      %v321 = vmax.f32 %v313, 0.0
      %v322 = vmax.f32 %v314, 0.0
      %v323 = vmax.f32 %v315, 0.0
      %v324 = vmax.f32 %v316, 0.0
      %v325 = vmax.f32 %v317, 0.0
      %v326 = vmax.f32 %v318, 0.0
      %v327 = vmax.f32 %v319, 0.0
      %328 = vst.msk [vmem:[%s205] sm:$0xf] %vm220, %v320
      %329 = vst.msk [vmem:[%s205 + $0x4] sm:$0xf] %vm220, %v321
      %330 = vst.msk [vmem:[%s205 + $0x8] sm:$0xf] %vm220, %v322
      %331 = vst.msk [vmem:[%s205 + $0xc] sm:$0xf] %vm220, %v323
      %332 = vst.msk [vmem:[%s205 + $0x10] sm:$0xf] %vm220, %v324
      %333 = vst.msk [vmem:[%s205 + $0x14] sm:$0xf] %vm220, %v325
      %334 = vst.msk [vmem:[%s205 + $0x18] sm:$0xf] %vm220, %v326
      %335 = vst.msk [vmem:[%s205 + $0x1c] sm:$0xf] %vm220, %v327
      %v340 = vcombine.low %v212, %v214
      %v341 = vcombine.low %v216, %v218
      %v344 = vpack.c.bf16 %v341, %v340
      %v345 = vld [vmem:[%s1] sm:$0xf]
      %v346 = vld [vmem:[%s1 + $0x4] sm:$0xf]
      %v347 = vld [vmem:[%s1 + $0x8] sm:$0xf]
      %v348 = vld [vmem:[%s1 + $0xc] sm:$0xf]
      %v349 = vld [vmem:[%s2] sm:$0x1]
      %v351 = vlaneseq
      %v352 = vshrl.u32 %v351, 7
      %v353 = vsub.s32 0, %v352
      %v354 = vrot.slane %v349, %v353
      %v360 = vunpack.c.l.b16 %v345
      %v361 = vunpack.c.l.b16 %v346
      %v362 = vunpack.c.l.b16 %v347
      %v363 = vunpack.c.l.b16 %v348
      %v364 = vpack.c.b16 %v361, %v360
      %v365 = vpack.c.b16 %v363, %v362
      %vm368 = vcmask 261120
      %v370 = vsel %vm368, %v344, 0
      %372 = vmatprep.subr.bf16.mxu0 0
      %373 = vmatpush1.bf16.msra.mxu0 0
      %374 = vmatprep.subr.bf16.mxu0 0
      %375 = vmatpush1.bf16.msra.mxu0 0
      %376 = vmatprep.subr.bf16.mxu0 0
      %377 = vmatpush1.bf16.msra.mxu0 0
      %378 = vmatprep.subr.bf16.mxu0 0
      %379 = vmatpush1.bf16.msra.mxu0 0
      %380 = vmatprep.subr.bf16.mxu0 0
      %381 = vmatpush1.bf16.msra.mxu0 0
      %382 = vmatprep.subr.bf16.mxu0 0
      %383 = vmatpush1.bf16.msra.mxu0 0
      %384 = vmatprep.subr.bf16.mxu0 0
      %385 = vmatpush1.bf16.msra.mxu0 %v365
      %386 = vmatprep.subr.bf16.mxu0 0
      %387 = vmatpush1.bf16.msra.mxu0 %v364
      %388 = vmatprep.subr.bf16.mxu0 0
      %389 = vmatpush2.bf16.msra.mxu0 0
      %390 = vmatprep.subr.bf16.mxu0 0
      %391 = vmatpush2.bf16.msra.mxu0 0
      %392 = vmatprep.subr.bf16.mxu0 0
      %393 = vmatpush2.bf16.msra.mxu0 0
      %394 = vmatprep.subr.bf16.mxu0 0
      %395 = vmatpush2.bf16.msra.mxu0 0
      %396 = vmatprep.subr.bf16.mxu0 0
      %397 = vmatpush2.bf16.msra.mxu0 0
      %398 = vmatprep.subr.bf16.mxu0 0
      %399 = vmatpush2.bf16.msra.mxu0 0
      %400 = vmatprep.subr.bf16.mxu0 0
      %401 = vmatpush2.bf16.msra.mxu0 0
      %402 = vmatprep.subr.bf16.mxu0 0
      %403 = vmatpush2.bf16.msra.mxu0 0
      %404 = vmatprep.mubr.bf16.mxu0 0
      %405 = vmatmul.mubr.bf16.gmra.mxu0 %v370
      %v406 = vpop.f32.mrf.mxu0
      %v407 = vadd.f32 %v354, %v406
      %v408 = vpop.f32.mrf.mxu0
      %v409 = vpop.f32.mrf.mxu0
      %v410 = vadd.f32 %v354, %v409
      %v411 = vpop.f32.mrf.mxu0
      %412 = vdwg.mxu0
      %413 = vst.msk [vmem:[%s210] sm:$0xff] %vm368, %v407
      %414 = vst.msk [vmem:[%s210 + $0x8] sm:$0xff] %vm368, %v410
      %p415 = scmp.lt.s32.totalorder %s16, 1
      %s416 = scalar_select %p415, %s16, 1
      %s417 = smul.addr %s416, 8
      %s418 = smul.addr %s417, 4
      %s419 = scalar_lea.vmem %s3, %s418
      %p420 = scmp.lt.s32.totalorder %s16, 1
      %s421 = scalar_select %p420, %s16, 1
      %s422 = smul.addr %s421, 2
      %s423 = smul.addr %s422, 8
      %s424 = scalar_lea.vmem %s4, %s423
      // Predicated region
      $region33: #{encoder_forward.12} parent=31 // pred_check
        %p425 = pneg %p102
      $region34: #{encoder_forward.12} parent=31 // pred_check_branch
        %427 = sbr.rel (%p425) target = $region36
      $region35: #{encoder_forward.12} parent=31 // pred_region
        _
      $region36: #{encoder_forward.12} parent=31 // pred_fallthru
        _
      // Predicated region
      $region37: #{encoder_forward.12} parent=31 // pred_check
        %p428 = pneg %p128
      $region38: #{encoder_forward.12} parent=31 // pred_check_branch
        %430 = sbr.rel (%p428) target = $region40
      $region39: #{encoder_forward.12} parent=31 // pred_region
        _
      $region40: #{encoder_forward.12} parent=31 // pred_fallthru
        _
    $region32: #{encoder_forward.12} parent=5 // pred_fallthru
      _
    %p431 = scmp.le.s32.totalorder 2, %s11
    // Predicated region
    $region41: #{encoder_forward.12} parent=5 // pred_check
      %p432 = pneg %p431
    $region42: #{encoder_forward.12} parent=5 // pred_check_branch
      %434 = sbr.rel (%p432) target = $region44
    $region43: #{encoder_forward.12} parent=5 // pred_region
      %s435 = ssub.s32 %s11, 2
      // Predicated region
      $region45: #{encoder_forward.12} parent=43 // pred_check
        %p436 = pneg %p108
      $region46: #{encoder_forward.12} parent=43 // pred_check_branch
        %438 = sbr.rel (%p436) target = $region48
      $region47: #{encoder_forward.12} parent=43 // pred_region
        %p439 = scmp.lt.s32.totalorder %s17, 1
        %s440 = scalar_select %p439, %s17, 1
        %s441 = smul.addr %s440, 8
        %s442 = smul.addr %s441, 4
        %s443 = scalar_lea.vmem %s3, %s442
      $region48: #{encoder_forward.12} parent=43 // pred_fallthru
        _
      // Predicated region
      $region49: #{encoder_forward.12} parent=43 // pred_check
        %p444 = pneg %p134
      $region50: #{encoder_forward.12} parent=43 // pred_check_branch
        %446 = sbr.rel (%p444) target = $region52
      $region51: #{encoder_forward.12} parent=43 // pred_region
        %p447 = scmp.lt.s32.totalorder %s17, 1
        %s448 = scalar_select %p447, %s17, 1
        %s449 = smul.addr %s448, 2
        %s450 = smul.addr %s449, 8
        %s451 = scalar_lea.vmem %s4, %s450
      $region52: #{encoder_forward.12} parent=43 // pred_fallthru
        _
    $region44: #{encoder_forward.12} parent=5 // pred_fallthru
      _
  $region6: #{encoder_forward.12} parent=0 // loop_footer
    %s15 = sadd.s32 1, %s11
  $region7: #{encoder_forward.12} parent=0 // loop_footer_branch
    %10 = sbr.rel target = $region3
  $region8: #{encoder_forward.12} parent=0 // loop_exit
    _

// kernel: encoder_forward.11
$region0: #{encoder_forward.11}
  #allocation0 [shape = 'u32[]', space=smem, size = 0x4, offset = 0x4, fixed_abs, tag = 'smem constant byte address 0x4 - core index']
  #allocation1 [shape = 'u32[144,128]{1,0:T(1,128)}', space=vmem, size = 0x12000, scoped, tag = 'internal scratch']
  %s0 = inlined_call_operand.vmem [shape: f32[2,10,10,16], index: 0, kind: input, shape index: {}]
  %s1 = inlined_call_operand.vmem [shape: bf16[9,16,16], index: 1, kind: input, shape index: {}]
  %s2 = inlined_call_operand.vmem [shape: f32[1,16], index: 2, kind: input, shape index: {}]
  %s3 = inlined_call_operand.vmem [shape: f32[2,64,16], index: 3, kind: input, shape index: {}]
  %s4 = inlined_call_operand.vmem [shape: f32[2,64,16], index: 4, kind: output, shape index: {}]
  %s5 = sld [smem:[#allocation0]]
  $region49: #{encoder_forward.11} parent=0
    _
  %s7 = ssub.s32 1, %s5
  %s8 = scalar_select 0, %s7, %s5
  loop: start=0, step=1, limit=4
  $region2: #{encoder_forward.11} parent=0 // loop_pre_header
    _
  $region3: #{encoder_forward.11} parent=0 // loop_header
    %s10 = sphi 0, %s14
    %p11 = scmp.ge.s32.totalorder %s10, 4
    %s20 = sphi 0, %s22
    %s23 = sphi 0, %s20
    %s24 = sphi 0, %s23
    %s40 = sphi 0, %s24
    %s44 = sphi 0, %s44
    %s46 = sphi 0, %s44
    %s47 = sphi 0, %s46
    %s61 = sphi 0, %s47
    %s65 = sphi 0, %s65
    %s67 = sphi 0, %s65
    %s68 = sphi 0, %s67
    %s82 = sphi 0, %s68
    %s88 = sphi 0, %s90
    %s91 = sphi 0, %s88
    %s92 = sphi 0, %s91
    %s108 = sphi 0, %s92
    %s114 = sphi 0, %s116
    %s117 = sphi 0, %s114
    %s118 = sphi 0, %s117
    %s134 = sphi 0, %s118
  $region4: #{encoder_forward.11} parent=0 // loop_header_branch
    %13 = sbr.rel (%p11) target = $region8
  $region5: #{encoder_forward.11} parent=0 // loop_body
    %s15 = ssub.s32 %s10, 1
    %s16 = ssub.s32 %s10, 2
    %s17 = sadd.s32 %s10, 1
    %s18 = ssub.s32 %s10, %s17
    %p19 = scmp.eq.s32.totalorder %s18, 0
    %s21 = sadd.s32 %s20, 1
    %s22 = scalar_select %p19, %s20, %s21
    %p25 = pneg %p19
    %p26 = scmp.eq.s32.totalorder %s10, 1
    %p27 = por %p25, %p26
    %p28 = scmp.ne.s32.totalorder %s20, %s23
    %p29 = scmp.eq.s32.totalorder %s10, 0
    %p30 = por %p28, %p29
    %p31 = scmp.ne.s32.totalorder %s20, %s23
    %p32 = scmp.eq.s32.totalorder %s15, 1
    %p33 = por %p31, %p32
    %p34 = scmp.ne.s32.totalorder %s23, %s24
    %p35 = scmp.eq.s32.totalorder %s15, 0
    %p36 = por %p34, %p35
    %p37 = scmp.ne.s32.totalorder %s23, %s24
    %p38 = scmp.eq.s32.totalorder %s16, 1
    %p39 = por %p37, %p38
    %p41 = scmp.ne.s32.totalorder %s24, %s40
    %p42 = scmp.eq.s32.totalorder %s16, 0
    %p43 = por %p41, %p42
    %s45 = sadd.s32 %s44, 1
    %p48 = scmp.eq.s32.totalorder %s10, 1
    %p49 = scmp.ne.s32.totalorder %s44, %s46
    %p50 = scmp.eq.s32.totalorder %s10, 0
    %p51 = por %p49, %p50
    %p52 = scmp.ne.s32.totalorder %s44, %s46
    %p53 = scmp.eq.s32.totalorder %s15, 1
    %p54 = por %p52, %p53
    %p55 = scmp.ne.s32.totalorder %s46, %s47
    %p56 = scmp.eq.s32.totalorder %s15, 0
    %p57 = por %p55, %p56
    %p58 = scmp.ne.s32.totalorder %s46, %s47
    %p59 = scmp.eq.s32.totalorder %s16, 1
    %p60 = por %p58, %p59
    %p62 = scmp.ne.s32.totalorder %s47, %s61
    %p63 = scmp.eq.s32.totalorder %s16, 0
    %p64 = por %p62, %p63
    %s66 = sadd.s32 %s65, 1
    %p69 = scmp.eq.s32.totalorder %s10, 1
    %p70 = scmp.ne.s32.totalorder %s65, %s67
    %p71 = scmp.eq.s32.totalorder %s10, 0
    %p72 = por %p70, %p71
    %p73 = scmp.ne.s32.totalorder %s65, %s67
    %p74 = scmp.eq.s32.totalorder %s15, 1
    %p75 = por %p73, %p74
    %p76 = scmp.ne.s32.totalorder %s67, %s68
    %p77 = scmp.eq.s32.totalorder %s15, 0
    %p78 = por %p76, %p77
    %p79 = scmp.ne.s32.totalorder %s67, %s68
    %p80 = scmp.eq.s32.totalorder %s16, 1
    %p81 = por %p79, %p80
    %p83 = scmp.ne.s32.totalorder %s68, %s82
    %p84 = scmp.eq.s32.totalorder %s16, 0
    %p85 = por %p83, %p84
    %s86 = ssub.s32 %s10, %s17
    %p87 = scmp.eq.s32.totalorder %s86, 0
    %s89 = sadd.s32 %s88, 1
    %s90 = scalar_select %p87, %s88, %s89
    %p93 = pneg %p87
    %p94 = scmp.eq.s32.totalorder %s10, 1
    %p95 = por %p93, %p94
    %p96 = scmp.ne.s32.totalorder %s88, %s91
    %p97 = scmp.eq.s32.totalorder %s10, 0
    %p98 = por %p96, %p97
    %p99 = scmp.ne.s32.totalorder %s88, %s91
    %p100 = scmp.eq.s32.totalorder %s15, 1
    %p101 = por %p99, %p100
    %p102 = scmp.ne.s32.totalorder %s91, %s92
    %p103 = scmp.eq.s32.totalorder %s15, 0
    %p104 = por %p102, %p103
    %p105 = scmp.ne.s32.totalorder %s91, %s92
    %p106 = scmp.eq.s32.totalorder %s16, 1
    %p107 = por %p105, %p106
    %p109 = scmp.ne.s32.totalorder %s92, %s108
    %p110 = scmp.eq.s32.totalorder %s16, 0
    %p111 = por %p109, %p110
    %s112 = ssub.s32 %s10, %s17
    %p113 = scmp.eq.s32.totalorder %s112, 0
    %s115 = sadd.s32 %s114, 1
    %s116 = scalar_select %p113, %s114, %s115
    %p119 = pneg %p113
    %p120 = scmp.eq.s32.totalorder %s10, 1
    %p121 = por %p119, %p120
    %p122 = scmp.ne.s32.totalorder %s114, %s117
    %p123 = scmp.eq.s32.totalorder %s10, 0
    %p124 = por %p122, %p123
    %p125 = scmp.ne.s32.totalorder %s114, %s117
    %p126 = scmp.eq.s32.totalorder %s15, 1
    %p127 = por %p125, %p126
    %p128 = scmp.ne.s32.totalorder %s117, %s118
    %p129 = scmp.eq.s32.totalorder %s15, 0
    %p130 = por %p128, %p129
    %p131 = scmp.ne.s32.totalorder %s117, %s118
    %p132 = scmp.eq.s32.totalorder %s16, 1
    %p133 = por %p131, %p132
    %p135 = scmp.ne.s32.totalorder %s118, %s134
    %p136 = scmp.eq.s32.totalorder %s16, 0
    %p137 = por %p135, %p136
    %p138 = scmp.le.s32.totalorder 1, %s10
    %p139 = scmp.lt.s32.totalorder %s10, 3
    %p140 = pnand %p138, %p139
    %p141 = pneg %p140
    // Predicated region
    $region9: #{encoder_forward.11} parent=5 // pred_check
      _
    $region10: #{encoder_forward.11} parent=5 // pred_check_branch
      %143 = sbr.rel (%p140) target = $region12
    $region11: #{encoder_forward.11} parent=5 // pred_region
      %s144 = ssub.s32 %s10, 1
      // Predicated region
      $region13: #{encoder_forward.11} parent=11 // pred_check
        %p145 = pneg %p57
      $region14: #{encoder_forward.11} parent=11 // pred_check_branch
        %147 = sbr.rel (%p145) target = $region16
      $region15: #{encoder_forward.11} parent=11 // pred_region
        _
      $region16: #{encoder_forward.11} parent=11 // pred_fallthru
        _
      // Predicated region
      $region17: #{encoder_forward.11} parent=11 // pred_check
        %p148 = pneg %p78
      $region18: #{encoder_forward.11} parent=11 // pred_check_branch
        %150 = sbr.rel (%p148) target = $region20
      $region19: #{encoder_forward.11} parent=11 // pred_region
        _
      $region20: #{encoder_forward.11} parent=11 // pred_fallthru
        _
    $region12: #{encoder_forward.11} parent=5 // pred_fallthru
      _
    %p151 = scmp.lt.s32.totalorder %s10, 2
    // Predicated region
    $region21: #{encoder_forward.11} parent=5 // pred_check
      %p152 = pneg %p151
    $region22: #{encoder_forward.11} parent=5 // pred_check_branch
      %154 = sbr.rel (%p152) target = $region24
    $region23: #{encoder_forward.11} parent=5 // pred_region
      // Predicated region
      $region25: #{encoder_forward.11} parent=23 // pred_check
        %p155 = pneg %p30
      $region26: #{encoder_forward.11} parent=23 // pred_check_branch
        %157 = sbr.rel (%p155) target = $region28
      $region27: #{encoder_forward.11} parent=23 // pred_region
        %p158 = scmp.lt.s32.totalorder %s10, 1
        %s159 = scalar_select %p158, %s10, 1
        %s160 = smul.addr %s159, 20
        %s161 = smul.addr %s160, 8
        %s162 = scalar_lea.vmem %s0, %s161
      $region28: #{encoder_forward.11} parent=23 // pred_fallthru
        _
      // Predicated region
      $region29: #{encoder_forward.11} parent=23 // pred_check
        %p163 = pneg %p98
      $region30: #{encoder_forward.11} parent=23 // pred_check_branch
        %165 = sbr.rel (%p163) target = $region32
      $region31: #{encoder_forward.11} parent=23 // pred_region
        %p166 = scmp.lt.s32.totalorder %s10, 1
        %s167 = scalar_select %p166, %s10, 1
        %s168 = smul.addr %s167, 8
        %s169 = smul.addr %s168, 8
        %s170 = scalar_lea.vmem %s3, %s169
      $region32: #{encoder_forward.11} parent=23 // pred_fallthru
        _
    $region24: #{encoder_forward.11} parent=5 // pred_fallthru
      _
    %p171 = scmp.le.s32.totalorder 1, %s10
    %p172 = scmp.lt.s32.totalorder %s10, 3
    %p173 = pnand %p171, %p172
    %p174 = pneg %p173
    // Predicated region
    $region33: #{encoder_forward.11} parent=5 // pred_check
      _
    $region34: #{encoder_forward.11} parent=5 // pred_check_branch
      %176 = sbr.rel (%p173) target = $region36
    $region35: #{encoder_forward.11} parent=5 // pred_region
      %s177 = ssub.s32 %s10, 1
      %p178 = scmp.lt.s32.totalorder %s15, 1
      %s179 = scalar_select %p178, %s15, 1
      %s180 = smul.addr %s179, 20
      %s181 = smul.addr %s180, 8
      %s182 = scalar_lea.vmem %s0, %s181
      %p183 = pneg %p36
      %p184 = pneg %p33
      %p185 = pneg %p57
      %p186 = pneg %p54
      %p187 = pneg %p78
      %p188 = pneg %p75
      %p189 = scmp.lt.s32.totalorder %s15, 1
      %s190 = scalar_select %p189, %s15, 1
      %s191 = smul.addr %s190, 8
      %s192 = smul.addr %s191, 8
      %s193 = scalar_lea.vmem %s3, %s192
      %p194 = pneg %p104
      %p195 = pneg %p101
      %p196 = pneg %p130
      %p197 = pneg %p127
      %p198 = scmp.lt.s32.totalorder %s15, 1
      %s199 = scalar_select %p198, %s15, 1
      %s200 = smul.addr %s199, 8
      %s201 = smul.addr %s200, 8
      %s202 = scalar_lea.vmem %s4, %s201
      %p203 = scmp.lt.s32.totalorder %s15, 1
      %s204 = scalar_select %p203, %s15, 1
      %s205 = smul.addr %s204, 20
      %s206 = smul.addr %s205, 8
      %s207 = scalar_lea.vmem %s0, %s206
      %p208 = scmp.lt.s32.totalorder %s15, 1
      %s209 = scalar_select %p208, %s15, 1
      %s210 = smul.addr %s209, 8
      %s211 = smul.addr %s210, 8
      %s212 = scalar_lea.vmem %s3, %s211
      %p213 = scmp.lt.s32.totalorder %s15, 1
      %s214 = scalar_select %p213, %s15, 1
      %s215 = smul.addr %s214, 8
      %s216 = smul.addr %s215, 8
      %s217 = scalar_lea.vmem %s4, %s216
      %v219 = vld [vmem:[%s207] sm:$0xff]
      %v220 = vld [vmem:[%s207 + $0x10] sm:$0xff]
      %v221 = vld [vmem:[%s207 + $0x20] sm:$0xff]
      %v222 = vld [vmem:[%s207 + $0x30] sm:$0xff]
      %v223 = vld [vmem:[%s207 + $0x40] sm:$0xff]
      %v224 = vld [vmem:[%s207 + $0x50] sm:$0xff]
      %v225 = vld [vmem:[%s207 + $0x60] sm:$0xff]
      %v226 = vld [vmem:[%s207 + $0x70] sm:$0xff]
      %v227 = vpack.c.bf16 %v220, %v219
      %v228 = vpack.c.bf16 %v222, %v221
      %v229 = vpack.c.bf16 %v224, %v223
      %v230 = vpack.c.bf16 %v226, %v225
      %v231 = vld [vmem:[%s1] sm:$0xf]
      %v232 = vld [vmem:[%s1 + $0x4] sm:$0xf]
      %v233 = vld [vmem:[%s207 + $0x1] sm:$0xff]
      %v234 = vld [vmem:[%s207 + $0x11] sm:$0xff]
      %v235 = vld [vmem:[%s207 + $0x21] sm:$0xff]
      %v236 = vld [vmem:[%s207 + $0x31] sm:$0xff]
      %v237 = vld [vmem:[%s207 + $0x41] sm:$0xff]
      %v238 = vld [vmem:[%s207 + $0x51] sm:$0xff]
      %v239 = vld [vmem:[%s207 + $0x61] sm:$0xff]
      %v240 = vld [vmem:[%s207 + $0x71] sm:$0xff]
      %v241 = vpack.c.bf16 %v234, %v233
      %v242 = vpack.c.bf16 %v236, %v235
      %v243 = vpack.c.bf16 %v238, %v237
      %v244 = vpack.c.bf16 %v240, %v239
      %s245 = scalar_lea.vmem %s1, 8
      %v246 = vld [vmem:[%s245] sm:$0xf]
      %v247 = vld [vmem:[%s245 + $0x4] sm:$0xf]
      %v250 = vunpack.c.l.b16 %v246
      %v251 = vunpack.c.l.b16 %v247
      %v252 = vpack.c.b16 %v251, %v250
      %vm254 = vcmask 130048
      %v256 = vsel %vm254, %v241, 0
      %v259 = vsel %vm254, %v242, 0
      %v262 = vsel %vm254, %v243, 0
      %v265 = vsel %vm254, %v244, 0
      %267 = vmatprep.subr.bf16.mxu0 0
      %268 = vmatpush1.bf16.msra.mxu0 0
      %269 = vmatprep.subr.bf16.mxu0 0
      %270 = vmatpush1.bf16.msra.mxu0 0
      %271 = vmatprep.subr.bf16.mxu0 0
      %272 = vmatpush1.bf16.msra.mxu0 0
      %273 = vmatprep.subr.bf16.mxu0 0
      %274 = vmatpush1.bf16.msra.mxu0 0
      %275 = vmatprep.subr.bf16.mxu0 0
      %276 = vmatpush1.bf16.msra.mxu0 0
      %277 = vmatprep.subr.bf16.mxu0 0
      %278 = vmatpush1.bf16.msra.mxu0 0
      %279 = vmatprep.subr.bf16.mxu0 0
      %280 = vmatpush1.bf16.msra.mxu0 0
      %281 = vmatprep.subr.bf16.mxu0 0
      %282 = vmatpush1.bf16.msra.mxu0 %v252
      %283 = vmatprep.subr.bf16.mxu0 0
      %284 = vmatpush2.bf16.msra.mxu0 0
      %285 = vmatprep.subr.bf16.mxu0 0
      %286 = vmatpush2.bf16.msra.mxu0 0
      %287 = vmatprep.subr.bf16.mxu0 0
      %288 = vmatpush2.bf16.msra.mxu0 0
      %289 = vmatprep.subr.bf16.mxu0 0
      %290 = vmatpush2.bf16.msra.mxu0 0
      %291 = vmatprep.subr.bf16.mxu0 0
      %292 = vmatpush2.bf16.msra.mxu0 0
      %293 = vmatprep.subr.bf16.mxu0 0
      %294 = vmatpush2.bf16.msra.mxu0 0
      %295 = vmatprep.subr.bf16.mxu0 0
      %296 = vmatpush2.bf16.msra.mxu0 0
      %297 = vmatprep.subr.bf16.mxu0 0
      %298 = vmatpush2.bf16.msra.mxu0 0
      %299 = vmatprep.mubr.bf16.mxu0 0
      %300 = vmatmul.mubr.bf16.gmra.mxu0 %v256
      %v301 = vpop.f32.mrf.mxu0
      %v302 = vadd.f32 0.0, %v301
      %v303 = vpop.f32.mrf.mxu0
      %v304 = vpop.f32.mrf.mxu0
      %v305 = vadd.f32 0.0, %v304
      %v306 = vpop.f32.mrf.mxu0
      %307 = vmatprep.mubr.bf16.mxu0 0
      %308 = vmatmul.mubr.bf16.gmra.mxu0 %v259
      %v309 = vpop.f32.mrf.mxu0
      %v310 = vadd.f32 0.0, %v309
      %v311 = vpop.f32.mrf.mxu0
      %v312 = vpop.f32.mrf.mxu0
      %v313 = vadd.f32 0.0, %v312
      %v314 = vpop.f32.mrf.mxu0
      %315 = vmatprep.mubr.bf16.mxu0 0
      %316 = vmatmul.mubr.bf16.gmra.mxu0 %v262
      %v317 = vpop.f32.mrf.mxu0
      %v318 = vadd.f32 0.0, %v317
      %v319 = vpop.f32.mrf.mxu0
      %v320 = vpop.f32.mrf.mxu0
      %v321 = vadd.f32 0.0, %v320
      %v322 = vpop.f32.mrf.mxu0
      %323 = vmatprep.mubr.bf16.mxu0 0
      %324 = vmatmul.mubr.bf16.gmra.mxu0 %v265
      %v325 = vpop.f32.mrf.mxu0
      %v326 = vadd.f32 0.0, %v325
      %v327 = vpop.f32.mrf.mxu0
      %v328 = vpop.f32.mrf.mxu0
      %v329 = vadd.f32 0.0, %v328
      %v330 = vpop.f32.mrf.mxu0
      %331 = vdwg.mxu0
      %v334 = vunpack.c.l.b16 %v231
      %v335 = vunpack.c.l.b16 %v232
      %v336 = vpack.c.b16 %v335, %v334
      %v339 = vsel %vm254, %v227, 0
      %v342 = vsel %vm254, %v228, 0
      %v345 = vsel %vm254, %v229, 0
      %v348 = vsel %vm254, %v230, 0
      %350 = vmatprep.subr.bf16.mxu0 0
      %351 = vmatpush1.bf16.msra.mxu0 0
      %352 = vmatprep.subr.bf16.mxu0 0
      %353 = vmatpush1.bf16.msra.mxu0 0
      %354 = vmatprep.subr.bf16.mxu0 0
      %355 = vmatpush1.bf16.msra.mxu0 0
      %356 = vmatprep.subr.bf16.mxu0 0
      %357 = vmatpush1.bf16.msra.mxu0 0
      %358 = vmatprep.subr.bf16.mxu0 0
      %359 = vmatpush1.bf16.msra.mxu0 0
      %360 = vmatprep.subr.bf16.mxu0 0
      %361 = vmatpush1.bf16.msra.mxu0 0
      %362 = vmatprep.subr.bf16.mxu0 0
      %363 = vmatpush1.bf16.msra.mxu0 0
      %364 = vmatprep.subr.bf16.mxu0 0
      %365 = vmatpush1.bf16.msra.mxu0 %v336
      %366 = vmatprep.subr.bf16.mxu0 0
      %367 = vmatpush2.bf16.msra.mxu0 0
      %368 = vmatprep.subr.bf16.mxu0 0
      %369 = vmatpush2.bf16.msra.mxu0 0
      %370 = vmatprep.subr.bf16.mxu0 0
      %371 = vmatpush2.bf16.msra.mxu0 0
      %372 = vmatprep.subr.bf16.mxu0 0
      %373 = vmatpush2.bf16.msra.mxu0 0
      %374 = vmatprep.subr.bf16.mxu0 0
      %375 = vmatpush2.bf16.msra.mxu0 0
      %376 = vmatprep.subr.bf16.mxu0 0
      %377 = vmatpush2.bf16.msra.mxu0 0
      %378 = vmatprep.subr.bf16.mxu0 0
      %379 = vmatpush2.bf16.msra.mxu0 0
      %380 = vmatprep.subr.bf16.mxu0 0
      %381 = vmatpush2.bf16.msra.mxu0 0
      %382 = vmatprep.mubr.bf16.mxu0 0
      %383 = vmatmul.mubr.bf16.gmra.mxu0 %v339
      %v384 = vpop.f32.mrf.mxu0
      %v385 = vadd.f32 %v302, %v384
      %v386 = vpop.f32.mrf.mxu0
      %v387 = vpop.f32.mrf.mxu0
      %v388 = vadd.f32 %v305, %v387
      %v389 = vpop.f32.mrf.mxu0
      %390 = vmatprep.mubr.bf16.mxu0 0
      %391 = vmatmul.mubr.bf16.gmra.mxu0 %v342
      %v392 = vpop.f32.mrf.mxu0
      %v393 = vadd.f32 %v310, %v392
      %v394 = vpop.f32.mrf.mxu0
      %v395 = vpop.f32.mrf.mxu0
      %v396 = vadd.f32 %v313, %v395
      %v397 = vpop.f32.mrf.mxu0
      %398 = vmatprep.mubr.bf16.mxu0 0
      %399 = vmatmul.mubr.bf16.gmra.mxu0 %v345
      %v400 = vpop.f32.mrf.mxu0
      %v401 = vadd.f32 %v318, %v400
      %v402 = vpop.f32.mrf.mxu0
      %v403 = vpop.f32.mrf.mxu0
      %v404 = vadd.f32 %v321, %v403
      %v405 = vpop.f32.mrf.mxu0
      %406 = vmatprep.mubr.bf16.mxu0 0
      %407 = vmatmul.mubr.bf16.gmra.mxu0 %v348
      %v408 = vpop.f32.mrf.mxu0
      %v409 = vadd.f32 %v326, %v408
      %v410 = vpop.f32.mrf.mxu0
      %v411 = vpop.f32.mrf.mxu0
      %v412 = vadd.f32 %v329, %v411
      %v413 = vpop.f32.mrf.mxu0
      %414 = vdwg.mxu0
      %v415 = vld [vmem:[%s207 + $0x2] sm:$0xff]
      %v416 = vld [vmem:[%s207 + $0x12] sm:$0xff]
      %v417 = vld [vmem:[%s207 + $0x22] sm:$0xff]
      %v418 = vld [vmem:[%s207 + $0x32] sm:$0xff]
      %v419 = vld [vmem:[%s207 + $0x42] sm:$0xff]
      %v420 = vld [vmem:[%s207 + $0x52] sm:$0xff]
      %v421 = vld [vmem:[%s207 + $0x62] sm:$0xff]
      %v422 = vld [vmem:[%s207 + $0x72] sm:$0xff]
      %v423 = vpack.c.bf16 %v416, %v415
      %v424 = vpack.c.bf16 %v418, %v417
      %v425 = vpack.c.bf16 %v420, %v419
      %v426 = vpack.c.bf16 %v422, %v421
      %s427 = scalar_lea.vmem %s1, 16
      %v428 = vld [vmem:[%s427] sm:$0xf]
      %v429 = vld [vmem:[%s427 + $0x4] sm:$0xf]
      %v432 = vunpack.c.l.b16 %v428
      %v433 = vunpack.c.l.b16 %v429
      %v434 = vpack.c.b16 %v433, %v432
      %v437 = vsel %vm254, %v423, 0
      %v440 = vsel %vm254, %v424, 0
      %v443 = vsel %vm254, %v425, 0
      %v446 = vsel %vm254, %v426, 0
      %448 = vmatprep.subr.bf16.mxu0 0
      %449 = vmatpush1.bf16.msra.mxu0 0
      %450 = vmatprep.subr.bf16.mxu0 0
      %451 = vmatpush1.bf16.msra.mxu0 0
      %452 = vmatprep.subr.bf16.mxu0 0
      %453 = vmatpush1.bf16.msra.mxu0 0
      %454 = vmatprep.subr.bf16.mxu0 0
      %455 = vmatpush1.bf16.msra.mxu0 0
      %456 = vmatprep.subr.bf16.mxu0 0
      %457 = vmatpush1.bf16.msra.mxu0 0
      %458 = vmatprep.subr.bf16.mxu0 0
      %459 = vmatpush1.bf16.msra.mxu0 0
      %460 = vmatprep.subr.bf16.mxu0 0
      %461 = vmatpush1.bf16.msra.mxu0 0
      %462 = vmatprep.subr.bf16.mxu0 0
      %463 = vmatpush1.bf16.msra.mxu0 %v434
      %464 = vmatprep.subr.bf16.mxu0 0
      %465 = vmatpush2.bf16.msra.mxu0 0
      %466 = vmatprep.subr.bf16.mxu0 0
      %467 = vmatpush2.bf16.msra.mxu0 0
      %468 = vmatprep.subr.bf16.mxu0 0
      %469 = vmatpush2.bf16.msra.mxu0 0
      %470 = vmatprep.subr.bf16.mxu0 0
      %471 = vmatpush2.bf16.msra.mxu0 0
      %472 = vmatprep.subr.bf16.mxu0 0
      %473 = vmatpush2.bf16.msra.mxu0 0
      %474 = vmatprep.subr.bf16.mxu0 0
      %475 = vmatpush2.bf16.msra.mxu0 0
      %476 = vmatprep.subr.bf16.mxu0 0
      %477 = vmatpush2.bf16.msra.mxu0 0
      %478 = vmatprep.subr.bf16.mxu0 0
      %479 = vmatpush2.bf16.msra.mxu0 0
      %480 = vmatprep.mubr.bf16.mxu0 0
      %481 = vmatmul.mubr.bf16.gmra.mxu0 %v437
      %v482 = vpop.f32.mrf.mxu0
      %v483 = vadd.f32 0.0, %v482
      %v484 = vpop.f32.mrf.mxu0
      %v485 = vpop.f32.mrf.mxu0
      %v486 = vadd.f32 0.0, %v485
      %v487 = vpop.f32.mrf.mxu0
      %488 = vmatprep.mubr.bf16.mxu0 0
      %489 = vmatmul.mubr.bf16.gmra.mxu0 %v440
      %v490 = vpop.f32.mrf.mxu0
      %v491 = vadd.f32 0.0, %v490
      %v492 = vpop.f32.mrf.mxu0
      %v493 = vpop.f32.mrf.mxu0
      %v494 = vadd.f32 0.0, %v493
      %v495 = vpop.f32.mrf.mxu0
      %496 = vmatprep.mubr.bf16.mxu0 0
      %497 = vmatmul.mubr.bf16.gmra.mxu0 %v443
      %v498 = vpop.f32.mrf.mxu0
      %v499 = vadd.f32 0.0, %v498
      %v500 = vpop.f32.mrf.mxu0
      %v501 = vpop.f32.mrf.mxu0
      %v502 = vadd.f32 0.0, %v501
      %v503 = vpop.f32.mrf.mxu0
      %504 = vmatprep.mubr.bf16.mxu0 0
      %505 = vmatmul.mubr.bf16.gmra.mxu0 %v446
      %v506 = vpop.f32.mrf.mxu0
      %v507 = vadd.f32 0.0, %v506
      %v508 = vpop.f32.mrf.mxu0
      %v509 = vpop.f32.mrf.mxu0
      %v510 = vadd.f32 0.0, %v509
      %v511 = vpop.f32.mrf.mxu0
      %512 = vdwg.mxu0
      %v513 = vadd.f32 %v385, %v483
      %v514 = vadd.f32 %v388, %v486
      %v515 = vadd.f32 %v393, %v491
      %v516 = vadd.f32 %v396, %v494
      %v517 = vadd.f32 %v401, %v499
      %v518 = vadd.f32 %v404, %v502
      %v519 = vadd.f32 %v409, %v507
      %v520 = vadd.f32 %v412, %v510
      %s521 = scalar_lea.vmem %s207, 16
      %v522 = vld [vmem:[%s521] sm:$0xff]
      %v523 = vld [vmem:[%s521 + $0x10] sm:$0xff]
      %v524 = vld [vmem:[%s521 + $0x20] sm:$0xff]
      %v525 = vld [vmem:[%s521 + $0x30] sm:$0xff]
      %v526 = vld [vmem:[%s521 + $0x40] sm:$0xff]
      %v527 = vld [vmem:[%s521 + $0x50] sm:$0xff]
      %v528 = vld [vmem:[%s521 + $0x60] sm:$0xff]
      %v529 = vld [vmem:[%s521 + $0x70] sm:$0xff]
      %v530 = vpack.c.bf16 %v523, %v522
      %v531 = vpack.c.bf16 %v525, %v524
      %v532 = vpack.c.bf16 %v527, %v526
      %v533 = vpack.c.bf16 %v529, %v528
      %s534 = scalar_lea.vmem %s1, 24
      %v535 = vld [vmem:[%s534] sm:$0xf]
      %v536 = vld [vmem:[%s534 + $0x4] sm:$0xf]
      %v539 = vunpack.c.l.b16 %v535
      %v540 = vunpack.c.l.b16 %v536
      %v541 = vpack.c.b16 %v540, %v539
      %v544 = vsel %vm254, %v530, 0
      %v547 = vsel %vm254, %v531, 0
      %v550 = vsel %vm254, %v532, 0
      %v553 = vsel %vm254, %v533, 0
      %555 = vmatprep.subr.bf16.mxu0 0
      %556 = vmatpush1.bf16.msra.mxu0 0
      %557 = vmatprep.subr.bf16.mxu0 0
      %558 = vmatpush1.bf16.msra.mxu0 0
      %559 = vmatprep.subr.bf16.mxu0 0
      %560 = vmatpush1.bf16.msra.mxu0 0
      %561 = vmatprep.subr.bf16.mxu0 0
      %562 = vmatpush1.bf16.msra.mxu0 0
      %563 = vmatprep.subr.bf16.mxu0 0
      %564 = vmatpush1.bf16.msra.mxu0 0
      %565 = vmatprep.subr.bf16.mxu0 0
      %566 = vmatpush1.bf16.msra.mxu0 0
      %567 = vmatprep.subr.bf16.mxu0 0
      %568 = vmatpush1.bf16.msra.mxu0 0
      %569 = vmatprep.subr.bf16.mxu0 0
      %570 = vmatpush1.bf16.msra.mxu0 %v541
      %571 = vmatprep.subr.bf16.mxu0 0
      %572 = vmatpush2.bf16.msra.mxu0 0
      %573 = vmatprep.subr.bf16.mxu0 0
      %574 = vmatpush2.bf16.msra.mxu0 0
      %575 = vmatprep.subr.bf16.mxu0 0
      %576 = vmatpush2.bf16.msra.mxu0 0
      %577 = vmatprep.subr.bf16.mxu0 0
      %578 = vmatpush2.bf16.msra.mxu0 0
      %579 = vmatprep.subr.bf16.mxu0 0
      %580 = vmatpush2.bf16.msra.mxu0 0
      %581 = vmatprep.subr.bf16.mxu0 0
      %582 = vmatpush2.bf16.msra.mxu0 0
      %583 = vmatprep.subr.bf16.mxu0 0
      %584 = vmatpush2.bf16.msra.mxu0 0
      %585 = vmatprep.subr.bf16.mxu0 0
      %586 = vmatpush2.bf16.msra.mxu0 0
      %587 = vmatprep.mubr.bf16.mxu0 0
      %588 = vmatmul.mubr.bf16.gmra.mxu0 %v544
      %v589 = vpop.f32.mrf.mxu0
      %v590 = vadd.f32 0.0, %v589
      %v591 = vpop.f32.mrf.mxu0
      %v592 = vpop.f32.mrf.mxu0
      %v593 = vadd.f32 0.0, %v592
      %v594 = vpop.f32.mrf.mxu0
      %595 = vmatprep.mubr.bf16.mxu0 0
      %596 = vmatmul.mubr.bf16.gmra.mxu0 %v547
      %v597 = vpop.f32.mrf.mxu0
      %v598 = vadd.f32 0.0, %v597
      %v599 = vpop.f32.mrf.mxu0
      %v600 = vpop.f32.mrf.mxu0
      %v601 = vadd.f32 0.0, %v600
      %v602 = vpop.f32.mrf.mxu0
      %603 = vmatprep.mubr.bf16.mxu0 0
      %604 = vmatmul.mubr.bf16.gmra.mxu0 %v550
      %v605 = vpop.f32.mrf.mxu0
      %v606 = vadd.f32 0.0, %v605
      %v607 = vpop.f32.mrf.mxu0
      %v608 = vpop.f32.mrf.mxu0
      %v609 = vadd.f32 0.0, %v608
      %v610 = vpop.f32.mrf.mxu0
      %611 = vmatprep.mubr.bf16.mxu0 0
      %612 = vmatmul.mubr.bf16.gmra.mxu0 %v553
      %v613 = vpop.f32.mrf.mxu0
      %v614 = vadd.f32 0.0, %v613
      %v615 = vpop.f32.mrf.mxu0
      %v616 = vpop.f32.mrf.mxu0
      %v617 = vadd.f32 0.0, %v616
      %v618 = vpop.f32.mrf.mxu0
      %619 = vdwg.mxu0
      %v620 = vadd.f32 %v513, %v590
      %v621 = vadd.f32 %v514, %v593
      %v622 = vadd.f32 %v515, %v598
      %v623 = vadd.f32 %v516, %v601
      %v624 = vadd.f32 %v517, %v606
      %v625 = vadd.f32 %v518, %v609
      %v626 = vadd.f32 %v519, %v614
      %v627 = vadd.f32 %v520, %v617
      %v628 = vld [vmem:[%s521 + $0x1] sm:$0xff]
      %v629 = vld [vmem:[%s521 + $0x11] sm:$0xff]
      %v630 = vld [vmem:[%s521 + $0x21] sm:$0xff]
      %v631 = vld [vmem:[%s521 + $0x31] sm:$0xff]
      %v632 = vld [vmem:[%s521 + $0x41] sm:$0xff]
      %v633 = vld [vmem:[%s521 + $0x51] sm:$0xff]
      %v634 = vld [vmem:[%s521 + $0x61] sm:$0xff]
      %v635 = vld [vmem:[%s521 + $0x71] sm:$0xff]
      %v636 = vpack.c.bf16 %v629, %v628
      %v637 = vpack.c.bf16 %v631, %v630
      %v638 = vpack.c.bf16 %v633, %v632
      %v639 = vpack.c.bf16 %v635, %v634
      %s640 = scalar_lea.vmem %s1, 32
      %v641 = vld [vmem:[%s640] sm:$0xf]
      %v642 = vld [vmem:[%s640 + $0x4] sm:$0xf]
      %v645 = vunpack.c.l.b16 %v641
      %v646 = vunpack.c.l.b16 %v642
      %v647 = vpack.c.b16 %v646, %v645
      %v650 = vsel %vm254, %v636, 0
      %v653 = vsel %vm254, %v637, 0
      %v656 = vsel %vm254, %v638, 0
      %v659 = vsel %vm254, %v639, 0
      %661 = vmatprep.subr.bf16.mxu0 0
      %662 = vmatpush1.bf16.msra.mxu0 0
      %663 = vmatprep.subr.bf16.mxu0 0
      %664 = vmatpush1.bf16.msra.mxu0 0
      %665 = vmatprep.subr.bf16.mxu0 0
      %666 = vmatpush1.bf16.msra.mxu0 0
      %667 = vmatprep.subr.bf16.mxu0 0
      %668 = vmatpush1.bf16.msra.mxu0 0
      %669 = vmatprep.subr.bf16.mxu0 0
      %670 = vmatpush1.bf16.msra.mxu0 0
      %671 = vmatprep.subr.bf16.mxu0 0
      %672 = vmatpush1.bf16.msra.mxu0 0
      %673 = vmatprep.subr.bf16.mxu0 0
      %674 = vmatpush1.bf16.msra.mxu0 0
      %675 = vmatprep.subr.bf16.mxu0 0
      %676 = vmatpush1.bf16.msra.mxu0 %v647
      %677 = vmatprep.subr.bf16.mxu0 0
      %678 = vmatpush2.bf16.msra.mxu0 0
      %679 = vmatprep.subr.bf16.mxu0 0
      %680 = vmatpush2.bf16.msra.mxu0 0
      %681 = vmatprep.subr.bf16.mxu0 0
      %682 = vmatpush2.bf16.msra.mxu0 0
      %683 = vmatprep.subr.bf16.mxu0 0
      %684 = vmatpush2.bf16.msra.mxu0 0
      %685 = vmatprep.subr.bf16.mxu0 0
      %686 = vmatpush2.bf16.msra.mxu0 0
      %687 = vmatprep.subr.bf16.mxu0 0
      %688 = vmatpush2.bf16.msra.mxu0 0
      %689 = vmatprep.subr.bf16.mxu0 0
      %690 = vmatpush2.bf16.msra.mxu0 0
      %691 = vmatprep.subr.bf16.mxu0 0
      %692 = vmatpush2.bf16.msra.mxu0 0
      %693 = vmatprep.mubr.bf16.mxu0 0
      %694 = vmatmul.mubr.bf16.gmra.mxu0 %v650
      %v695 = vpop.f32.mrf.mxu0
      %v696 = vadd.f32 0.0, %v695
      %v697 = vpop.f32.mrf.mxu0
      %v698 = vpop.f32.mrf.mxu0
      %v699 = vadd.f32 0.0, %v698
      %v700 = vpop.f32.mrf.mxu0
      %701 = vmatprep.mubr.bf16.mxu0 0
      %702 = vmatmul.mubr.bf16.gmra.mxu0 %v653
      %v703 = vpop.f32.mrf.mxu0
      %v704 = vadd.f32 0.0, %v703
      %v705 = vpop.f32.mrf.mxu0
      %v706 = vpop.f32.mrf.mxu0
      %v707 = vadd.f32 0.0, %v706
      %v708 = vpop.f32.mrf.mxu0
      %709 = vmatprep.mubr.bf16.mxu0 0
      %710 = vmatmul.mubr.bf16.gmra.mxu0 %v656
      %v711 = vpop.f32.mrf.mxu0
      %v712 = vadd.f32 0.0, %v711
      %v713 = vpop.f32.mrf.mxu0
      %v714 = vpop.f32.mrf.mxu0
      %v715 = vadd.f32 0.0, %v714
      %v716 = vpop.f32.mrf.mxu0
      %717 = vmatprep.mubr.bf16.mxu0 0
      %718 = vmatmul.mubr.bf16.gmra.mxu0 %v659
      %v719 = vpop.f32.mrf.mxu0
      %v720 = vadd.f32 0.0, %v719
      %v721 = vpop.f32.mrf.mxu0
      %v722 = vpop.f32.mrf.mxu0
      %v723 = vadd.f32 0.0, %v722
      %v724 = vpop.f32.mrf.mxu0
      %725 = vdwg.mxu0
      %v726 = vadd.f32 %v620, %v696
      %v727 = vadd.f32 %v621, %v699
      %v728 = vadd.f32 %v622, %v704
      %v729 = vadd.f32 %v623, %v707
      %v730 = vadd.f32 %v624, %v712
      %v731 = vadd.f32 %v625, %v715
      %v732 = vadd.f32 %v626, %v720
      %v733 = vadd.f32 %v627, %v723
      %v734 = vld [vmem:[%s521 + $0x2] sm:$0xff]
      %v735 = vld [vmem:[%s521 + $0x12] sm:$0xff]
      %v736 = vld [vmem:[%s521 + $0x22] sm:$0xff]
      %v737 = vld [vmem:[%s521 + $0x32] sm:$0xff]
      %v738 = vld [vmem:[%s521 + $0x42] sm:$0xff]
      %v739 = vld [vmem:[%s521 + $0x52] sm:$0xff]
      %v740 = vld [vmem:[%s521 + $0x62] sm:$0xff]
      %v741 = vld [vmem:[%s521 + $0x72] sm:$0xff]
      %v742 = vpack.c.bf16 %v735, %v734
      %v743 = vpack.c.bf16 %v737, %v736
      %v744 = vpack.c.bf16 %v739, %v738
      %v745 = vpack.c.bf16 %v741, %v740
      %s746 = scalar_lea.vmem %s1, 40
      %v747 = vld [vmem:[%s746] sm:$0xf]
      %v748 = vld [vmem:[%s746 + $0x4] sm:$0xf]
      %v751 = vunpack.c.l.b16 %v747
      %v752 = vunpack.c.l.b16 %v748
      %v753 = vpack.c.b16 %v752, %v751
      %v756 = vsel %vm254, %v742, 0
      %v759 = vsel %vm254, %v743, 0
      %v762 = vsel %vm254, %v744, 0
      %v765 = vsel %vm254, %v745, 0
      %767 = vmatprep.subr.bf16.mxu0 0
      %768 = vmatpush1.bf16.msra.mxu0 0
      %769 = vmatprep.subr.bf16.mxu0 0
      %770 = vmatpush1.bf16.msra.mxu0 0
      %771 = vmatprep.subr.bf16.mxu0 0
      %772 = vmatpush1.bf16.msra.mxu0 0
      %773 = vmatprep.subr.bf16.mxu0 0
      %774 = vmatpush1.bf16.msra.mxu0 0
      %775 = vmatprep.subr.bf16.mxu0 0
      %776 = vmatpush1.bf16.msra.mxu0 0
      %777 = vmatprep.subr.bf16.mxu0 0
      %778 = vmatpush1.bf16.msra.mxu0 0
      %779 = vmatprep.subr.bf16.mxu0 0
      %780 = vmatpush1.bf16.msra.mxu0 0
      %781 = vmatprep.subr.bf16.mxu0 0
      %782 = vmatpush1.bf16.msra.mxu0 %v753
      %783 = vmatprep.subr.bf16.mxu0 0
      %784 = vmatpush2.bf16.msra.mxu0 0
      %785 = vmatprep.subr.bf16.mxu0 0
      %786 = vmatpush2.bf16.msra.mxu0 0
      %787 = vmatprep.subr.bf16.mxu0 0
      %788 = vmatpush2.bf16.msra.mxu0 0
      %789 = vmatprep.subr.bf16.mxu0 0
      %790 = vmatpush2.bf16.msra.mxu0 0
      %791 = vmatprep.subr.bf16.mxu0 0
      %792 = vmatpush2.bf16.msra.mxu0 0
      %793 = vmatprep.subr.bf16.mxu0 0
      %794 = vmatpush2.bf16.msra.mxu0 0
      %795 = vmatprep.subr.bf16.mxu0 0
      %796 = vmatpush2.bf16.msra.mxu0 0
      %797 = vmatprep.subr.bf16.mxu0 0
      %798 = vmatpush2.bf16.msra.mxu0 0
      %799 = vmatprep.mubr.bf16.mxu0 0
      %800 = vmatmul.mubr.bf16.gmra.mxu0 %v756
      %v801 = vpop.f32.mrf.mxu0
      %v802 = vadd.f32 0.0, %v801
      %v803 = vpop.f32.mrf.mxu0
      %v804 = vpop.f32.mrf.mxu0
      %v805 = vadd.f32 0.0, %v804
      %v806 = vpop.f32.mrf.mxu0
      %807 = vmatprep.mubr.bf16.mxu0 0
      %808 = vmatmul.mubr.bf16.gmra.mxu0 %v759
      %v809 = vpop.f32.mrf.mxu0
      %v810 = vadd.f32 0.0, %v809
      %v811 = vpop.f32.mrf.mxu0
      %v812 = vpop.f32.mrf.mxu0
      %v813 = vadd.f32 0.0, %v812
      %v814 = vpop.f32.mrf.mxu0
      %815 = vmatprep.mubr.bf16.mxu0 0
      %816 = vmatmul.mubr.bf16.gmra.mxu0 %v762
      %v817 = vpop.f32.mrf.mxu0
      %v818 = vadd.f32 0.0, %v817
      %v819 = vpop.f32.mrf.mxu0
      %v820 = vpop.f32.mrf.mxu0
      %v821 = vadd.f32 0.0, %v820
      %v822 = vpop.f32.mrf.mxu0
      %823 = vmatprep.mubr.bf16.mxu0 0
      %824 = vmatmul.mubr.bf16.gmra.mxu0 %v765
      %v825 = vpop.f32.mrf.mxu0
      %v826 = vadd.f32 0.0, %v825
      %v827 = vpop.f32.mrf.mxu0
      %v828 = vpop.f32.mrf.mxu0
      %v829 = vadd.f32 0.0, %v828
      %v830 = vpop.f32.mrf.mxu0
      %831 = vdwg.mxu0
      %v832 = vadd.f32 %v726, %v802
      %v833 = vadd.f32 %v727, %v805
      %v834 = vadd.f32 %v728, %v810
      %v835 = vadd.f32 %v729, %v813
      %v836 = vadd.f32 %v730, %v818
      %v837 = vadd.f32 %v731, %v821
      %v838 = vadd.f32 %v732, %v826
      %v839 = vadd.f32 %v733, %v829
      %s840 = scalar_lea.vmem %s207, 32
      %v841 = vld [vmem:[%s840] sm:$0xff]
      %v842 = vld [vmem:[%s840 + $0x10] sm:$0xff]
      %v843 = vld [vmem:[%s840 + $0x20] sm:$0xff]
      %v844 = vld [vmem:[%s840 + $0x30] sm:$0xff]
      %v845 = vld [vmem:[%s840 + $0x40] sm:$0xff]
      %v846 = vld [vmem:[%s840 + $0x50] sm:$0xff]
      %v847 = vld [vmem:[%s840 + $0x60] sm:$0xff]
      %v848 = vld [vmem:[%s840 + $0x70] sm:$0xff]
      %v849 = vpack.c.bf16 %v842, %v841
      %v850 = vpack.c.bf16 %v844, %v843
      %v851 = vpack.c.bf16 %v846, %v845
      %v852 = vpack.c.bf16 %v848, %v847
      %s853 = scalar_lea.vmem %s1, 48
      %v854 = vld [vmem:[%s853] sm:$0xf]
      %v855 = vld [vmem:[%s853 + $0x4] sm:$0xf]
      %v858 = vunpack.c.l.b16 %v854
      %v859 = vunpack.c.l.b16 %v855
      %v860 = vpack.c.b16 %v859, %v858
      %v863 = vsel %vm254, %v849, 0
      %v866 = vsel %vm254, %v850, 0
      %v869 = vsel %vm254, %v851, 0
      %v872 = vsel %vm254, %v852, 0
      %874 = vmatprep.subr.bf16.mxu0 0
      %875 = vmatpush1.bf16.msra.mxu0 0
      %876 = vmatprep.subr.bf16.mxu0 0
      %877 = vmatpush1.bf16.msra.mxu0 0
      %878 = vmatprep.subr.bf16.mxu0 0
      %879 = vmatpush1.bf16.msra.mxu0 0
      %880 = vmatprep.subr.bf16.mxu0 0
      %881 = vmatpush1.bf16.msra.mxu0 0
      %882 = vmatprep.subr.bf16.mxu0 0
      %883 = vmatpush1.bf16.msra.mxu0 0
      %884 = vmatprep.subr.bf16.mxu0 0
      %885 = vmatpush1.bf16.msra.mxu0 0
      %886 = vmatprep.subr.bf16.mxu0 0
      %887 = vmatpush1.bf16.msra.mxu0 0
      %888 = vmatprep.subr.bf16.mxu0 0
      %889 = vmatpush1.bf16.msra.mxu0 %v860
      %890 = vmatprep.subr.bf16.mxu0 0
      %891 = vmatpush2.bf16.msra.mxu0 0
      %892 = vmatprep.subr.bf16.mxu0 0
      %893 = vmatpush2.bf16.msra.mxu0 0
      %894 = vmatprep.subr.bf16.mxu0 0
      %895 = vmatpush2.bf16.msra.mxu0 0
      %896 = vmatprep.subr.bf16.mxu0 0
      %897 = vmatpush2.bf16.msra.mxu0 0
      %898 = vmatprep.subr.bf16.mxu0 0
      %899 = vmatpush2.bf16.msra.mxu0 0
      %900 = vmatprep.subr.bf16.mxu0 0
      %901 = vmatpush2.bf16.msra.mxu0 0
      %902 = vmatprep.subr.bf16.mxu0 0
      %903 = vmatpush2.bf16.msra.mxu0 0
      %904 = vmatprep.subr.bf16.mxu0 0
      %905 = vmatpush2.bf16.msra.mxu0 0
      %906 = vmatprep.mubr.bf16.mxu0 0
      %907 = vmatmul.mubr.bf16.gmra.mxu0 %v863
      %v908 = vpop.f32.mrf.mxu0
      %v909 = vadd.f32 0.0, %v908
      %v910 = vpop.f32.mrf.mxu0
      %v911 = vpop.f32.mrf.mxu0
      %v912 = vadd.f32 0.0, %v911
      %v913 = vpop.f32.mrf.mxu0
      %914 = vmatprep.mubr.bf16.mxu0 0
      %915 = vmatmul.mubr.bf16.gmra.mxu0 %v866
      %v916 = vpop.f32.mrf.mxu0
      %v917 = vadd.f32 0.0, %v916
      %v918 = vpop.f32.mrf.mxu0
      %v919 = vpop.f32.mrf.mxu0
      %v920 = vadd.f32 0.0, %v919
      %v921 = vpop.f32.mrf.mxu0
      %922 = vmatprep.mubr.bf16.mxu0 0
      %923 = vmatmul.mubr.bf16.gmra.mxu0 %v869
      %v924 = vpop.f32.mrf.mxu0
      %v925 = vadd.f32 0.0, %v924
      %v926 = vpop.f32.mrf.mxu0
      %v927 = vpop.f32.mrf.mxu0
      %v928 = vadd.f32 0.0, %v927
      %v929 = vpop.f32.mrf.mxu0
      %930 = vmatprep.mubr.bf16.mxu0 0
      %931 = vmatmul.mubr.bf16.gmra.mxu0 %v872
      %v932 = vpop.f32.mrf.mxu0
      %v933 = vadd.f32 0.0, %v932
      %v934 = vpop.f32.mrf.mxu0
      %v935 = vpop.f32.mrf.mxu0
      %v936 = vadd.f32 0.0, %v935
      %v937 = vpop.f32.mrf.mxu0
      %938 = vdwg.mxu0
      %v939 = vadd.f32 %v832, %v909
      %v940 = vadd.f32 %v833, %v912
      %v941 = vadd.f32 %v834, %v917
      %v942 = vadd.f32 %v835, %v920
      %v943 = vadd.f32 %v836, %v925
      %v944 = vadd.f32 %v837, %v928
      %v945 = vadd.f32 %v838, %v933
      %v946 = vadd.f32 %v839, %v936
      %v947 = vld [vmem:[%s840 + $0x1] sm:$0xff]
      %v948 = vld [vmem:[%s840 + $0x11] sm:$0xff]
      %v949 = vld [vmem:[%s840 + $0x21] sm:$0xff]
      %v950 = vld [vmem:[%s840 + $0x31] sm:$0xff]
      %v951 = vld [vmem:[%s840 + $0x41] sm:$0xff]
      %v952 = vld [vmem:[%s840 + $0x51] sm:$0xff]
      %v953 = vld [vmem:[%s840 + $0x61] sm:$0xff]
      %v954 = vld [vmem:[%s840 + $0x71] sm:$0xff]
      %v955 = vpack.c.bf16 %v948, %v947
      %v956 = vpack.c.bf16 %v950, %v949
      %v957 = vpack.c.bf16 %v952, %v951
      %v958 = vpack.c.bf16 %v954, %v953
      %s959 = scalar_lea.vmem %s1, 56
      %v960 = vld [vmem:[%s959] sm:$0xf]
      %v961 = vld [vmem:[%s959 + $0x4] sm:$0xf]
      %v964 = vunpack.c.l.b16 %v960
      %v965 = vunpack.c.l.b16 %v961
      %v966 = vpack.c.b16 %v965, %v964
      %v969 = vsel %vm254, %v955, 0
      %v972 = vsel %vm254, %v956, 0
      %v975 = vsel %vm254, %v957, 0
      %v978 = vsel %vm254, %v958, 0
      %980 = vmatprep.subr.bf16.mxu0 0
      %981 = vmatpush1.bf16.msra.mxu0 0
      %982 = vmatprep.subr.bf16.mxu0 0
      %983 = vmatpush1.bf16.msra.mxu0 0
      %984 = vmatprep.subr.bf16.mxu0 0
      %985 = vmatpush1.bf16.msra.mxu0 0
      %986 = vmatprep.subr.bf16.mxu0 0
      %987 = vmatpush1.bf16.msra.mxu0 0
      %988 = vmatprep.subr.bf16.mxu0 0
      %989 = vmatpush1.bf16.msra.mxu0 0
      %990 = vmatprep.subr.bf16.mxu0 0
      %991 = vmatpush1.bf16.msra.mxu0 0
      %992 = vmatprep.subr.bf16.mxu0 0
      %993 = vmatpush1.bf16.msra.mxu0 0
      %994 = vmatprep.subr.bf16.mxu0 0
      %995 = vmatpush1.bf16.msra.mxu0 %v966
      %996 = vmatprep.subr.bf16.mxu0 0
      %997 = vmatpush2.bf16.msra.mxu0 0
      %998 = vmatprep.subr.bf16.mxu0 0
      %999 = vmatpush2.bf16.msra.mxu0 0
      %1000 = vmatprep.subr.bf16.mxu0 0
      %1001 = vmatpush2.bf16.msra.mxu0 0
      %1002 = vmatprep.subr.bf16.mxu0 0
      %1003 = vmatpush2.bf16.msra.mxu0 0
      %1004 = vmatprep.subr.bf16.mxu0 0
      %1005 = vmatpush2.bf16.msra.mxu0 0
      %1006 = vmatprep.subr.bf16.mxu0 0
      %1007 = vmatpush2.bf16.msra.mxu0 0
      %1008 = vmatprep.subr.bf16.mxu0 0
      %1009 = vmatpush2.bf16.msra.mxu0 0
      %1010 = vmatprep.subr.bf16.mxu0 0
      %1011 = vmatpush2.bf16.msra.mxu0 0
      %1012 = vmatprep.mubr.bf16.mxu0 0
      %1013 = vmatmul.mubr.bf16.gmra.mxu0 %v969
      %v1014 = vpop.f32.mrf.mxu0
      %v1015 = vadd.f32 0.0, %v1014
      %v1016 = vpop.f32.mrf.mxu0
      %v1017 = vpop.f32.mrf.mxu0
      %v1018 = vadd.f32 0.0, %v1017
      %v1019 = vpop.f32.mrf.mxu0
      %1020 = vmatprep.mubr.bf16.mxu0 0
      %1021 = vmatmul.mubr.bf16.gmra.mxu0 %v972
      %v1022 = vpop.f32.mrf.mxu0
      %v1023 = vadd.f32 0.0, %v1022
      %v1024 = vpop.f32.mrf.mxu0
      %v1025 = vpop.f32.mrf.mxu0
      %v1026 = vadd.f32 0.0, %v1025
      %v1027 = vpop.f32.mrf.mxu0
      %1028 = vmatprep.mubr.bf16.mxu0 0
      %1029 = vmatmul.mubr.bf16.gmra.mxu0 %v975
      %v1030 = vpop.f32.mrf.mxu0
      %v1031 = vadd.f32 0.0, %v1030
      %v1032 = vpop.f32.mrf.mxu0
      %v1033 = vpop.f32.mrf.mxu0
      %v1034 = vadd.f32 0.0, %v1033
      %v1035 = vpop.f32.mrf.mxu0
      %1036 = vmatprep.mubr.bf16.mxu0 0
      %1037 = vmatmul.mubr.bf16.gmra.mxu0 %v978
      %v1038 = vpop.f32.mrf.mxu0
      %v1039 = vadd.f32 0.0, %v1038
      %v1040 = vpop.f32.mrf.mxu0
      %v1041 = vpop.f32.mrf.mxu0
      %v1042 = vadd.f32 0.0, %v1041
      %v1043 = vpop.f32.mrf.mxu0
      %1044 = vdwg.mxu0
      %v1045 = vadd.f32 %v939, %v1015
      %v1046 = vadd.f32 %v940, %v1018
      %v1047 = vadd.f32 %v941, %v1023
      %v1048 = vadd.f32 %v942, %v1026
      %v1049 = vadd.f32 %v943, %v1031
      %v1050 = vadd.f32 %v944, %v1034
      %v1051 = vadd.f32 %v945, %v1039
      %v1052 = vadd.f32 %v946, %v1042
      %v1053 = vld [vmem:[%s840 + $0x2] sm:$0xff]
      %v1054 = vld [vmem:[%s840 + $0x12] sm:$0xff]
      %v1055 = vld [vmem:[%s840 + $0x22] sm:$0xff]
      %v1056 = vld [vmem:[%s840 + $0x32] sm:$0xff]
      %v1057 = vld [vmem:[%s840 + $0x42] sm:$0xff]
      %v1058 = vld [vmem:[%s840 + $0x52] sm:$0xff]
      %v1059 = vld [vmem:[%s840 + $0x62] sm:$0xff]
      %v1060 = vld [vmem:[%s840 + $0x72] sm:$0xff]
      %v1061 = vpack.c.bf16 %v1054, %v1053
      %v1062 = vpack.c.bf16 %v1056, %v1055
      %v1063 = vpack.c.bf16 %v1058, %v1057
      %v1064 = vpack.c.bf16 %v1060, %v1059
      %s1065 = scalar_lea.vmem %s1, 64
      %v1066 = vld [vmem:[%s1065] sm:$0xf]
      %v1067 = vld [vmem:[%s1065 + $0x4] sm:$0xf]
      %v1070 = vunpack.c.l.b16 %v1066
      %v1071 = vunpack.c.l.b16 %v1067
      %v1072 = vpack.c.b16 %v1071, %v1070
      %v1075 = vsel %vm254, %v1061, 0
      %v1078 = vsel %vm254, %v1062, 0
      %v1081 = vsel %vm254, %v1063, 0
      %v1084 = vsel %vm254, %v1064, 0
      %1086 = vmatprep.subr.bf16.mxu0 0
      %1087 = vmatpush1.bf16.msra.mxu0 0
      %1088 = vmatprep.subr.bf16.mxu0 0
      %1089 = vmatpush1.bf16.msra.mxu0 0
      %1090 = vmatprep.subr.bf16.mxu0 0
      %1091 = vmatpush1.bf16.msra.mxu0 0
      %1092 = vmatprep.subr.bf16.mxu0 0
      %1093 = vmatpush1.bf16.msra.mxu0 0
      %1094 = vmatprep.subr.bf16.mxu0 0
      %1095 = vmatpush1.bf16.msra.mxu0 0
      %1096 = vmatprep.subr.bf16.mxu0 0
      %1097 = vmatpush1.bf16.msra.mxu0 0
      %1098 = vmatprep.subr.bf16.mxu0 0
      %1099 = vmatpush1.bf16.msra.mxu0 0
      %1100 = vmatprep.subr.bf16.mxu0 0
      %1101 = vmatpush1.bf16.msra.mxu0 %v1072
      %1102 = vmatprep.subr.bf16.mxu0 0
      %1103 = vmatpush2.bf16.msra.mxu0 0
      %1104 = vmatprep.subr.bf16.mxu0 0
      %1105 = vmatpush2.bf16.msra.mxu0 0
      %1106 = vmatprep.subr.bf16.mxu0 0
      %1107 = vmatpush2.bf16.msra.mxu0 0
      %1108 = vmatprep.subr.bf16.mxu0 0
      %1109 = vmatpush2.bf16.msra.mxu0 0
      %1110 = vmatprep.subr.bf16.mxu0 0
      %1111 = vmatpush2.bf16.msra.mxu0 0
      %1112 = vmatprep.subr.bf16.mxu0 0
      %1113 = vmatpush2.bf16.msra.mxu0 0
      %1114 = vmatprep.subr.bf16.mxu0 0
      %1115 = vmatpush2.bf16.msra.mxu0 0
      %1116 = vmatprep.subr.bf16.mxu0 0
      %1117 = vmatpush2.bf16.msra.mxu0 0
      %1118 = vmatprep.mubr.bf16.mxu0 0
      %1119 = vmatmul.mubr.bf16.gmra.mxu0 %v1075
      %v1120 = vpop.f32.mrf.mxu0
      %v1121 = vadd.f32 0.0, %v1120
      %v1122 = vpop.f32.mrf.mxu0
      %v1123 = vpop.f32.mrf.mxu0
      %v1124 = vadd.f32 0.0, %v1123
      %v1125 = vpop.f32.mrf.mxu0
      %1126 = vmatprep.mubr.bf16.mxu0 0
      %1127 = vmatmul.mubr.bf16.gmra.mxu0 %v1078
      %v1128 = vpop.f32.mrf.mxu0
      %v1129 = vadd.f32 0.0, %v1128
      %v1130 = vpop.f32.mrf.mxu0
      %v1131 = vpop.f32.mrf.mxu0
      %v1132 = vadd.f32 0.0, %v1131
      %v1133 = vpop.f32.mrf.mxu0
      %1134 = vmatprep.mubr.bf16.mxu0 0
      %1135 = vmatmul.mubr.bf16.gmra.mxu0 %v1081
      %v1136 = vpop.f32.mrf.mxu0
      %v1137 = vadd.f32 0.0, %v1136
      %v1138 = vpop.f32.mrf.mxu0
      %v1139 = vpop.f32.mrf.mxu0
      %v1140 = vadd.f32 0.0, %v1139
      %v1141 = vpop.f32.mrf.mxu0
      %1142 = vmatprep.mubr.bf16.mxu0 0
      %1143 = vmatmul.mubr.bf16.gmra.mxu0 %v1084
      %v1144 = vpop.f32.mrf.mxu0
      %v1145 = vadd.f32 0.0, %v1144
      %v1146 = vpop.f32.mrf.mxu0
      %v1147 = vpop.f32.mrf.mxu0
      %v1148 = vadd.f32 0.0, %v1147
      %v1149 = vpop.f32.mrf.mxu0
      %1150 = vdwg.mxu0
      %v1151 = vadd.f32 %v1045, %v1121
      %v1152 = vadd.f32 %v1046, %v1124
      %v1153 = vadd.f32 %v1047, %v1129
      %v1154 = vadd.f32 %v1048, %v1132
      %v1155 = vadd.f32 %v1049, %v1137
      %v1156 = vadd.f32 %v1050, %v1140
      %v1157 = vadd.f32 %v1051, %v1145
      %v1158 = vadd.f32 %v1052, %v1148
      %v1159 = vld [vmem:[%s2] sm:$0x1]
      %v1161 = vlaneseq
      %v1162 = vshrl.u32 %v1161, 7
      %v1163 = vsub.s32 0, %v1162
      %v1164 = vrot.slane %v1159, %v1163
      %v1166 = vadd.f32 %v1151, %v1164
      %v1167 = vadd.f32 %v1152, %v1164
      %v1168 = vadd.f32 %v1153, %v1164
      %v1169 = vadd.f32 %v1154, %v1164
      %v1170 = vadd.f32 %v1155, %v1164
      %v1171 = vadd.f32 %v1156, %v1164
      %v1172 = vadd.f32 %v1157, %v1164
      %v1173 = vadd.f32 %v1158, %v1164
      %v1174 = vld [vmem:[%s212] sm:$0xff]
      %v1175 = vld [vmem:[%s212 + $0x8] sm:$0xff]
      %v1176 = vld [vmem:[%s212 + $0x10] sm:$0xff]
      %v1177 = vld [vmem:[%s212 + $0x18] sm:$0xff]
      %v1178 = vld [vmem:[%s212 + $0x20] sm:$0xff]
      %v1179 = vld [vmem:[%s212 + $0x28] sm:$0xff]
      %v1180 = vld [vmem:[%s212 + $0x30] sm:$0xff]
      %v1181 = vld [vmem:[%s212 + $0x38] sm:$0xff]
      %v1182 = vadd.f32 %v1166, %v1174
      %v1183 = vadd.f32 %v1167, %v1175
      %v1184 = vadd.f32 %v1168, %v1176
      %v1185 = vadd.f32 %v1169, %v1177
      %v1186 = vadd.f32 %v1170, %v1178
      %v1187 = vadd.f32 %v1171, %v1179
      %v1188 = vadd.f32 %v1172, %v1180
      %v1189 = vadd.f32 %v1173, %v1181
      %1190 = vst.msk [vmem:[%s217] sm:$0xff] %vm254, %v1182
      %1191 = vst.msk [vmem:[%s217 + $0x8] sm:$0xff] %vm254, %v1183
      %1192 = vst.msk [vmem:[%s217 + $0x10] sm:$0xff] %vm254, %v1184
      %1193 = vst.msk [vmem:[%s217 + $0x18] sm:$0xff] %vm254, %v1185
      %1194 = vst.msk [vmem:[%s217 + $0x20] sm:$0xff] %vm254, %v1186
      %1195 = vst.msk [vmem:[%s217 + $0x28] sm:$0xff] %vm254, %v1187
      %1196 = vst.msk [vmem:[%s217 + $0x30] sm:$0xff] %vm254, %v1188
      %1197 = vst.msk [vmem:[%s217 + $0x38] sm:$0xff] %vm254, %v1189
      %p1198 = scmp.lt.s32.totalorder %s15, 1
      %s1199 = scalar_select %p1198, %s15, 1
      %s1200 = smul.addr %s1199, 8
      %s1201 = smul.addr %s1200, 8
      %s1202 = scalar_lea.vmem %s4, %s1201
      // Predicated region
      $region37: #{encoder_forward.11} parent=35 // pred_check
        %p1203 = pneg %p127
      $region38: #{encoder_forward.11} parent=35 // pred_check_branch
        %1205 = sbr.rel (%p1203) target = $region40
      $region39: #{encoder_forward.11} parent=35 // pred_region
        _
      $region40: #{encoder_forward.11} parent=35 // pred_fallthru
        _
    $region36: #{encoder_forward.11} parent=5 // pred_fallthru
      _
    %p1206 = scmp.le.s32.totalorder 2, %s10
    // Predicated region
    $region41: #{encoder_forward.11} parent=5 // pred_check
      %p1207 = pneg %p1206
    $region42: #{encoder_forward.11} parent=5 // pred_check_branch
      %1209 = sbr.rel (%p1207) target = $region44
    $region43: #{encoder_forward.11} parent=5 // pred_region
      %s1210 = ssub.s32 %s10, 2
      // Predicated region
      $region45: #{encoder_forward.11} parent=43 // pred_check
        %p1211 = pneg %p133
      $region46: #{encoder_forward.11} parent=43 // pred_check_branch
        %1213 = sbr.rel (%p1211) target = $region48
      $region47: #{encoder_forward.11} parent=43 // pred_region
        %p1214 = scmp.lt.s32.totalorder %s16, 1
        %s1215 = scalar_select %p1214, %s16, 1
        %s1216 = smul.addr %s1215, 8
        %s1217 = smul.addr %s1216, 8
        %s1218 = scalar_lea.vmem %s4, %s1217
      $region48: #{encoder_forward.11} parent=43 // pred_fallthru
        _
    $region44: #{encoder_forward.11} parent=5 // pred_fallthru
      _
  $region6: #{encoder_forward.11} parent=0 // loop_footer
    %s14 = sadd.s32 1, %s10
  $region7: #{encoder_forward.11} parent=0 // loop_footer_branch
    %9 = sbr.rel target = $region3
  $region8: #{encoder_forward.11} parent=0 // loop_exit
    _

// kernel: encoder_forward.15
$region0: #{encoder_forward.15}
  #allocation0 [shape = 'u32[]', space=smem, size = 0x4, offset = 0x4, fixed_abs, tag = 'smem constant byte address 0x4 - core index']
  #allocation1 [shape = 'u32[144,128]{1,0:T(1,128)}', space=vmem, size = 0x12000, scoped, tag = 'internal scratch']
  %s0 = inlined_call_operand.vmem [shape: f32[2,4,4,32], index: 0, kind: input, shape index: {}]
  %s1 = inlined_call_operand.hbm [shape: f32[2,4,4,32], index: 1, kind: output, shape index: {}]
  %s2 = sld [smem:[#allocation0]]
  $region37: #{encoder_forward.15} parent=0
    _
  %s4 = ssub.s32 1, %s2
  %s5 = scalar_select 0, %s4, %s2
  $region1: #{encoder_forward.15} parent=0
    #allocation2 [shape = 'u8[16384]{0}', space=vmem, size = 0x4000, scoped, tag = 'output window, operand 0']
    #allocation3 [shape = 's32[2]{0}', space=sflag, size = 0x8, scoped, tag = 'scoped memory for encoder_forward.15']
    %6 = vsyncpa [#allocation3], 0
    %s7 = scalar_lea.sflag [#allocation3], 1
    %8 = vsyncpa %s7, 0
    loop: start=0, step=1, limit=4
    $region2: #{encoder_forward.15} parent=1 // loop_pre_header
      _
    $region3: #{encoder_forward.15} parent=1 // loop_header
      %s10 = sphi 0, %s14
      %p11 = scmp.ge.s32.totalorder %s10, 4
      %s20 = sphi 0, %s22
      %s23 = sphi 0, %s20
      %s24 = sphi 0, %s23
      %s40 = sphi 0, %s24
      %s46 = sphi 0, %s48
      %s49 = sphi 0, %s46
      %s50 = sphi 0, %s49
      %s66 = sphi 0, %s50
    $region4: #{encoder_forward.15} parent=1 // loop_header_branch
      %13 = sbr.rel (%p11) target = $region8
    $region5: #{encoder_forward.15} parent=1 // loop_body
      %s15 = ssub.s32 %s10, 1
      %s16 = ssub.s32 %s10, 2
      %s17 = sadd.s32 %s10, 1
      %s18 = ssub.s32 %s10, %s17
      %p19 = scmp.eq.s32.totalorder %s18, 0
      %s21 = sadd.s32 %s20, 1
      %s22 = scalar_select %p19, %s20, %s21
      %p25 = pneg %p19
      %p26 = scmp.eq.s32.totalorder %s10, 1
      %p27 = por %p25, %p26
      %p28 = scmp.ne.s32.totalorder %s20, %s23
      %p29 = scmp.eq.s32.totalorder %s10, 0
      %p30 = por %p28, %p29
      %p31 = scmp.ne.s32.totalorder %s20, %s23
      %p32 = scmp.eq.s32.totalorder %s15, 1
      %p33 = por %p31, %p32
      %p34 = scmp.ne.s32.totalorder %s23, %s24
      %p35 = scmp.eq.s32.totalorder %s15, 0
      %p36 = por %p34, %p35
      %p37 = scmp.ne.s32.totalorder %s23, %s24
      %p38 = scmp.eq.s32.totalorder %s16, 1
      %p39 = por %p37, %p38
      %p41 = scmp.ne.s32.totalorder %s24, %s40
      %p42 = scmp.eq.s32.totalorder %s16, 0
      %p43 = por %p41, %p42
      %s44 = ssub.s32 %s10, %s17
      %p45 = scmp.eq.s32.totalorder %s44, 0
      %s47 = sadd.s32 %s46, 1
      %s48 = scalar_select %p45, %s46, %s47
      %p51 = pneg %p45
      %p52 = scmp.eq.s32.totalorder %s10, 1
      %p53 = por %p51, %p52
      %p54 = scmp.ne.s32.totalorder %s46, %s49
      %p55 = scmp.eq.s32.totalorder %s10, 0
      %p56 = por %p54, %p55
      %p57 = scmp.ne.s32.totalorder %s46, %s49
      %p58 = scmp.eq.s32.totalorder %s15, 1
      %p59 = por %p57, %p58
      %p60 = scmp.ne.s32.totalorder %s49, %s50
      %p61 = scmp.eq.s32.totalorder %s15, 0
      %p62 = por %p60, %p61
      %p63 = scmp.ne.s32.totalorder %s49, %s50
      %p64 = scmp.eq.s32.totalorder %s16, 1
      %p65 = por %p63, %p64
      %p67 = scmp.ne.s32.totalorder %s50, %s66
      %p68 = scmp.eq.s32.totalorder %s16, 0
      %p69 = por %p67, %p68
      %p70 = scmp.le.s32.totalorder 1, %s10
      %p71 = scmp.lt.s32.totalorder %s10, 3
      %p72 = pnand %p70, %p71
      %p73 = pneg %p72
      // Predicated region
      $region9: #{encoder_forward.15} parent=5 // pred_check
        _
      $region10: #{encoder_forward.15} parent=5 // pred_check_branch
        %75 = sbr.rel (%p72) target = $region12
      $region11: #{encoder_forward.15} parent=5 // pred_region
        %s76 = ssub.s32 %s10, 1
      $region12: #{encoder_forward.15} parent=5 // pred_fallthru
        _
      %p77 = scmp.lt.s32.totalorder %s10, 2
      // Predicated region
      $region13: #{encoder_forward.15} parent=5 // pred_check
        %p78 = pneg %p77
      $region14: #{encoder_forward.15} parent=5 // pred_check_branch
        %80 = sbr.rel (%p78) target = $region16
      $region15: #{encoder_forward.15} parent=5 // pred_region
        // Predicated region
        $region17: #{encoder_forward.15} parent=15 // pred_check
          %p81 = pneg %p30
        $region18: #{encoder_forward.15} parent=15 // pred_check_branch
          %83 = sbr.rel (%p81) target = $region20
        $region19: #{encoder_forward.15} parent=15 // pred_region
          %p84 = scmp.lt.s32.totalorder %s10, 1
          %s85 = scalar_select %p84, %s10, 1
          %s86 = smul.addr %s85, 4
          %s87 = smul.addr %s86, 4
          %s88 = scalar_lea.vmem %s0, %s87
        $region20: #{encoder_forward.15} parent=15 // pred_fallthru
          _
      $region16: #{encoder_forward.15} parent=5 // pred_fallthru
        _
      %p89 = scmp.le.s32.totalorder 1, %s10
      %p90 = scmp.lt.s32.totalorder %s10, 3
      %p91 = pnand %p89, %p90
      %p92 = pneg %p91
      // Predicated region
      $region21: #{encoder_forward.15} parent=5 // pred_check
        _
      $region22: #{encoder_forward.15} parent=5 // pred_check_branch
        %94 = sbr.rel (%p91) target = $region24
      $region23: #{encoder_forward.15} parent=5 // pred_region
        %s95 = ssub.s32 %s10, 1
        %p96 = scmp.lt.s32.totalorder %s15, 1
        %s97 = scalar_select %p96, %s15, 1
        %s98 = smul.addr %s97, 4
        %s99 = smul.addr %s98, 4
        %s100 = scalar_lea.vmem %s0, %s99
        %p101 = pneg %p36
        %p102 = pneg %p33
        %p103 = pneg %p62
        %p104 = pneg %p59
        %s105 = sand.u32 %s49, 1
        %s106 = scalar_lea.sflag [#allocation3], %s105
        %s107 = sand.u32 %s49, 1
        %s108 = smul.addr %s107, 16
        %s109 = scalar_lea.vmem [#allocation2], %s108
        %p110 = scmp.lt.s32.totalorder %s15, 1
        %s111 = scalar_select %p110, %s15, 1
        %s112 = smul.addr %s111, 4
        %s113 = smul.addr %s112, 4
        %s114 = scalar_lea.vmem %s0, %s113
        %v115 = vld [vmem:[%s114] sm:$0xf]
        %v116 = vld [vmem:[%s114 + $0x4] sm:$0xf]
        %v117 = vld [vmem:[%s114 + $0x8] sm:$0xf]
        %v118 = vld [vmem:[%s114 + $0xc] sm:$0xf]
        %vm119 = vcmask 257024
        %v120 = vsel %vm119, %v115, 0.0
        %v121 = vsel %vm119, %v116, 0.0
        %v122 = vadd.f32 %v120, %v121
        %v123 = vsel %vm119, %v117, 0.0
        %v124 = vadd.f32 %v122, %v123
        %v125 = vsel %vm119, %v118, 0.0
        %v126 = vadd.f32 %v124, %v125
        %v127 = vrot.slane %v126, 4
        %v128 = vadd.f32 %v126, %v127
        %v129 = vrot.slane %v128, 2
        %v130 = vadd.f32 %v128, %v129
        %v131 = vrot.slane %v130, 1
        %v132 = vadd.f32 %v130, %v131
        %v133 = vrcp.pop 16.0
        %v134 = vmul.f32 %v132, %v133
        %v135 = vsub.f32 %v115, %v134
        %v136 = vsub.f32 %v116, %v134
        %v137 = vsub.f32 %v117, %v134
        %v138 = vsub.f32 %v118, %v134
        %v139 = vmul.f32 %v135, %v135
        %v140 = vmul.f32 %v136, %v136
        %v141 = vmul.f32 %v137, %v137
        %v142 = vmul.f32 %v138, %v138
        %v143 = vsel %vm119, %v139, 0.0
        %v144 = vsel %vm119, %v140, 0.0
        %v145 = vadd.f32 %v143, %v144
        %v146 = vsel %vm119, %v141, 0.0
        %v147 = vadd.f32 %v145, %v146
        %v148 = vsel %vm119, %v142, 0.0
        %v149 = vadd.f32 %v147, %v148
        %v150 = vrot.slane %v149, 4
        %v151 = vadd.f32 %v149, %v150
        %v152 = vrot.slane %v151, 2
        %v153 = vadd.f32 %v151, %v152
        %v154 = vrot.slane %v153, 1
        %v155 = vadd.f32 %v153, %v154
        %v156 = vmul.f32 %v155, %v133
        %v157 = vadd.f32 %v156, 1e-05
        %v158 = vrsqrt.pop %v157
        %v159 = vmul.f32 %v135, %v158
        %v160 = vmul.f32 %v136, %v158
        %v161 = vmul.f32 %v137, %v158
        %v162 = vmul.f32 %v138, %v158
        %v163 = vmax.f32 %v159, 0.0
        %v164 = vmax.f32 %v160, 0.0
        %v165 = vmax.f32 %v161, 0.0
        %v166 = vmax.f32 %v162, 0.0
        %167 = vst.msk [vmem:[%s109] sm:$0xf] %vm119, %v163
        %168 = vst.msk [vmem:[%s109 + $0x4] sm:$0xf] %vm119, %v164
        %169 = vst.msk [vmem:[%s109 + $0x8] sm:$0xf] %vm119, %v165
        %170 = vst.msk [vmem:[%s109 + $0xc] sm:$0xf] %vm119, %v166
        %s171 = sand.u32 %s49, 1
        %s172 = scalar_lea.sflag [#allocation3], %s171
        %s173 = sand.u32 %s49, 1
        %s174 = smul.addr %s173, 16
        %s175 = scalar_lea.vmem [#allocation2], %s174
        // Predicated region
        $region25: #{encoder_forward.15} parent=23 // pred_check
          %p176 = pneg %p59
        $region26: #{encoder_forward.15} parent=23 // pred_check_branch
          %178 = sbr.rel (%p176) target = $region28
        $region27: #{encoder_forward.15} parent=23 // pred_region
          %s180 = ssub.s32 256, 256
          %181 = vsyncadd %s172, %s180
          %s182 = smul.addr %s15, 4
          %s183 = smul.addr %s182, 64
          %s184 = scalar_lea.hbm %s1, %s183
          %s185 = sshll.u32 %s175, 4
          %s186 = int_to_ptr.vmem [resolvable:$true] %s185
          %191 = dma.vmem_to_hbm [thread:$0]  %s186, 256, %s184, %s172, 64, 64, 4
        $region28: #{encoder_forward.15} parent=23 // pred_fallthru
          _
      $region24: #{encoder_forward.15} parent=5 // pred_fallthru
        _
      %p192 = scmp.le.s32.totalorder 2, %s10
      // Predicated region
      $region29: #{encoder_forward.15} parent=5 // pred_check
        %p193 = pneg %p192
      $region30: #{encoder_forward.15} parent=5 // pred_check_branch
        %195 = sbr.rel (%p193) target = $region32
      $region31: #{encoder_forward.15} parent=5 // pred_region
        %s196 = ssub.s32 %s10, 2
        // Predicated region
        $region33: #{encoder_forward.15} parent=31 // pred_check
          %p197 = pneg %p65
        $region34: #{encoder_forward.15} parent=31 // pred_check_branch
          %199 = sbr.rel (%p197) target = $region36
        $region35: #{encoder_forward.15} parent=31 // pred_region
          %s200 = sand.u32 %s50, 1
          %s201 = scalar_lea.sflag [#allocation3], %s200
          %s202 = sand.u32 %s50, 1
          %s203 = smul.addr %s202, 16
          %s204 = scalar_lea.vmem [#allocation2], %s203
          %205 = dma.done %s201, 256
        $region36: #{encoder_forward.15} parent=31 // pred_fallthru
          _
      $region32: #{encoder_forward.15} parent=5 // pred_fallthru
        _
    $region6: #{encoder_forward.15} parent=1 // loop_footer
      %s14 = sadd.s32 1, %s10
    $region7: #{encoder_forward.15} parent=1 // loop_footer_branch
      %9 = sbr.rel target = $region3
    $region8: #{encoder_forward.15} parent=1 // loop_exit
      _
    %206 = vsyncpa [#allocation3], 1
    %s207 = scalar_lea.sflag [#allocation3], 1
    %208 = vsyncpa %s207, 1

// kernel: encoder_forward.13
$region0: #{encoder_forward.13}
  #allocation0 [shape = 'u32[]', space=smem, size = 0x4, offset = 0x4, fixed_abs, tag = 'smem constant byte address 0x4 - core index']
  #allocation1 [shape = 'u32[144,128]{1,0:T(1,128)}', space=vmem, size = 0x12000, scoped, tag = 'internal scratch']
  %s0 = inlined_call_operand.vmem [shape: f32[2,5,2,5,32], index: 0, kind: input, shape index: {}]
  %s1 = inlined_call_operand.vmem [shape: bf16[6,32,32], index: 1, kind: input, shape index: {}]
  %s2 = inlined_call_operand.vmem [shape: f32[1,32], index: 2, kind: input, shape index: {}]
  %s3 = inlined_call_operand.vmem [shape: f32[2,16,32], index: 3, kind: output, shape index: {}]
  %s4 = sld [smem:[#allocation0]]
  $region45: #{encoder_forward.13} parent=0
    _
  %s6 = ssub.s32 1, %s4
  %s7 = scalar_select 0, %s6, %s4
  loop: start=0, step=1, limit=4
  $region2: #{encoder_forward.13} parent=0 // loop_pre_header
    _
  $region3: #{encoder_forward.13} parent=0 // loop_header
    %s9 = sphi 0, %s13
    %p10 = scmp.ge.s32.totalorder %s9, 4
    %s19 = sphi 0, %s21
    %s22 = sphi 0, %s19
    %s23 = sphi 0, %s22
    %s39 = sphi 0, %s23
    %s43 = sphi 0, %s43
    %s45 = sphi 0, %s43
    %s46 = sphi 0, %s45
    %s60 = sphi 0, %s46
    %s64 = sphi 0, %s64
    %s66 = sphi 0, %s64
    %s67 = sphi 0, %s66
    %s81 = sphi 0, %s67
    %s87 = sphi 0, %s89
    %s90 = sphi 0, %s87
    %s91 = sphi 0, %s90
    %s107 = sphi 0, %s91
  $region4: #{encoder_forward.13} parent=0 // loop_header_branch
    %12 = sbr.rel (%p10) target = $region8
  $region5: #{encoder_forward.13} parent=0 // loop_body
    %s14 = ssub.s32 %s9, 1
    %s15 = ssub.s32 %s9, 2
    %s16 = sadd.s32 %s9, 1
    %s17 = ssub.s32 %s9, %s16
    %p18 = scmp.eq.s32.totalorder %s17, 0
    %s20 = sadd.s32 %s19, 1
    %s21 = scalar_select %p18, %s19, %s20
    %p24 = pneg %p18
    %p25 = scmp.eq.s32.totalorder %s9, 1
    %p26 = por %p24, %p25
    %p27 = scmp.ne.s32.totalorder %s19, %s22
    %p28 = scmp.eq.s32.totalorder %s9, 0
    %p29 = por %p27, %p28
    %p30 = scmp.ne.s32.totalorder %s19, %s22
    %p31 = scmp.eq.s32.totalorder %s14, 1
    %p32 = por %p30, %p31
    %p33 = scmp.ne.s32.totalorder %s22, %s23
    %p34 = scmp.eq.s32.totalorder %s14, 0
    %p35 = por %p33, %p34
    %p36 = scmp.ne.s32.totalorder %s22, %s23
    %p37 = scmp.eq.s32.totalorder %s15, 1
    %p38 = por %p36, %p37
    %p40 = scmp.ne.s32.totalorder %s23, %s39
    %p41 = scmp.eq.s32.totalorder %s15, 0
    %p42 = por %p40, %p41
    %s44 = sadd.s32 %s43, 1
    %p47 = scmp.eq.s32.totalorder %s9, 1
    %p48 = scmp.ne.s32.totalorder %s43, %s45
    %p49 = scmp.eq.s32.totalorder %s9, 0
    %p50 = por %p48, %p49
    %p51 = scmp.ne.s32.totalorder %s43, %s45
    %p52 = scmp.eq.s32.totalorder %s14, 1
    %p53 = por %p51, %p52
    %p54 = scmp.ne.s32.totalorder %s45, %s46
    %p55 = scmp.eq.s32.totalorder %s14, 0
    %p56 = por %p54, %p55
    %p57 = scmp.ne.s32.totalorder %s45, %s46
    %p58 = scmp.eq.s32.totalorder %s15, 1
    %p59 = por %p57, %p58
    %p61 = scmp.ne.s32.totalorder %s46, %s60
    %p62 = scmp.eq.s32.totalorder %s15, 0
    %p63 = por %p61, %p62
    %s65 = sadd.s32 %s64, 1
    %p68 = scmp.eq.s32.totalorder %s9, 1
    %p69 = scmp.ne.s32.totalorder %s64, %s66
    %p70 = scmp.eq.s32.totalorder %s9, 0
    %p71 = por %p69, %p70
    %p72 = scmp.ne.s32.totalorder %s64, %s66
    %p73 = scmp.eq.s32.totalorder %s14, 1
    %p74 = por %p72, %p73
    %p75 = scmp.ne.s32.totalorder %s66, %s67
    %p76 = scmp.eq.s32.totalorder %s14, 0
    %p77 = por %p75, %p76
    %p78 = scmp.ne.s32.totalorder %s66, %s67
    %p79 = scmp.eq.s32.totalorder %s15, 1
    %p80 = por %p78, %p79
    %p82 = scmp.ne.s32.totalorder %s67, %s81
    %p83 = scmp.eq.s32.totalorder %s15, 0
    %p84 = por %p82, %p83
    %s85 = ssub.s32 %s9, %s16
    %p86 = scmp.eq.s32.totalorder %s85, 0
    %s88 = sadd.s32 %s87, 1
    %s89 = scalar_select %p86, %s87, %s88
    %p92 = pneg %p86
    %p93 = scmp.eq.s32.totalorder %s9, 1
    %p94 = por %p92, %p93
    %p95 = scmp.ne.s32.totalorder %s87, %s90
    %p96 = scmp.eq.s32.totalorder %s9, 0
    %p97 = por %p95, %p96
    %p98 = scmp.ne.s32.totalorder %s87, %s90
    %p99 = scmp.eq.s32.totalorder %s14, 1
    %p100 = por %p98, %p99
    %p101 = scmp.ne.s32.totalorder %s90, %s91
    %p102 = scmp.eq.s32.totalorder %s14, 0
    %p103 = por %p101, %p102
    %p104 = scmp.ne.s32.totalorder %s90, %s91
    %p105 = scmp.eq.s32.totalorder %s15, 1
    %p106 = por %p104, %p105
    %p108 = scmp.ne.s32.totalorder %s91, %s107
    %p109 = scmp.eq.s32.totalorder %s15, 0
    %p110 = por %p108, %p109
    %p111 = scmp.le.s32.totalorder 1, %s9
    %p112 = scmp.lt.s32.totalorder %s9, 3
    %p113 = pnand %p111, %p112
    %p114 = pneg %p113
    // Predicated region
    $region9: #{encoder_forward.13} parent=5 // pred_check
      _
    $region10: #{encoder_forward.13} parent=5 // pred_check_branch
      %116 = sbr.rel (%p113) target = $region12
    $region11: #{encoder_forward.13} parent=5 // pred_region
      %s117 = ssub.s32 %s9, 1
      // Predicated region
      $region13: #{encoder_forward.13} parent=11 // pred_check
        %p118 = pneg %p56
      $region14: #{encoder_forward.13} parent=11 // pred_check_branch
        %120 = sbr.rel (%p118) target = $region16
      $region15: #{encoder_forward.13} parent=11 // pred_region
        _
      $region16: #{encoder_forward.13} parent=11 // pred_fallthru
        _
      // Predicated region
      $region17: #{encoder_forward.13} parent=11 // pred_check
        %p121 = pneg %p77
      $region18: #{encoder_forward.13} parent=11 // pred_check_branch
        %123 = sbr.rel (%p121) target = $region20
      $region19: #{encoder_forward.13} parent=11 // pred_region
        _
      $region20: #{encoder_forward.13} parent=11 // pred_fallthru
        _
    $region12: #{encoder_forward.13} parent=5 // pred_fallthru
      _
    %p124 = scmp.lt.s32.totalorder %s9, 2
    // Predicated region
    $region21: #{encoder_forward.13} parent=5 // pred_check
      %p125 = pneg %p124
    $region22: #{encoder_forward.13} parent=5 // pred_check_branch
      %127 = sbr.rel (%p125) target = $region24
    $region23: #{encoder_forward.13} parent=5 // pred_region
      // Predicated region
      $region25: #{encoder_forward.13} parent=23 // pred_check
        %p128 = pneg %p29
      $region26: #{encoder_forward.13} parent=23 // pred_check_branch
        %130 = sbr.rel (%p128) target = $region28
      $region27: #{encoder_forward.13} parent=23 // pred_region
        %p131 = scmp.lt.s32.totalorder %s9, 1
        %s132 = scalar_select %p131, %s9, 1
        %s133 = smul.addr %s132, 10
        %s134 = smul.addr %s133, 8
        %s135 = scalar_lea.vmem %s0, %s134
      $region28: #{encoder_forward.13} parent=23 // pred_fallthru
        _
    $region24: #{encoder_forward.13} parent=5 // pred_fallthru
      _
    %p136 = scmp.le.s32.totalorder 1, %s9
    %p137 = scmp.lt.s32.totalorder %s9, 3
    %p138 = pnand %p136, %p137
    %p139 = pneg %p138
    // Predicated region
    $region29: #{encoder_forward.13} parent=5 // pred_check
      _
    $region30: #{encoder_forward.13} parent=5 // pred_check_branch
      %141 = sbr.rel (%p138) target = $region32
    $region31: #{encoder_forward.13} parent=5 // pred_region
      %s142 = ssub.s32 %s9, 1
      %p143 = scmp.lt.s32.totalorder %s14, 1
      %s144 = scalar_select %p143, %s14, 1
      %s145 = smul.addr %s144, 10
      %s146 = smul.addr %s145, 8
      %s147 = scalar_lea.vmem %s0, %s146
      %p148 = pneg %p35
      %p149 = pneg %p32
      %p150 = pneg %p56
      %p151 = pneg %p53
      %p152 = pneg %p77
      %p153 = pneg %p74
      %p154 = pneg %p103
      %p155 = pneg %p100
      %p156 = scmp.lt.s32.totalorder %s14, 1
      %s157 = scalar_select %p156, %s14, 1
      %s158 = smul.addr %s157, 2
      %s159 = smul.addr %s158, 8
      %s160 = scalar_lea.vmem %s3, %s159
      %p161 = scmp.lt.s32.totalorder %s14, 1
      %s162 = scalar_select %p161, %s14, 1
      %s163 = smul.addr %s162, 10
      %s164 = smul.addr %s163, 8
      %s165 = scalar_lea.vmem %s0, %s164
      %p166 = scmp.lt.s32.totalorder %s14, 1
      %s167 = scalar_select %p166, %s14, 1
      %s168 = smul.addr %s167, 2
      %s169 = smul.addr %s168, 8
      %s170 = scalar_lea.vmem %s3, %s169
      %v172 = vld [vmem:[%s165] sm:$0xf]
      %v173 = vld [vmem:[%s165 + $0x10] sm:$0xf]
      %v174 = vld [vmem:[%s165 + $0x20] sm:$0xf]
      %v175 = vld [vmem:[%s165 + $0x30] sm:$0xf]
      %v180 = vcombine.low %v172, %v173
      %v181 = vcombine.low %v174, %v175
      %v184 = vpack.c.bf16 %v181, %v180
      %v185 = vld [vmem:[%s1] sm:$0xf]
      %v186 = vld [vmem:[%s1 + $0x4] sm:$0xf]
      %v187 = vld [vmem:[%s1 + $0x8] sm:$0xf]
      %v188 = vld [vmem:[%s1 + $0xc] sm:$0xf]
      %v189 = vld [vmem:[%s165 + $0x1] sm:$0xf]
      %v190 = vld [vmem:[%s165 + $0x11] sm:$0xf]
      %v191 = vld [vmem:[%s165 + $0x21] sm:$0xf]
      %v192 = vld [vmem:[%s165 + $0x31] sm:$0xf]
      %v197 = vcombine.low %v189, %v190
      %v198 = vcombine.low %v191, %v192
      %v201 = vpack.c.bf16 %v198, %v197
      %s202 = scalar_lea.vmem %s1, 16
      %v203 = vld [vmem:[%s202] sm:$0xf]
      %v204 = vld [vmem:[%s202 + $0x4] sm:$0xf]
      %v205 = vld [vmem:[%s202 + $0x8] sm:$0xf]
      %v206 = vld [vmem:[%s202 + $0xc] sm:$0xf]
      %v211 = vunpack.c.l.b16 %v203
      %v212 = vunpack.c.l.b16 %v204
      %v213 = vunpack.c.l.b16 %v205
      %v214 = vunpack.c.l.b16 %v206
      %v215 = vpack.c.b16 %v212, %v211
      %v216 = vpack.c.b16 %v214, %v213
      %vm219 = vcmask 261120
      %v221 = vsel %vm219, %v201, 0
      %223 = vmatprep.subr.bf16.mxu0 0
      %224 = vmatpush1.bf16.msra.mxu0 0
      %225 = vmatprep.subr.bf16.mxu0 0
      %226 = vmatpush1.bf16.msra.mxu0 0
      %227 = vmatprep.subr.bf16.mxu0 0
      %228 = vmatpush1.bf16.msra.mxu0 0
      %229 = vmatprep.subr.bf16.mxu0 0
      %230 = vmatpush1.bf16.msra.mxu0 0
      %231 = vmatprep.subr.bf16.mxu0 0
      %232 = vmatpush1.bf16.msra.mxu0 0
      %233 = vmatprep.subr.bf16.mxu0 0
      %234 = vmatpush1.bf16.msra.mxu0 0
      %235 = vmatprep.subr.bf16.mxu0 0
      %236 = vmatpush1.bf16.msra.mxu0 %v216
      %237 = vmatprep.subr.bf16.mxu0 0
      %238 = vmatpush1.bf16.msra.mxu0 %v215
      %239 = vmatprep.subr.bf16.mxu0 0
      %240 = vmatpush2.bf16.msra.mxu0 0
      %241 = vmatprep.subr.bf16.mxu0 0
      %242 = vmatpush2.bf16.msra.mxu0 0
      %243 = vmatprep.subr.bf16.mxu0 0
      %244 = vmatpush2.bf16.msra.mxu0 0
      %245 = vmatprep.subr.bf16.mxu0 0
      %246 = vmatpush2.bf16.msra.mxu0 0
      %247 = vmatprep.subr.bf16.mxu0 0
      %248 = vmatpush2.bf16.msra.mxu0 0
      %249 = vmatprep.subr.bf16.mxu0 0
      %250 = vmatpush2.bf16.msra.mxu0 0
      %251 = vmatprep.subr.bf16.mxu0 0
      %252 = vmatpush2.bf16.msra.mxu0 0
      %253 = vmatprep.subr.bf16.mxu0 0
      %254 = vmatpush2.bf16.msra.mxu0 0
      %255 = vmatprep.mubr.bf16.mxu0 0
      %256 = vmatmul.mubr.bf16.gmra.mxu0 %v221
      %v257 = vpop.f32.mrf.mxu0
      %v258 = vadd.f32 0.0, %v257
      %v259 = vpop.f32.mrf.mxu0
      %v260 = vpop.f32.mrf.mxu0
      %v261 = vadd.f32 0.0, %v260
      %v262 = vpop.f32.mrf.mxu0
      %263 = vdwg.mxu0
      %v268 = vunpack.c.l.b16 %v185
      %v269 = vunpack.c.l.b16 %v186
      %v270 = vunpack.c.l.b16 %v187
      %v271 = vunpack.c.l.b16 %v188
      %v272 = vpack.c.b16 %v269, %v268
      %v273 = vpack.c.b16 %v271, %v270
      %v277 = vsel %vm219, %v184, 0
      %279 = vmatprep.subr.bf16.mxu0 0
      %280 = vmatpush1.bf16.msra.mxu0 0
      %281 = vmatprep.subr.bf16.mxu0 0
      %282 = vmatpush1.bf16.msra.mxu0 0
      %283 = vmatprep.subr.bf16.mxu0 0
      %284 = vmatpush1.bf16.msra.mxu0 0
      %285 = vmatprep.subr.bf16.mxu0 0
      %286 = vmatpush1.bf16.msra.mxu0 0
      %287 = vmatprep.subr.bf16.mxu0 0
      %288 = vmatpush1.bf16.msra.mxu0 0
      %289 = vmatprep.subr.bf16.mxu0 0
      %290 = vmatpush1.bf16.msra.mxu0 0
      %291 = vmatprep.subr.bf16.mxu0 0
      %292 = vmatpush1.bf16.msra.mxu0 %v273
      %293 = vmatprep.subr.bf16.mxu0 0
      %294 = vmatpush1.bf16.msra.mxu0 %v272
      %295 = vmatprep.subr.bf16.mxu0 0
      %296 = vmatpush2.bf16.msra.mxu0 0
      %297 = vmatprep.subr.bf16.mxu0 0
      %298 = vmatpush2.bf16.msra.mxu0 0
      %299 = vmatprep.subr.bf16.mxu0 0
      %300 = vmatpush2.bf16.msra.mxu0 0
      %301 = vmatprep.subr.bf16.mxu0 0
      %302 = vmatpush2.bf16.msra.mxu0 0
      %303 = vmatprep.subr.bf16.mxu0 0
      %304 = vmatpush2.bf16.msra.mxu0 0
      %305 = vmatprep.subr.bf16.mxu0 0
      %306 = vmatpush2.bf16.msra.mxu0 0
      %307 = vmatprep.subr.bf16.mxu0 0
      %308 = vmatpush2.bf16.msra.mxu0 0
      %309 = vmatprep.subr.bf16.mxu0 0
      %310 = vmatpush2.bf16.msra.mxu0 0
      %311 = vmatprep.mubr.bf16.mxu0 0
      %312 = vmatmul.mubr.bf16.gmra.mxu0 %v277
      %v313 = vpop.f32.mrf.mxu0
      %v314 = vadd.f32 %v258, %v313
      %v315 = vpop.f32.mrf.mxu0
      %v316 = vpop.f32.mrf.mxu0
      %v317 = vadd.f32 %v261, %v316
      %v318 = vpop.f32.mrf.mxu0
      %319 = vdwg.mxu0
      %s320 = scalar_lea.vmem %s165, 8
      %v321 = vld [vmem:[%s320] sm:$0xf]
      %v322 = vld [vmem:[%s320 + $0x10] sm:$0xf]
      %v323 = vld [vmem:[%s320 + $0x20] sm:$0xf]
      %v324 = vld [vmem:[%s320 + $0x30] sm:$0xf]
      %v329 = vcombine.low %v321, %v322
      %v330 = vcombine.low %v323, %v324
      %v333 = vpack.c.bf16 %v330, %v329
      %s334 = scalar_lea.vmem %s1, 32
      %v335 = vld [vmem:[%s334] sm:$0xf]
      %v336 = vld [vmem:[%s334 + $0x4] sm:$0xf]
      %v337 = vld [vmem:[%s334 + $0x8] sm:$0xf]
      %v338 = vld [vmem:[%s334 + $0xc] sm:$0xf]
      %v343 = vunpack.c.l.b16 %v335
      %v344 = vunpack.c.l.b16 %v336
      %v345 = vunpack.c.l.b16 %v337
      %v346 = vunpack.c.l.b16 %v338
      %v347 = vpack.c.b16 %v344, %v343
      %v348 = vpack.c.b16 %v346, %v345
      %v352 = vsel %vm219, %v333, 0
      %354 = vmatprep.subr.bf16.mxu0 0
      %355 = vmatpush1.bf16.msra.mxu0 0
      %356 = vmatprep.subr.bf16.mxu0 0
      %357 = vmatpush1.bf16.msra.mxu0 0
      %358 = vmatprep.subr.bf16.mxu0 0
      %359 = vmatpush1.bf16.msra.mxu0 0
      %360 = vmatprep.subr.bf16.mxu0 0
      %361 = vmatpush1.bf16.msra.mxu0 0
      %362 = vmatprep.subr.bf16.mxu0 0
      %363 = vmatpush1.bf16.msra.mxu0 0
      %364 = vmatprep.subr.bf16.mxu0 0
      %365 = vmatpush1.bf16.msra.mxu0 0
      %366 = vmatprep.subr.bf16.mxu0 0
      %367 = vmatpush1.bf16.msra.mxu0 %v348
      %368 = vmatprep.subr.bf16.mxu0 0
      %369 = vmatpush1.bf16.msra.mxu0 %v347
      %370 = vmatprep.subr.bf16.mxu0 0
      %371 = vmatpush2.bf16.msra.mxu0 0
      %372 = vmatprep.subr.bf16.mxu0 0
      %373 = vmatpush2.bf16.msra.mxu0 0
      %374 = vmatprep.subr.bf16.mxu0 0
      %375 = vmatpush2.bf16.msra.mxu0 0
      %376 = vmatprep.subr.bf16.mxu0 0
      %377 = vmatpush2.bf16.msra.mxu0 0
      %378 = vmatprep.subr.bf16.mxu0 0
      %379 = vmatpush2.bf16.msra.mxu0 0
      %380 = vmatprep.subr.bf16.mxu0 0
      %381 = vmatpush2.bf16.msra.mxu0 0
      %382 = vmatprep.subr.bf16.mxu0 0
      %383 = vmatpush2.bf16.msra.mxu0 0
      %384 = vmatprep.subr.bf16.mxu0 0
      %385 = vmatpush2.bf16.msra.mxu0 0
      %386 = vmatprep.mubr.bf16.mxu0 0
      %387 = vmatmul.mubr.bf16.gmra.mxu0 %v352
      %v388 = vpop.f32.mrf.mxu0
      %v389 = vadd.f32 0.0, %v388
      %v390 = vpop.f32.mrf.mxu0
      %v391 = vpop.f32.mrf.mxu0
      %v392 = vadd.f32 0.0, %v391
      %v393 = vpop.f32.mrf.mxu0
      %394 = vdwg.mxu0
      %v395 = vadd.f32 %v314, %v389
      %v396 = vadd.f32 %v317, %v392
      %v397 = vld [vmem:[%s320 + $0x1] sm:$0xf]
      %v398 = vld [vmem:[%s320 + $0x11] sm:$0xf]
      %v399 = vld [vmem:[%s320 + $0x21] sm:$0xf]
      %v400 = vld [vmem:[%s320 + $0x31] sm:$0xf]
      %v405 = vcombine.low %v397, %v398
      %v406 = vcombine.low %v399, %v400
      %v409 = vpack.c.bf16 %v406, %v405
      %s410 = scalar_lea.vmem %s1, 48
      %v411 = vld [vmem:[%s410] sm:$0xf]
      %v412 = vld [vmem:[%s410 + $0x4] sm:$0xf]
      %v413 = vld [vmem:[%s410 + $0x8] sm:$0xf]
      %v414 = vld [vmem:[%s410 + $0xc] sm:$0xf]
      %v419 = vunpack.c.l.b16 %v411
      %v420 = vunpack.c.l.b16 %v412
      %v421 = vunpack.c.l.b16 %v413
      %v422 = vunpack.c.l.b16 %v414
      %v423 = vpack.c.b16 %v420, %v419
      %v424 = vpack.c.b16 %v422, %v421
      %v428 = vsel %vm219, %v409, 0
      %430 = vmatprep.subr.bf16.mxu0 0
      %431 = vmatpush1.bf16.msra.mxu0 0
      %432 = vmatprep.subr.bf16.mxu0 0
      %433 = vmatpush1.bf16.msra.mxu0 0
      %434 = vmatprep.subr.bf16.mxu0 0
      %435 = vmatpush1.bf16.msra.mxu0 0
      %436 = vmatprep.subr.bf16.mxu0 0
      %437 = vmatpush1.bf16.msra.mxu0 0
      %438 = vmatprep.subr.bf16.mxu0 0
      %439 = vmatpush1.bf16.msra.mxu0 0
      %440 = vmatprep.subr.bf16.mxu0 0
      %441 = vmatpush1.bf16.msra.mxu0 0
      %442 = vmatprep.subr.bf16.mxu0 0
      %443 = vmatpush1.bf16.msra.mxu0 %v424
      %444 = vmatprep.subr.bf16.mxu0 0
      %445 = vmatpush1.bf16.msra.mxu0 %v423
      %446 = vmatprep.subr.bf16.mxu0 0
      %447 = vmatpush2.bf16.msra.mxu0 0
      %448 = vmatprep.subr.bf16.mxu0 0
      %449 = vmatpush2.bf16.msra.mxu0 0
      %450 = vmatprep.subr.bf16.mxu0 0
      %451 = vmatpush2.bf16.msra.mxu0 0
      %452 = vmatprep.subr.bf16.mxu0 0
      %453 = vmatpush2.bf16.msra.mxu0 0
      %454 = vmatprep.subr.bf16.mxu0 0
      %455 = vmatpush2.bf16.msra.mxu0 0
      %456 = vmatprep.subr.bf16.mxu0 0
      %457 = vmatpush2.bf16.msra.mxu0 0
      %458 = vmatprep.subr.bf16.mxu0 0
      %459 = vmatpush2.bf16.msra.mxu0 0
      %460 = vmatprep.subr.bf16.mxu0 0
      %461 = vmatpush2.bf16.msra.mxu0 0
      %462 = vmatprep.mubr.bf16.mxu0 0
      %463 = vmatmul.mubr.bf16.gmra.mxu0 %v428
      %v464 = vpop.f32.mrf.mxu0
      %v465 = vadd.f32 0.0, %v464
      %v466 = vpop.f32.mrf.mxu0
      %v467 = vpop.f32.mrf.mxu0
      %v468 = vadd.f32 0.0, %v467
      %v469 = vpop.f32.mrf.mxu0
      %470 = vdwg.mxu0
      %v471 = vadd.f32 %v395, %v465
      %v472 = vadd.f32 %v396, %v468
      %s473 = scalar_lea.vmem %s165, 16
      %v474 = vld [vmem:[%s473] sm:$0xf]
      %v475 = vld [vmem:[%s473 + $0x10] sm:$0xf]
      %v476 = vld [vmem:[%s473 + $0x20] sm:$0xf]
      %v477 = vld [vmem:[%s473 + $0x30] sm:$0xf]
      %v482 = vcombine.low %v474, %v475
      %v483 = vcombine.low %v476, %v477
      %v486 = vpack.c.bf16 %v483, %v482
      %s487 = scalar_lea.vmem %s1, 64
      %v488 = vld [vmem:[%s487] sm:$0xf]
      %v489 = vld [vmem:[%s487 + $0x4] sm:$0xf]
      %v490 = vld [vmem:[%s487 + $0x8] sm:$0xf]
      %v491 = vld [vmem:[%s487 + $0xc] sm:$0xf]
      %v496 = vunpack.c.l.b16 %v488
      %v497 = vunpack.c.l.b16 %v489
      %v498 = vunpack.c.l.b16 %v490
      %v499 = vunpack.c.l.b16 %v491
      %v500 = vpack.c.b16 %v497, %v496
      %v501 = vpack.c.b16 %v499, %v498
      %v505 = vsel %vm219, %v486, 0
      %507 = vmatprep.subr.bf16.mxu0 0
      %508 = vmatpush1.bf16.msra.mxu0 0
      %509 = vmatprep.subr.bf16.mxu0 0
      %510 = vmatpush1.bf16.msra.mxu0 0
      %511 = vmatprep.subr.bf16.mxu0 0
      %512 = vmatpush1.bf16.msra.mxu0 0
      %513 = vmatprep.subr.bf16.mxu0 0
      %514 = vmatpush1.bf16.msra.mxu0 0
      %515 = vmatprep.subr.bf16.mxu0 0
      %516 = vmatpush1.bf16.msra.mxu0 0
      %517 = vmatprep.subr.bf16.mxu0 0
      %518 = vmatpush1.bf16.msra.mxu0 0
      %519 = vmatprep.subr.bf16.mxu0 0
      %520 = vmatpush1.bf16.msra.mxu0 %v501
      %521 = vmatprep.subr.bf16.mxu0 0
      %522 = vmatpush1.bf16.msra.mxu0 %v500
      %523 = vmatprep.subr.bf16.mxu0 0
      %524 = vmatpush2.bf16.msra.mxu0 0
      %525 = vmatprep.subr.bf16.mxu0 0
      %526 = vmatpush2.bf16.msra.mxu0 0
      %527 = vmatprep.subr.bf16.mxu0 0
      %528 = vmatpush2.bf16.msra.mxu0 0
      %529 = vmatprep.subr.bf16.mxu0 0
      %530 = vmatpush2.bf16.msra.mxu0 0
      %531 = vmatprep.subr.bf16.mxu0 0
      %532 = vmatpush2.bf16.msra.mxu0 0
      %533 = vmatprep.subr.bf16.mxu0 0
      %534 = vmatpush2.bf16.msra.mxu0 0
      %535 = vmatprep.subr.bf16.mxu0 0
      %536 = vmatpush2.bf16.msra.mxu0 0
      %537 = vmatprep.subr.bf16.mxu0 0
      %538 = vmatpush2.bf16.msra.mxu0 0
      %539 = vmatprep.mubr.bf16.mxu0 0
      %540 = vmatmul.mubr.bf16.gmra.mxu0 %v505
      %v541 = vpop.f32.mrf.mxu0
      %v542 = vadd.f32 0.0, %v541
      %v543 = vpop.f32.mrf.mxu0
      %v544 = vpop.f32.mrf.mxu0
      %v545 = vadd.f32 0.0, %v544
      %v546 = vpop.f32.mrf.mxu0
      %547 = vdwg.mxu0
      %v548 = vadd.f32 %v471, %v542
      %v549 = vadd.f32 %v472, %v545
      %v550 = vld [vmem:[%s473 + $0x1] sm:$0xf]
      %v551 = vld [vmem:[%s473 + $0x11] sm:$0xf]
      %v552 = vld [vmem:[%s473 + $0x21] sm:$0xf]
      %v553 = vld [vmem:[%s473 + $0x31] sm:$0xf]
      %v558 = vcombine.low %v550, %v551
      %v559 = vcombine.low %v552, %v553
      %v562 = vpack.c.bf16 %v559, %v558
      %s563 = scalar_lea.vmem %s1, 80
      %v564 = vld [vmem:[%s563] sm:$0xf]
      %v565 = vld [vmem:[%s563 + $0x4] sm:$0xf]
      %v566 = vld [vmem:[%s563 + $0x8] sm:$0xf]
      %v567 = vld [vmem:[%s563 + $0xc] sm:$0xf]
      %v572 = vunpack.c.l.b16 %v564
      %v573 = vunpack.c.l.b16 %v565
      %v574 = vunpack.c.l.b16 %v566
      %v575 = vunpack.c.l.b16 %v567
      %v576 = vpack.c.b16 %v573, %v572
      %v577 = vpack.c.b16 %v575, %v574
      %v581 = vsel %vm219, %v562, 0
      %583 = vmatprep.subr.bf16.mxu0 0
      %584 = vmatpush1.bf16.msra.mxu0 0
      %585 = vmatprep.subr.bf16.mxu0 0
      %586 = vmatpush1.bf16.msra.mxu0 0
      %587 = vmatprep.subr.bf16.mxu0 0
      %588 = vmatpush1.bf16.msra.mxu0 0
      %589 = vmatprep.subr.bf16.mxu0 0
      %590 = vmatpush1.bf16.msra.mxu0 0
      %591 = vmatprep.subr.bf16.mxu0 0
      %592 = vmatpush1.bf16.msra.mxu0 0
      %593 = vmatprep.subr.bf16.mxu0 0
      %594 = vmatpush1.bf16.msra.mxu0 0
      %595 = vmatprep.subr.bf16.mxu0 0
      %596 = vmatpush1.bf16.msra.mxu0 %v577
      %597 = vmatprep.subr.bf16.mxu0 0
      %598 = vmatpush1.bf16.msra.mxu0 %v576
      %599 = vmatprep.subr.bf16.mxu0 0
      %600 = vmatpush2.bf16.msra.mxu0 0
      %601 = vmatprep.subr.bf16.mxu0 0
      %602 = vmatpush2.bf16.msra.mxu0 0
      %603 = vmatprep.subr.bf16.mxu0 0
      %604 = vmatpush2.bf16.msra.mxu0 0
      %605 = vmatprep.subr.bf16.mxu0 0
      %606 = vmatpush2.bf16.msra.mxu0 0
      %607 = vmatprep.subr.bf16.mxu0 0
      %608 = vmatpush2.bf16.msra.mxu0 0
      %609 = vmatprep.subr.bf16.mxu0 0
      %610 = vmatpush2.bf16.msra.mxu0 0
      %611 = vmatprep.subr.bf16.mxu0 0
      %612 = vmatpush2.bf16.msra.mxu0 0
      %613 = vmatprep.subr.bf16.mxu0 0
      %614 = vmatpush2.bf16.msra.mxu0 0
      %615 = vmatprep.mubr.bf16.mxu0 0
      %616 = vmatmul.mubr.bf16.gmra.mxu0 %v581
      %v617 = vpop.f32.mrf.mxu0
      %v618 = vadd.f32 0.0, %v617
      %v619 = vpop.f32.mrf.mxu0
      %v620 = vpop.f32.mrf.mxu0
      %v621 = vadd.f32 0.0, %v620
      %v622 = vpop.f32.mrf.mxu0
      %623 = vdwg.mxu0
      %v624 = vadd.f32 %v548, %v618
      %v625 = vadd.f32 %v549, %v621
      %v626 = vld [vmem:[%s2] sm:$0x1]
      %v628 = vlaneseq
      %v629 = vshrl.u32 %v628, 7
      %v630 = vsub.s32 0, %v629
      %v631 = vrot.slane %v626, %v630
      %v633 = vadd.f32 %v624, %v631
      %v634 = vadd.f32 %v625, %v631
      %v635 = vsel %vm219, %v633, 0.0
      %v636 = vsel %vm219, %v634, 0.0
      %v637 = vadd.f32 %v635, %v636
      %v638 = vrot.slane %v637, 4
      %v639 = vadd.f32 %v637, %v638
      %v640 = vrot.slane %v639, 2
      %v641 = vadd.f32 %v639, %v640
      %v642 = vrot.slane %v641, 1
      %v643 = vadd.f32 %v641, %v642
      %v644 = vrcp.pop 16.0
      %v645 = vmul.f32 %v643, %v644
      %v646 = vsub.f32 %v633, %v645
      %v647 = vsub.f32 %v634, %v645
      %v648 = vmul.f32 %v646, %v646
      %v649 = vmul.f32 %v647, %v647
      %v650 = vsel %vm219, %v648, 0.0
      %v651 = vsel %vm219, %v649, 0.0
      %v652 = vadd.f32 %v650, %v651
      %v653 = vrot.slane %v652, 4
      %v654 = vadd.f32 %v652, %v653
      %v655 = vrot.slane %v654, 2
      %v656 = vadd.f32 %v654, %v655
      %v657 = vrot.slane %v656, 1
      %v658 = vadd.f32 %v656, %v657
      %v659 = vmul.f32 %v658, %v644
      %v660 = vadd.f32 %v659, 1e-05
      %v661 = vrsqrt.pop %v660
      %v662 = vmul.f32 %v646, %v661
      %v663 = vmul.f32 %v647, %v661
      %v664 = vmax.f32 %v662, 0.0
      %v665 = vmax.f32 %v663, 0.0
      %666 = vst.msk [vmem:[%s170] sm:$0xff] %vm219, %v664
      %667 = vst.msk [vmem:[%s170 + $0x8] sm:$0xff] %vm219, %v665
      %p668 = scmp.lt.s32.totalorder %s14, 1
      %s669 = scalar_select %p668, %s14, 1
      %s670 = smul.addr %s669, 2
      %s671 = smul.addr %s670, 8
      %s672 = scalar_lea.vmem %s3, %s671
      // Predicated region
      $region33: #{encoder_forward.13} parent=31 // pred_check
        %p673 = pneg %p100
      $region34: #{encoder_forward.13} parent=31 // pred_check_branch
        %675 = sbr.rel (%p673) target = $region36
      $region35: #{encoder_forward.13} parent=31 // pred_region
        _
      $region36: #{encoder_forward.13} parent=31 // pred_fallthru
        _
    $region32: #{encoder_forward.13} parent=5 // pred_fallthru
      _
    %p676 = scmp.le.s32.totalorder 2, %s9
    // Predicated region
    $region37: #{encoder_forward.13} parent=5 // pred_check
      %p677 = pneg %p676
    $region38: #{encoder_forward.13} parent=5 // pred_check_branch
      %679 = sbr.rel (%p677) target = $region40
    $region39: #{encoder_forward.13} parent=5 // pred_region
      %s680 = ssub.s32 %s9, 2
      // Predicated region
      $region41: #{encoder_forward.13} parent=39 // pred_check
        %p681 = pneg %p106
      $region42: #{encoder_forward.13} parent=39 // pred_check_branch
        %683 = sbr.rel (%p681) target = $region44
      $region43: #{encoder_forward.13} parent=39 // pred_region
        %p684 = scmp.lt.s32.totalorder %s15, 1
        %s685 = scalar_select %p684, %s15, 1
        %s686 = smul.addr %s685, 2
        %s687 = smul.addr %s686, 8
        %s688 = scalar_lea.vmem %s3, %s687
      $region44: #{encoder_forward.13} parent=39 // pred_fallthru
        _
    $region40: #{encoder_forward.13} parent=5 // pred_fallthru
      _
  $region6: #{encoder_forward.13} parent=0 // loop_footer
    %s13 = sadd.s32 1, %s9
  $region7: #{encoder_forward.13} parent=0 // loop_footer_branch
    %8 = sbr.rel target = $region3
  $region8: #{encoder_forward.13} parent=0 // loop_exit
    _

// kernel: encoder_forward.14
$region0: #{encoder_forward.14}
  #allocation0 [shape = 'u32[]', space=smem, size = 0x4, offset = 0x4, fixed_abs, tag = 'smem constant byte address 0x4 - core index']
  #allocation1 [shape = 'u32[144,128]{1,0:T(1,128)}', space=vmem, size = 0x12000, scoped, tag = 'internal scratch']
  %s0 = inlined_call_operand.vmem [shape: f32[2,6,6,32], index: 0, kind: input, shape index: {}]
  %s1 = inlined_call_operand.vmem [shape: bf16[9,32,32], index: 1, kind: input, shape index: {}]
  %s2 = inlined_call_operand.vmem [shape: f32[1,32], index: 2, kind: input, shape index: {}]
  %s3 = inlined_call_operand.vmem [shape: f32[2,16,32], index: 3, kind: input, shape index: {}]
  %s4 = inlined_call_operand.vmem [shape: f32[2,16,32], index: 4, kind: output, shape index: {}]
  %s5 = sld [smem:[#allocation0]]
  $region49: #{encoder_forward.14} parent=0
    _
  %s7 = ssub.s32 1, %s5
  %s8 = scalar_select 0, %s7, %s5
  loop: start=0, step=1, limit=4
  $region2: #{encoder_forward.14} parent=0 // loop_pre_header
    _
  $region3: #{encoder_forward.14} parent=0 // loop_header
    %s10 = sphi 0, %s14
    %p11 = scmp.ge.s32.totalorder %s10, 4
    %s20 = sphi 0, %s22
    %s23 = sphi 0, %s20
    %s24 = sphi 0, %s23
    %s40 = sphi 0, %s24
    %s44 = sphi 0, %s44
    %s46 = sphi 0, %s44
    %s47 = sphi 0, %s46
    %s61 = sphi 0, %s47
    %s65 = sphi 0, %s65
    %s67 = sphi 0, %s65
    %s68 = sphi 0, %s67
    %s82 = sphi 0, %s68
    %s88 = sphi 0, %s90
    %s91 = sphi 0, %s88
    %s92 = sphi 0, %s91
    %s108 = sphi 0, %s92
    %s114 = sphi 0, %s116
    %s117 = sphi 0, %s114
    %s118 = sphi 0, %s117
    %s134 = sphi 0, %s118
  $region4: #{encoder_forward.14} parent=0 // loop_header_branch
    %13 = sbr.rel (%p11) target = $region8
  $region5: #{encoder_forward.14} parent=0 // loop_body
    %s15 = ssub.s32 %s10, 1
    %s16 = ssub.s32 %s10, 2
    %s17 = sadd.s32 %s10, 1
    %s18 = ssub.s32 %s10, %s17
    %p19 = scmp.eq.s32.totalorder %s18, 0
    %s21 = sadd.s32 %s20, 1
    %s22 = scalar_select %p19, %s20, %s21
    %p25 = pneg %p19
    %p26 = scmp.eq.s32.totalorder %s10, 1
    %p27 = por %p25, %p26
    %p28 = scmp.ne.s32.totalorder %s20, %s23
    %p29 = scmp.eq.s32.totalorder %s10, 0
    %p30 = por %p28, %p29
    %p31 = scmp.ne.s32.totalorder %s20, %s23
    %p32 = scmp.eq.s32.totalorder %s15, 1
    %p33 = por %p31, %p32
    %p34 = scmp.ne.s32.totalorder %s23, %s24
    %p35 = scmp.eq.s32.totalorder %s15, 0
    %p36 = por %p34, %p35
    %p37 = scmp.ne.s32.totalorder %s23, %s24
    %p38 = scmp.eq.s32.totalorder %s16, 1
    %p39 = por %p37, %p38
    %p41 = scmp.ne.s32.totalorder %s24, %s40
    %p42 = scmp.eq.s32.totalorder %s16, 0
    %p43 = por %p41, %p42
    %s45 = sadd.s32 %s44, 1
    %p48 = scmp.eq.s32.totalorder %s10, 1
    %p49 = scmp.ne.s32.totalorder %s44, %s46
    %p50 = scmp.eq.s32.totalorder %s10, 0
    %p51 = por %p49, %p50
    %p52 = scmp.ne.s32.totalorder %s44, %s46
    %p53 = scmp.eq.s32.totalorder %s15, 1
    %p54 = por %p52, %p53
    %p55 = scmp.ne.s32.totalorder %s46, %s47
    %p56 = scmp.eq.s32.totalorder %s15, 0
    %p57 = por %p55, %p56
    %p58 = scmp.ne.s32.totalorder %s46, %s47
    %p59 = scmp.eq.s32.totalorder %s16, 1
    %p60 = por %p58, %p59
    %p62 = scmp.ne.s32.totalorder %s47, %s61
    %p63 = scmp.eq.s32.totalorder %s16, 0
    %p64 = por %p62, %p63
    %s66 = sadd.s32 %s65, 1
    %p69 = scmp.eq.s32.totalorder %s10, 1
    %p70 = scmp.ne.s32.totalorder %s65, %s67
    %p71 = scmp.eq.s32.totalorder %s10, 0
    %p72 = por %p70, %p71
    %p73 = scmp.ne.s32.totalorder %s65, %s67
    %p74 = scmp.eq.s32.totalorder %s15, 1
    %p75 = por %p73, %p74
    %p76 = scmp.ne.s32.totalorder %s67, %s68
    %p77 = scmp.eq.s32.totalorder %s15, 0
    %p78 = por %p76, %p77
    %p79 = scmp.ne.s32.totalorder %s67, %s68
    %p80 = scmp.eq.s32.totalorder %s16, 1
    %p81 = por %p79, %p80
    %p83 = scmp.ne.s32.totalorder %s68, %s82
    %p84 = scmp.eq.s32.totalorder %s16, 0
    %p85 = por %p83, %p84
    %s86 = ssub.s32 %s10, %s17
    %p87 = scmp.eq.s32.totalorder %s86, 0
    %s89 = sadd.s32 %s88, 1
    %s90 = scalar_select %p87, %s88, %s89
    %p93 = pneg %p87
    %p94 = scmp.eq.s32.totalorder %s10, 1
    %p95 = por %p93, %p94
    %p96 = scmp.ne.s32.totalorder %s88, %s91
    %p97 = scmp.eq.s32.totalorder %s10, 0
    %p98 = por %p96, %p97
    %p99 = scmp.ne.s32.totalorder %s88, %s91
    %p100 = scmp.eq.s32.totalorder %s15, 1
    %p101 = por %p99, %p100
    %p102 = scmp.ne.s32.totalorder %s91, %s92
    %p103 = scmp.eq.s32.totalorder %s15, 0
    %p104 = por %p102, %p103
    %p105 = scmp.ne.s32.totalorder %s91, %s92
    %p106 = scmp.eq.s32.totalorder %s16, 1
    %p107 = por %p105, %p106
    %p109 = scmp.ne.s32.totalorder %s92, %s108
    %p110 = scmp.eq.s32.totalorder %s16, 0
    %p111 = por %p109, %p110
    %s112 = ssub.s32 %s10, %s17
    %p113 = scmp.eq.s32.totalorder %s112, 0
    %s115 = sadd.s32 %s114, 1
    %s116 = scalar_select %p113, %s114, %s115
    %p119 = pneg %p113
    %p120 = scmp.eq.s32.totalorder %s10, 1
    %p121 = por %p119, %p120
    %p122 = scmp.ne.s32.totalorder %s114, %s117
    %p123 = scmp.eq.s32.totalorder %s10, 0
    %p124 = por %p122, %p123
    %p125 = scmp.ne.s32.totalorder %s114, %s117
    %p126 = scmp.eq.s32.totalorder %s15, 1
    %p127 = por %p125, %p126
    %p128 = scmp.ne.s32.totalorder %s117, %s118
    %p129 = scmp.eq.s32.totalorder %s15, 0
    %p130 = por %p128, %p129
    %p131 = scmp.ne.s32.totalorder %s117, %s118
    %p132 = scmp.eq.s32.totalorder %s16, 1
    %p133 = por %p131, %p132
    %p135 = scmp.ne.s32.totalorder %s118, %s134
    %p136 = scmp.eq.s32.totalorder %s16, 0
    %p137 = por %p135, %p136
    %p138 = scmp.le.s32.totalorder 1, %s10
    %p139 = scmp.lt.s32.totalorder %s10, 3
    %p140 = pnand %p138, %p139
    %p141 = pneg %p140
    // Predicated region
    $region9: #{encoder_forward.14} parent=5 // pred_check
      _
    $region10: #{encoder_forward.14} parent=5 // pred_check_branch
      %143 = sbr.rel (%p140) target = $region12
    $region11: #{encoder_forward.14} parent=5 // pred_region
      %s144 = ssub.s32 %s10, 1
      // Predicated region
      $region13: #{encoder_forward.14} parent=11 // pred_check
        %p145 = pneg %p57
      $region14: #{encoder_forward.14} parent=11 // pred_check_branch
        %147 = sbr.rel (%p145) target = $region16
      $region15: #{encoder_forward.14} parent=11 // pred_region
        _
      $region16: #{encoder_forward.14} parent=11 // pred_fallthru
        _
      // Predicated region
      $region17: #{encoder_forward.14} parent=11 // pred_check
        %p148 = pneg %p78
      $region18: #{encoder_forward.14} parent=11 // pred_check_branch
        %150 = sbr.rel (%p148) target = $region20
      $region19: #{encoder_forward.14} parent=11 // pred_region
        _
      $region20: #{encoder_forward.14} parent=11 // pred_fallthru
        _
    $region12: #{encoder_forward.14} parent=5 // pred_fallthru
      _
    %p151 = scmp.lt.s32.totalorder %s10, 2
    // Predicated region
    $region21: #{encoder_forward.14} parent=5 // pred_check
      %p152 = pneg %p151
    $region22: #{encoder_forward.14} parent=5 // pred_check_branch
      %154 = sbr.rel (%p152) target = $region24
    $region23: #{encoder_forward.14} parent=5 // pred_region
      // Predicated region
      $region25: #{encoder_forward.14} parent=23 // pred_check
        %p155 = pneg %p30
      $region26: #{encoder_forward.14} parent=23 // pred_check_branch
        %157 = sbr.rel (%p155) target = $region28
      $region27: #{encoder_forward.14} parent=23 // pred_region
        %p158 = scmp.lt.s32.totalorder %s10, 1
        %s159 = scalar_select %p158, %s10, 1
        %s160 = smul.addr %s159, 6
        %s161 = smul.addr %s160, 8
        %s162 = scalar_lea.vmem %s0, %s161
      $region28: #{encoder_forward.14} parent=23 // pred_fallthru
        _
      // Predicated region
      $region29: #{encoder_forward.14} parent=23 // pred_check
        %p163 = pneg %p98
      $region30: #{encoder_forward.14} parent=23 // pred_check_branch
        %165 = sbr.rel (%p163) target = $region32
      $region31: #{encoder_forward.14} parent=23 // pred_region
        %p166 = scmp.lt.s32.totalorder %s10, 1
        %s167 = scalar_select %p166, %s10, 1
        %s168 = smul.addr %s167, 2
        %s169 = smul.addr %s168, 8
        %s170 = scalar_lea.vmem %s3, %s169
      $region32: #{encoder_forward.14} parent=23 // pred_fallthru
        _
    $region24: #{encoder_forward.14} parent=5 // pred_fallthru
      _
    %p171 = scmp.le.s32.totalorder 1, %s10
    %p172 = scmp.lt.s32.totalorder %s10, 3
    %p173 = pnand %p171, %p172
    %p174 = pneg %p173
    // Predicated region
    $region33: #{encoder_forward.14} parent=5 // pred_check
      _
    $region34: #{encoder_forward.14} parent=5 // pred_check_branch
      %176 = sbr.rel (%p173) target = $region36
    $region35: #{encoder_forward.14} parent=5 // pred_region
      %s177 = ssub.s32 %s10, 1
      %p178 = scmp.lt.s32.totalorder %s15, 1
      %s179 = scalar_select %p178, %s15, 1
      %s180 = smul.addr %s179, 6
      %s181 = smul.addr %s180, 8
      %s182 = scalar_lea.vmem %s0, %s181
      %p183 = pneg %p36
      %p184 = pneg %p33
      %p185 = pneg %p57
      %p186 = pneg %p54
      %p187 = pneg %p78
      %p188 = pneg %p75
      %p189 = scmp.lt.s32.totalorder %s15, 1
      %s190 = scalar_select %p189, %s15, 1
      %s191 = smul.addr %s190, 2
      %s192 = smul.addr %s191, 8
      %s193 = scalar_lea.vmem %s3, %s192
      %p194 = pneg %p104
      %p195 = pneg %p101
      %p196 = pneg %p130
      %p197 = pneg %p127
      %p198 = scmp.lt.s32.totalorder %s15, 1
      %s199 = scalar_select %p198, %s15, 1
      %s200 = smul.addr %s199, 2
      %s201 = smul.addr %s200, 8
      %s202 = scalar_lea.vmem %s4, %s201
      %p203 = scmp.lt.s32.totalorder %s15, 1
      %s204 = scalar_select %p203, %s15, 1
      %s205 = smul.addr %s204, 6
      %s206 = smul.addr %s205, 8
      %s207 = scalar_lea.vmem %s0, %s206
      %p208 = scmp.lt.s32.totalorder %s15, 1
      %s209 = scalar_select %p208, %s15, 1
      %s210 = smul.addr %s209, 2
      %s211 = smul.addr %s210, 8
      %s212 = scalar_lea.vmem %s3, %s211
      %p213 = scmp.lt.s32.totalorder %s15, 1
      %s214 = scalar_select %p213, %s15, 1
      %s215 = smul.addr %s214, 2
      %s216 = smul.addr %s215, 8
      %s217 = scalar_lea.vmem %s4, %s216
      %v219 = vld [vmem:[%s207] sm:$0xf]
      %v220 = vld [vmem:[%s207 + $0x8] sm:$0xf]
      %v221 = vld [vmem:[%s207 + $0x10] sm:$0xf]
      %v222 = vld [vmem:[%s207 + $0x18] sm:$0xf]
      %v227 = vcombine.low %v219, %v220
      %v228 = vcombine.low %v221, %v222
      %v231 = vpack.c.bf16 %v228, %v227
      %v232 = vld [vmem:[%s1] sm:$0xf]
      %v233 = vld [vmem:[%s1 + $0x4] sm:$0xf]
      %v234 = vld [vmem:[%s1 + $0x8] sm:$0xf]
      %v235 = vld [vmem:[%s1 + $0xc] sm:$0xf]
      %v236 = vld [vmem:[%s207 + $0x1] sm:$0xf]
      %v237 = vld [vmem:[%s207 + $0x9] sm:$0xf]
      %v238 = vld [vmem:[%s207 + $0x11] sm:$0xf]
      %v239 = vld [vmem:[%s207 + $0x19] sm:$0xf]
      %v244 = vcombine.low %v236, %v237
      %v245 = vcombine.low %v238, %v239
      %v248 = vpack.c.bf16 %v245, %v244
      %s249 = scalar_lea.vmem %s1, 16
      %v250 = vld [vmem:[%s249] sm:$0xf]
      %v251 = vld [vmem:[%s249 + $0x4] sm:$0xf]
      %v252 = vld [vmem:[%s249 + $0x8] sm:$0xf]
      %v253 = vld [vmem:[%s249 + $0xc] sm:$0xf]
      %v258 = vunpack.c.l.b16 %v250
      %v259 = vunpack.c.l.b16 %v251
      %v260 = vunpack.c.l.b16 %v252
      %v261 = vunpack.c.l.b16 %v253
      %v262 = vpack.c.b16 %v259, %v258
      %v263 = vpack.c.b16 %v261, %v260
      %vm266 = vcmask 261120
      %v268 = vsel %vm266, %v248, 0
      %270 = vmatprep.subr.bf16.mxu0 0
      %271 = vmatpush1.bf16.msra.mxu0 0
      %272 = vmatprep.subr.bf16.mxu0 0
      %273 = vmatpush1.bf16.msra.mxu0 0
      %274 = vmatprep.subr.bf16.mxu0 0
      %275 = vmatpush1.bf16.msra.mxu0 0
      %276 = vmatprep.subr.bf16.mxu0 0
      %277 = vmatpush1.bf16.msra.mxu0 0
      %278 = vmatprep.subr.bf16.mxu0 0
      %279 = vmatpush1.bf16.msra.mxu0 0
      %280 = vmatprep.subr.bf16.mxu0 0
      %281 = vmatpush1.bf16.msra.mxu0 0
      %282 = vmatprep.subr.bf16.mxu0 0
      %283 = vmatpush1.bf16.msra.mxu0 %v263
      %284 = vmatprep.subr.bf16.mxu0 0
      %285 = vmatpush1.bf16.msra.mxu0 %v262
      %286 = vmatprep.subr.bf16.mxu0 0
      %287 = vmatpush2.bf16.msra.mxu0 0
      %288 = vmatprep.subr.bf16.mxu0 0
      %289 = vmatpush2.bf16.msra.mxu0 0
      %290 = vmatprep.subr.bf16.mxu0 0
      %291 = vmatpush2.bf16.msra.mxu0 0
      %292 = vmatprep.subr.bf16.mxu0 0
      %293 = vmatpush2.bf16.msra.mxu0 0
      %294 = vmatprep.subr.bf16.mxu0 0
      %295 = vmatpush2.bf16.msra.mxu0 0
      %296 = vmatprep.subr.bf16.mxu0 0
      %297 = vmatpush2.bf16.msra.mxu0 0
      %298 = vmatprep.subr.bf16.mxu0 0
      %299 = vmatpush2.bf16.msra.mxu0 0
      %300 = vmatprep.subr.bf16.mxu0 0
      %301 = vmatpush2.bf16.msra.mxu0 0
      %302 = vmatprep.mubr.bf16.mxu0 0
      %303 = vmatmul.mubr.bf16.gmra.mxu0 %v268
      %v304 = vpop.f32.mrf.mxu0
      %v305 = vadd.f32 0.0, %v304
      %v306 = vpop.f32.mrf.mxu0
      %v307 = vpop.f32.mrf.mxu0
      %v308 = vadd.f32 0.0, %v307
      %v309 = vpop.f32.mrf.mxu0
      %310 = vdwg.mxu0
      %v315 = vunpack.c.l.b16 %v232
      %v316 = vunpack.c.l.b16 %v233
      %v317 = vunpack.c.l.b16 %v234
      %v318 = vunpack.c.l.b16 %v235
      %v319 = vpack.c.b16 %v316, %v315
      %v320 = vpack.c.b16 %v318, %v317
      %v324 = vsel %vm266, %v231, 0
      %326 = vmatprep.subr.bf16.mxu0 0
      %327 = vmatpush1.bf16.msra.mxu0 0
      %328 = vmatprep.subr.bf16.mxu0 0
      %329 = vmatpush1.bf16.msra.mxu0 0
      %330 = vmatprep.subr.bf16.mxu0 0
      %331 = vmatpush1.bf16.msra.mxu0 0
      %332 = vmatprep.subr.bf16.mxu0 0
      %333 = vmatpush1.bf16.msra.mxu0 0
      %334 = vmatprep.subr.bf16.mxu0 0
      %335 = vmatpush1.bf16.msra.mxu0 0
      %336 = vmatprep.subr.bf16.mxu0 0
      %337 = vmatpush1.bf16.msra.mxu0 0
      %338 = vmatprep.subr.bf16.mxu0 0
      %339 = vmatpush1.bf16.msra.mxu0 %v320
      %340 = vmatprep.subr.bf16.mxu0 0
      %341 = vmatpush1.bf16.msra.mxu0 %v319
      %342 = vmatprep.subr.bf16.mxu0 0
      %343 = vmatpush2.bf16.msra.mxu0 0
      %344 = vmatprep.subr.bf16.mxu0 0
      %345 = vmatpush2.bf16.msra.mxu0 0
      %346 = vmatprep.subr.bf16.mxu0 0
      %347 = vmatpush2.bf16.msra.mxu0 0
      %348 = vmatprep.subr.bf16.mxu0 0
      %349 = vmatpush2.bf16.msra.mxu0 0
      %350 = vmatprep.subr.bf16.mxu0 0
      %351 = vmatpush2.bf16.msra.mxu0 0
      %352 = vmatprep.subr.bf16.mxu0 0
      %353 = vmatpush2.bf16.msra.mxu0 0
      %354 = vmatprep.subr.bf16.mxu0 0
      %355 = vmatpush2.bf16.msra.mxu0 0
      %356 = vmatprep.subr.bf16.mxu0 0
      %357 = vmatpush2.bf16.msra.mxu0 0
      %358 = vmatprep.mubr.bf16.mxu0 0
      %359 = vmatmul.mubr.bf16.gmra.mxu0 %v324
      %v360 = vpop.f32.mrf.mxu0
      %v361 = vadd.f32 %v305, %v360
      %v362 = vpop.f32.mrf.mxu0
      %v363 = vpop.f32.mrf.mxu0
      %v364 = vadd.f32 %v308, %v363
      %v365 = vpop.f32.mrf.mxu0
      %366 = vdwg.mxu0
      %v367 = vld [vmem:[%s207 + $0x2] sm:$0xf]
      %v368 = vld [vmem:[%s207 + $0xa] sm:$0xf]
      %v369 = vld [vmem:[%s207 + $0x12] sm:$0xf]
      %v370 = vld [vmem:[%s207 + $0x1a] sm:$0xf]
      %v375 = vcombine.low %v367, %v368
      %v376 = vcombine.low %v369, %v370
      %v379 = vpack.c.bf16 %v376, %v375
      %s380 = scalar_lea.vmem %s1, 32
      %v381 = vld [vmem:[%s380] sm:$0xf]
      %v382 = vld [vmem:[%s380 + $0x4] sm:$0xf]
      %v383 = vld [vmem:[%s380 + $0x8] sm:$0xf]
      %v384 = vld [vmem:[%s380 + $0xc] sm:$0xf]
      %v389 = vunpack.c.l.b16 %v381
      %v390 = vunpack.c.l.b16 %v382
      %v391 = vunpack.c.l.b16 %v383
      %v392 = vunpack.c.l.b16 %v384
      %v393 = vpack.c.b16 %v390, %v389
      %v394 = vpack.c.b16 %v392, %v391
      %v398 = vsel %vm266, %v379, 0
      %400 = vmatprep.subr.bf16.mxu0 0
      %401 = vmatpush1.bf16.msra.mxu0 0
      %402 = vmatprep.subr.bf16.mxu0 0
      %403 = vmatpush1.bf16.msra.mxu0 0
      %404 = vmatprep.subr.bf16.mxu0 0
      %405 = vmatpush1.bf16.msra.mxu0 0
      %406 = vmatprep.subr.bf16.mxu0 0
      %407 = vmatpush1.bf16.msra.mxu0 0
      %408 = vmatprep.subr.bf16.mxu0 0
      %409 = vmatpush1.bf16.msra.mxu0 0
      %410 = vmatprep.subr.bf16.mxu0 0
      %411 = vmatpush1.bf16.msra.mxu0 0
      %412 = vmatprep.subr.bf16.mxu0 0
      %413 = vmatpush1.bf16.msra.mxu0 %v394
      %414 = vmatprep.subr.bf16.mxu0 0
      %415 = vmatpush1.bf16.msra.mxu0 %v393
      %416 = vmatprep.subr.bf16.mxu0 0
      %417 = vmatpush2.bf16.msra.mxu0 0
      %418 = vmatprep.subr.bf16.mxu0 0
      %419 = vmatpush2.bf16.msra.mxu0 0
      %420 = vmatprep.subr.bf16.mxu0 0
      %421 = vmatpush2.bf16.msra.mxu0 0
      %422 = vmatprep.subr.bf16.mxu0 0
      %423 = vmatpush2.bf16.msra.mxu0 0
      %424 = vmatprep.subr.bf16.mxu0 0
      %425 = vmatpush2.bf16.msra.mxu0 0
      %426 = vmatprep.subr.bf16.mxu0 0
      %427 = vmatpush2.bf16.msra.mxu0 0
      %428 = vmatprep.subr.bf16.mxu0 0
      %429 = vmatpush2.bf16.msra.mxu0 0
      %430 = vmatprep.subr.bf16.mxu0 0
      %431 = vmatpush2.bf16.msra.mxu0 0
      %432 = vmatprep.mubr.bf16.mxu0 0
      %433 = vmatmul.mubr.bf16.gmra.mxu0 %v398
      %v434 = vpop.f32.mrf.mxu0
      %v435 = vadd.f32 0.0, %v434
      %v436 = vpop.f32.mrf.mxu0
      %v437 = vpop.f32.mrf.mxu0
      %v438 = vadd.f32 0.0, %v437
      %v439 = vpop.f32.mrf.mxu0
      %440 = vdwg.mxu0
      %v441 = vadd.f32 %v361, %v435
      %v442 = vadd.f32 %v364, %v438
      %s443 = scalar_lea.vmem %s207, 8
      %v444 = vld [vmem:[%s443] sm:$0xf]
      %v445 = vld [vmem:[%s443 + $0x8] sm:$0xf]
      %v446 = vld [vmem:[%s443 + $0x10] sm:$0xf]
      %v447 = vld [vmem:[%s443 + $0x18] sm:$0xf]
      %v452 = vcombine.low %v444, %v445
      %v453 = vcombine.low %v446, %v447
      %v456 = vpack.c.bf16 %v453, %v452
      %s457 = scalar_lea.vmem %s1, 48
      %v458 = vld [vmem:[%s457] sm:$0xf]
      %v459 = vld [vmem:[%s457 + $0x4] sm:$0xf]
      %v460 = vld [vmem:[%s457 + $0x8] sm:$0xf]
      %v461 = vld [vmem:[%s457 + $0xc] sm:$0xf]
      %v466 = vunpack.c.l.b16 %v458
      %v467 = vunpack.c.l.b16 %v459
      %v468 = vunpack.c.l.b16 %v460
      %v469 = vunpack.c.l.b16 %v461
      %v470 = vpack.c.b16 %v467, %v466
      %v471 = vpack.c.b16 %v469, %v468
      %v475 = vsel %vm266, %v456, 0
      %477 = vmatprep.subr.bf16.mxu0 0
      %478 = vmatpush1.bf16.msra.mxu0 0
      %479 = vmatprep.subr.bf16.mxu0 0
      %480 = vmatpush1.bf16.msra.mxu0 0
      %481 = vmatprep.subr.bf16.mxu0 0
      %482 = vmatpush1.bf16.msra.mxu0 0
      %483 = vmatprep.subr.bf16.mxu0 0
      %484 = vmatpush1.bf16.msra.mxu0 0
      %485 = vmatprep.subr.bf16.mxu0 0
      %486 = vmatpush1.bf16.msra.mxu0 0
      %487 = vmatprep.subr.bf16.mxu0 0
      %488 = vmatpush1.bf16.msra.mxu0 0
      %489 = vmatprep.subr.bf16.mxu0 0
      %490 = vmatpush1.bf16.msra.mxu0 %v471
      %491 = vmatprep.subr.bf16.mxu0 0
      %492 = vmatpush1.bf16.msra.mxu0 %v470
      %493 = vmatprep.subr.bf16.mxu0 0
      %494 = vmatpush2.bf16.msra.mxu0 0
      %495 = vmatprep.subr.bf16.mxu0 0
      %496 = vmatpush2.bf16.msra.mxu0 0
      %497 = vmatprep.subr.bf16.mxu0 0
      %498 = vmatpush2.bf16.msra.mxu0 0
      %499 = vmatprep.subr.bf16.mxu0 0
      %500 = vmatpush2.bf16.msra.mxu0 0
      %501 = vmatprep.subr.bf16.mxu0 0
      %502 = vmatpush2.bf16.msra.mxu0 0
      %503 = vmatprep.subr.bf16.mxu0 0
      %504 = vmatpush2.bf16.msra.mxu0 0
      %505 = vmatprep.subr.bf16.mxu0 0
      %506 = vmatpush2.bf16.msra.mxu0 0
      %507 = vmatprep.subr.bf16.mxu0 0
      %508 = vmatpush2.bf16.msra.mxu0 0
      %509 = vmatprep.mubr.bf16.mxu0 0
      %510 = vmatmul.mubr.bf16.gmra.mxu0 %v475
      %v511 = vpop.f32.mrf.mxu0
      %v512 = vadd.f32 0.0, %v511
      %v513 = vpop.f32.mrf.mxu0
      %v514 = vpop.f32.mrf.mxu0
      %v515 = vadd.f32 0.0, %v514
      %v516 = vpop.f32.mrf.mxu0
      %517 = vdwg.mxu0
      %v518 = vadd.f32 %v441, %v512
      %v519 = vadd.f32 %v442, %v515
      %v520 = vld [vmem:[%s443 + $0x1] sm:$0xf]
      %v521 = vld [vmem:[%s443 + $0x9] sm:$0xf]
      %v522 = vld [vmem:[%s443 + $0x11] sm:$0xf]
      %v523 = vld [vmem:[%s443 + $0x19] sm:$0xf]
      %v528 = vcombine.low %v520, %v521
      %v529 = vcombine.low %v522, %v523
      %v532 = vpack.c.bf16 %v529, %v528
      %s533 = scalar_lea.vmem %s1, 64
      %v534 = vld [vmem:[%s533] sm:$0xf]
      %v535 = vld [vmem:[%s533 + $0x4] sm:$0xf]
      %v536 = vld [vmem:[%s533 + $0x8] sm:$0xf]
      %v537 = vld [vmem:[%s533 + $0xc] sm:$0xf]
      %v542 = vunpack.c.l.b16 %v534
      %v543 = vunpack.c.l.b16 %v535
      %v544 = vunpack.c.l.b16 %v536
      %v545 = vunpack.c.l.b16 %v537
      %v546 = vpack.c.b16 %v543, %v542
      %v547 = vpack.c.b16 %v545, %v544
      %v551 = vsel %vm266, %v532, 0
      %553 = vmatprep.subr.bf16.mxu0 0
      %554 = vmatpush1.bf16.msra.mxu0 0
      %555 = vmatprep.subr.bf16.mxu0 0
      %556 = vmatpush1.bf16.msra.mxu0 0
      %557 = vmatprep.subr.bf16.mxu0 0
      %558 = vmatpush1.bf16.msra.mxu0 0
      %559 = vmatprep.subr.bf16.mxu0 0
      %560 = vmatpush1.bf16.msra.mxu0 0
      %561 = vmatprep.subr.bf16.mxu0 0
      %562 = vmatpush1.bf16.msra.mxu0 0
      %563 = vmatprep.subr.bf16.mxu0 0
      %564 = vmatpush1.bf16.msra.mxu0 0
      %565 = vmatprep.subr.bf16.mxu0 0
      %566 = vmatpush1.bf16.msra.mxu0 %v547
      %567 = vmatprep.subr.bf16.mxu0 0
      %568 = vmatpush1.bf16.msra.mxu0 %v546
      %569 = vmatprep.subr.bf16.mxu0 0
      %570 = vmatpush2.bf16.msra.mxu0 0
      %571 = vmatprep.subr.bf16.mxu0 0
      %572 = vmatpush2.bf16.msra.mxu0 0
      %573 = vmatprep.subr.bf16.mxu0 0
      %574 = vmatpush2.bf16.msra.mxu0 0
      %575 = vmatprep.subr.bf16.mxu0 0
      %576 = vmatpush2.bf16.msra.mxu0 0
      %577 = vmatprep.subr.bf16.mxu0 0
      %578 = vmatpush2.bf16.msra.mxu0 0
      %579 = vmatprep.subr.bf16.mxu0 0
      %580 = vmatpush2.bf16.msra.mxu0 0
      %581 = vmatprep.subr.bf16.mxu0 0
      %582 = vmatpush2.bf16.msra.mxu0 0
      %583 = vmatprep.subr.bf16.mxu0 0
      %584 = vmatpush2.bf16.msra.mxu0 0
      %585 = vmatprep.mubr.bf16.mxu0 0
      %586 = vmatmul.mubr.bf16.gmra.mxu0 %v551
      %v587 = vpop.f32.mrf.mxu0
      %v588 = vadd.f32 0.0, %v587
      %v589 = vpop.f32.mrf.mxu0
      %v590 = vpop.f32.mrf.mxu0
      %v591 = vadd.f32 0.0, %v590
      %v592 = vpop.f32.mrf.mxu0
      %593 = vdwg.mxu0
      %v594 = vadd.f32 %v518, %v588
      %v595 = vadd.f32 %v519, %v591
      %v596 = vld [vmem:[%s443 + $0x2] sm:$0xf]
      %v597 = vld [vmem:[%s443 + $0xa] sm:$0xf]
      %v598 = vld [vmem:[%s443 + $0x12] sm:$0xf]
      %v599 = vld [vmem:[%s443 + $0x1a] sm:$0xf]
      %v604 = vcombine.low %v596, %v597
      %v605 = vcombine.low %v598, %v599
      %v608 = vpack.c.bf16 %v605, %v604
      %s609 = scalar_lea.vmem %s1, 80
      %v610 = vld [vmem:[%s609] sm:$0xf]
      %v611 = vld [vmem:[%s609 + $0x4] sm:$0xf]
      %v612 = vld [vmem:[%s609 + $0x8] sm:$0xf]
      %v613 = vld [vmem:[%s609 + $0xc] sm:$0xf]
      %v618 = vunpack.c.l.b16 %v610
      %v619 = vunpack.c.l.b16 %v611
      %v620 = vunpack.c.l.b16 %v612
      %v621 = vunpack.c.l.b16 %v613
      %v622 = vpack.c.b16 %v619, %v618
      %v623 = vpack.c.b16 %v621, %v620
      %v627 = vsel %vm266, %v608, 0
      %629 = vmatprep.subr.bf16.mxu0 0
      %630 = vmatpush1.bf16.msra.mxu0 0
      %631 = vmatprep.subr.bf16.mxu0 0
      %632 = vmatpush1.bf16.msra.mxu0 0
      %633 = vmatprep.subr.bf16.mxu0 0
      %634 = vmatpush1.bf16.msra.mxu0 0
      %635 = vmatprep.subr.bf16.mxu0 0
      %636 = vmatpush1.bf16.msra.mxu0 0
      %637 = vmatprep.subr.bf16.mxu0 0
      %638 = vmatpush1.bf16.msra.mxu0 0
      %639 = vmatprep.subr.bf16.mxu0 0
      %640 = vmatpush1.bf16.msra.mxu0 0
      %641 = vmatprep.subr.bf16.mxu0 0
      %642 = vmatpush1.bf16.msra.mxu0 %v623
      %643 = vmatprep.subr.bf16.mxu0 0
      %644 = vmatpush1.bf16.msra.mxu0 %v622
      %645 = vmatprep.subr.bf16.mxu0 0
      %646 = vmatpush2.bf16.msra.mxu0 0
      %647 = vmatprep.subr.bf16.mxu0 0
      %648 = vmatpush2.bf16.msra.mxu0 0
      %649 = vmatprep.subr.bf16.mxu0 0
      %650 = vmatpush2.bf16.msra.mxu0 0
      %651 = vmatprep.subr.bf16.mxu0 0
      %652 = vmatpush2.bf16.msra.mxu0 0
      %653 = vmatprep.subr.bf16.mxu0 0
      %654 = vmatpush2.bf16.msra.mxu0 0
      %655 = vmatprep.subr.bf16.mxu0 0
      %656 = vmatpush2.bf16.msra.mxu0 0
      %657 = vmatprep.subr.bf16.mxu0 0
      %658 = vmatpush2.bf16.msra.mxu0 0
      %659 = vmatprep.subr.bf16.mxu0 0
      %660 = vmatpush2.bf16.msra.mxu0 0
      %661 = vmatprep.mubr.bf16.mxu0 0
      %662 = vmatmul.mubr.bf16.gmra.mxu0 %v627
      %v663 = vpop.f32.mrf.mxu0
      %v664 = vadd.f32 0.0, %v663
      %v665 = vpop.f32.mrf.mxu0
      %v666 = vpop.f32.mrf.mxu0
      %v667 = vadd.f32 0.0, %v666
      %v668 = vpop.f32.mrf.mxu0
      %669 = vdwg.mxu0
      %v670 = vadd.f32 %v594, %v664
      %v671 = vadd.f32 %v595, %v667
      %s672 = scalar_lea.vmem %s207, 16
      %v673 = vld [vmem:[%s672] sm:$0xf]
      %v674 = vld [vmem:[%s672 + $0x8] sm:$0xf]
      %v675 = vld [vmem:[%s672 + $0x10] sm:$0xf]
      %v676 = vld [vmem:[%s672 + $0x18] sm:$0xf]
      %v681 = vcombine.low %v673, %v674
      %v682 = vcombine.low %v675, %v676
      %v685 = vpack.c.bf16 %v682, %v681
      %s686 = scalar_lea.vmem %s1, 96
      %v687 = vld [vmem:[%s686] sm:$0xf]
      %v688 = vld [vmem:[%s686 + $0x4] sm:$0xf]
      %v689 = vld [vmem:[%s686 + $0x8] sm:$0xf]
      %v690 = vld [vmem:[%s686 + $0xc] sm:$0xf]
      %v695 = vunpack.c.l.b16 %v687
      %v696 = vunpack.c.l.b16 %v688
      %v697 = vunpack.c.l.b16 %v689
      %v698 = vunpack.c.l.b16 %v690
      %v699 = vpack.c.b16 %v696, %v695
      %v700 = vpack.c.b16 %v698, %v697
      %v704 = vsel %vm266, %v685, 0
      %706 = vmatprep.subr.bf16.mxu0 0
      %707 = vmatpush1.bf16.msra.mxu0 0
      %708 = vmatprep.subr.bf16.mxu0 0
      %709 = vmatpush1.bf16.msra.mxu0 0
      %710 = vmatprep.subr.bf16.mxu0 0
      %711 = vmatpush1.bf16.msra.mxu0 0
      %712 = vmatprep.subr.bf16.mxu0 0
      %713 = vmatpush1.bf16.msra.mxu0 0
      %714 = vmatprep.subr.bf16.mxu0 0
      %715 = vmatpush1.bf16.msra.mxu0 0
      %716 = vmatprep.subr.bf16.mxu0 0
      %717 = vmatpush1.bf16.msra.mxu0 0
      %718 = vmatprep.subr.bf16.mxu0 0
      %719 = vmatpush1.bf16.msra.mxu0 %v700
      %720 = vmatprep.subr.bf16.mxu0 0
      %721 = vmatpush1.bf16.msra.mxu0 %v699
      %722 = vmatprep.subr.bf16.mxu0 0
      %723 = vmatpush2.bf16.msra.mxu0 0
      %724 = vmatprep.subr.bf16.mxu0 0
      %725 = vmatpush2.bf16.msra.mxu0 0
      %726 = vmatprep.subr.bf16.mxu0 0
      %727 = vmatpush2.bf16.msra.mxu0 0
      %728 = vmatprep.subr.bf16.mxu0 0
      %729 = vmatpush2.bf16.msra.mxu0 0
      %730 = vmatprep.subr.bf16.mxu0 0
      %731 = vmatpush2.bf16.msra.mxu0 0
      %732 = vmatprep.subr.bf16.mxu0 0
      %733 = vmatpush2.bf16.msra.mxu0 0
      %734 = vmatprep.subr.bf16.mxu0 0
      %735 = vmatpush2.bf16.msra.mxu0 0
      %736 = vmatprep.subr.bf16.mxu0 0
      %737 = vmatpush2.bf16.msra.mxu0 0
      %738 = vmatprep.mubr.bf16.mxu0 0
      %739 = vmatmul.mubr.bf16.gmra.mxu0 %v704
      %v740 = vpop.f32.mrf.mxu0
      %v741 = vadd.f32 0.0, %v740
      %v742 = vpop.f32.mrf.mxu0
      %v743 = vpop.f32.mrf.mxu0
      %v744 = vadd.f32 0.0, %v743
      %v745 = vpop.f32.mrf.mxu0
      %746 = vdwg.mxu0
      %v747 = vadd.f32 %v670, %v741
      %v748 = vadd.f32 %v671, %v744
      %v749 = vld [vmem:[%s672 + $0x1] sm:$0xf]
      %v750 = vld [vmem:[%s672 + $0x9] sm:$0xf]
      %v751 = vld [vmem:[%s672 + $0x11] sm:$0xf]
      %v752 = vld [vmem:[%s672 + $0x19] sm:$0xf]
      %v757 = vcombine.low %v749, %v750
      %v758 = vcombine.low %v751, %v752
      %v761 = vpack.c.bf16 %v758, %v757
      %s762 = scalar_lea.vmem %s1, 112
      %v763 = vld [vmem:[%s762] sm:$0xf]
      %v764 = vld [vmem:[%s762 + $0x4] sm:$0xf]
      %v765 = vld [vmem:[%s762 + $0x8] sm:$0xf]
      %v766 = vld [vmem:[%s762 + $0xc] sm:$0xf]
      %v771 = vunpack.c.l.b16 %v763
      %v772 = vunpack.c.l.b16 %v764
      %v773 = vunpack.c.l.b16 %v765
      %v774 = vunpack.c.l.b16 %v766
      %v775 = vpack.c.b16 %v772, %v771
      %v776 = vpack.c.b16 %v774, %v773
      %v780 = vsel %vm266, %v761, 0
      %782 = vmatprep.subr.bf16.mxu0 0
      %783 = vmatpush1.bf16.msra.mxu0 0
      %784 = vmatprep.subr.bf16.mxu0 0
      %785 = vmatpush1.bf16.msra.mxu0 0
      %786 = vmatprep.subr.bf16.mxu0 0
      %787 = vmatpush1.bf16.msra.mxu0 0
      %788 = vmatprep.subr.bf16.mxu0 0
      %789 = vmatpush1.bf16.msra.mxu0 0
      %790 = vmatprep.subr.bf16.mxu0 0
      %791 = vmatpush1.bf16.msra.mxu0 0
      %792 = vmatprep.subr.bf16.mxu0 0
      %793 = vmatpush1.bf16.msra.mxu0 0
      %794 = vmatprep.subr.bf16.mxu0 0
      %795 = vmatpush1.bf16.msra.mxu0 %v776
      %796 = vmatprep.subr.bf16.mxu0 0
      %797 = vmatpush1.bf16.msra.mxu0 %v775
      %798 = vmatprep.subr.bf16.mxu0 0
      %799 = vmatpush2.bf16.msra.mxu0 0
      %800 = vmatprep.subr.bf16.mxu0 0
      %801 = vmatpush2.bf16.msra.mxu0 0
      %802 = vmatprep.subr.bf16.mxu0 0
      %803 = vmatpush2.bf16.msra.mxu0 0
      %804 = vmatprep.subr.bf16.mxu0 0
      %805 = vmatpush2.bf16.msra.mxu0 0
      %806 = vmatprep.subr.bf16.mxu0 0
      %807 = vmatpush2.bf16.msra.mxu0 0
      %808 = vmatprep.subr.bf16.mxu0 0
      %809 = vmatpush2.bf16.msra.mxu0 0
      %810 = vmatprep.subr.bf16.mxu0 0
      %811 = vmatpush2.bf16.msra.mxu0 0
      %812 = vmatprep.subr.bf16.mxu0 0
      %813 = vmatpush2.bf16.msra.mxu0 0
      %814 = vmatprep.mubr.bf16.mxu0 0
      %815 = vmatmul.mubr.bf16.gmra.mxu0 %v780
      %v816 = vpop.f32.mrf.mxu0
      %v817 = vadd.f32 0.0, %v816
      %v818 = vpop.f32.mrf.mxu0
      %v819 = vpop.f32.mrf.mxu0
      %v820 = vadd.f32 0.0, %v819
      %v821 = vpop.f32.mrf.mxu0
      %822 = vdwg.mxu0
      %v823 = vadd.f32 %v747, %v817
      %v824 = vadd.f32 %v748, %v820
      %v825 = vld [vmem:[%s672 + $0x2] sm:$0xf]
      %v826 = vld [vmem:[%s672 + $0xa] sm:$0xf]
      %v827 = vld [vmem:[%s672 + $0x12] sm:$0xf]
      %v828 = vld [vmem:[%s672 + $0x1a] sm:$0xf]
      %v833 = vcombine.low %v825, %v826
      %v834 = vcombine.low %v827, %v828
      %v837 = vpack.c.bf16 %v834, %v833
      %s838 = scalar_lea.vmem %s1, 128
      %v839 = vld [vmem:[%s838] sm:$0xf]
      %v840 = vld [vmem:[%s838 + $0x4] sm:$0xf]
      %v841 = vld [vmem:[%s838 + $0x8] sm:$0xf]
      %v842 = vld [vmem:[%s838 + $0xc] sm:$0xf]
      %v847 = vunpack.c.l.b16 %v839
      %v848 = vunpack.c.l.b16 %v840
      %v849 = vunpack.c.l.b16 %v841
      %v850 = vunpack.c.l.b16 %v842
      %v851 = vpack.c.b16 %v848, %v847
      %v852 = vpack.c.b16 %v850, %v849
      %v856 = vsel %vm266, %v837, 0
      %858 = vmatprep.subr.bf16.mxu0 0
      %859 = vmatpush1.bf16.msra.mxu0 0
      %860 = vmatprep.subr.bf16.mxu0 0
      %861 = vmatpush1.bf16.msra.mxu0 0
      %862 = vmatprep.subr.bf16.mxu0 0
      %863 = vmatpush1.bf16.msra.mxu0 0
      %864 = vmatprep.subr.bf16.mxu0 0
      %865 = vmatpush1.bf16.msra.mxu0 0
      %866 = vmatprep.subr.bf16.mxu0 0
      %867 = vmatpush1.bf16.msra.mxu0 0
      %868 = vmatprep.subr.bf16.mxu0 0
      %869 = vmatpush1.bf16.msra.mxu0 0
      %870 = vmatprep.subr.bf16.mxu0 0
      %871 = vmatpush1.bf16.msra.mxu0 %v852
      %872 = vmatprep.subr.bf16.mxu0 0
      %873 = vmatpush1.bf16.msra.mxu0 %v851
      %874 = vmatprep.subr.bf16.mxu0 0
      %875 = vmatpush2.bf16.msra.mxu0 0
      %876 = vmatprep.subr.bf16.mxu0 0
      %877 = vmatpush2.bf16.msra.mxu0 0
      %878 = vmatprep.subr.bf16.mxu0 0
      %879 = vmatpush2.bf16.msra.mxu0 0
      %880 = vmatprep.subr.bf16.mxu0 0
      %881 = vmatpush2.bf16.msra.mxu0 0
      %882 = vmatprep.subr.bf16.mxu0 0
      %883 = vmatpush2.bf16.msra.mxu0 0
      %884 = vmatprep.subr.bf16.mxu0 0
      %885 = vmatpush2.bf16.msra.mxu0 0
      %886 = vmatprep.subr.bf16.mxu0 0
      %887 = vmatpush2.bf16.msra.mxu0 0
      %888 = vmatprep.subr.bf16.mxu0 0
      %889 = vmatpush2.bf16.msra.mxu0 0
      %890 = vmatprep.mubr.bf16.mxu0 0
      %891 = vmatmul.mubr.bf16.gmra.mxu0 %v856
      %v892 = vpop.f32.mrf.mxu0
      %v893 = vadd.f32 0.0, %v892
      %v894 = vpop.f32.mrf.mxu0
      %v895 = vpop.f32.mrf.mxu0
      %v896 = vadd.f32 0.0, %v895
      %v897 = vpop.f32.mrf.mxu0
      %898 = vdwg.mxu0
      %v899 = vadd.f32 %v823, %v893
      %v900 = vadd.f32 %v824, %v896
      %v901 = vld [vmem:[%s2] sm:$0x1]
      %v903 = vlaneseq
      %v904 = vshrl.u32 %v903, 7
      %v905 = vsub.s32 0, %v904
      %v906 = vrot.slane %v901, %v905
      %v908 = vadd.f32 %v899, %v906
      %v909 = vadd.f32 %v900, %v906
      %v910 = vld [vmem:[%s212] sm:$0xff]
      %v911 = vld [vmem:[%s212 + $0x8] sm:$0xff]
      %v912 = vadd.f32 %v908, %v910
      %v913 = vadd.f32 %v909, %v911
      %914 = vst.msk [vmem:[%s217] sm:$0xff] %vm266, %v912
      %915 = vst.msk [vmem:[%s217 + $0x8] sm:$0xff] %vm266, %v913
      %p916 = scmp.lt.s32.totalorder %s15, 1
      %s917 = scalar_select %p916, %s15, 1
      %s918 = smul.addr %s917, 2
      %s919 = smul.addr %s918, 8
      %s920 = scalar_lea.vmem %s4, %s919
      // Predicated region
      $region37: #{encoder_forward.14} parent=35 // pred_check
        %p921 = pneg %p127
      $region38: #{encoder_forward.14} parent=35 // pred_check_branch
        %923 = sbr.rel (%p921) target = $region40
      $region39: #{encoder_forward.14} parent=35 // pred_region
        _
      $region40: #{encoder_forward.14} parent=35 // pred_fallthru
        _
    $region36: #{encoder_forward.14} parent=5 // pred_fallthru
      _
    %p924 = scmp.le.s32.totalorder 2, %s10
    // Predicated region
    $region41: #{encoder_forward.14} parent=5 // pred_check
      %p925 = pneg %p924
    $region42: #{encoder_forward.14} parent=5 // pred_check_branch
      %927 = sbr.rel (%p925) target = $region44
    $region43: #{encoder_forward.14} parent=5 // pred_region
      %s928 = ssub.s32 %s10, 2
      // Predicated region
      $region45: #{encoder_forward.14} parent=43 // pred_check
        %p929 = pneg %p133
      $region46: #{encoder_forward.14} parent=43 // pred_check_branch
        %931 = sbr.rel (%p929) target = $region48
      $region47: #{encoder_forward.14} parent=43 // pred_region
        %p932 = scmp.lt.s32.totalorder %s16, 1
        %s933 = scalar_select %p932, %s16, 1
        %s934 = smul.addr %s933, 2
        %s935 = smul.addr %s934, 8
        %s936 = scalar_lea.vmem %s4, %s935
      $region48: #{encoder_forward.14} parent=43 // pred_fallthru
        _
    $region44: #{encoder_forward.14} parent=5 // pred_fallthru
      _
  $region6: #{encoder_forward.14} parent=0 // loop_footer
    %s14 = sadd.s32 1, %s10
  $region7: #{encoder_forward.14} parent=0 // loop_footer_branch
    %9 = sbr.rel target = $region3
  $region8: #{encoder_forward.14} parent=0 // loop_exit
    _

</llo_original>
